<compile_context>
chip_gen: v7x
topology: tpu7x:2x2x1
jax: 0.10.0
libtpu: 0.0.40
codegen_flags: <defaults>
</compile_context>

<pallas_src>
import functools
import math

import jax
import jax.numpy as jnp
from jax.experimental import pallas as pl
from jax.experimental.pallas import tpu as pltpu

KS = (3, 4, 4, 5)        # conv_layer1..4 kernel sizes over the sequence axis
NFM = 150                # feature maps per conv (nfms)
KMAX = max(KS)           # 5
NF = len(KS) * NFM       # 600 concatenated pooled features

_VMEM_LIMIT = 48 * 1024 * 1024      # requested scoped VMEM (< v7x's 64 MiB physical)
_VMEM_SOFT_CAP = 36 * 1024 * 1024   # target per-step footprint incl. temporaries
_NEG = -1e30                        # additive mask for invalid positions/features


def _round_up(x, m):
    return (x + m - 1) // m * m


def _cdiv(a, b):
    return -(-a // b)


def text_cnn1d_kernel(emb_ref, wc_ref, madd_ref, fw_ref, fb_ref, out_ref, acc_ref,
                      *, kmax, t_out):
    bt = emb_ref.shape[0]
    c_pad = emb_ref.shape[2]            # padded channel dim (multiple of 128)
    nf = wc_ref.shape[1]                # padded 4*NFM (640)

    # Per-tap accumulation instead of materializing the im2col LHS: each tap dh is
    # one (bt*T, C) @ (C, NF) bf16 MXU matmul accumulated into the f32 scratch.
    def tap(dh):
        lhs = emb_ref[:, pl.ds(dh, t_out), :].reshape(bt * t_out, c_pad)
        return jnp.dot(lhs, wc_ref[pl.ds(dh * c_pad, c_pad), :],
                       preferred_element_type=jnp.float32)

    acc_ref[...] = tap(0)               # first tap writes (no zero-init pass)
    for dh in range(1, kmax):           # static unroll (kmax == 5)
        acc_ref[...] += tap(dh)

    # Fused additive bias + validity mask (valid -> bias, invalid -> -1e30), applied
    # BEFORE the ReLU so invalid positions/features clamp to exactly 0 for the max.
    act = jnp.maximum(acc_ref[...].reshape(bt, t_out, nf) + madd_ref[...], 0.0)
    pooled = jnp.max(act, axis=1)       # (bt, NF_pad) f32

    # TODO(synk): Dropout(0.1) / Dropout2d(0.4) are identity in eval mode; omitted.
    out_ref[...] = (jnp.dot(pooled, fw_ref[...], preferred_element_type=jnp.float32)
                    + fb_ref[...])      # (bt, CLS_pad) lane-dense


def _vmem_bytes(bt, t_out, l_pad, c_pad, nf_pad, cls_pad):
    emb = 2 * bt * l_pad * c_pad * 2                 # double-buffered bf16 batch tile
    wc = KMAX * c_pad * nf_pad * 2                   # fused conv weight (single-buffered)
    madd = t_out * nf_pad * 4                        # additive bias/mask
    fc = nf_pad * cls_pad * 4 + cls_pad * 4          # fc weight + bias
    acc = bt * t_out * nf_pad * 4                    # f32 accumulator scratch
    temps = bt * t_out * c_pad * 2 + bt * t_out * nf_pad * 4   # per-tap lhs + masked act
    out = 2 * bt * cls_pad * 4                       # double-buffered output tile
    return emb + wc + madd + fc + acc + temps + out


def _pick_bt(B, block_b, t_out, bytes_fn):
    """Batch-tile size: multiple of 8; >= 2 grid steps when the batch allows it
    (v7x shards the 'parallel' axis across its 2 TensorCores); bt*t_out a multiple
    of 256 when that adds no extra padded steps (256-wide MXU on v6e/v7x); shrunk
    until the per-step VMEM footprint (incl. in-kernel temporaries) fits."""
    b8 = _round_up(max(B, 1), 8)
    cap = _round_up(max(block_b, 8), 8)
    if b8 <= 8:
        bt = 8
    else:
        n_steps = max(2, _cdiv(b8, cap))
        bt = min(cap, max(8, _round_up(_cdiv(b8, n_steps), 8)))
        align = math.lcm(8, 256 // math.gcd(256, t_out))
        if 2 * _round_up(bt, align) <= b8:
            bt = _round_up(bt, align)
    while bt > 8 and bytes_fn(bt) > _VMEM_SOFT_CAP:
        bt = max(8, _round_up(bt // 2, 8))
    return bt


def experiment12_forward(x, params, block_b=64):
    """x: (B, L) int32 token ids. Returns (B, num_classes) float32 logits."""
    emb_s = params["emb_static"]
    emb_ns = params["emb_nonstatic"]
    H = emb_s.shape[1]
    B, L = x.shape
    assert L >= KMAX, "sequence length must be >= max kernel size (5)"
    num_classes = params["fc_b"].shape[0]

    # Channel folding: right after __init__ both embedding channels are the same
    # pre-trained table (static frozen, non-static trainable). When they are the
    # same object, conv([e; e]) == conv'(e) with the two channel halves of each
    # conv weight summed -> half the embedding DMA and half the MXU contraction.
    fold = emb_ns is emb_s
    if fold:
        emb_in = emb_s[x].astype(jnp.bfloat16)                      # (B, L, H)
        c_dim = H
    else:
        emb_in = jnp.concatenate([emb_s[x].astype(jnp.bfloat16),
                                  emb_ns[x].astype(jnp.bfloat16)], axis=-1)
        c_dim = 2 * H

    c_pad = _round_up(c_dim, 128)           # lane-align per-position feature vector
    nf_pad = _round_up(NF, 128)             # 600 -> 640
    cls_pad = _round_up(num_classes, 128)
    t_out = _round_up(L, 8)                 # conv positions computed (tail masked)
    l_pad = _round_up(t_out + KMAX - 1, 8)  # sublane-aligned sequence tile

    bytes_fn = lambda b: _vmem_bytes(b, t_out, l_pad, c_pad, nf_pad, cls_pad)
    bt = _pick_bt(B, block_b, t_out, bytes_fn)
    b_pad = _round_up(max(B, 1), bt)

    # bf16 pad in glue: no extra f32 materialization of the (only) batch-sized input.
    emb_p = jnp.pad(emb_in, ((0, b_pad - B), (0, l_pad - L), (0, c_pad - c_dim)))

    # Fused conv weight: tap dh of every conv lives at rows [dh*c_pad, dh*c_pad+c_dim);
    # unused taps (dh >= k) stay zero so they contribute nothing. Bias + validity mask
    # fused into one additive tensor (valid -> bias, invalid -> -1e30, applied pre-ReLU).
    w_big = jnp.zeros((KMAX * c_pad, nf_pad), jnp.float32)
    madd = jnp.full((1, t_out, nf_pad), _NEG, jnp.float32)
    for i, k in enumerate(KS):
        w = params[f"conv_w{i + 1}"]                         # torch Conv1d layout (NFM, 2H, k)
        if fold:
            w = w[:, :H, :] + w[:, H:, :]                    # (NFM, H, k)
        wt = jnp.transpose(w, (2, 1, 0))                     # (k, c_dim, NFM)
        for dh in range(k):
            w_big = w_big.at[dh * c_pad:dh * c_pad + c_dim,
                             i * NFM:(i + 1) * NFM].set(wt[dh])
        madd = madd.at[0, :L - k + 1, i * NFM:(i + 1) * NFM].set(
            params[f"conv_b{i + 1}"][None, :])
    w_big = w_big.astype(jnp.bfloat16)

    # fc, zero-padded to lane-dense shapes (kept f32: negligible FLOPs).
    fc_w = jnp.pad(params["fc_w"], ((0, nf_pad - NF), (0, cls_pad - num_classes)))
    fc_b = jnp.pad(params["fc_b"], (0, cls_pad - num_classes))[None, :]

    kernel = functools.partial(text_cnn1d_kernel, kmax=KMAX, t_out=t_out)

    def run(single_buffer_weights):
        const_kw = ({"pipeline_mode": pl.Buffered(1)}
                    if single_buffer_weights else {})
        return pl.pallas_call(
            kernel,
            out_shape=jax.ShapeDtypeStruct((b_pad, cls_pad), jnp.float32),
            grid=(b_pad // bt,),
            in_specs=[
                pl.BlockSpec((bt, l_pad, c_pad), lambda b: (b, 0, 0)),
                pl.BlockSpec((KMAX * c_pad, nf_pad), lambda b: (0, 0), **const_kw),
                pl.BlockSpec((1, t_out, nf_pad), lambda b: (0, 0, 0), **const_kw),
                pl.BlockSpec((nf_pad, cls_pad), lambda b: (0, 0), **const_kw),
                pl.BlockSpec((1, cls_pad), lambda b: (0, 0), **const_kw),
            ],
            out_specs=pl.BlockSpec((bt, cls_pad), lambda b: (b, 0)),
            scratch_shapes=[pltpu.VMEM((bt * t_out, nf_pad), jnp.float32)],
            compiler_params=pltpu.CompilerParams(
                dimension_semantics=("parallel",),          # batch blocks independent
                vmem_limit_bytes=_VMEM_LIMIT),
        )(emb_p, w_big, madd, fc_w, fc_b)

    try:
        # Grid-invariant weights/bias-mask single-buffered: halves their VMEM cost
        # (matters on v7x's 64 MiB) without touching the pipelined batch tile.
        out = run(single_buffer_weights=True)
    except Exception:
        # pl.Buffered(1) unsupported on this JAX build -> default double-buffering.
        out = run(single_buffer_weights=False)
    return out[:B, :num_classes]


def reference_forward(x, params):
    """Pure-JAX reference mirroring the PyTorch forward in eval mode.

    Conv/embedding operands are rounded to bf16 (as fed to the kernel's MXU);
    accumulation stays f32, so the comparison is tight.
    """
    static = params["emb_static"][x]
    nonstat = params["emb_nonstatic"][x]
    feat = jnp.concatenate([static, nonstat], axis=-1)      # (B, L, 2H)
    featb = feat.astype(jnp.bfloat16).astype(jnp.float32)
    B, L, _ = feat.shape
    pools = []
    for i, k in enumerate(KS):
        w = params[f"conv_w{i + 1}"].astype(jnp.bfloat16).astype(jnp.float32)
        b = params[f"conv_b{i + 1}"]
        T = L - k + 1
        out = jnp.zeros((B, T, NFM), jnp.float32)
        for dh in range(k):
            out = out + jnp.einsum("btc,oc->bto", featb[:, dh:dh + T, :], w[:, :, dh],
                                   precision=jax.lax.Precision.HIGHEST)
        out = jnp.maximum(out + b[None, None, :], 0.0)
        pools.append(jnp.max(out, axis=1))                  # (B, NFM)
    feat_cat = jnp.concatenate(pools, axis=-1)              # (B, 600)
    return (jnp.dot(feat_cat, params["fc_w"], precision=jax.lax.Precision.HIGHEST)
            + params["fc_b"][None, :])


def make_params(key, vocab_size, hidden_dim, num_classes):
    keys = jax.random.split(key, 11)
    pre_trained = 0.1 * jax.random.normal(keys[0], (vocab_size, hidden_dim), jnp.float32)
    params = {
        # Both embedding channels start from the same pre-trained table
        # (static frozen, non-static trainable; identical right after __init__).
        "emb_static": pre_trained,
        "emb_nonstatic": pre_trained,
        "fc_w": 0.1 * jax.random.normal(keys[1], (NF, num_classes), jnp.float32),
        "fc_b": 0.1 * jax.random.normal(keys[2], (num_classes,), jnp.float32),
    }
    for i, k in enumerate(KS):
        params[f"conv_w{i + 1}"] = 0.1 * jax.random.normal(
            keys[3 + 2 * i], (NFM, 2 * hidden_dim, k), jnp.float32)   # torch Conv1d layout
        params[f"conv_b{i + 1}"] = 0.1 * jax.random.normal(
            keys[4 + 2 * i], (NFM,), jnp.float32)
    return params


if __name__ == "__main__":
    B, L = 2, 8                          # batch, sequence length (>= 5 for the k=5 conv)
    VOCAB, HIDDEN, NUM_CLASSES = 50, 32, 4

    key = jax.random.PRNGKey(0)
    pkey, xkey = jax.random.split(key)
    params = make_params(pkey, VOCAB, HIDDEN, NUM_CLASSES)
    x = jax.random.randint(xkey, (B, L), 0, VOCAB, dtype=jnp.int32)

    out = jax.block_until_ready(experiment12_forward(x, params))
    ref = jax.block_until_ready(reference_forward(x, params))

    assert out.shape == (B, NUM_CLASSES)
    if not jnp.allclose(out, ref, atol=1e-2, rtol=1e-2):
        max_err = float(jnp.max(jnp.abs(out - ref)))
        raise AssertionError(f"Pallas kernel output mismatch, max abs err = {max_err}")

    print("KERNEL_OK")
</pallas_src>

<mosaic_0001>
module attributes {stable_mosaic.version = 11 : i64} {
  func.func @text_cnn1d_kernel(%arg0: i32, %arg1: memref<8x16x128xbf16, #tpu.memory_space<vmem>>, %arg2: memref<640x640xbf16, #tpu.memory_space<vmem>>, %arg3: memref<1x8x640xf32, #tpu.memory_space<vmem>>, %arg4: memref<640x128xf32, #tpu.memory_space<vmem>>, %arg5: memref<1x128xf32, #tpu.memory_space<vmem>>, %arg6: memref<8x128xf32, #tpu.memory_space<vmem>>, %arg7: memref<64x640xf32, #tpu.memory_space<vmem>>) attributes {dimension_semantics = [#tpu.dimension_semantics<parallel>], iteration_bounds = array<i64: 1>, scalar_prefetch = 0 : i64, scratch_operands = 1 : i64, tpu.core_type = #tpu.core_type<tc>, window_params = [{transform_indices = @transform_0, window_bounds = array<i64: 8, 16, 128>}, {pipeline_mode = #tpu.pipeline_mode<synchronous>, transform_indices = @transform_1, window_bounds = array<i64: 640, 640>}, {pipeline_mode = #tpu.pipeline_mode<synchronous>, transform_indices = @transform_2, window_bounds = array<i64: 1, 8, 640>}, {pipeline_mode = #tpu.pipeline_mode<synchronous>, transform_indices = @transform_3, window_bounds = array<i64: 640, 128>}, {pipeline_mode = #tpu.pipeline_mode<synchronous>, transform_indices = @transform_4, window_bounds = array<i64: 1, 128>}, {transform_indices = @transform_5, window_bounds = array<i64: 8, 128>}]} {
    %c0 = arith.constant 0 : index
    %c0_0 = arith.constant 0 : index
    %c0_1 = arith.constant 0 : index
    %0 = vector.load %arg1[%c0, %c0_0, %c0_1] : memref<8x16x128xbf16, #tpu.memory_space<vmem>>, vector<8x8x128xbf16>
    %1 = vector.shape_cast %0 : vector<8x8x128xbf16> to vector<64x128xbf16>
    %c0_2 = arith.constant 0 : index
    %c0_3 = arith.constant 0 : index
    %2 = vector.load %arg2[%c0_2, %c0_3] : memref<640x640xbf16, #tpu.memory_space<vmem>>, vector<128x640xbf16>
    %cst = arith.constant dense<0.000000e+00> : vector<64x640xf32>
    %3 = tpu.matmul %1, %2, %cst {dimension_numbers = #tpu.dot_dimension_numbers<[1], [0], [0], [1], [0, 0, 1, 1], [], []>} : vector<64x128xbf16>, vector<128x640xbf16>, vector<64x640xf32> -> vector<64x640xf32>
    %c0_4 = arith.constant 0 : index
    %c0_5 = arith.constant 0 : index
    %4 = vector.load %arg7[%c0_4, %c0_5] : memref<64x640xf32, #tpu.memory_space<vmem>>, vector<64x640xf32>
    tpu.vector_store %arg7[%c0_4, %c0_5], %3 {strides = array<i32>} : memref<64x640xf32, #tpu.memory_space<vmem>>, vector<64x640xf32>,
    %c0_6 = arith.constant 0 : index
    %c0_7 = arith.constant 0 : index
    %5 = vector.load %arg7[%c0_6, %c0_7] : memref<64x640xf32, #tpu.memory_space<vmem>>, vector<64x640xf32>
    %c0_8 = arith.constant 0 : index
    %c1 = arith.constant 1 : index
    %c0_9 = arith.constant 0 : index
    %6 = vector.load %arg1[%c0_8, %c1, %c0_9] : memref<8x16x128xbf16, #tpu.memory_space<vmem>>, vector<8x8x128xbf16>
    %7 = vector.shape_cast %6 : vector<8x8x128xbf16> to vector<64x128xbf16>
    %c128 = arith.constant 128 : index
    %c0_10 = arith.constant 0 : index
    %8 = vector.load %arg2[%c128, %c0_10] : memref<640x640xbf16, #tpu.memory_space<vmem>>, vector<128x640xbf16>
    %cst_11 = arith.constant dense<0.000000e+00> : vector<64x640xf32>
    %9 = tpu.matmul %7, %8, %cst_11 {dimension_numbers = #tpu.dot_dimension_numbers<[1], [0], [0], [1], [0, 0, 1, 1], [], []>} : vector<64x128xbf16>, vector<128x640xbf16>, vector<64x640xf32> -> vector<64x640xf32>
    %10 = arith.addf %5, %9 : vector<64x640xf32>
    %c0_12 = arith.constant 0 : index
    %c0_13 = arith.constant 0 : index
    %11 = vector.load %arg7[%c0_12, %c0_13] : memref<64x640xf32, #tpu.memory_space<vmem>>, vector<64x640xf32>
    tpu.vector_store %arg7[%c0_12, %c0_13], %10 {strides = array<i32>} : memref<64x640xf32, #tpu.memory_space<vmem>>, vector<64x640xf32>,
    %c0_14 = arith.constant 0 : index
    %c0_15 = arith.constant 0 : index
    %12 = vector.load %arg7[%c0_14, %c0_15] : memref<64x640xf32, #tpu.memory_space<vmem>>, vector<64x640xf32>
    %c0_16 = arith.constant 0 : index
    %c2 = arith.constant 2 : index
    %c0_17 = arith.constant 0 : index
    %13 = vector.load %arg1[%c0_16, %c2, %c0_17] : memref<8x16x128xbf16, #tpu.memory_space<vmem>>, vector<8x8x128xbf16>
    %14 = vector.shape_cast %13 : vector<8x8x128xbf16> to vector<64x128xbf16>
    %c256 = arith.constant 256 : index
    %c0_18 = arith.constant 0 : index
    %15 = vector.load %arg2[%c256, %c0_18] : memref<640x640xbf16, #tpu.memory_space<vmem>>, vector<128x640xbf16>
    %cst_19 = arith.constant dense<0.000000e+00> : vector<64x640xf32>
    %16 = tpu.matmul %14, %15, %cst_19 {dimension_numbers = #tpu.dot_dimension_numbers<[1], [0], [0], [1], [0, 0, 1, 1], [], []>} : vector<64x128xbf16>, vector<128x640xbf16>, vector<64x640xf32> -> vector<64x640xf32>
    %17 = arith.addf %12, %16 : vector<64x640xf32>
    %c0_20 = arith.constant 0 : index
    %c0_21 = arith.constant 0 : index
    %18 = vector.load %arg7[%c0_20, %c0_21] : memref<64x640xf32, #tpu.memory_space<vmem>>, vector<64x640xf32>
    tpu.vector_store %arg7[%c0_20, %c0_21], %17 {strides = array<i32>} : memref<64x640xf32, #tpu.memory_space<vmem>>, vector<64x640xf32>,
    %c0_22 = arith.constant 0 : index
    %c0_23 = arith.constant 0 : index
    %19 = vector.load %arg7[%c0_22, %c0_23] : memref<64x640xf32, #tpu.memory_space<vmem>>, vector<64x640xf32>
    %c0_24 = arith.constant 0 : index
    %c3 = arith.constant 3 : index
    %c0_25 = arith.constant 0 : index
    %20 = vector.load %arg1[%c0_24, %c3, %c0_25] : memref<8x16x128xbf16, #tpu.memory_space<vmem>>, vector<8x8x128xbf16>
    %21 = vector.shape_cast %20 : vector<8x8x128xbf16> to vector<64x128xbf16>
    %c384 = arith.constant 384 : index
    %c0_26 = arith.constant 0 : index
    %22 = vector.load %arg2[%c384, %c0_26] : memref<640x640xbf16, #tpu.memory_space<vmem>>, vector<128x640xbf16>
    %cst_27 = arith.constant dense<0.000000e+00> : vector<64x640xf32>
    %23 = tpu.matmul %21, %22, %cst_27 {dimension_numbers = #tpu.dot_dimension_numbers<[1], [0], [0], [1], [0, 0, 1, 1], [], []>} : vector<64x128xbf16>, vector<128x640xbf16>, vector<64x640xf32> -> vector<64x640xf32>
    %24 = arith.addf %19, %23 : vector<64x640xf32>
    %c0_28 = arith.constant 0 : index
    %c0_29 = arith.constant 0 : index
    %25 = vector.load %arg7[%c0_28, %c0_29] : memref<64x640xf32, #tpu.memory_space<vmem>>, vector<64x640xf32>
    tpu.vector_store %arg7[%c0_28, %c0_29], %24 {strides = array<i32>} : memref<64x640xf32, #tpu.memory_space<vmem>>, vector<64x640xf32>,
    %c0_30 = arith.constant 0 : index
    %c0_31 = arith.constant 0 : index
    %26 = vector.load %arg7[%c0_30, %c0_31] : memref<64x640xf32, #tpu.memory_space<vmem>>, vector<64x640xf32>
    %c0_32 = arith.constant 0 : index
    %c4 = arith.constant 4 : index
    %c0_33 = arith.constant 0 : index
    %27 = vector.load %arg1[%c0_32, %c4, %c0_33] : memref<8x16x128xbf16, #tpu.memory_space<vmem>>, vector<8x8x128xbf16>
    %28 = vector.shape_cast %27 : vector<8x8x128xbf16> to vector<64x128xbf16>
    %c512 = arith.constant 512 : index
    %c0_34 = arith.constant 0 : index
    %29 = vector.load %arg2[%c512, %c0_34] : memref<640x640xbf16, #tpu.memory_space<vmem>>, vector<128x640xbf16>
    %cst_35 = arith.constant dense<0.000000e+00> : vector<64x640xf32>
    %30 = tpu.matmul %28, %29, %cst_35 {dimension_numbers = #tpu.dot_dimension_numbers<[1], [0], [0], [1], [0, 0, 1, 1], [], []>} : vector<64x128xbf16>, vector<128x640xbf16>, vector<64x640xf32> -> vector<64x640xf32>
    %31 = arith.addf %26, %30 : vector<64x640xf32>
    %c0_36 = arith.constant 0 : index
    %c0_37 = arith.constant 0 : index
    %32 = vector.load %arg7[%c0_36, %c0_37] : memref<64x640xf32, #tpu.memory_space<vmem>>, vector<64x640xf32>
    tpu.vector_store %arg7[%c0_36, %c0_37], %31 {strides = array<i32>} : memref<64x640xf32, #tpu.memory_space<vmem>>, vector<64x640xf32>,
    %c0_38 = arith.constant 0 : index
    %c0_39 = arith.constant 0 : index
    %33 = vector.load %arg7[%c0_38, %c0_39] : memref<64x640xf32, #tpu.memory_space<vmem>>, vector<64x640xf32>
    %34 = vector.shape_cast %33 : vector<64x640xf32> to vector<8x8x640xf32>
    %c0_40 = arith.constant 0 : index
    %c0_41 = arith.constant 0 : index
    %c0_42 = arith.constant 0 : index
    %35 = vector.load %arg3[%c0_40, %c0_41, %c0_42] : memref<1x8x640xf32, #tpu.memory_space<vmem>>, vector<1x8x640xf32>
    %36 = vector.broadcast %35 : vector<1x8x640xf32> to vector<8x8x640xf32>
    %37 = arith.addf %34, %36 : vector<8x8x640xf32>
    %cst_43 = arith.constant 0.000000e+00 : f32
    %38 = vector.broadcast %cst_43 : f32 to vector<8x8x640xf32>
    %39 = arith.maximumf %37, %38 : vector<8x8x640xf32>
    %cst_44 = arith.constant dense<0xFF800000> : vector<8x640xf32>
    %40 = vector.multi_reduction <maximumf>, %39, %cst_44 [1] : vector<8x8x640xf32> to vector<8x640xf32>
    %c0_45 = arith.constant 0 : index
    %c0_46 = arith.constant 0 : index
    %41 = vector.load %arg4[%c0_45, %c0_46] : memref<640x128xf32, #tpu.memory_space<vmem>>, vector<640x128xf32>
    %cst_47 = arith.constant dense<0.000000e+00> : vector<8x128xf32>
    %42 = tpu.matmul %40, %41, %cst_47 {dimension_numbers = #tpu.dot_dimension_numbers<[1], [0], [0], [1], [0, 0, 1, 1], [], []>} : vector<8x640xf32>, vector<640x128xf32>, vector<8x128xf32> -> vector<8x128xf32>
    %c0_48 = arith.constant 0 : index
    %c0_49 = arith.constant 0 : index
    %43 = vector.load %arg5[%c0_48, %c0_49] : memref<1x128xf32, #tpu.memory_space<vmem>>, vector<1x128xf32>
    %44 = vector.broadcast %43 : vector<1x128xf32> to vector<8x128xf32>
    %45 = arith.addf %42, %44 : vector<8x128xf32>
    %c0_50 = arith.constant 0 : index
    %c0_51 = arith.constant 0 : index
    %46 = vector.load %arg6[%c0_50, %c0_51] : memref<8x128xf32, #tpu.memory_space<vmem>>, vector<8x128xf32>
    tpu.vector_store %arg6[%c0_50, %c0_51], %45 {strides = array<i32>} : memref<8x128xf32, #tpu.memory_space<vmem>>, vector<8x128xf32>,
    return
  }
  func.func @transform_0(%arg0: i32) -> (i32, i32, i32) {
    %c0_i32 = arith.constant 0 : i32
    %c0_i32_0 = arith.constant 0 : i32
    %c0_i32_1 = arith.constant 0 : i32
    return %arg0, %c0_i32, %c0_i32_0 : i32, i32, i32
  }
  func.func @transform_1(%arg0: i32) -> (i32, i32) {
    %c0_i32 = arith.constant 0 : i32
    %c0_i32_0 = arith.constant 0 : i32
    %c0_i32_1 = arith.constant 0 : i32
    return %c0_i32, %c0_i32_0 : i32, i32
  }
  func.func @transform_2(%arg0: i32) -> (i32, i32, i32) {
    %c0_i32 = arith.constant 0 : i32
    %c0_i32_0 = arith.constant 0 : i32
    %c0_i32_1 = arith.constant 0 : i32
    %c0_i32_2 = arith.constant 0 : i32
    return %c0_i32, %c0_i32_0, %c0_i32_1 : i32, i32, i32
  }
  func.func @transform_3(%arg0: i32) -> (i32, i32) {
    %c0_i32 = arith.constant 0 : i32
    %c0_i32_0 = arith.constant 0 : i32
    %c0_i32_1 = arith.constant 0 : i32
    return %c0_i32, %c0_i32_0 : i32, i32
  }
  func.func @transform_4(%arg0: i32) -> (i32, i32) {
    %c0_i32 = arith.constant 0 : i32
    %c0_i32_0 = arith.constant 0 : i32
    %c0_i32_1 = arith.constant 0 : i32
    return %c0_i32, %c0_i32_0 : i32, i32
  }
  func.func @transform_5(%arg0: i32) -> (i32, i32) {
    %c0_i32 = arith.constant 0 : i32
    %c0_i32_0 = arith.constant 0 : i32
    return %arg0, %c0_i32 : i32, i32
  }
}

module attributes {stable_mosaic.version = 11 : i64} {
  func.func @text_cnn1d_kernel(%arg0: i32, %arg1: memref<8x16x128xbf16, #tpu.memory_space<vmem>>, %arg2: memref<640x640xbf16, #tpu.memory_space<vmem>>, %arg3: memref<1x8x640xf32, #tpu.memory_space<vmem>>, %arg4: memref<640x128xf32, #tpu.memory_space<vmem>>, %arg5: memref<1x128xf32, #tpu.memory_space<vmem>>, %arg6: memref<8x128xf32, #tpu.memory_space<vmem>>, %arg7: memref<64x640xf32, #tpu.memory_space<vmem>>) attributes {dimension_semantics = [#tpu.dimension_semantics<parallel>], iteration_bounds = array<i64: 1>, scalar_prefetch = 0 : i64, scratch_operands = 1 : i64, tpu.core_type = #tpu.core_type<tc>, window_params = [{transform_indices = @transform_0, window_bounds = array<i64: 8, 16, 128>}, {pipeline_mode = #tpu.pipeline_mode<synchronous>, transform_indices = @transform_1, window_bounds = array<i64: 640, 640>}, {pipeline_mode = #tpu.pipeline_mode<synchronous>, transform_indices = @transform_2, window_bounds = array<i64: 1, 8, 640>}, {pipeline_mode = #tpu.pipeline_mode<synchronous>, transform_indices = @transform_3, window_bounds = array<i64: 640, 128>}, {pipeline_mode = #tpu.pipeline_mode<synchronous>, transform_indices = @transform_4, window_bounds = array<i64: 1, 128>}, {transform_indices = @transform_5, window_bounds = array<i64: 8, 128>}]} {
    %c0 = arith.constant 0 : index
    %c0_0 = arith.constant 0 : index
    %c0_1 = arith.constant 0 : index
    %0 = vector.load %arg1[%c0, %c0_0, %c0_1] : memref<8x16x128xbf16, #tpu.memory_space<vmem>>, vector<8x8x128xbf16>
    %1 = vector.shape_cast %0 : vector<8x8x128xbf16> to vector<64x128xbf16>
    %c0_2 = arith.constant 0 : index
    %c0_3 = arith.constant 0 : index
    %2 = vector.load %arg2[%c0_2, %c0_3] : memref<640x640xbf16, #tpu.memory_space<vmem>>, vector<128x640xbf16>
    %cst = arith.constant dense<0.000000e+00> : vector<64x640xf32>
    %3 = tpu.matmul %1, %2, %cst {dimension_numbers = #tpu.dot_dimension_numbers<[1], [0], [0], [1], [0, 0, 1, 1], [], []>} : vector<64x128xbf16>, vector<128x640xbf16>, vector<64x640xf32> -> vector<64x640xf32>
    %c0_4 = arith.constant 0 : index
    %c0_5 = arith.constant 0 : index
    %4 = vector.load %arg7[%c0_4, %c0_5] : memref<64x640xf32, #tpu.memory_space<vmem>>, vector<64x640xf32>
    tpu.vector_store %arg7[%c0_4, %c0_5], %3 {strides = array<i32>} : memref<64x640xf32, #tpu.memory_space<vmem>>, vector<64x640xf32>,
    %c0_6 = arith.constant 0 : index
    %c0_7 = arith.constant 0 : index
    %5 = vector.load %arg7[%c0_6, %c0_7] : memref<64x640xf32, #tpu.memory_space<vmem>>, vector<64x640xf32>
    %c0_8 = arith.constant 0 : index
    %c1 = arith.constant 1 : index
    %c0_9 = arith.constant 0 : index
    %6 = vector.load %arg1[%c0_8, %c1, %c0_9] : memref<8x16x128xbf16, #tpu.memory_space<vmem>>, vector<8x8x128xbf16>
    %7 = vector.shape_cast %6 : vector<8x8x128xbf16> to vector<64x128xbf16>
    %c128 = arith.constant 128 : index
    %c0_10 = arith.constant 0 : index
    %8 = vector.load %arg2[%c128, %c0_10] : memref<640x640xbf16, #tpu.memory_space<vmem>>, vector<128x640xbf16>
    %cst_11 = arith.constant dense<0.000000e+00> : vector<64x640xf32>
    %9 = tpu.matmul %7, %8, %cst_11 {dimension_numbers = #tpu.dot_dimension_numbers<[1], [0], [0], [1], [0, 0, 1, 1], [], []>} : vector<64x128xbf16>, vector<128x640xbf16>, vector<64x640xf32> -> vector<64x640xf32>
    %10 = arith.addf %5, %9 : vector<64x640xf32>
    %c0_12 = arith.constant 0 : index
    %c0_13 = arith.constant 0 : index
    %11 = vector.load %arg7[%c0_12, %c0_13] : memref<64x640xf32, #tpu.memory_space<vmem>>, vector<64x640xf32>
    tpu.vector_store %arg7[%c0_12, %c0_13], %10 {strides = array<i32>} : memref<64x640xf32, #tpu.memory_space<vmem>>, vector<64x640xf32>,
    %c0_14 = arith.constant 0 : index
    %c0_15 = arith.constant 0 : index
    %12 = vector.load %arg7[%c0_14, %c0_15] : memref<64x640xf32, #tpu.memory_space<vmem>>, vector<64x640xf32>
    %c0_16 = arith.constant 0 : index
    %c2 = arith.constant 2 : index
    %c0_17 = arith.constant 0 : index
    %13 = vector.load %arg1[%c0_16, %c2, %c0_17] : memref<8x16x128xbf16, #tpu.memory_space<vmem>>, vector<8x8x128xbf16>
    %14 = vector.shape_cast %13 : vector<8x8x128xbf16> to vector<64x128xbf16>
    %c256 = arith.constant 256 : index
    %c0_18 = arith.constant 0 : index
    %15 = vector.load %arg2[%c256, %c0_18] : memref<640x640xbf16, #tpu.memory_space<vmem>>, vector<128x640xbf16>
    %cst_19 = arith.constant dense<0.000000e+00> : vector<64x640xf32>
    %16 = tpu.matmul %14, %15, %cst_19 {dimension_numbers = #tpu.dot_dimension_numbers<[1], [0], [0], [1], [0, 0, 1, 1], [], []>} : vector<64x128xbf16>, vector<128x640xbf16>, vector<64x640xf32> -> vector<64x640xf32>
    %17 = arith.addf %12, %16 : vector<64x640xf32>
    %c0_20 = arith.constant 0 : index
    %c0_21 = arith.constant 0 : index
    %18 = vector.load %arg7[%c0_20, %c0_21] : memref<64x640xf32, #tpu.memory_space<vmem>>, vector<64x640xf32>
    tpu.vector_store %arg7[%c0_20, %c0_21], %17 {strides = array<i32>} : memref<64x640xf32, #tpu.memory_space<vmem>>, vector<64x640xf32>,
    %c0_22 = arith.constant 0 : index
    %c0_23 = arith.constant 0 : index
    %19 = vector.load %arg7[%c0_22, %c0_23] : memref<64x640xf32, #tpu.memory_space<vmem>>, vector<64x640xf32>
    %c0_24 = arith.constant 0 : index
    %c3 = arith.constant 3 : index
    %c0_25 = arith.constant 0 : index
    %20 = vector.load %arg1[%c0_24, %c3, %c0_25] : memref<8x16x128xbf16, #tpu.memory_space<vmem>>, vector<8x8x128xbf16>
    %21 = vector.shape_cast %20 : vector<8x8x128xbf16> to vector<64x128xbf16>
    %c384 = arith.constant 384 : index
    %c0_26 = arith.constant 0 : index
    %22 = vector.load %arg2[%c384, %c0_26] : memref<640x640xbf16, #tpu.memory_space<vmem>>, vector<128x640xbf16>
    %cst_27 = arith.constant dense<0.000000e+00> : vector<64x640xf32>
    %23 = tpu.matmul %21, %22, %cst_27 {dimension_numbers = #tpu.dot_dimension_numbers<[1], [0], [0], [1], [0, 0, 1, 1], [], []>} : vector<64x128xbf16>, vector<128x640xbf16>, vector<64x640xf32> -> vector<64x640xf32>
    %24 = arith.addf %19, %23 : vector<64x640xf32>
    %c0_28 = arith.constant 0 : index
    %c0_29 = arith.constant 0 : index
    %25 = vector.load %arg7[%c0_28, %c0_29] : memref<64x640xf32, #tpu.memory_space<vmem>>, vector<64x640xf32>
    tpu.vector_store %arg7[%c0_28, %c0_29], %24 {strides = array<i32>} : memref<64x640xf32, #tpu.memory_space<vmem>>, vector<64x640xf32>,
    %c0_30 = arith.constant 0 : index
    %c0_31 = arith.constant 0 : index
    %26 = vector.load %arg7[%c0_30, %c0_31] : memref<64x640xf32, #tpu.memory_space<vmem>>, vector<64x640xf32>
    %c0_32 = arith.constant 0 : index
    %c4 = arith.constant 4 : index
    %c0_33 = arith.constant 0 : index
    %27 = vector.load %arg1[%c0_32, %c4, %c0_33] : memref<8x16x128xbf16, #tpu.memory_space<vmem>>, vector<8x8x128xbf16>
    %28 = vector.shape_cast %27 : vector<8x8x128xbf16> to vector<64x128xbf16>
    %c512 = arith.constant 512 : index
    %c0_34 = arith.constant 0 : index
    %29 = vector.load %arg2[%c512, %c0_34] : memref<640x640xbf16, #tpu.memory_space<vmem>>, vector<128x640xbf16>
    %cst_35 = arith.constant dense<0.000000e+00> : vector<64x640xf32>
    %30 = tpu.matmul %28, %29, %cst_35 {dimension_numbers = #tpu.dot_dimension_numbers<[1], [0], [0], [1], [0, 0, 1, 1], [], []>} : vector<64x128xbf16>, vector<128x640xbf16>, vector<64x640xf32> -> vector<64x640xf32>
    %31 = arith.addf %26, %30 : vector<64x640xf32>
    %c0_36 = arith.constant 0 : index
    %c0_37 = arith.constant 0 : index
    %32 = vector.load %arg7[%c0_36, %c0_37] : memref<64x640xf32, #tpu.memory_space<vmem>>, vector<64x640xf32>
    tpu.vector_store %arg7[%c0_36, %c0_37], %31 {strides = array<i32>} : memref<64x640xf32, #tpu.memory_space<vmem>>, vector<64x640xf32>,
    %c0_38 = arith.constant 0 : index
    %c0_39 = arith.constant 0 : index
    %33 = vector.load %arg7[%c0_38, %c0_39] : memref<64x640xf32, #tpu.memory_space<vmem>>, vector<64x640xf32>
    %34 = vector.shape_cast %33 : vector<64x640xf32> to vector<8x8x640xf32>
    %c0_40 = arith.constant 0 : index
    %c0_41 = arith.constant 0 : index
    %c0_42 = arith.constant 0 : index
    %35 = vector.load %arg3[%c0_40, %c0_41, %c0_42] : memref<1x8x640xf32, #tpu.memory_space<vmem>>, vector<1x8x640xf32>
    %36 = vector.broadcast %35 : vector<1x8x640xf32> to vector<8x8x640xf32>
    %37 = arith.addf %34, %36 : vector<8x8x640xf32>
    %cst_43 = arith.constant 0.000000e+00 : f32
    %38 = vector.broadcast %cst_43 : f32 to vector<8x8x640xf32>
    %39 = arith.maximumf %37, %38 : vector<8x8x640xf32>
    %cst_44 = arith.constant dense<0xFF800000> : vector<8x640xf32>
    %40 = vector.multi_reduction <maximumf>, %39, %cst_44 [1] : vector<8x8x640xf32> to vector<8x640xf32>
    %c0_45 = arith.constant 0 : index
    %c0_46 = arith.constant 0 : index
    %41 = vector.load %arg4[%c0_45, %c0_46] : memref<640x128xf32, #tpu.memory_space<vmem>>, vector<640x128xf32>
    %cst_47 = arith.constant dense<0.000000e+00> : vector<8x128xf32>
    %42 = tpu.matmul %40, %41, %cst_47 {dimension_numbers = #tpu.dot_dimension_numbers<[1], [0], [0], [1], [0, 0, 1, 1], [], []>} : vector<8x640xf32>, vector<640x128xf32>, vector<8x128xf32> -> vector<8x128xf32>
    %c0_48 = arith.constant 0 : index
    %c0_49 = arith.constant 0 : index
    %43 = vector.load %arg5[%c0_48, %c0_49] : memref<1x128xf32, #tpu.memory_space<vmem>>, vector<1x128xf32>
    %44 = vector.broadcast %43 : vector<1x128xf32> to vector<8x128xf32>
    %45 = arith.addf %42, %44 : vector<8x128xf32>
    %c0_50 = arith.constant 0 : index
    %c0_51 = arith.constant 0 : index
    %46 = vector.load %arg6[%c0_50, %c0_51] : memref<8x128xf32, #tpu.memory_space<vmem>>, vector<8x128xf32>
    tpu.vector_store %arg6[%c0_50, %c0_51], %45 {strides = array<i32>} : memref<8x128xf32, #tpu.memory_space<vmem>>, vector<8x128xf32>,
    return
  }
  func.func @transform_0(%arg0: i32) -> (i32, i32, i32) {
    %c0_i32 = arith.constant 0 : i32
    %c0_i32_0 = arith.constant 0 : i32
    %c0_i32_1 = arith.constant 0 : i32
    return %arg0, %c0_i32, %c0_i32_0 : i32, i32, i32
  }
  func.func @transform_1(%arg0: i32) -> (i32, i32) {
    %c0_i32 = arith.constant 0 : i32
    %c0_i32_0 = arith.constant 0 : i32
    %c0_i32_1 = arith.constant 0 : i32
    return %c0_i32, %c0_i32_0 : i32, i32
  }
  func.func @transform_2(%arg0: i32) -> (i32, i32, i32) {
    %c0_i32 = arith.constant 0 : i32
    %c0_i32_0 = arith.constant 0 : i32
    %c0_i32_1 = arith.constant 0 : i32
    %c0_i32_2 = arith.constant 0 : i32
    return %c0_i32, %c0_i32_0, %c0_i32_1 : i32, i32, i32
  }
  func.func @transform_3(%arg0: i32) -> (i32, i32) {
    %c0_i32 = arith.constant 0 : i32
    %c0_i32_0 = arith.constant 0 : i32
    %c0_i32_1 = arith.constant 0 : i32
    return %c0_i32, %c0_i32_0 : i32, i32
  }
  func.func @transform_4(%arg0: i32) -> (i32, i32) {
    %c0_i32 = arith.constant 0 : i32
    %c0_i32_0 = arith.constant 0 : i32
    %c0_i32_1 = arith.constant 0 : i32
    return %c0_i32, %c0_i32_0 : i32, i32
  }
  func.func @transform_5(%arg0: i32) -> (i32, i32) {
    %c0_i32 = arith.constant 0 : i32
    %c0_i32_0 = arith.constant 0 : i32
    return %arg0, %c0_i32 : i32, i32
  }
}

</mosaic_0001>

<llo_original>
// kernel: tpu_custom_call.1
$region0: #{tpu_custom_call.1}
  #allocation0 [shape = 'u32[]', space=smem, size = 0x4, offset = 0x4, fixed_abs, tag = 'smem constant byte address 0x4 - core index']
  #allocation1 [shape = 'u32[144,128]{1,0:T(1,128)}', space=vmem, size = 0x12000, scoped, tag = 'internal scratch']
  #allocation2 [shape = 'f32[64,640]{1,0:T(8,128)}', space=vmem, size = 0x28000, scoped, tag = 'scratch operand']
  %s0 = inlined_call_operand.hbm [shape: bf16[8,16,128], index: 0, kind: input, shape index: {}]
  %s1 = inlined_call_operand.hbm [shape: bf16[640,640], index: 1, kind: input, shape index: {}]
  %s2 = inlined_call_operand.hbm [shape: f32[1,8,640], index: 2, kind: input, shape index: {}]
  %s3 = inlined_call_operand.hbm [shape: f32[640,128], index: 3, kind: input, shape index: {}]
  %s4 = inlined_call_operand.vmem [shape: f32[1,128], index: 4, kind: input, shape index: {}]
  %s5 = inlined_call_operand.hbm [shape: f32[8,128], index: 5, kind: output, shape index: {}]
  %s6 = sld [smem:[#allocation0]]
  $region46: #{tpu_custom_call.1} parent=0
    _
  %s8 = ssub.s32 1, %s6
  %s9 = scalar_select 0, %s8, %s6
  $region1: #{tpu_custom_call.1} parent=0
    #allocation3 [shape = 'u8[32768]{0}', space=vmem, size = 0x8000, scoped, tag = 'input window, operand 0, single buffered']
    #allocation4 [shape = 's32[1]{0}', space=sflag, size = 0x4, scoped, tag = 'scoped memory for tpu_custom_call.1']
    #allocation5 [shape = 's32[1]{0}', space=sflag, size = 0x4, scoped, tag = 'scoped memory for tpu_custom_call.1']
    #allocation6 [shape = 'u8[819200]{0}', space=vmem, size = 0xc8000, scoped, tag = 'input window, operand 1, single buffered']
    #allocation7 [shape = 's32[1]{0}', space=sflag, size = 0x4, scoped, tag = 'scoped memory for tpu_custom_call.1']
    #allocation8 [shape = 'u8[20480]{0}', space=vmem, size = 0x5000, scoped, tag = 'input window, operand 2, single buffered']
    #allocation9 [shape = 'u8[327680]{0}', space=vmem, size = 0x50000, scoped, tag = 'input window, operand 3, single buffered']
    #allocation10 [shape = 's32[1]{0}', space=sflag, size = 0x4, scoped, tag = 'scoped memory for tpu_custom_call.1']
    #allocation11 [shape = 'u8[4096]{0}', space=vmem, size = 0x1000, scoped, tag = 'output window, operand 0, single buffered']
    %10 = vsyncpa [#allocation4], 0
    %11 = vsyncpa [#allocation7], 0
    %12 = vsyncpa [#allocation10], 0
    %13 = vsyncpa [#allocation5], 0
    // Predicated region
    $region2: #{tpu_custom_call.1} parent=1 // pred_check
      _
    $region3: #{tpu_custom_call.1} parent=1 // pred_check_branch
      %15 = sbr.rel (0) target = $region5
    $region4: #{tpu_custom_call.1} parent=1 // pred_region
      %s17 = ssub.s32 1024, 1024
      %18 = vsyncadd [#allocation4], %s17
      %s19 = sshll.u32 [#allocation3], 4
      %s20 = int_to_ptr.vmem [resolvable:$true] %s19
      %25 = dma.hbm_to_vmem [thread:$0]  %s0, 1024, %s20, [#allocation4], 64, 64, 4
    $region5: #{tpu_custom_call.1} parent=1 // pred_fallthru
      _
    // Predicated region
    $region6: #{tpu_custom_call.1} parent=1 // pred_check
      _
    $region7: #{tpu_custom_call.1} parent=1 // pred_check_branch
      %27 = sbr.rel (0) target = $region9
    $region8: #{tpu_custom_call.1} parent=1 // pred_region
      %s29 = ssub.s32 25600, 25600
      %30 = vsyncadd [#allocation7], %s29
      %s31 = sshll.u32 [#allocation6], 4
      %s32 = int_to_ptr.vmem [resolvable:$true] %s31
      %37 = dma.hbm_to_vmem [thread:$0]  %s1, 25600, %s32, [#allocation7], 320, 320, 20
    $region9: #{tpu_custom_call.1} parent=1 // pred_fallthru
      _
    // Predicated region
    $region10: #{tpu_custom_call.1} parent=1 // pred_check
      _
    $region11: #{tpu_custom_call.1} parent=1 // pred_check_branch
      %39 = sbr.rel (0) target = $region13
    $region12: #{tpu_custom_call.1} parent=1 // pred_region
      %s41 = ssub.s32 640, 640
      %42 = vsyncadd [#allocation7], %s41
      %s44 = sshll.u32 [#allocation8], 4
      %s45 = int_to_ptr.vmem [resolvable:$true] %s44
      %47 = dma.hbm_to_vmem [thread:$0]  %s2, 640, %s45, [#allocation7]
    $region13: #{tpu_custom_call.1} parent=1 // pred_fallthru
      _
    // Predicated region
    $region14: #{tpu_custom_call.1} parent=1 // pred_check
      _
    $region15: #{tpu_custom_call.1} parent=1 // pred_check_branch
      %49 = sbr.rel (0) target = $region17
    $region16: #{tpu_custom_call.1} parent=1 // pred_region
      %s51 = ssub.s32 10240, 10240
      %52 = vsyncadd [#allocation10], %s51
      %s53 = sshll.u32 [#allocation9], 4
      %s54 = int_to_ptr.vmem [resolvable:$true] %s53
      %59 = dma.hbm_to_vmem [thread:$0]  %s3, 10240, %s54, [#allocation10], 128, 128, 8
    $region17: #{tpu_custom_call.1} parent=1 // pred_fallthru
      _
    // Predicated region
    $region18: #{tpu_custom_call.1} parent=1 // pred_check
      _
    $region19: #{tpu_custom_call.1} parent=1 // pred_check_branch
      %61 = sbr.rel (0) target = $region21
    $region20: #{tpu_custom_call.1} parent=1 // pred_region
      _
    $region21: #{tpu_custom_call.1} parent=1 // pred_fallthru
      _
    // Predicated region
    $region22: #{tpu_custom_call.1} parent=1 // pred_check
      _
    $region23: #{tpu_custom_call.1} parent=1 // pred_check_branch
      %63 = sbr.rel (0) target = $region25
    $region24: #{tpu_custom_call.1} parent=1 // pred_region
      %64 = dma.done [#allocation4], 1024
    $region25: #{tpu_custom_call.1} parent=1 // pred_fallthru
      _
    // Predicated region
    $region26: #{tpu_custom_call.1} parent=1 // pred_check
      _
    $region27: #{tpu_custom_call.1} parent=1 // pred_check_branch
      %66 = sbr.rel (0) target = $region29
    $region28: #{tpu_custom_call.1} parent=1 // pred_region
      %67 = dma.done [#allocation7], 25600
    $region29: #{tpu_custom_call.1} parent=1 // pred_fallthru
      _
    // Predicated region
    $region30: #{tpu_custom_call.1} parent=1 // pred_check
      _
    $region31: #{tpu_custom_call.1} parent=1 // pred_check_branch
      %69 = sbr.rel (0) target = $region33
    $region32: #{tpu_custom_call.1} parent=1 // pred_region
      %70 = dma.done [#allocation7], 640
    $region33: #{tpu_custom_call.1} parent=1 // pred_fallthru
      _
    // Predicated region
    $region34: #{tpu_custom_call.1} parent=1 // pred_check
      _
    $region35: #{tpu_custom_call.1} parent=1 // pred_check_branch
      %72 = sbr.rel (0) target = $region37
    $region36: #{tpu_custom_call.1} parent=1 // pred_region
      %73 = dma.done [#allocation10], 10240
    $region37: #{tpu_custom_call.1} parent=1 // pred_fallthru
      _
    %v75 = vld [vmem:[#allocation3] sm:$0xf]
    %v76 = vld [vmem:[#allocation3 + $0x8] sm:$0xf]
    %v77 = vld [vmem:[#allocation3 + $0x10] sm:$0xf]
    %v78 = vld [vmem:[#allocation3 + $0x18] sm:$0xf]
    %v79 = vld [vmem:[#allocation3 + $0x20] sm:$0xf]
    %v80 = vld [vmem:[#allocation3 + $0x28] sm:$0xf]
    %v81 = vld [vmem:[#allocation3 + $0x30] sm:$0xf]
    %v82 = vld [vmem:[#allocation3 + $0x38] sm:$0xf]
    %v83 = vld [vmem:[#allocation6] sm:$0xff]
    %v84 = vld [vmem:[#allocation6 + $0x8] sm:$0xff]
    %v85 = vld [vmem:[#allocation6 + $0x10] sm:$0xf]
    %v86 = vld [vmem:[#allocation6 + $0x14] sm:$0xff]
    %v87 = vld [vmem:[#allocation6 + $0x1c] sm:$0xff]
    %v88 = vld [vmem:[#allocation6 + $0x24] sm:$0xf]
    %v89 = vld [vmem:[#allocation6 + $0x28] sm:$0xff]
    %v90 = vld [vmem:[#allocation6 + $0x30] sm:$0xff]
    %v91 = vld [vmem:[#allocation6 + $0x38] sm:$0xf]
    %v92 = vld [vmem:[#allocation6 + $0x3c] sm:$0xff]
    %v93 = vld [vmem:[#allocation6 + $0x44] sm:$0xff]
    %v94 = vld [vmem:[#allocation6 + $0x4c] sm:$0xf]
    %v95 = vld [vmem:[#allocation6 + $0x50] sm:$0xff]
    %v96 = vld [vmem:[#allocation6 + $0x58] sm:$0xff]
    %v97 = vld [vmem:[#allocation6 + $0x60] sm:$0xf]
    %v98 = vld [vmem:[#allocation6 + $0x64] sm:$0xff]
    %v99 = vld [vmem:[#allocation6 + $0x6c] sm:$0xff]
    %v100 = vld [vmem:[#allocation6 + $0x74] sm:$0xf]
    %v101 = vld [vmem:[#allocation6 + $0x78] sm:$0xff]
    %v102 = vld [vmem:[#allocation6 + $0x80] sm:$0xff]
    %v103 = vld [vmem:[#allocation6 + $0x88] sm:$0xf]
    %v104 = vld [vmem:[#allocation6 + $0x8c] sm:$0xff]
    %v105 = vld [vmem:[#allocation6 + $0x94] sm:$0xff]
    %v106 = vld [vmem:[#allocation6 + $0x9c] sm:$0xf]
    %v107 = vld [vmem:[#allocation6 + $0xa0] sm:$0xff]
    %v108 = vld [vmem:[#allocation6 + $0xa8] sm:$0xff]
    %v109 = vld [vmem:[#allocation6 + $0xb0] sm:$0xf]
    %v110 = vld [vmem:[#allocation6 + $0xb4] sm:$0xff]
    %v111 = vld [vmem:[#allocation6 + $0xbc] sm:$0xff]
    %v112 = vld [vmem:[#allocation6 + $0xc4] sm:$0xf]
    %v113 = vld [vmem:[#allocation6 + $0xc8] sm:$0xff]
    %v114 = vld [vmem:[#allocation6 + $0xd0] sm:$0xff]
    %v115 = vld [vmem:[#allocation6 + $0xd8] sm:$0xf]
    %v116 = vld [vmem:[#allocation6 + $0xdc] sm:$0xff]
    %v117 = vld [vmem:[#allocation6 + $0xe4] sm:$0xff]
    %v118 = vld [vmem:[#allocation6 + $0xec] sm:$0xf]
    %v119 = vld [vmem:[#allocation6 + $0xf0] sm:$0xff]
    %v120 = vld [vmem:[#allocation6 + $0xf8] sm:$0xff]
    %v121 = vld [vmem:[#allocation6 + $0x100] sm:$0xf]
    %v122 = vld [vmem:[#allocation6 + $0x104] sm:$0xff]
    %v123 = vld [vmem:[#allocation6 + $0x10c] sm:$0xff]
    %v124 = vld [vmem:[#allocation6 + $0x114] sm:$0xf]
    %v125 = vld [vmem:[#allocation6 + $0x118] sm:$0xff]
    %v126 = vld [vmem:[#allocation6 + $0x120] sm:$0xff]
    %v127 = vld [vmem:[#allocation6 + $0x128] sm:$0xf]
    %v128 = vld [vmem:[#allocation6 + $0x12c] sm:$0xff]
    %v129 = vld [vmem:[#allocation6 + $0x134] sm:$0xff]
    %v130 = vld [vmem:[#allocation6 + $0x13c] sm:$0xf]
    %v139 = vunpack.c.l.b16 %v75
    %v140 = vunpack.c.l.b16 %v76
    %v141 = vunpack.c.l.b16 %v77
    %v142 = vunpack.c.l.b16 %v78
    %v143 = vunpack.c.l.b16 %v79
    %v144 = vunpack.c.l.b16 %v80
    %v145 = vunpack.c.l.b16 %v81
    %v146 = vunpack.c.l.b16 %v82
    %v147 = vpack.c.b16 %v140, %v139
    %v148 = vpack.c.b16 %v142, %v141
    %v149 = vpack.c.b16 %v144, %v143
    %v150 = vpack.c.b16 %v146, %v145
    %v203 = vunpack.c.l.b16 %v83
    %v204 = vunpack.c.h.b16 %v83
    %v205 = vunpack.c.l.b16 %v84
    %v206 = vunpack.c.h.b16 %v84
    %v207 = vunpack.c.l.b16 %v85
    %v208 = vunpack.c.l.b16 %v86
    %v209 = vunpack.c.h.b16 %v86
    %v210 = vunpack.c.l.b16 %v87
    %v211 = vunpack.c.h.b16 %v87
    %v212 = vunpack.c.l.b16 %v88
    %v213 = vunpack.c.l.b16 %v89
    %v214 = vunpack.c.h.b16 %v89
    %v215 = vunpack.c.l.b16 %v90
    %v216 = vunpack.c.h.b16 %v90
    %v217 = vunpack.c.l.b16 %v91
    %v218 = vunpack.c.l.b16 %v92
    %v219 = vunpack.c.h.b16 %v92
    %v220 = vunpack.c.l.b16 %v93
    %v221 = vunpack.c.h.b16 %v93
    %v222 = vunpack.c.l.b16 %v94
    %v223 = vunpack.c.l.b16 %v95
    %v224 = vunpack.c.h.b16 %v95
    %v225 = vunpack.c.l.b16 %v96
    %v226 = vunpack.c.h.b16 %v96
    %v227 = vunpack.c.l.b16 %v97
    %v228 = vunpack.c.l.b16 %v98
    %v229 = vunpack.c.h.b16 %v98
    %v230 = vunpack.c.l.b16 %v99
    %v231 = vunpack.c.h.b16 %v99
    %v232 = vunpack.c.l.b16 %v100
    %v233 = vunpack.c.l.b16 %v101
    %v234 = vunpack.c.h.b16 %v101
    %v235 = vunpack.c.l.b16 %v102
    %v236 = vunpack.c.h.b16 %v102
    %v237 = vunpack.c.l.b16 %v103
    %v238 = vunpack.c.l.b16 %v104
    %v239 = vunpack.c.h.b16 %v104
    %v240 = vunpack.c.l.b16 %v105
    %v241 = vunpack.c.h.b16 %v105
    %v242 = vunpack.c.l.b16 %v106
    %v243 = vunpack.c.l.b16 %v107
    %v244 = vunpack.c.h.b16 %v107
    %v245 = vunpack.c.l.b16 %v108
    %v246 = vunpack.c.h.b16 %v108
    %v247 = vunpack.c.l.b16 %v109
    %v248 = vunpack.c.l.b16 %v110
    %v249 = vunpack.c.h.b16 %v110
    %v250 = vunpack.c.l.b16 %v111
    %v251 = vunpack.c.h.b16 %v111
    %v252 = vunpack.c.l.b16 %v112
    %v253 = vunpack.c.l.b16 %v113
    %v254 = vunpack.c.h.b16 %v113
    %v255 = vunpack.c.l.b16 %v114
    %v256 = vunpack.c.h.b16 %v114
    %v257 = vunpack.c.l.b16 %v115
    %v258 = vunpack.c.l.b16 %v116
    %v259 = vunpack.c.h.b16 %v116
    %v260 = vunpack.c.l.b16 %v117
    %v261 = vunpack.c.h.b16 %v117
    %v262 = vunpack.c.l.b16 %v118
    %v263 = vunpack.c.l.b16 %v119
    %v264 = vunpack.c.h.b16 %v119
    %v265 = vunpack.c.l.b16 %v120
    %v266 = vunpack.c.h.b16 %v120
    %v267 = vunpack.c.l.b16 %v121
    %v268 = vunpack.c.l.b16 %v122
    %v269 = vunpack.c.h.b16 %v122
    %v270 = vunpack.c.l.b16 %v123
    %v271 = vunpack.c.h.b16 %v123
    %v272 = vunpack.c.l.b16 %v124
    %v273 = vunpack.c.l.b16 %v125
    %v274 = vunpack.c.h.b16 %v125
    %v275 = vunpack.c.l.b16 %v126
    %v276 = vunpack.c.h.b16 %v126
    %v277 = vunpack.c.l.b16 %v127
    %v278 = vunpack.c.l.b16 %v128
    %v279 = vunpack.c.h.b16 %v128
    %v280 = vunpack.c.l.b16 %v129
    %v281 = vunpack.c.h.b16 %v129
    %v282 = vunpack.c.l.b16 %v130
    %v283 = vpack.c.b16 %v208, %v203
    %v284 = vpack.c.b16 %v209, %v204
    %v285 = vpack.c.b16 %v210, %v205
    %v286 = vpack.c.b16 %v211, %v206
    %v287 = vpack.c.b16 %v212, %v207
    %v288 = vpack.c.b16 %v218, %v213
    %v289 = vpack.c.b16 %v219, %v214
    %v290 = vpack.c.b16 %v220, %v215
    %v291 = vpack.c.b16 %v221, %v216
    %v292 = vpack.c.b16 %v222, %v217
    %v293 = vpack.c.b16 %v228, %v223
    %v294 = vpack.c.b16 %v229, %v224
    %v295 = vpack.c.b16 %v230, %v225
    %v296 = vpack.c.b16 %v231, %v226
    %v297 = vpack.c.b16 %v232, %v227
    %v298 = vpack.c.b16 %v238, %v233
    %v299 = vpack.c.b16 %v239, %v234
    %v300 = vpack.c.b16 %v240, %v235
    %v301 = vpack.c.b16 %v241, %v236
    %v302 = vpack.c.b16 %v242, %v237
    %v303 = vpack.c.b16 %v248, %v243
    %v304 = vpack.c.b16 %v249, %v244
    %v305 = vpack.c.b16 %v250, %v245
    %v306 = vpack.c.b16 %v251, %v246
    %v307 = vpack.c.b16 %v252, %v247
    %v308 = vpack.c.b16 %v258, %v253
    %v309 = vpack.c.b16 %v259, %v254
    %v310 = vpack.c.b16 %v260, %v255
    %v311 = vpack.c.b16 %v261, %v256
    %v312 = vpack.c.b16 %v262, %v257
    %v313 = vpack.c.b16 %v268, %v263
    %v314 = vpack.c.b16 %v269, %v264
    %v315 = vpack.c.b16 %v270, %v265
    %v316 = vpack.c.b16 %v271, %v266
    %v317 = vpack.c.b16 %v272, %v267
    %v318 = vpack.c.b16 %v278, %v273
    %v319 = vpack.c.b16 %v279, %v274
    %v320 = vpack.c.b16 %v280, %v275
    %v321 = vpack.c.b16 %v281, %v276
    %v322 = vpack.c.b16 %v282, %v277
    %363 = vmatprep.subr.bf16.mxu0 %v284
    %364 = vmatpush1.bf16.msra.mxu0 %v283
    %365 = vmatprep.subr.bf16.mxu0 %v289
    %366 = vmatpush1.bf16.msra.mxu0 %v288
    %367 = vmatprep.subr.bf16.mxu0 %v294
    %368 = vmatpush1.bf16.msra.mxu0 %v293
    %369 = vmatprep.subr.bf16.mxu0 %v299
    %370 = vmatpush1.bf16.msra.mxu0 %v298
    %371 = vmatprep.subr.bf16.mxu0 %v304
    %372 = vmatpush1.bf16.msra.mxu0 %v303
    %373 = vmatprep.subr.bf16.mxu0 %v309
    %374 = vmatpush1.bf16.msra.mxu0 %v308
    %375 = vmatprep.subr.bf16.mxu0 %v314
    %376 = vmatpush1.bf16.msra.mxu0 %v313
    %377 = vmatprep.subr.bf16.mxu0 %v319
    %378 = vmatpush1.bf16.msra.mxu0 %v318
    %379 = vmatprep.subr.bf16.mxu0 0
    %380 = vmatpush1.bf16.msra.mxu0 0
    %381 = vmatprep.subr.bf16.mxu0 0
    %382 = vmatpush1.bf16.msra.mxu0 0
    %383 = vmatprep.subr.bf16.mxu0 0
    %384 = vmatpush1.bf16.msra.mxu0 0
    %385 = vmatprep.subr.bf16.mxu0 0
    %386 = vmatpush1.bf16.msra.mxu0 0
    %387 = vmatprep.subr.bf16.mxu0 0
    %388 = vmatpush1.bf16.msra.mxu0 0
    %389 = vmatprep.subr.bf16.mxu0 0
    %390 = vmatpush1.bf16.msra.mxu0 0
    %391 = vmatprep.subr.bf16.mxu0 0
    %392 = vmatpush1.bf16.msra.mxu0 0
    %393 = vmatprep.subr.bf16.mxu0 0
    %394 = vmatpush1.bf16.msra.mxu0 0
    %395 = vmatprep.mubr.bf16.mxu0 0
    %396 = vmatmul.mubr.bf16.gmra.mrb[0].mxu0 %v147
    %v397 = vpop.f32.mrb[0].mxu0
    %v398 = vadd.f32 0.0, %v397
    %v399 = vpop.f32.mrb[0].mxu0
    %v400 = vadd.f32 0.0, %v399
    %v401 = vpop.f32.mrb[0].mxu0
    %v402 = vadd.f32 0.0, %v401
    %v403 = vpop.f32.mrb[0].mxu0
    %v404 = vadd.f32 0.0, %v403
    %405 = vmatprep.mubr.bf16.mxu0 0
    %406 = vmatmul.mubr.bf16.gmra.mrb[0].mxu0 %v148
    %v407 = vpop.f32.mrb[0].mxu0
    %v408 = vadd.f32 0.0, %v407
    %v409 = vpop.f32.mrb[0].mxu0
    %v410 = vadd.f32 0.0, %v409
    %v411 = vpop.f32.mrb[0].mxu0
    %v412 = vadd.f32 0.0, %v411
    %v413 = vpop.f32.mrb[0].mxu0
    %v414 = vadd.f32 0.0, %v413
    %415 = vmatprep.mubr.bf16.mxu0 0
    %416 = vmatmul.mubr.bf16.gmra.mrb[0].mxu0 %v149
    %v417 = vpop.f32.mrb[0].mxu0
    %v418 = vadd.f32 0.0, %v417
    %v419 = vpop.f32.mrb[0].mxu0
    %v420 = vadd.f32 0.0, %v419
    %v421 = vpop.f32.mrb[0].mxu0
    %v422 = vadd.f32 0.0, %v421
    %v423 = vpop.f32.mrb[0].mxu0
    %v424 = vadd.f32 0.0, %v423
    %425 = vmatprep.mubr.bf16.mxu0 0
    %426 = vmatmul.mubr.bf16.gmra.mrb[0].mxu0 %v150
    %v427 = vpop.f32.mrb[0].mxu0
    %v428 = vadd.f32 0.0, %v427
    %v429 = vpop.f32.mrb[0].mxu0
    %v430 = vadd.f32 0.0, %v429
    %v431 = vpop.f32.mrb[0].mxu0
    %v432 = vadd.f32 0.0, %v431
    %v433 = vpop.f32.mrb[0].mxu0
    %v434 = vadd.f32 0.0, %v433
    %435 = vdwg.mxu0
    %436 = vmatprep.subr.bf16.mxu0 %v286
    %437 = vmatpush1.bf16.msra.mxu0 %v285
    %438 = vmatprep.subr.bf16.mxu0 %v291
    %439 = vmatpush1.bf16.msra.mxu0 %v290
    %440 = vmatprep.subr.bf16.mxu0 %v296
    %441 = vmatpush1.bf16.msra.mxu0 %v295
    %442 = vmatprep.subr.bf16.mxu0 %v301
    %443 = vmatpush1.bf16.msra.mxu0 %v300
    %444 = vmatprep.subr.bf16.mxu0 %v306
    %445 = vmatpush1.bf16.msra.mxu0 %v305
    %446 = vmatprep.subr.bf16.mxu0 %v311
    %447 = vmatpush1.bf16.msra.mxu0 %v310
    %448 = vmatprep.subr.bf16.mxu0 %v316
    %449 = vmatpush1.bf16.msra.mxu0 %v315
    %450 = vmatprep.subr.bf16.mxu0 %v321
    %451 = vmatpush1.bf16.msra.mxu0 %v320
    %452 = vmatprep.subr.bf16.mxu0 0
    %453 = vmatpush1.bf16.msra.mxu0 0
    %454 = vmatprep.subr.bf16.mxu0 0
    %455 = vmatpush1.bf16.msra.mxu0 0
    %456 = vmatprep.subr.bf16.mxu0 0
    %457 = vmatpush1.bf16.msra.mxu0 0
    %458 = vmatprep.subr.bf16.mxu0 0
    %459 = vmatpush1.bf16.msra.mxu0 0
    %460 = vmatprep.subr.bf16.mxu0 0
    %461 = vmatpush1.bf16.msra.mxu0 0
    %462 = vmatprep.subr.bf16.mxu0 0
    %463 = vmatpush1.bf16.msra.mxu0 0
    %464 = vmatprep.subr.bf16.mxu0 0
    %465 = vmatpush1.bf16.msra.mxu0 0
    %466 = vmatprep.subr.bf16.mxu0 0
    %467 = vmatpush1.bf16.msra.mxu0 0
    %468 = vmatprep.mubr.bf16.mxu0 0
    %469 = vmatmul.mubr.bf16.gmra.mrb[0].mxu0 %v147
    %v470 = vpop.f32.mrb[0].mxu0
    %v471 = vadd.f32 0.0, %v470
    %v472 = vpop.f32.mrb[0].mxu0
    %v473 = vadd.f32 0.0, %v472
    %v474 = vpop.f32.mrb[0].mxu0
    %v475 = vadd.f32 0.0, %v474
    %v476 = vpop.f32.mrb[0].mxu0
    %v477 = vadd.f32 0.0, %v476
    %478 = vmatprep.mubr.bf16.mxu0 0
    %479 = vmatmul.mubr.bf16.gmra.mrb[0].mxu0 %v148
    %v480 = vpop.f32.mrb[0].mxu0
    %v481 = vadd.f32 0.0, %v480
    %v482 = vpop.f32.mrb[0].mxu0
    %v483 = vadd.f32 0.0, %v482
    %v484 = vpop.f32.mrb[0].mxu0
    %v485 = vadd.f32 0.0, %v484
    %v486 = vpop.f32.mrb[0].mxu0
    %v487 = vadd.f32 0.0, %v486
    %488 = vmatprep.mubr.bf16.mxu0 0
    %489 = vmatmul.mubr.bf16.gmra.mrb[0].mxu0 %v149
    %v490 = vpop.f32.mrb[0].mxu0
    %v491 = vadd.f32 0.0, %v490
    %v492 = vpop.f32.mrb[0].mxu0
    %v493 = vadd.f32 0.0, %v492
    %v494 = vpop.f32.mrb[0].mxu0
    %v495 = vadd.f32 0.0, %v494
    %v496 = vpop.f32.mrb[0].mxu0
    %v497 = vadd.f32 0.0, %v496
    %498 = vmatprep.mubr.bf16.mxu0 0
    %499 = vmatmul.mubr.bf16.gmra.mrb[0].mxu0 %v150
    %v500 = vpop.f32.mrb[0].mxu0
    %v501 = vadd.f32 0.0, %v500
    %v502 = vpop.f32.mrb[0].mxu0
    %v503 = vadd.f32 0.0, %v502
    %v504 = vpop.f32.mrb[0].mxu0
    %v505 = vadd.f32 0.0, %v504
    %v506 = vpop.f32.mrb[0].mxu0
    %v507 = vadd.f32 0.0, %v506
    %508 = vdwg.mxu0
    %509 = vmatprep.subr.bf16.mxu0 0
    %510 = vmatpush1.bf16.msra.mxu0 %v287
    %511 = vmatprep.subr.bf16.mxu0 0
    %512 = vmatpush1.bf16.msra.mxu0 %v292
    %513 = vmatprep.subr.bf16.mxu0 0
    %514 = vmatpush1.bf16.msra.mxu0 %v297
    %515 = vmatprep.subr.bf16.mxu0 0
    %516 = vmatpush1.bf16.msra.mxu0 %v302
    %517 = vmatprep.subr.bf16.mxu0 0
    %518 = vmatpush1.bf16.msra.mxu0 %v307
    %519 = vmatprep.subr.bf16.mxu0 0
    %520 = vmatpush1.bf16.msra.mxu0 %v312
    %521 = vmatprep.subr.bf16.mxu0 0
    %522 = vmatpush1.bf16.msra.mxu0 %v317
    %523 = vmatprep.subr.bf16.mxu0 0
    %524 = vmatpush1.bf16.msra.mxu0 %v322
    %525 = vmatprep.subr.bf16.mxu0 0
    %526 = vmatpush1.bf16.msra.mxu0 0
    %527 = vmatprep.subr.bf16.mxu0 0
    %528 = vmatpush1.bf16.msra.mxu0 0
    %529 = vmatprep.subr.bf16.mxu0 0
    %530 = vmatpush1.bf16.msra.mxu0 0
    %531 = vmatprep.subr.bf16.mxu0 0
    %532 = vmatpush1.bf16.msra.mxu0 0
    %533 = vmatprep.subr.bf16.mxu0 0
    %534 = vmatpush1.bf16.msra.mxu0 0
    %535 = vmatprep.subr.bf16.mxu0 0
    %536 = vmatpush1.bf16.msra.mxu0 0
    %537 = vmatprep.subr.bf16.mxu0 0
    %538 = vmatpush1.bf16.msra.mxu0 0
    %539 = vmatprep.subr.bf16.mxu0 0
    %540 = vmatpush1.bf16.msra.mxu0 0
    %541 = vmatprep.mubr.bf16.mxu0 0
    %542 = vmatmul.mubr.bf16.gmra.mrb[0].mxu0 %v147
    %v543 = vpop.f32.mrb[0].mxu0
    %v544 = vadd.f32 0.0, %v543
    %v545 = vpop.f32.mrb[0].mxu0
    %v546 = vpop.f32.mrb[0].mxu0
    %v547 = vadd.f32 0.0, %v546
    %v548 = vpop.f32.mrb[0].mxu0
    %549 = vmatprep.mubr.bf16.mxu0 0
    %550 = vmatmul.mubr.bf16.gmra.mrb[0].mxu0 %v148
    %v551 = vpop.f32.mrb[0].mxu0
    %v552 = vadd.f32 0.0, %v551
    %v553 = vpop.f32.mrb[0].mxu0
    %v554 = vpop.f32.mrb[0].mxu0
    %v555 = vadd.f32 0.0, %v554
    %v556 = vpop.f32.mrb[0].mxu0
    %557 = vmatprep.mubr.bf16.mxu0 0
    %558 = vmatmul.mubr.bf16.gmra.mrb[0].mxu0 %v149
    %v559 = vpop.f32.mrb[0].mxu0
    %v560 = vadd.f32 0.0, %v559
    %v561 = vpop.f32.mrb[0].mxu0
    %v562 = vpop.f32.mrb[0].mxu0
    %v563 = vadd.f32 0.0, %v562
    %v564 = vpop.f32.mrb[0].mxu0
    %565 = vmatprep.mubr.bf16.mxu0 0
    %566 = vmatmul.mubr.bf16.gmra.mrb[0].mxu0 %v150
    %v567 = vpop.f32.mrb[0].mxu0
    %v568 = vadd.f32 0.0, %v567
    %v569 = vpop.f32.mrb[0].mxu0
    %v570 = vpop.f32.mrb[0].mxu0
    %v571 = vadd.f32 0.0, %v570
    %v572 = vpop.f32.mrb[0].mxu0
    %573 = vdwg.mxu0
    %574 = vst [vmem:[#allocation2] sm:$0xff] %v398
    %575 = vst [vmem:[#allocation2 + $0x8] sm:$0xff] %v400
    %576 = vst [vmem:[#allocation2 + $0x10] sm:$0xff] %v471
    %577 = vst [vmem:[#allocation2 + $0x18] sm:$0xff] %v473
    %578 = vst [vmem:[#allocation2 + $0x20] sm:$0xff] %v544
    %579 = vst [vmem:[#allocation2 + $0x28] sm:$0xff] %v402
    %580 = vst [vmem:[#allocation2 + $0x30] sm:$0xff] %v404
    %581 = vst [vmem:[#allocation2 + $0x38] sm:$0xff] %v475
    %582 = vst [vmem:[#allocation2 + $0x40] sm:$0xff] %v477
    %583 = vst [vmem:[#allocation2 + $0x48] sm:$0xff] %v547
    %584 = vst [vmem:[#allocation2 + $0x50] sm:$0xff] %v408
    %585 = vst [vmem:[#allocation2 + $0x58] sm:$0xff] %v410
    %586 = vst [vmem:[#allocation2 + $0x60] sm:$0xff] %v481
    %587 = vst [vmem:[#allocation2 + $0x68] sm:$0xff] %v483
    %588 = vst [vmem:[#allocation2 + $0x70] sm:$0xff] %v552
    %589 = vst [vmem:[#allocation2 + $0x78] sm:$0xff] %v412
    %590 = vst [vmem:[#allocation2 + $0x80] sm:$0xff] %v414
    %591 = vst [vmem:[#allocation2 + $0x88] sm:$0xff] %v485
    %592 = vst [vmem:[#allocation2 + $0x90] sm:$0xff] %v487
    %593 = vst [vmem:[#allocation2 + $0x98] sm:$0xff] %v555
    %594 = vst [vmem:[#allocation2 + $0xa0] sm:$0xff] %v418
    %595 = vst [vmem:[#allocation2 + $0xa8] sm:$0xff] %v420
    %596 = vst [vmem:[#allocation2 + $0xb0] sm:$0xff] %v491
    %597 = vst [vmem:[#allocation2 + $0xb8] sm:$0xff] %v493
    %598 = vst [vmem:[#allocation2 + $0xc0] sm:$0xff] %v560
    %599 = vst [vmem:[#allocation2 + $0xc8] sm:$0xff] %v422
    %600 = vst [vmem:[#allocation2 + $0xd0] sm:$0xff] %v424
    %601 = vst [vmem:[#allocation2 + $0xd8] sm:$0xff] %v495
    %602 = vst [vmem:[#allocation2 + $0xe0] sm:$0xff] %v497
    %603 = vst [vmem:[#allocation2 + $0xe8] sm:$0xff] %v563
    %604 = vst [vmem:[#allocation2 + $0xf0] sm:$0xff] %v428
    %605 = vst [vmem:[#allocation2 + $0xf8] sm:$0xff] %v430
    %606 = vst [vmem:[#allocation2 + $0x100] sm:$0xff] %v501
    %607 = vst [vmem:[#allocation2 + $0x108] sm:$0xff] %v503
    %608 = vst [vmem:[#allocation2 + $0x110] sm:$0xff] %v568
    %609 = vst [vmem:[#allocation2 + $0x118] sm:$0xff] %v432
    %610 = vst [vmem:[#allocation2 + $0x120] sm:$0xff] %v434
    %611 = vst [vmem:[#allocation2 + $0x128] sm:$0xff] %v505
    %612 = vst [vmem:[#allocation2 + $0x130] sm:$0xff] %v507
    %613 = vst [vmem:[#allocation2 + $0x138] sm:$0xff] %v571
    %v614 = vld [vmem:[#allocation2] sm:$0xff]
    %v615 = vld [vmem:[#allocation2 + $0x8] sm:$0xff]
    %v616 = vld [vmem:[#allocation2 + $0x10] sm:$0xff]
    %v617 = vld [vmem:[#allocation2 + $0x18] sm:$0xff]
    %v618 = vld [vmem:[#allocation2 + $0x20] sm:$0xff]
    %v619 = vld [vmem:[#allocation2 + $0x28] sm:$0xff]
    %v620 = vld [vmem:[#allocation2 + $0x30] sm:$0xff]
    %v621 = vld [vmem:[#allocation2 + $0x38] sm:$0xff]
    %v622 = vld [vmem:[#allocation2 + $0x40] sm:$0xff]
    %v623 = vld [vmem:[#allocation2 + $0x48] sm:$0xff]
    %v624 = vld [vmem:[#allocation2 + $0x50] sm:$0xff]
    %v625 = vld [vmem:[#allocation2 + $0x58] sm:$0xff]
    %v626 = vld [vmem:[#allocation2 + $0x60] sm:$0xff]
    %v627 = vld [vmem:[#allocation2 + $0x68] sm:$0xff]
    %v628 = vld [vmem:[#allocation2 + $0x70] sm:$0xff]
    %v629 = vld [vmem:[#allocation2 + $0x78] sm:$0xff]
    %v630 = vld [vmem:[#allocation2 + $0x80] sm:$0xff]
    %v631 = vld [vmem:[#allocation2 + $0x88] sm:$0xff]
    %v632 = vld [vmem:[#allocation2 + $0x90] sm:$0xff]
    %v633 = vld [vmem:[#allocation2 + $0x98] sm:$0xff]
    %v634 = vld [vmem:[#allocation2 + $0xa0] sm:$0xff]
    %v635 = vld [vmem:[#allocation2 + $0xa8] sm:$0xff]
    %v636 = vld [vmem:[#allocation2 + $0xb0] sm:$0xff]
    %v637 = vld [vmem:[#allocation2 + $0xb8] sm:$0xff]
    %v638 = vld [vmem:[#allocation2 + $0xc0] sm:$0xff]
    %v639 = vld [vmem:[#allocation2 + $0xc8] sm:$0xff]
    %v640 = vld [vmem:[#allocation2 + $0xd0] sm:$0xff]
    %v641 = vld [vmem:[#allocation2 + $0xd8] sm:$0xff]
    %v642 = vld [vmem:[#allocation2 + $0xe0] sm:$0xff]
    %v643 = vld [vmem:[#allocation2 + $0xe8] sm:$0xff]
    %v644 = vld [vmem:[#allocation2 + $0xf0] sm:$0xff]
    %v645 = vld [vmem:[#allocation2 + $0xf8] sm:$0xff]
    %v646 = vld [vmem:[#allocation2 + $0x100] sm:$0xff]
    %v647 = vld [vmem:[#allocation2 + $0x108] sm:$0xff]
    %v648 = vld [vmem:[#allocation2 + $0x110] sm:$0xff]
    %v649 = vld [vmem:[#allocation2 + $0x118] sm:$0xff]
    %v650 = vld [vmem:[#allocation2 + $0x120] sm:$0xff]
    %v651 = vld [vmem:[#allocation2 + $0x128] sm:$0xff]
    %v652 = vld [vmem:[#allocation2 + $0x130] sm:$0xff]
    %v653 = vld [vmem:[#allocation2 + $0x138] sm:$0xff]
    %v654 = vld [vmem:[#allocation3] sm:$0xf]
    %v655 = vld [vmem:[#allocation3 + $0x4] sm:$0x1]
    %v656 = vld [vmem:[#allocation3 + $0x8] sm:$0xf]
    %v657 = vld [vmem:[#allocation3 + $0xc] sm:$0x1]
    %v658 = vld [vmem:[#allocation3 + $0x10] sm:$0xf]
    %v659 = vld [vmem:[#allocation3 + $0x14] sm:$0x1]
    %v660 = vld [vmem:[#allocation3 + $0x18] sm:$0xf]
    %v661 = vld [vmem:[#allocation3 + $0x1c] sm:$0x1]
    %v662 = vld [vmem:[#allocation3 + $0x20] sm:$0xf]
    %v663 = vld [vmem:[#allocation3 + $0x24] sm:$0x1]
    %v664 = vld [vmem:[#allocation3 + $0x28] sm:$0xf]
    %v665 = vld [vmem:[#allocation3 + $0x2c] sm:$0x1]
    %v666 = vld [vmem:[#allocation3 + $0x30] sm:$0xf]
    %v667 = vld [vmem:[#allocation3 + $0x34] sm:$0x1]
    %v668 = vld [vmem:[#allocation3 + $0x38] sm:$0xf]
    %v669 = vld [vmem:[#allocation3 + $0x3c] sm:$0x1]
    %vm670 = vsmask.f32 3328
    %vm671 = vsmask.f32 7440
    %vm672 = vmor %vm670, %vm671
    %v674 = vshrl.u32 %v654, 16
    %v676 = vrot.slane %v674, 4
    %v677 = vshll.u32 %v654, 16
    %v679 = vrot.slane %v677, 5
    %v680 = vor.u32 %v676, %v679
    %v681 = vrot.slane %v680, 4
    %v683 = vshll.u32 %v655, 16
    %v685 = vrot.slane %v683, 5
    %v686 = vsel %vm672, %v681, %v685
    %v688 = vshrl.u32 %v656, 16
    %v690 = vrot.slane %v688, 4
    %v691 = vshll.u32 %v656, 16
    %v693 = vrot.slane %v691, 5
    %v694 = vor.u32 %v690, %v693
    %v695 = vrot.slane %v694, 4
    %v697 = vshll.u32 %v657, 16
    %v699 = vrot.slane %v697, 5
    %v700 = vsel %vm672, %v695, %v699
    %v702 = vshrl.u32 %v658, 16
    %v704 = vrot.slane %v702, 4
    %v705 = vshll.u32 %v658, 16
    %v707 = vrot.slane %v705, 5
    %v708 = vor.u32 %v704, %v707
    %v709 = vrot.slane %v708, 4
    %v711 = vshll.u32 %v659, 16
    %v713 = vrot.slane %v711, 5
    %v714 = vsel %vm672, %v709, %v713
    %v716 = vshrl.u32 %v660, 16
    %v718 = vrot.slane %v716, 4
    %v719 = vshll.u32 %v660, 16
    %v721 = vrot.slane %v719, 5
    %v722 = vor.u32 %v718, %v721
    %v723 = vrot.slane %v722, 4
    %v725 = vshll.u32 %v661, 16
    %v727 = vrot.slane %v725, 5
    %v728 = vsel %vm672, %v723, %v727
    %v730 = vshrl.u32 %v662, 16
    %v732 = vrot.slane %v730, 4
    %v733 = vshll.u32 %v662, 16
    %v735 = vrot.slane %v733, 5
    %v736 = vor.u32 %v732, %v735
    %v737 = vrot.slane %v736, 4
    %v739 = vshll.u32 %v663, 16
    %v741 = vrot.slane %v739, 5
    %v742 = vsel %vm672, %v737, %v741
    %v744 = vshrl.u32 %v664, 16
    %v746 = vrot.slane %v744, 4
    %v747 = vshll.u32 %v664, 16
    %v749 = vrot.slane %v747, 5
    %v750 = vor.u32 %v746, %v749
    %v751 = vrot.slane %v750, 4
    %v753 = vshll.u32 %v665, 16
    %v755 = vrot.slane %v753, 5
    %v756 = vsel %vm672, %v751, %v755
    %v758 = vshrl.u32 %v666, 16
    %v760 = vrot.slane %v758, 4
    %v761 = vshll.u32 %v666, 16
    %v763 = vrot.slane %v761, 5
    %v764 = vor.u32 %v760, %v763
    %v765 = vrot.slane %v764, 4
    %v767 = vshll.u32 %v667, 16
    %v769 = vrot.slane %v767, 5
    %v770 = vsel %vm672, %v765, %v769
    %v772 = vshrl.u32 %v668, 16
    %v774 = vrot.slane %v772, 4
    %v775 = vshll.u32 %v668, 16
    %v777 = vrot.slane %v775, 5
    %v778 = vor.u32 %v774, %v777
    %v779 = vrot.slane %v778, 4
    %v781 = vshll.u32 %v669, 16
    %v783 = vrot.slane %v781, 5
    %v784 = vsel %vm672, %v779, %v783
    %v785 = vld [vmem:[#allocation6 + $0x140] sm:$0xff]
    %v786 = vld [vmem:[#allocation6 + $0x148] sm:$0xff]
    %v787 = vld [vmem:[#allocation6 + $0x150] sm:$0xf]
    %v788 = vld [vmem:[#allocation6 + $0x154] sm:$0xff]
    %v789 = vld [vmem:[#allocation6 + $0x15c] sm:$0xff]
    %v790 = vld [vmem:[#allocation6 + $0x164] sm:$0xf]
    %v791 = vld [vmem:[#allocation6 + $0x168] sm:$0xff]
    %v792 = vld [vmem:[#allocation6 + $0x170] sm:$0xff]
    %v793 = vld [vmem:[#allocation6 + $0x178] sm:$0xf]
    %v794 = vld [vmem:[#allocation6 + $0x17c] sm:$0xff]
    %v795 = vld [vmem:[#allocation6 + $0x184] sm:$0xff]
    %v796 = vld [vmem:[#allocation6 + $0x18c] sm:$0xf]
    %v797 = vld [vmem:[#allocation6 + $0x190] sm:$0xff]
    %v798 = vld [vmem:[#allocation6 + $0x198] sm:$0xff]
    %v799 = vld [vmem:[#allocation6 + $0x1a0] sm:$0xf]
    %v800 = vld [vmem:[#allocation6 + $0x1a4] sm:$0xff]
    %v801 = vld [vmem:[#allocation6 + $0x1ac] sm:$0xff]
    %v802 = vld [vmem:[#allocation6 + $0x1b4] sm:$0xf]
    %v803 = vld [vmem:[#allocation6 + $0x1b8] sm:$0xff]
    %v804 = vld [vmem:[#allocation6 + $0x1c0] sm:$0xff]
    %v805 = vld [vmem:[#allocation6 + $0x1c8] sm:$0xf]
    %v806 = vld [vmem:[#allocation6 + $0x1cc] sm:$0xff]
    %v807 = vld [vmem:[#allocation6 + $0x1d4] sm:$0xff]
    %v808 = vld [vmem:[#allocation6 + $0x1dc] sm:$0xf]
    %v809 = vld [vmem:[#allocation6 + $0x1e0] sm:$0xff]
    %v810 = vld [vmem:[#allocation6 + $0x1e8] sm:$0xff]
    %v811 = vld [vmem:[#allocation6 + $0x1f0] sm:$0xf]
    %v812 = vld [vmem:[#allocation6 + $0x1f4] sm:$0xff]
    %v813 = vld [vmem:[#allocation6 + $0x1fc] sm:$0xff]
    %v814 = vld [vmem:[#allocation6 + $0x204] sm:$0xf]
    %v815 = vld [vmem:[#allocation6 + $0x208] sm:$0xff]
    %v816 = vld [vmem:[#allocation6 + $0x210] sm:$0xff]
    %v817 = vld [vmem:[#allocation6 + $0x218] sm:$0xf]
    %v818 = vld [vmem:[#allocation6 + $0x21c] sm:$0xff]
    %v819 = vld [vmem:[#allocation6 + $0x224] sm:$0xff]
    %v820 = vld [vmem:[#allocation6 + $0x22c] sm:$0xf]
    %v821 = vld [vmem:[#allocation6 + $0x230] sm:$0xff]
    %v822 = vld [vmem:[#allocation6 + $0x238] sm:$0xff]
    %v823 = vld [vmem:[#allocation6 + $0x240] sm:$0xf]
    %v824 = vld [vmem:[#allocation6 + $0x244] sm:$0xff]
    %v825 = vld [vmem:[#allocation6 + $0x24c] sm:$0xff]
    %v826 = vld [vmem:[#allocation6 + $0x254] sm:$0xf]
    %v827 = vld [vmem:[#allocation6 + $0x258] sm:$0xff]
    %v828 = vld [vmem:[#allocation6 + $0x260] sm:$0xff]
    %v829 = vld [vmem:[#allocation6 + $0x268] sm:$0xf]
    %v830 = vld [vmem:[#allocation6 + $0x26c] sm:$0xff]
    %v831 = vld [vmem:[#allocation6 + $0x274] sm:$0xff]
    %v832 = vld [vmem:[#allocation6 + $0x27c] sm:$0xf]
    %v833 = vunpack.c.l.b16 %v686
    %v834 = vunpack.c.l.b16 %v700
    %v835 = vunpack.c.l.b16 %v714
    %v836 = vunpack.c.l.b16 %v728
    %v837 = vunpack.c.l.b16 %v742
    %v838 = vunpack.c.l.b16 %v756
    %v839 = vunpack.c.l.b16 %v770
    %v840 = vunpack.c.l.b16 %v784
    %v841 = vpack.c.b16 %v834, %v833
    %v842 = vpack.c.b16 %v836, %v835
    %v843 = vpack.c.b16 %v838, %v837
    %v844 = vpack.c.b16 %v840, %v839
    %v897 = vunpack.c.l.b16 %v785
    %v898 = vunpack.c.h.b16 %v785
    %v899 = vunpack.c.l.b16 %v786
    %v900 = vunpack.c.h.b16 %v786
    %v901 = vunpack.c.l.b16 %v787
    %v902 = vunpack.c.l.b16 %v788
    %v903 = vunpack.c.h.b16 %v788
    %v904 = vunpack.c.l.b16 %v789
    %v905 = vunpack.c.h.b16 %v789
    %v906 = vunpack.c.l.b16 %v790
    %v907 = vunpack.c.l.b16 %v791
    %v908 = vunpack.c.h.b16 %v791
    %v909 = vunpack.c.l.b16 %v792
    %v910 = vunpack.c.h.b16 %v792
    %v911 = vunpack.c.l.b16 %v793
    %v912 = vunpack.c.l.b16 %v794
    %v913 = vunpack.c.h.b16 %v794
    %v914 = vunpack.c.l.b16 %v795
    %v915 = vunpack.c.h.b16 %v795
    %v916 = vunpack.c.l.b16 %v796
    %v917 = vunpack.c.l.b16 %v797
    %v918 = vunpack.c.h.b16 %v797
    %v919 = vunpack.c.l.b16 %v798
    %v920 = vunpack.c.h.b16 %v798
    %v921 = vunpack.c.l.b16 %v799
    %v922 = vunpack.c.l.b16 %v800
    %v923 = vunpack.c.h.b16 %v800
    %v924 = vunpack.c.l.b16 %v801
    %v925 = vunpack.c.h.b16 %v801
    %v926 = vunpack.c.l.b16 %v802
    %v927 = vunpack.c.l.b16 %v803
    %v928 = vunpack.c.h.b16 %v803
    %v929 = vunpack.c.l.b16 %v804
    %v930 = vunpack.c.h.b16 %v804
    %v931 = vunpack.c.l.b16 %v805
    %v932 = vunpack.c.l.b16 %v806
    %v933 = vunpack.c.h.b16 %v806
    %v934 = vunpack.c.l.b16 %v807
    %v935 = vunpack.c.h.b16 %v807
    %v936 = vunpack.c.l.b16 %v808
    %v937 = vunpack.c.l.b16 %v809
    %v938 = vunpack.c.h.b16 %v809
    %v939 = vunpack.c.l.b16 %v810
    %v940 = vunpack.c.h.b16 %v810
    %v941 = vunpack.c.l.b16 %v811
    %v942 = vunpack.c.l.b16 %v812
    %v943 = vunpack.c.h.b16 %v812
    %v944 = vunpack.c.l.b16 %v813
    %v945 = vunpack.c.h.b16 %v813
    %v946 = vunpack.c.l.b16 %v814
    %v947 = vunpack.c.l.b16 %v815
    %v948 = vunpack.c.h.b16 %v815
    %v949 = vunpack.c.l.b16 %v816
    %v950 = vunpack.c.h.b16 %v816
    %v951 = vunpack.c.l.b16 %v817
    %v952 = vunpack.c.l.b16 %v818
    %v953 = vunpack.c.h.b16 %v818
    %v954 = vunpack.c.l.b16 %v819
    %v955 = vunpack.c.h.b16 %v819
    %v956 = vunpack.c.l.b16 %v820
    %v957 = vunpack.c.l.b16 %v821
    %v958 = vunpack.c.h.b16 %v821
    %v959 = vunpack.c.l.b16 %v822
    %v960 = vunpack.c.h.b16 %v822
    %v961 = vunpack.c.l.b16 %v823
    %v962 = vunpack.c.l.b16 %v824
    %v963 = vunpack.c.h.b16 %v824
    %v964 = vunpack.c.l.b16 %v825
    %v965 = vunpack.c.h.b16 %v825
    %v966 = vunpack.c.l.b16 %v826
    %v967 = vunpack.c.l.b16 %v827
    %v968 = vunpack.c.h.b16 %v827
    %v969 = vunpack.c.l.b16 %v828
    %v970 = vunpack.c.h.b16 %v828
    %v971 = vunpack.c.l.b16 %v829
    %v972 = vunpack.c.l.b16 %v830
    %v973 = vunpack.c.h.b16 %v830
    %v974 = vunpack.c.l.b16 %v831
    %v975 = vunpack.c.h.b16 %v831
    %v976 = vunpack.c.l.b16 %v832
    %v977 = vpack.c.b16 %v902, %v897
    %v978 = vpack.c.b16 %v903, %v898
    %v979 = vpack.c.b16 %v904, %v899
    %v980 = vpack.c.b16 %v905, %v900
    %v981 = vpack.c.b16 %v906, %v901
    %v982 = vpack.c.b16 %v912, %v907
    %v983 = vpack.c.b16 %v913, %v908
    %v984 = vpack.c.b16 %v914, %v909
    %v985 = vpack.c.b16 %v915, %v910
    %v986 = vpack.c.b16 %v916, %v911
    %v987 = vpack.c.b16 %v922, %v917
    %v988 = vpack.c.b16 %v923, %v918
    %v989 = vpack.c.b16 %v924, %v919
    %v990 = vpack.c.b16 %v925, %v920
    %v991 = vpack.c.b16 %v926, %v921
    %v992 = vpack.c.b16 %v932, %v927
    %v993 = vpack.c.b16 %v933, %v928
    %v994 = vpack.c.b16 %v934, %v929
    %v995 = vpack.c.b16 %v935, %v930
    %v996 = vpack.c.b16 %v936, %v931
    %v997 = vpack.c.b16 %v942, %v937
    %v998 = vpack.c.b16 %v943, %v938
    %v999 = vpack.c.b16 %v944, %v939
    %v1000 = vpack.c.b16 %v945, %v940
    %v1001 = vpack.c.b16 %v946, %v941
    %v1002 = vpack.c.b16 %v952, %v947
    %v1003 = vpack.c.b16 %v953, %v948
    %v1004 = vpack.c.b16 %v954, %v949
    %v1005 = vpack.c.b16 %v955, %v950
    %v1006 = vpack.c.b16 %v956, %v951
    %v1007 = vpack.c.b16 %v962, %v957
    %v1008 = vpack.c.b16 %v963, %v958
    %v1009 = vpack.c.b16 %v964, %v959
    %v1010 = vpack.c.b16 %v965, %v960
    %v1011 = vpack.c.b16 %v966, %v961
    %v1012 = vpack.c.b16 %v972, %v967
    %v1013 = vpack.c.b16 %v973, %v968
    %v1014 = vpack.c.b16 %v974, %v969
    %v1015 = vpack.c.b16 %v975, %v970
    %v1016 = vpack.c.b16 %v976, %v971
    %1057 = vmatprep.subr.bf16.mxu0 %v978
    %1058 = vmatpush1.bf16.msra.mxu0 %v977
    %1059 = vmatprep.subr.bf16.mxu0 %v983
    %1060 = vmatpush1.bf16.msra.mxu0 %v982
    %1061 = vmatprep.subr.bf16.mxu0 %v988
    %1062 = vmatpush1.bf16.msra.mxu0 %v987
    %1063 = vmatprep.subr.bf16.mxu0 %v993
    %1064 = vmatpush1.bf16.msra.mxu0 %v992
    %1065 = vmatprep.subr.bf16.mxu0 %v998
    %1066 = vmatpush1.bf16.msra.mxu0 %v997
    %1067 = vmatprep.subr.bf16.mxu0 %v1003
    %1068 = vmatpush1.bf16.msra.mxu0 %v1002
    %1069 = vmatprep.subr.bf16.mxu0 %v1008
    %1070 = vmatpush1.bf16.msra.mxu0 %v1007
    %1071 = vmatprep.subr.bf16.mxu0 %v1013
    %1072 = vmatpush1.bf16.msra.mxu0 %v1012
    %1073 = vmatprep.subr.bf16.mxu0 0
    %1074 = vmatpush1.bf16.msra.mxu0 0
    %1075 = vmatprep.subr.bf16.mxu0 0
    %1076 = vmatpush1.bf16.msra.mxu0 0
    %1077 = vmatprep.subr.bf16.mxu0 0
    %1078 = vmatpush1.bf16.msra.mxu0 0
    %1079 = vmatprep.subr.bf16.mxu0 0
    %1080 = vmatpush1.bf16.msra.mxu0 0
    %1081 = vmatprep.subr.bf16.mxu0 0
    %1082 = vmatpush1.bf16.msra.mxu0 0
    %1083 = vmatprep.subr.bf16.mxu0 0
    %1084 = vmatpush1.bf16.msra.mxu0 0
    %1085 = vmatprep.subr.bf16.mxu0 0
    %1086 = vmatpush1.bf16.msra.mxu0 0
    %1087 = vmatprep.subr.bf16.mxu0 0
    %1088 = vmatpush1.bf16.msra.mxu0 0
    %1089 = vmatprep.mubr.bf16.mxu0 0
    %1090 = vmatmul.mubr.bf16.gmra.mrb[0].mxu0 %v841
    %v1091 = vpop.f32.mrb[0].mxu0
    %v1092 = vadd.f32 0.0, %v1091
    %v1093 = vpop.f32.mrb[0].mxu0
    %v1094 = vadd.f32 0.0, %v1093
    %v1095 = vpop.f32.mrb[0].mxu0
    %v1096 = vadd.f32 0.0, %v1095
    %v1097 = vpop.f32.mrb[0].mxu0
    %v1098 = vadd.f32 0.0, %v1097
    %1099 = vmatprep.mubr.bf16.mxu0 0
    %1100 = vmatmul.mubr.bf16.gmra.mrb[0].mxu0 %v842
    %v1101 = vpop.f32.mrb[0].mxu0
    %v1102 = vadd.f32 0.0, %v1101
    %v1103 = vpop.f32.mrb[0].mxu0
    %v1104 = vadd.f32 0.0, %v1103
    %v1105 = vpop.f32.mrb[0].mxu0
    %v1106 = vadd.f32 0.0, %v1105
    %v1107 = vpop.f32.mrb[0].mxu0
    %v1108 = vadd.f32 0.0, %v1107
    %1109 = vmatprep.mubr.bf16.mxu0 0
    %1110 = vmatmul.mubr.bf16.gmra.mrb[0].mxu0 %v843
    %v1111 = vpop.f32.mrb[0].mxu0
    %v1112 = vadd.f32 0.0, %v1111
    %v1113 = vpop.f32.mrb[0].mxu0
    %v1114 = vadd.f32 0.0, %v1113
    %v1115 = vpop.f32.mrb[0].mxu0
    %v1116 = vadd.f32 0.0, %v1115
    %v1117 = vpop.f32.mrb[0].mxu0
    %v1118 = vadd.f32 0.0, %v1117
    %1119 = vmatprep.mubr.bf16.mxu0 0
    %1120 = vmatmul.mubr.bf16.gmra.mrb[0].mxu0 %v844
    %v1121 = vpop.f32.mrb[0].mxu0
    %v1122 = vadd.f32 0.0, %v1121
    %v1123 = vpop.f32.mrb[0].mxu0
    %v1124 = vadd.f32 0.0, %v1123
    %v1125 = vpop.f32.mrb[0].mxu0
    %v1126 = vadd.f32 0.0, %v1125
    %v1127 = vpop.f32.mrb[0].mxu0
    %v1128 = vadd.f32 0.0, %v1127
    %1129 = vdwg.mxu0
    %1130 = vmatprep.subr.bf16.mxu0 %v980
    %1131 = vmatpush1.bf16.msra.mxu0 %v979
    %1132 = vmatprep.subr.bf16.mxu0 %v985
    %1133 = vmatpush1.bf16.msra.mxu0 %v984
    %1134 = vmatprep.subr.bf16.mxu0 %v990
    %1135 = vmatpush1.bf16.msra.mxu0 %v989
    %1136 = vmatprep.subr.bf16.mxu0 %v995
    %1137 = vmatpush1.bf16.msra.mxu0 %v994
    %1138 = vmatprep.subr.bf16.mxu0 %v1000
    %1139 = vmatpush1.bf16.msra.mxu0 %v999
    %1140 = vmatprep.subr.bf16.mxu0 %v1005
    %1141 = vmatpush1.bf16.msra.mxu0 %v1004
    %1142 = vmatprep.subr.bf16.mxu0 %v1010
    %1143 = vmatpush1.bf16.msra.mxu0 %v1009
    %1144 = vmatprep.subr.bf16.mxu0 %v1015
    %1145 = vmatpush1.bf16.msra.mxu0 %v1014
    %1146 = vmatprep.subr.bf16.mxu0 0
    %1147 = vmatpush1.bf16.msra.mxu0 0
    %1148 = vmatprep.subr.bf16.mxu0 0
    %1149 = vmatpush1.bf16.msra.mxu0 0
    %1150 = vmatprep.subr.bf16.mxu0 0
    %1151 = vmatpush1.bf16.msra.mxu0 0
    %1152 = vmatprep.subr.bf16.mxu0 0
    %1153 = vmatpush1.bf16.msra.mxu0 0
    %1154 = vmatprep.subr.bf16.mxu0 0
    %1155 = vmatpush1.bf16.msra.mxu0 0
    %1156 = vmatprep.subr.bf16.mxu0 0
    %1157 = vmatpush1.bf16.msra.mxu0 0
    %1158 = vmatprep.subr.bf16.mxu0 0
    %1159 = vmatpush1.bf16.msra.mxu0 0
    %1160 = vmatprep.subr.bf16.mxu0 0
    %1161 = vmatpush1.bf16.msra.mxu0 0
    %1162 = vmatprep.mubr.bf16.mxu0 0
    %1163 = vmatmul.mubr.bf16.gmra.mrb[0].mxu0 %v841
    %v1164 = vpop.f32.mrb[0].mxu0
    %v1165 = vadd.f32 0.0, %v1164
    %v1166 = vpop.f32.mrb[0].mxu0
    %v1167 = vadd.f32 0.0, %v1166
    %v1168 = vpop.f32.mrb[0].mxu0
    %v1169 = vadd.f32 0.0, %v1168
    %v1170 = vpop.f32.mrb[0].mxu0
    %v1171 = vadd.f32 0.0, %v1170
    %1172 = vmatprep.mubr.bf16.mxu0 0
    %1173 = vmatmul.mubr.bf16.gmra.mrb[0].mxu0 %v842
    %v1174 = vpop.f32.mrb[0].mxu0
    %v1175 = vadd.f32 0.0, %v1174
    %v1176 = vpop.f32.mrb[0].mxu0
    %v1177 = vadd.f32 0.0, %v1176
    %v1178 = vpop.f32.mrb[0].mxu0
    %v1179 = vadd.f32 0.0, %v1178
    %v1180 = vpop.f32.mrb[0].mxu0
    %v1181 = vadd.f32 0.0, %v1180
    %1182 = vmatprep.mubr.bf16.mxu0 0
    %1183 = vmatmul.mubr.bf16.gmra.mrb[0].mxu0 %v843
    %v1184 = vpop.f32.mrb[0].mxu0
    %v1185 = vadd.f32 0.0, %v1184
    %v1186 = vpop.f32.mrb[0].mxu0
    %v1187 = vadd.f32 0.0, %v1186
    %v1188 = vpop.f32.mrb[0].mxu0
    %v1189 = vadd.f32 0.0, %v1188
    %v1190 = vpop.f32.mrb[0].mxu0
    %v1191 = vadd.f32 0.0, %v1190
    %1192 = vmatprep.mubr.bf16.mxu0 0
    %1193 = vmatmul.mubr.bf16.gmra.mrb[0].mxu0 %v844
    %v1194 = vpop.f32.mrb[0].mxu0
    %v1195 = vadd.f32 0.0, %v1194
    %v1196 = vpop.f32.mrb[0].mxu0
    %v1197 = vadd.f32 0.0, %v1196
    %v1198 = vpop.f32.mrb[0].mxu0
    %v1199 = vadd.f32 0.0, %v1198
    %v1200 = vpop.f32.mrb[0].mxu0
    %v1201 = vadd.f32 0.0, %v1200
    %1202 = vdwg.mxu0
    %1203 = vmatprep.subr.bf16.mxu0 0
    %1204 = vmatpush1.bf16.msra.mxu0 %v981
    %1205 = vmatprep.subr.bf16.mxu0 0
    %1206 = vmatpush1.bf16.msra.mxu0 %v986
    %1207 = vmatprep.subr.bf16.mxu0 0
    %1208 = vmatpush1.bf16.msra.mxu0 %v991
    %1209 = vmatprep.subr.bf16.mxu0 0
    %1210 = vmatpush1.bf16.msra.mxu0 %v996
    %1211 = vmatprep.subr.bf16.mxu0 0
    %1212 = vmatpush1.bf16.msra.mxu0 %v1001
    %1213 = vmatprep.subr.bf16.mxu0 0
    %1214 = vmatpush1.bf16.msra.mxu0 %v1006
    %1215 = vmatprep.subr.bf16.mxu0 0
    %1216 = vmatpush1.bf16.msra.mxu0 %v1011
    %1217 = vmatprep.subr.bf16.mxu0 0
    %1218 = vmatpush1.bf16.msra.mxu0 %v1016
    %1219 = vmatprep.subr.bf16.mxu0 0
    %1220 = vmatpush1.bf16.msra.mxu0 0
    %1221 = vmatprep.subr.bf16.mxu0 0
    %1222 = vmatpush1.bf16.msra.mxu0 0
    %1223 = vmatprep.subr.bf16.mxu0 0
    %1224 = vmatpush1.bf16.msra.mxu0 0
    %1225 = vmatprep.subr.bf16.mxu0 0
    %1226 = vmatpush1.bf16.msra.mxu0 0
    %1227 = vmatprep.subr.bf16.mxu0 0
    %1228 = vmatpush1.bf16.msra.mxu0 0
    %1229 = vmatprep.subr.bf16.mxu0 0
    %1230 = vmatpush1.bf16.msra.mxu0 0
    %1231 = vmatprep.subr.bf16.mxu0 0
    %1232 = vmatpush1.bf16.msra.mxu0 0
    %1233 = vmatprep.subr.bf16.mxu0 0
    %1234 = vmatpush1.bf16.msra.mxu0 0
    %1235 = vmatprep.mubr.bf16.mxu0 0
    %1236 = vmatmul.mubr.bf16.gmra.mrb[0].mxu0 %v841
    %v1237 = vpop.f32.mrb[0].mxu0
    %v1238 = vadd.f32 0.0, %v1237
    %v1239 = vpop.f32.mrb[0].mxu0
    %v1240 = vpop.f32.mrb[0].mxu0
    %v1241 = vadd.f32 0.0, %v1240
    %v1242 = vpop.f32.mrb[0].mxu0
    %1243 = vmatprep.mubr.bf16.mxu0 0
    %1244 = vmatmul.mubr.bf16.gmra.mrb[0].mxu0 %v842
    %v1245 = vpop.f32.mrb[0].mxu0
    %v1246 = vadd.f32 0.0, %v1245
    %v1247 = vpop.f32.mrb[0].mxu0
    %v1248 = vpop.f32.mrb[0].mxu0
    %v1249 = vadd.f32 0.0, %v1248
    %v1250 = vpop.f32.mrb[0].mxu0
    %1251 = vmatprep.mubr.bf16.mxu0 0
    %1252 = vmatmul.mubr.bf16.gmra.mrb[0].mxu0 %v843
    %v1253 = vpop.f32.mrb[0].mxu0
    %v1254 = vadd.f32 0.0, %v1253
    %v1255 = vpop.f32.mrb[0].mxu0
    %v1256 = vpop.f32.mrb[0].mxu0
    %v1257 = vadd.f32 0.0, %v1256
    %v1258 = vpop.f32.mrb[0].mxu0
    %1259 = vmatprep.mubr.bf16.mxu0 0
    %1260 = vmatmul.mubr.bf16.gmra.mrb[0].mxu0 %v844
    %v1261 = vpop.f32.mrb[0].mxu0
    %v1262 = vadd.f32 0.0, %v1261
    %v1263 = vpop.f32.mrb[0].mxu0
    %v1264 = vpop.f32.mrb[0].mxu0
    %v1265 = vadd.f32 0.0, %v1264
    %v1266 = vpop.f32.mrb[0].mxu0
    %1267 = vdwg.mxu0
    %v1268 = vadd.f32 %v614, %v1092
    %v1269 = vadd.f32 %v615, %v1094
    %v1270 = vadd.f32 %v616, %v1165
    %v1271 = vadd.f32 %v617, %v1167
    %v1272 = vadd.f32 %v618, %v1238
    %v1273 = vadd.f32 %v619, %v1096
    %v1274 = vadd.f32 %v620, %v1098
    %v1275 = vadd.f32 %v621, %v1169
    %v1276 = vadd.f32 %v622, %v1171
    %v1277 = vadd.f32 %v623, %v1241
    %v1278 = vadd.f32 %v624, %v1102
    %v1279 = vadd.f32 %v625, %v1104
    %v1280 = vadd.f32 %v626, %v1175
    %v1281 = vadd.f32 %v627, %v1177
    %v1282 = vadd.f32 %v628, %v1246
    %v1283 = vadd.f32 %v629, %v1106
    %v1284 = vadd.f32 %v630, %v1108
    %v1285 = vadd.f32 %v631, %v1179
    %v1286 = vadd.f32 %v632, %v1181
    %v1287 = vadd.f32 %v633, %v1249
    %v1288 = vadd.f32 %v634, %v1112
    %v1289 = vadd.f32 %v635, %v1114
    %v1290 = vadd.f32 %v636, %v1185
    %v1291 = vadd.f32 %v637, %v1187
    %v1292 = vadd.f32 %v638, %v1254
    %v1293 = vadd.f32 %v639, %v1116
    %v1294 = vadd.f32 %v640, %v1118
    %v1295 = vadd.f32 %v641, %v1189
    %v1296 = vadd.f32 %v642, %v1191
    %v1297 = vadd.f32 %v643, %v1257
    %v1298 = vadd.f32 %v644, %v1122
    %v1299 = vadd.f32 %v645, %v1124
    %v1300 = vadd.f32 %v646, %v1195
    %v1301 = vadd.f32 %v647, %v1197
    %v1302 = vadd.f32 %v648, %v1262
    %v1303 = vadd.f32 %v649, %v1126
    %v1304 = vadd.f32 %v650, %v1128
    %v1305 = vadd.f32 %v651, %v1199
    %v1306 = vadd.f32 %v652, %v1201
    %v1307 = vadd.f32 %v653, %v1265
    %1308 = vst [vmem:[#allocation2] sm:$0xff] %v1268
    %1309 = vst [vmem:[#allocation2 + $0x8] sm:$0xff] %v1269
    %1310 = vst [vmem:[#allocation2 + $0x10] sm:$0xff] %v1270
    %1311 = vst [vmem:[#allocation2 + $0x18] sm:$0xff] %v1271
    %1312 = vst [vmem:[#allocation2 + $0x20] sm:$0xff] %v1272
    %1313 = vst [vmem:[#allocation2 + $0x28] sm:$0xff] %v1273
    %1314 = vst [vmem:[#allocation2 + $0x30] sm:$0xff] %v1274
    %1315 = vst [vmem:[#allocation2 + $0x38] sm:$0xff] %v1275
    %1316 = vst [vmem:[#allocation2 + $0x40] sm:$0xff] %v1276
    %1317 = vst [vmem:[#allocation2 + $0x48] sm:$0xff] %v1277
    %1318 = vst [vmem:[#allocation2 + $0x50] sm:$0xff] %v1278
    %1319 = vst [vmem:[#allocation2 + $0x58] sm:$0xff] %v1279
    %1320 = vst [vmem:[#allocation2 + $0x60] sm:$0xff] %v1280
    %1321 = vst [vmem:[#allocation2 + $0x68] sm:$0xff] %v1281
    %1322 = vst [vmem:[#allocation2 + $0x70] sm:$0xff] %v1282
    %1323 = vst [vmem:[#allocation2 + $0x78] sm:$0xff] %v1283
    %1324 = vst [vmem:[#allocation2 + $0x80] sm:$0xff] %v1284
    %1325 = vst [vmem:[#allocation2 + $0x88] sm:$0xff] %v1285
    %1326 = vst [vmem:[#allocation2 + $0x90] sm:$0xff] %v1286
    %1327 = vst [vmem:[#allocation2 + $0x98] sm:$0xff] %v1287
    %1328 = vst [vmem:[#allocation2 + $0xa0] sm:$0xff] %v1288
    %1329 = vst [vmem:[#allocation2 + $0xa8] sm:$0xff] %v1289
    %1330 = vst [vmem:[#allocation2 + $0xb0] sm:$0xff] %v1290
    %1331 = vst [vmem:[#allocation2 + $0xb8] sm:$0xff] %v1291
    %1332 = vst [vmem:[#allocation2 + $0xc0] sm:$0xff] %v1292
    %1333 = vst [vmem:[#allocation2 + $0xc8] sm:$0xff] %v1293
    %1334 = vst [vmem:[#allocation2 + $0xd0] sm:$0xff] %v1294
    %1335 = vst [vmem:[#allocation2 + $0xd8] sm:$0xff] %v1295
    %1336 = vst [vmem:[#allocation2 + $0xe0] sm:$0xff] %v1296
    %1337 = vst [vmem:[#allocation2 + $0xe8] sm:$0xff] %v1297
    %1338 = vst [vmem:[#allocation2 + $0xf0] sm:$0xff] %v1298
    %1339 = vst [vmem:[#allocation2 + $0xf8] sm:$0xff] %v1299
    %1340 = vst [vmem:[#allocation2 + $0x100] sm:$0xff] %v1300
    %1341 = vst [vmem:[#allocation2 + $0x108] sm:$0xff] %v1301
    %1342 = vst [vmem:[#allocation2 + $0x110] sm:$0xff] %v1302
    %1343 = vst [vmem:[#allocation2 + $0x118] sm:$0xff] %v1303
    %1344 = vst [vmem:[#allocation2 + $0x120] sm:$0xff] %v1304
    %1345 = vst [vmem:[#allocation2 + $0x128] sm:$0xff] %v1305
    %1346 = vst [vmem:[#allocation2 + $0x130] sm:$0xff] %v1306
    %1347 = vst [vmem:[#allocation2 + $0x138] sm:$0xff] %v1307
    %v1348 = vld [vmem:[#allocation2] sm:$0xff]
    %v1349 = vld [vmem:[#allocation2 + $0x8] sm:$0xff]
    %v1350 = vld [vmem:[#allocation2 + $0x10] sm:$0xff]
    %v1351 = vld [vmem:[#allocation2 + $0x18] sm:$0xff]
    %v1352 = vld [vmem:[#allocation2 + $0x20] sm:$0xff]
    %v1353 = vld [vmem:[#allocation2 + $0x28] sm:$0xff]
    %v1354 = vld [vmem:[#allocation2 + $0x30] sm:$0xff]
    %v1355 = vld [vmem:[#allocation2 + $0x38] sm:$0xff]
    %v1356 = vld [vmem:[#allocation2 + $0x40] sm:$0xff]
    %v1357 = vld [vmem:[#allocation2 + $0x48] sm:$0xff]
    %v1358 = vld [vmem:[#allocation2 + $0x50] sm:$0xff]
    %v1359 = vld [vmem:[#allocation2 + $0x58] sm:$0xff]
    %v1360 = vld [vmem:[#allocation2 + $0x60] sm:$0xff]
    %v1361 = vld [vmem:[#allocation2 + $0x68] sm:$0xff]
    %v1362 = vld [vmem:[#allocation2 + $0x70] sm:$0xff]
    %v1363 = vld [vmem:[#allocation2 + $0x78] sm:$0xff]
    %v1364 = vld [vmem:[#allocation2 + $0x80] sm:$0xff]
    %v1365 = vld [vmem:[#allocation2 + $0x88] sm:$0xff]
    %v1366 = vld [vmem:[#allocation2 + $0x90] sm:$0xff]
    %v1367 = vld [vmem:[#allocation2 + $0x98] sm:$0xff]
    %v1368 = vld [vmem:[#allocation2 + $0xa0] sm:$0xff]
    %v1369 = vld [vmem:[#allocation2 + $0xa8] sm:$0xff]
    %v1370 = vld [vmem:[#allocation2 + $0xb0] sm:$0xff]
    %v1371 = vld [vmem:[#allocation2 + $0xb8] sm:$0xff]
    %v1372 = vld [vmem:[#allocation2 + $0xc0] sm:$0xff]
    %v1373 = vld [vmem:[#allocation2 + $0xc8] sm:$0xff]
    %v1374 = vld [vmem:[#allocation2 + $0xd0] sm:$0xff]
    %v1375 = vld [vmem:[#allocation2 + $0xd8] sm:$0xff]
    %v1376 = vld [vmem:[#allocation2 + $0xe0] sm:$0xff]
    %v1377 = vld [vmem:[#allocation2 + $0xe8] sm:$0xff]
    %v1378 = vld [vmem:[#allocation2 + $0xf0] sm:$0xff]
    %v1379 = vld [vmem:[#allocation2 + $0xf8] sm:$0xff]
    %v1380 = vld [vmem:[#allocation2 + $0x100] sm:$0xff]
    %v1381 = vld [vmem:[#allocation2 + $0x108] sm:$0xff]
    %v1382 = vld [vmem:[#allocation2 + $0x110] sm:$0xff]
    %v1383 = vld [vmem:[#allocation2 + $0x118] sm:$0xff]
    %v1384 = vld [vmem:[#allocation2 + $0x120] sm:$0xff]
    %v1385 = vld [vmem:[#allocation2 + $0x128] sm:$0xff]
    %v1386 = vld [vmem:[#allocation2 + $0x130] sm:$0xff]
    %v1387 = vld [vmem:[#allocation2 + $0x138] sm:$0xff]
    %v1388 = vld [vmem:[#allocation3] sm:$0xe]
    %v1389 = vld [vmem:[#allocation3 + $0x4] sm:$0x1]
    %v1390 = vld [vmem:[#allocation3 + $0x8] sm:$0xe]
    %v1391 = vld [vmem:[#allocation3 + $0xc] sm:$0x1]
    %v1392 = vld [vmem:[#allocation3 + $0x10] sm:$0xe]
    %v1393 = vld [vmem:[#allocation3 + $0x14] sm:$0x1]
    %v1394 = vld [vmem:[#allocation3 + $0x18] sm:$0xe]
    %v1395 = vld [vmem:[#allocation3 + $0x1c] sm:$0x1]
    %v1396 = vld [vmem:[#allocation3 + $0x20] sm:$0xe]
    %v1397 = vld [vmem:[#allocation3 + $0x24] sm:$0x1]
    %v1398 = vld [vmem:[#allocation3 + $0x28] sm:$0xe]
    %v1399 = vld [vmem:[#allocation3 + $0x2c] sm:$0x1]
    %v1400 = vld [vmem:[#allocation3 + $0x30] sm:$0xe]
    %v1401 = vld [vmem:[#allocation3 + $0x34] sm:$0x1]
    %v1402 = vld [vmem:[#allocation3 + $0x38] sm:$0xe]
    %v1403 = vld [vmem:[#allocation3 + $0x3c] sm:$0x1]
    %vm1420 = vcmask 1042432
    %vm1421 = vcmask 1046532
    %vm1422 = vmor %vm1420, %vm1421
    %v1423 = vrot.slane %v1388, 5
    %v1424 = vrot.slane %v1423, 4
    %v1425 = vrot.slane %v1389, 5
    %v1426 = vsel %vm1422, %v1424, %v1425
    %v1427 = vrot.slane %v1390, 5
    %v1428 = vrot.slane %v1427, 4
    %v1429 = vrot.slane %v1391, 5
    %v1430 = vsel %vm1422, %v1428, %v1429
    %v1431 = vrot.slane %v1392, 5
    %v1432 = vrot.slane %v1431, 4
    %v1433 = vrot.slane %v1393, 5
    %v1434 = vsel %vm1422, %v1432, %v1433
    %v1435 = vrot.slane %v1394, 5
    %v1436 = vrot.slane %v1435, 4
    %v1437 = vrot.slane %v1395, 5
    %v1438 = vsel %vm1422, %v1436, %v1437
    %v1439 = vrot.slane %v1396, 5
    %v1440 = vrot.slane %v1439, 4
    %v1441 = vrot.slane %v1397, 5
    %v1442 = vsel %vm1422, %v1440, %v1441
    %v1443 = vrot.slane %v1398, 5
    %v1444 = vrot.slane %v1443, 4
    %v1445 = vrot.slane %v1399, 5
    %v1446 = vsel %vm1422, %v1444, %v1445
    %v1447 = vrot.slane %v1400, 5
    %v1448 = vrot.slane %v1447, 4
    %v1449 = vrot.slane %v1401, 5
    %v1450 = vsel %vm1422, %v1448, %v1449
    %v1451 = vrot.slane %v1402, 5
    %v1452 = vrot.slane %v1451, 4
    %v1453 = vrot.slane %v1403, 5
    %v1454 = vsel %vm1422, %v1452, %v1453
    %v1455 = vld [vmem:[#allocation6 + $0x280] sm:$0xff]
    %v1456 = vld [vmem:[#allocation6 + $0x288] sm:$0xff]
    %v1457 = vld [vmem:[#allocation6 + $0x290] sm:$0xf]
    %v1458 = vld [vmem:[#allocation6 + $0x294] sm:$0xff]
    %v1459 = vld [vmem:[#allocation6 + $0x29c] sm:$0xff]
    %v1460 = vld [vmem:[#allocation6 + $0x2a4] sm:$0xf]
    %v1461 = vld [vmem:[#allocation6 + $0x2a8] sm:$0xff]
    %v1462 = vld [vmem:[#allocation6 + $0x2b0] sm:$0xff]
    %v1463 = vld [vmem:[#allocation6 + $0x2b8] sm:$0xf]
    %v1464 = vld [vmem:[#allocation6 + $0x2bc] sm:$0xff]
    %v1465 = vld [vmem:[#allocation6 + $0x2c4] sm:$0xff]
    %v1466 = vld [vmem:[#allocation6 + $0x2cc] sm:$0xf]
    %v1467 = vld [vmem:[#allocation6 + $0x2d0] sm:$0xff]
    %v1468 = vld [vmem:[#allocation6 + $0x2d8] sm:$0xff]
    %v1469 = vld [vmem:[#allocation6 + $0x2e0] sm:$0xf]
    %v1470 = vld [vmem:[#allocation6 + $0x2e4] sm:$0xff]
    %v1471 = vld [vmem:[#allocation6 + $0x2ec] sm:$0xff]
    %v1472 = vld [vmem:[#allocation6 + $0x2f4] sm:$0xf]
    %v1473 = vld [vmem:[#allocation6 + $0x2f8] sm:$0xff]
    %v1474 = vld [vmem:[#allocation6 + $0x300] sm:$0xff]
    %v1475 = vld [vmem:[#allocation6 + $0x308] sm:$0xf]
    %v1476 = vld [vmem:[#allocation6 + $0x30c] sm:$0xff]
    %v1477 = vld [vmem:[#allocation6 + $0x314] sm:$0xff]
    %v1478 = vld [vmem:[#allocation6 + $0x31c] sm:$0xf]
    %v1479 = vld [vmem:[#allocation6 + $0x320] sm:$0xff]
    %v1480 = vld [vmem:[#allocation6 + $0x328] sm:$0xff]
    %v1481 = vld [vmem:[#allocation6 + $0x330] sm:$0xf]
    %v1482 = vld [vmem:[#allocation6 + $0x334] sm:$0xff]
    %v1483 = vld [vmem:[#allocation6 + $0x33c] sm:$0xff]
    %v1484 = vld [vmem:[#allocation6 + $0x344] sm:$0xf]
    %v1485 = vld [vmem:[#allocation6 + $0x348] sm:$0xff]
    %v1486 = vld [vmem:[#allocation6 + $0x350] sm:$0xff]
    %v1487 = vld [vmem:[#allocation6 + $0x358] sm:$0xf]
    %v1488 = vld [vmem:[#allocation6 + $0x35c] sm:$0xff]
    %v1489 = vld [vmem:[#allocation6 + $0x364] sm:$0xff]
    %v1490 = vld [vmem:[#allocation6 + $0x36c] sm:$0xf]
    %v1491 = vld [vmem:[#allocation6 + $0x370] sm:$0xff]
    %v1492 = vld [vmem:[#allocation6 + $0x378] sm:$0xff]
    %v1493 = vld [vmem:[#allocation6 + $0x380] sm:$0xf]
    %v1494 = vld [vmem:[#allocation6 + $0x384] sm:$0xff]
    %v1495 = vld [vmem:[#allocation6 + $0x38c] sm:$0xff]
    %v1496 = vld [vmem:[#allocation6 + $0x394] sm:$0xf]
    %v1497 = vld [vmem:[#allocation6 + $0x398] sm:$0xff]
    %v1498 = vld [vmem:[#allocation6 + $0x3a0] sm:$0xff]
    %v1499 = vld [vmem:[#allocation6 + $0x3a8] sm:$0xf]
    %v1500 = vld [vmem:[#allocation6 + $0x3ac] sm:$0xff]
    %v1501 = vld [vmem:[#allocation6 + $0x3b4] sm:$0xff]
    %v1502 = vld [vmem:[#allocation6 + $0x3bc] sm:$0xf]
    %v1503 = vunpack.c.l.b16 %v1426
    %v1504 = vunpack.c.l.b16 %v1430
    %v1505 = vunpack.c.l.b16 %v1434
    %v1506 = vunpack.c.l.b16 %v1438
    %v1507 = vunpack.c.l.b16 %v1442
    %v1508 = vunpack.c.l.b16 %v1446
    %v1509 = vunpack.c.l.b16 %v1450
    %v1510 = vunpack.c.l.b16 %v1454
    %v1511 = vpack.c.b16 %v1504, %v1503
    %v1512 = vpack.c.b16 %v1506, %v1505
    %v1513 = vpack.c.b16 %v1508, %v1507
    %v1514 = vpack.c.b16 %v1510, %v1509
    %v1567 = vunpack.c.l.b16 %v1455
    %v1568 = vunpack.c.h.b16 %v1455
    %v1569 = vunpack.c.l.b16 %v1456
    %v1570 = vunpack.c.h.b16 %v1456
    %v1571 = vunpack.c.l.b16 %v1457
    %v1572 = vunpack.c.l.b16 %v1458
    %v1573 = vunpack.c.h.b16 %v1458
    %v1574 = vunpack.c.l.b16 %v1459
    %v1575 = vunpack.c.h.b16 %v1459
    %v1576 = vunpack.c.l.b16 %v1460
    %v1577 = vunpack.c.l.b16 %v1461
    %v1578 = vunpack.c.h.b16 %v1461
    %v1579 = vunpack.c.l.b16 %v1462
    %v1580 = vunpack.c.h.b16 %v1462
    %v1581 = vunpack.c.l.b16 %v1463
    %v1582 = vunpack.c.l.b16 %v1464
    %v1583 = vunpack.c.h.b16 %v1464
    %v1584 = vunpack.c.l.b16 %v1465
    %v1585 = vunpack.c.h.b16 %v1465
    %v1586 = vunpack.c.l.b16 %v1466
    %v1587 = vunpack.c.l.b16 %v1467
    %v1588 = vunpack.c.h.b16 %v1467
    %v1589 = vunpack.c.l.b16 %v1468
    %v1590 = vunpack.c.h.b16 %v1468
    %v1591 = vunpack.c.l.b16 %v1469
    %v1592 = vunpack.c.l.b16 %v1470
    %v1593 = vunpack.c.h.b16 %v1470
    %v1594 = vunpack.c.l.b16 %v1471
    %v1595 = vunpack.c.h.b16 %v1471
    %v1596 = vunpack.c.l.b16 %v1472
    %v1597 = vunpack.c.l.b16 %v1473
    %v1598 = vunpack.c.h.b16 %v1473
    %v1599 = vunpack.c.l.b16 %v1474
    %v1600 = vunpack.c.h.b16 %v1474
    %v1601 = vunpack.c.l.b16 %v1475
    %v1602 = vunpack.c.l.b16 %v1476
    %v1603 = vunpack.c.h.b16 %v1476
    %v1604 = vunpack.c.l.b16 %v1477
    %v1605 = vunpack.c.h.b16 %v1477
    %v1606 = vunpack.c.l.b16 %v1478
    %v1607 = vunpack.c.l.b16 %v1479
    %v1608 = vunpack.c.h.b16 %v1479
    %v1609 = vunpack.c.l.b16 %v1480
    %v1610 = vunpack.c.h.b16 %v1480
    %v1611 = vunpack.c.l.b16 %v1481
    %v1612 = vunpack.c.l.b16 %v1482
    %v1613 = vunpack.c.h.b16 %v1482
    %v1614 = vunpack.c.l.b16 %v1483
    %v1615 = vunpack.c.h.b16 %v1483
    %v1616 = vunpack.c.l.b16 %v1484
    %v1617 = vunpack.c.l.b16 %v1485
    %v1618 = vunpack.c.h.b16 %v1485
    %v1619 = vunpack.c.l.b16 %v1486
    %v1620 = vunpack.c.h.b16 %v1486
    %v1621 = vunpack.c.l.b16 %v1487
    %v1622 = vunpack.c.l.b16 %v1488
    %v1623 = vunpack.c.h.b16 %v1488
    %v1624 = vunpack.c.l.b16 %v1489
    %v1625 = vunpack.c.h.b16 %v1489
    %v1626 = vunpack.c.l.b16 %v1490
    %v1627 = vunpack.c.l.b16 %v1491
    %v1628 = vunpack.c.h.b16 %v1491
    %v1629 = vunpack.c.l.b16 %v1492
    %v1630 = vunpack.c.h.b16 %v1492
    %v1631 = vunpack.c.l.b16 %v1493
    %v1632 = vunpack.c.l.b16 %v1494
    %v1633 = vunpack.c.h.b16 %v1494
    %v1634 = vunpack.c.l.b16 %v1495
    %v1635 = vunpack.c.h.b16 %v1495
    %v1636 = vunpack.c.l.b16 %v1496
    %v1637 = vunpack.c.l.b16 %v1497
    %v1638 = vunpack.c.h.b16 %v1497
    %v1639 = vunpack.c.l.b16 %v1498
    %v1640 = vunpack.c.h.b16 %v1498
    %v1641 = vunpack.c.l.b16 %v1499
    %v1642 = vunpack.c.l.b16 %v1500
    %v1643 = vunpack.c.h.b16 %v1500
    %v1644 = vunpack.c.l.b16 %v1501
    %v1645 = vunpack.c.h.b16 %v1501
    %v1646 = vunpack.c.l.b16 %v1502
    %v1647 = vpack.c.b16 %v1572, %v1567
    %v1648 = vpack.c.b16 %v1573, %v1568
    %v1649 = vpack.c.b16 %v1574, %v1569
    %v1650 = vpack.c.b16 %v1575, %v1570
    %v1651 = vpack.c.b16 %v1576, %v1571
    %v1652 = vpack.c.b16 %v1582, %v1577
    %v1653 = vpack.c.b16 %v1583, %v1578
    %v1654 = vpack.c.b16 %v1584, %v1579
    %v1655 = vpack.c.b16 %v1585, %v1580
    %v1656 = vpack.c.b16 %v1586, %v1581
    %v1657 = vpack.c.b16 %v1592, %v1587
    %v1658 = vpack.c.b16 %v1593, %v1588
    %v1659 = vpack.c.b16 %v1594, %v1589
    %v1660 = vpack.c.b16 %v1595, %v1590
    %v1661 = vpack.c.b16 %v1596, %v1591
    %v1662 = vpack.c.b16 %v1602, %v1597
    %v1663 = vpack.c.b16 %v1603, %v1598
    %v1664 = vpack.c.b16 %v1604, %v1599
    %v1665 = vpack.c.b16 %v1605, %v1600
    %v1666 = vpack.c.b16 %v1606, %v1601
    %v1667 = vpack.c.b16 %v1612, %v1607
    %v1668 = vpack.c.b16 %v1613, %v1608
    %v1669 = vpack.c.b16 %v1614, %v1609
    %v1670 = vpack.c.b16 %v1615, %v1610
    %v1671 = vpack.c.b16 %v1616, %v1611
    %v1672 = vpack.c.b16 %v1622, %v1617
    %v1673 = vpack.c.b16 %v1623, %v1618
    %v1674 = vpack.c.b16 %v1624, %v1619
    %v1675 = vpack.c.b16 %v1625, %v1620
    %v1676 = vpack.c.b16 %v1626, %v1621
    %v1677 = vpack.c.b16 %v1632, %v1627
    %v1678 = vpack.c.b16 %v1633, %v1628
    %v1679 = vpack.c.b16 %v1634, %v1629
    %v1680 = vpack.c.b16 %v1635, %v1630
    %v1681 = vpack.c.b16 %v1636, %v1631
    %v1682 = vpack.c.b16 %v1642, %v1637
    %v1683 = vpack.c.b16 %v1643, %v1638
    %v1684 = vpack.c.b16 %v1644, %v1639
    %v1685 = vpack.c.b16 %v1645, %v1640
    %v1686 = vpack.c.b16 %v1646, %v1641
    %1727 = vmatprep.subr.bf16.mxu0 %v1648
    %1728 = vmatpush1.bf16.msra.mxu0 %v1647
    %1729 = vmatprep.subr.bf16.mxu0 %v1653
    %1730 = vmatpush1.bf16.msra.mxu0 %v1652
    %1731 = vmatprep.subr.bf16.mxu0 %v1658
    %1732 = vmatpush1.bf16.msra.mxu0 %v1657
    %1733 = vmatprep.subr.bf16.mxu0 %v1663
    %1734 = vmatpush1.bf16.msra.mxu0 %v1662
    %1735 = vmatprep.subr.bf16.mxu0 %v1668
    %1736 = vmatpush1.bf16.msra.mxu0 %v1667
    %1737 = vmatprep.subr.bf16.mxu0 %v1673
    %1738 = vmatpush1.bf16.msra.mxu0 %v1672
    %1739 = vmatprep.subr.bf16.mxu0 %v1678
    %1740 = vmatpush1.bf16.msra.mxu0 %v1677
    %1741 = vmatprep.subr.bf16.mxu0 %v1683
    %1742 = vmatpush1.bf16.msra.mxu0 %v1682
    %1743 = vmatprep.subr.bf16.mxu0 0
    %1744 = vmatpush1.bf16.msra.mxu0 0
    %1745 = vmatprep.subr.bf16.mxu0 0
    %1746 = vmatpush1.bf16.msra.mxu0 0
    %1747 = vmatprep.subr.bf16.mxu0 0
    %1748 = vmatpush1.bf16.msra.mxu0 0
    %1749 = vmatprep.subr.bf16.mxu0 0
    %1750 = vmatpush1.bf16.msra.mxu0 0
    %1751 = vmatprep.subr.bf16.mxu0 0
    %1752 = vmatpush1.bf16.msra.mxu0 0
    %1753 = vmatprep.subr.bf16.mxu0 0
    %1754 = vmatpush1.bf16.msra.mxu0 0
    %1755 = vmatprep.subr.bf16.mxu0 0
    %1756 = vmatpush1.bf16.msra.mxu0 0
    %1757 = vmatprep.subr.bf16.mxu0 0
    %1758 = vmatpush1.bf16.msra.mxu0 0
    %1759 = vmatprep.mubr.bf16.mxu0 0
    %1760 = vmatmul.mubr.bf16.gmra.mrb[0].mxu0 %v1511
    %v1761 = vpop.f32.mrb[0].mxu0
    %v1762 = vadd.f32 0.0, %v1761
    %v1763 = vpop.f32.mrb[0].mxu0
    %v1764 = vadd.f32 0.0, %v1763
    %v1765 = vpop.f32.mrb[0].mxu0
    %v1766 = vadd.f32 0.0, %v1765
    %v1767 = vpop.f32.mrb[0].mxu0
    %v1768 = vadd.f32 0.0, %v1767
    %1769 = vmatprep.mubr.bf16.mxu0 0
    %1770 = vmatmul.mubr.bf16.gmra.mrb[0].mxu0 %v1512
    %v1771 = vpop.f32.mrb[0].mxu0
    %v1772 = vadd.f32 0.0, %v1771
    %v1773 = vpop.f32.mrb[0].mxu0
    %v1774 = vadd.f32 0.0, %v1773
    %v1775 = vpop.f32.mrb[0].mxu0
    %v1776 = vadd.f32 0.0, %v1775
    %v1777 = vpop.f32.mrb[0].mxu0
    %v1778 = vadd.f32 0.0, %v1777
    %1779 = vmatprep.mubr.bf16.mxu0 0
    %1780 = vmatmul.mubr.bf16.gmra.mrb[0].mxu0 %v1513
    %v1781 = vpop.f32.mrb[0].mxu0
    %v1782 = vadd.f32 0.0, %v1781
    %v1783 = vpop.f32.mrb[0].mxu0
    %v1784 = vadd.f32 0.0, %v1783
    %v1785 = vpop.f32.mrb[0].mxu0
    %v1786 = vadd.f32 0.0, %v1785
    %v1787 = vpop.f32.mrb[0].mxu0
    %v1788 = vadd.f32 0.0, %v1787
    %1789 = vmatprep.mubr.bf16.mxu0 0
    %1790 = vmatmul.mubr.bf16.gmra.mrb[0].mxu0 %v1514
    %v1791 = vpop.f32.mrb[0].mxu0
    %v1792 = vadd.f32 0.0, %v1791
    %v1793 = vpop.f32.mrb[0].mxu0
    %v1794 = vadd.f32 0.0, %v1793
    %v1795 = vpop.f32.mrb[0].mxu0
    %v1796 = vadd.f32 0.0, %v1795
    %v1797 = vpop.f32.mrb[0].mxu0
    %v1798 = vadd.f32 0.0, %v1797
    %1799 = vdwg.mxu0
    %1800 = vmatprep.subr.bf16.mxu0 %v1650
    %1801 = vmatpush1.bf16.msra.mxu0 %v1649
    %1802 = vmatprep.subr.bf16.mxu0 %v1655
    %1803 = vmatpush1.bf16.msra.mxu0 %v1654
    %1804 = vmatprep.subr.bf16.mxu0 %v1660
    %1805 = vmatpush1.bf16.msra.mxu0 %v1659
    %1806 = vmatprep.subr.bf16.mxu0 %v1665
    %1807 = vmatpush1.bf16.msra.mxu0 %v1664
    %1808 = vmatprep.subr.bf16.mxu0 %v1670
    %1809 = vmatpush1.bf16.msra.mxu0 %v1669
    %1810 = vmatprep.subr.bf16.mxu0 %v1675
    %1811 = vmatpush1.bf16.msra.mxu0 %v1674
    %1812 = vmatprep.subr.bf16.mxu0 %v1680
    %1813 = vmatpush1.bf16.msra.mxu0 %v1679
    %1814 = vmatprep.subr.bf16.mxu0 %v1685
    %1815 = vmatpush1.bf16.msra.mxu0 %v1684
    %1816 = vmatprep.subr.bf16.mxu0 0
    %1817 = vmatpush1.bf16.msra.mxu0 0
    %1818 = vmatprep.subr.bf16.mxu0 0
    %1819 = vmatpush1.bf16.msra.mxu0 0
    %1820 = vmatprep.subr.bf16.mxu0 0
    %1821 = vmatpush1.bf16.msra.mxu0 0
    %1822 = vmatprep.subr.bf16.mxu0 0
    %1823 = vmatpush1.bf16.msra.mxu0 0
    %1824 = vmatprep.subr.bf16.mxu0 0
    %1825 = vmatpush1.bf16.msra.mxu0 0
    %1826 = vmatprep.subr.bf16.mxu0 0
    %1827 = vmatpush1.bf16.msra.mxu0 0
    %1828 = vmatprep.subr.bf16.mxu0 0
    %1829 = vmatpush1.bf16.msra.mxu0 0
    %1830 = vmatprep.subr.bf16.mxu0 0
    %1831 = vmatpush1.bf16.msra.mxu0 0
    %1832 = vmatprep.mubr.bf16.mxu0 0
    %1833 = vmatmul.mubr.bf16.gmra.mrb[0].mxu0 %v1511
    %v1834 = vpop.f32.mrb[0].mxu0
    %v1835 = vadd.f32 0.0, %v1834
    %v1836 = vpop.f32.mrb[0].mxu0
    %v1837 = vadd.f32 0.0, %v1836
    %v1838 = vpop.f32.mrb[0].mxu0
    %v1839 = vadd.f32 0.0, %v1838
    %v1840 = vpop.f32.mrb[0].mxu0
    %v1841 = vadd.f32 0.0, %v1840
    %1842 = vmatprep.mubr.bf16.mxu0 0
    %1843 = vmatmul.mubr.bf16.gmra.mrb[0].mxu0 %v1512
    %v1844 = vpop.f32.mrb[0].mxu0
    %v1845 = vadd.f32 0.0, %v1844
    %v1846 = vpop.f32.mrb[0].mxu0
    %v1847 = vadd.f32 0.0, %v1846
    %v1848 = vpop.f32.mrb[0].mxu0
    %v1849 = vadd.f32 0.0, %v1848
    %v1850 = vpop.f32.mrb[0].mxu0
    %v1851 = vadd.f32 0.0, %v1850
    %1852 = vmatprep.mubr.bf16.mxu0 0
    %1853 = vmatmul.mubr.bf16.gmra.mrb[0].mxu0 %v1513
    %v1854 = vpop.f32.mrb[0].mxu0
    %v1855 = vadd.f32 0.0, %v1854
    %v1856 = vpop.f32.mrb[0].mxu0
    %v1857 = vadd.f32 0.0, %v1856
    %v1858 = vpop.f32.mrb[0].mxu0
    %v1859 = vadd.f32 0.0, %v1858
    %v1860 = vpop.f32.mrb[0].mxu0
    %v1861 = vadd.f32 0.0, %v1860
    %1862 = vmatprep.mubr.bf16.mxu0 0
    %1863 = vmatmul.mubr.bf16.gmra.mrb[0].mxu0 %v1514
    %v1864 = vpop.f32.mrb[0].mxu0
    %v1865 = vadd.f32 0.0, %v1864
    %v1866 = vpop.f32.mrb[0].mxu0
    %v1867 = vadd.f32 0.0, %v1866
    %v1868 = vpop.f32.mrb[0].mxu0
    %v1869 = vadd.f32 0.0, %v1868
    %v1870 = vpop.f32.mrb[0].mxu0
    %v1871 = vadd.f32 0.0, %v1870
    %1872 = vdwg.mxu0
    %1873 = vmatprep.subr.bf16.mxu0 0
    %1874 = vmatpush1.bf16.msra.mxu0 %v1651
    %1875 = vmatprep.subr.bf16.mxu0 0
    %1876 = vmatpush1.bf16.msra.mxu0 %v1656
    %1877 = vmatprep.subr.bf16.mxu0 0
    %1878 = vmatpush1.bf16.msra.mxu0 %v1661
    %1879 = vmatprep.subr.bf16.mxu0 0
    %1880 = vmatpush1.bf16.msra.mxu0 %v1666
    %1881 = vmatprep.subr.bf16.mxu0 0
    %1882 = vmatpush1.bf16.msra.mxu0 %v1671
    %1883 = vmatprep.subr.bf16.mxu0 0
    %1884 = vmatpush1.bf16.msra.mxu0 %v1676
    %1885 = vmatprep.subr.bf16.mxu0 0
    %1886 = vmatpush1.bf16.msra.mxu0 %v1681
    %1887 = vmatprep.subr.bf16.mxu0 0
    %1888 = vmatpush1.bf16.msra.mxu0 %v1686
    %1889 = vmatprep.subr.bf16.mxu0 0
    %1890 = vmatpush1.bf16.msra.mxu0 0
    %1891 = vmatprep.subr.bf16.mxu0 0
    %1892 = vmatpush1.bf16.msra.mxu0 0
    %1893 = vmatprep.subr.bf16.mxu0 0
    %1894 = vmatpush1.bf16.msra.mxu0 0
    %1895 = vmatprep.subr.bf16.mxu0 0
    %1896 = vmatpush1.bf16.msra.mxu0 0
    %1897 = vmatprep.subr.bf16.mxu0 0
    %1898 = vmatpush1.bf16.msra.mxu0 0
    %1899 = vmatprep.subr.bf16.mxu0 0
    %1900 = vmatpush1.bf16.msra.mxu0 0
    %1901 = vmatprep.subr.bf16.mxu0 0
    %1902 = vmatpush1.bf16.msra.mxu0 0
    %1903 = vmatprep.subr.bf16.mxu0 0
    %1904 = vmatpush1.bf16.msra.mxu0 0
    %1905 = vmatprep.mubr.bf16.mxu0 0
    %1906 = vmatmul.mubr.bf16.gmra.mrb[0].mxu0 %v1511
    %v1907 = vpop.f32.mrb[0].mxu0
    %v1908 = vadd.f32 0.0, %v1907
    %v1909 = vpop.f32.mrb[0].mxu0
    %v1910 = vpop.f32.mrb[0].mxu0
    %v1911 = vadd.f32 0.0, %v1910
    %v1912 = vpop.f32.mrb[0].mxu0
    %1913 = vmatprep.mubr.bf16.mxu0 0
    %1914 = vmatmul.mubr.bf16.gmra.mrb[0].mxu0 %v1512
    %v1915 = vpop.f32.mrb[0].mxu0
    %v1916 = vadd.f32 0.0, %v1915
    %v1917 = vpop.f32.mrb[0].mxu0
    %v1918 = vpop.f32.mrb[0].mxu0
    %v1919 = vadd.f32 0.0, %v1918
    %v1920 = vpop.f32.mrb[0].mxu0
    %1921 = vmatprep.mubr.bf16.mxu0 0
    %1922 = vmatmul.mubr.bf16.gmra.mrb[0].mxu0 %v1513
    %v1923 = vpop.f32.mrb[0].mxu0
    %v1924 = vadd.f32 0.0, %v1923
    %v1925 = vpop.f32.mrb[0].mxu0
    %v1926 = vpop.f32.mrb[0].mxu0
    %v1927 = vadd.f32 0.0, %v1926
    %v1928 = vpop.f32.mrb[0].mxu0
    %1929 = vmatprep.mubr.bf16.mxu0 0
    %1930 = vmatmul.mubr.bf16.gmra.mrb[0].mxu0 %v1514
    %v1931 = vpop.f32.mrb[0].mxu0
    %v1932 = vadd.f32 0.0, %v1931
    %v1933 = vpop.f32.mrb[0].mxu0
    %v1934 = vpop.f32.mrb[0].mxu0
    %v1935 = vadd.f32 0.0, %v1934
    %v1936 = vpop.f32.mrb[0].mxu0
    %1937 = vdwg.mxu0
    %v1938 = vadd.f32 %v1348, %v1762
    %v1939 = vadd.f32 %v1349, %v1764
    %v1940 = vadd.f32 %v1350, %v1835
    %v1941 = vadd.f32 %v1351, %v1837
    %v1942 = vadd.f32 %v1352, %v1908
    %v1943 = vadd.f32 %v1353, %v1766
    %v1944 = vadd.f32 %v1354, %v1768
    %v1945 = vadd.f32 %v1355, %v1839
    %v1946 = vadd.f32 %v1356, %v1841
    %v1947 = vadd.f32 %v1357, %v1911
    %v1948 = vadd.f32 %v1358, %v1772
    %v1949 = vadd.f32 %v1359, %v1774
    %v1950 = vadd.f32 %v1360, %v1845
    %v1951 = vadd.f32 %v1361, %v1847
    %v1952 = vadd.f32 %v1362, %v1916
    %v1953 = vadd.f32 %v1363, %v1776
    %v1954 = vadd.f32 %v1364, %v1778
    %v1955 = vadd.f32 %v1365, %v1849
    %v1956 = vadd.f32 %v1366, %v1851
    %v1957 = vadd.f32 %v1367, %v1919
    %v1958 = vadd.f32 %v1368, %v1782
    %v1959 = vadd.f32 %v1369, %v1784
    %v1960 = vadd.f32 %v1370, %v1855
    %v1961 = vadd.f32 %v1371, %v1857
    %v1962 = vadd.f32 %v1372, %v1924
    %v1963 = vadd.f32 %v1373, %v1786
    %v1964 = vadd.f32 %v1374, %v1788
    %v1965 = vadd.f32 %v1375, %v1859
    %v1966 = vadd.f32 %v1376, %v1861
    %v1967 = vadd.f32 %v1377, %v1927
    %v1968 = vadd.f32 %v1378, %v1792
    %v1969 = vadd.f32 %v1379, %v1794
    %v1970 = vadd.f32 %v1380, %v1865
    %v1971 = vadd.f32 %v1381, %v1867
    %v1972 = vadd.f32 %v1382, %v1932
    %v1973 = vadd.f32 %v1383, %v1796
    %v1974 = vadd.f32 %v1384, %v1798
    %v1975 = vadd.f32 %v1385, %v1869
    %v1976 = vadd.f32 %v1386, %v1871
    %v1977 = vadd.f32 %v1387, %v1935
    %1978 = vst [vmem:[#allocation2] sm:$0xff] %v1938
    %1979 = vst [vmem:[#allocation2 + $0x8] sm:$0xff] %v1939
    %1980 = vst [vmem:[#allocation2 + $0x10] sm:$0xff] %v1940
    %1981 = vst [vmem:[#allocation2 + $0x18] sm:$0xff] %v1941
    %1982 = vst [vmem:[#allocation2 + $0x20] sm:$0xff] %v1942
    %1983 = vst [vmem:[#allocation2 + $0x28] sm:$0xff] %v1943
    %1984 = vst [vmem:[#allocation2 + $0x30] sm:$0xff] %v1944
    %1985 = vst [vmem:[#allocation2 + $0x38] sm:$0xff] %v1945
    %1986 = vst [vmem:[#allocation2 + $0x40] sm:$0xff] %v1946
    %1987 = vst [vmem:[#allocation2 + $0x48] sm:$0xff] %v1947
    %1988 = vst [vmem:[#allocation2 + $0x50] sm:$0xff] %v1948
    %1989 = vst [vmem:[#allocation2 + $0x58] sm:$0xff] %v1949
    %1990 = vst [vmem:[#allocation2 + $0x60] sm:$0xff] %v1950
    %1991 = vst [vmem:[#allocation2 + $0x68] sm:$0xff] %v1951
    %1992 = vst [vmem:[#allocation2 + $0x70] sm:$0xff] %v1952
    %1993 = vst [vmem:[#allocation2 + $0x78] sm:$0xff] %v1953
    %1994 = vst [vmem:[#allocation2 + $0x80] sm:$0xff] %v1954
    %1995 = vst [vmem:[#allocation2 + $0x88] sm:$0xff] %v1955
    %1996 = vst [vmem:[#allocation2 + $0x90] sm:$0xff] %v1956
    %1997 = vst [vmem:[#allocation2 + $0x98] sm:$0xff] %v1957
    %1998 = vst [vmem:[#allocation2 + $0xa0] sm:$0xff] %v1958
    %1999 = vst [vmem:[#allocation2 + $0xa8] sm:$0xff] %v1959
    %2000 = vst [vmem:[#allocation2 + $0xb0] sm:$0xff] %v1960
    %2001 = vst [vmem:[#allocation2 + $0xb8] sm:$0xff] %v1961
    %2002 = vst [vmem:[#allocation2 + $0xc0] sm:$0xff] %v1962
    %2003 = vst [vmem:[#allocation2 + $0xc8] sm:$0xff] %v1963
    %2004 = vst [vmem:[#allocation2 + $0xd0] sm:$0xff] %v1964
    %2005 = vst [vmem:[#allocation2 + $0xd8] sm:$0xff] %v1965
    %2006 = vst [vmem:[#allocation2 + $0xe0] sm:$0xff] %v1966
    %2007 = vst [vmem:[#allocation2 + $0xe8] sm:$0xff] %v1967
    %2008 = vst [vmem:[#allocation2 + $0xf0] sm:$0xff] %v1968
    %2009 = vst [vmem:[#allocation2 + $0xf8] sm:$0xff] %v1969
    %2010 = vst [vmem:[#allocation2 + $0x100] sm:$0xff] %v1970
    %2011 = vst [vmem:[#allocation2 + $0x108] sm:$0xff] %v1971
    %2012 = vst [vmem:[#allocation2 + $0x110] sm:$0xff] %v1972
    %2013 = vst [vmem:[#allocation2 + $0x118] sm:$0xff] %v1973
    %2014 = vst [vmem:[#allocation2 + $0x120] sm:$0xff] %v1974
    %2015 = vst [vmem:[#allocation2 + $0x128] sm:$0xff] %v1975
    %2016 = vst [vmem:[#allocation2 + $0x130] sm:$0xff] %v1976
    %2017 = vst [vmem:[#allocation2 + $0x138] sm:$0xff] %v1977
    %v2018 = vld [vmem:[#allocation2] sm:$0xff]
    %v2019 = vld [vmem:[#allocation2 + $0x8] sm:$0xff]
    %v2020 = vld [vmem:[#allocation2 + $0x10] sm:$0xff]
    %v2021 = vld [vmem:[#allocation2 + $0x18] sm:$0xff]
    %v2022 = vld [vmem:[#allocation2 + $0x20] sm:$0xff]
    %v2023 = vld [vmem:[#allocation2 + $0x28] sm:$0xff]
    %v2024 = vld [vmem:[#allocation2 + $0x30] sm:$0xff]
    %v2025 = vld [vmem:[#allocation2 + $0x38] sm:$0xff]
    %v2026 = vld [vmem:[#allocation2 + $0x40] sm:$0xff]
    %v2027 = vld [vmem:[#allocation2 + $0x48] sm:$0xff]
    %v2028 = vld [vmem:[#allocation2 + $0x50] sm:$0xff]
    %v2029 = vld [vmem:[#allocation2 + $0x58] sm:$0xff]
    %v2030 = vld [vmem:[#allocation2 + $0x60] sm:$0xff]
    %v2031 = vld [vmem:[#allocation2 + $0x68] sm:$0xff]
    %v2032 = vld [vmem:[#allocation2 + $0x70] sm:$0xff]
    %v2033 = vld [vmem:[#allocation2 + $0x78] sm:$0xff]
    %v2034 = vld [vmem:[#allocation2 + $0x80] sm:$0xff]
    %v2035 = vld [vmem:[#allocation2 + $0x88] sm:$0xff]
    %v2036 = vld [vmem:[#allocation2 + $0x90] sm:$0xff]
    %v2037 = vld [vmem:[#allocation2 + $0x98] sm:$0xff]
    %v2038 = vld [vmem:[#allocation2 + $0xa0] sm:$0xff]
    %v2039 = vld [vmem:[#allocation2 + $0xa8] sm:$0xff]
    %v2040 = vld [vmem:[#allocation2 + $0xb0] sm:$0xff]
    %v2041 = vld [vmem:[#allocation2 + $0xb8] sm:$0xff]
    %v2042 = vld [vmem:[#allocation2 + $0xc0] sm:$0xff]
    %v2043 = vld [vmem:[#allocation2 + $0xc8] sm:$0xff]
    %v2044 = vld [vmem:[#allocation2 + $0xd0] sm:$0xff]
    %v2045 = vld [vmem:[#allocation2 + $0xd8] sm:$0xff]
    %v2046 = vld [vmem:[#allocation2 + $0xe0] sm:$0xff]
    %v2047 = vld [vmem:[#allocation2 + $0xe8] sm:$0xff]
    %v2048 = vld [vmem:[#allocation2 + $0xf0] sm:$0xff]
    %v2049 = vld [vmem:[#allocation2 + $0xf8] sm:$0xff]
    %v2050 = vld [vmem:[#allocation2 + $0x100] sm:$0xff]
    %v2051 = vld [vmem:[#allocation2 + $0x108] sm:$0xff]
    %v2052 = vld [vmem:[#allocation2 + $0x110] sm:$0xff]
    %v2053 = vld [vmem:[#allocation2 + $0x118] sm:$0xff]
    %v2054 = vld [vmem:[#allocation2 + $0x120] sm:$0xff]
    %v2055 = vld [vmem:[#allocation2 + $0x128] sm:$0xff]
    %v2056 = vld [vmem:[#allocation2 + $0x130] sm:$0xff]
    %v2057 = vld [vmem:[#allocation2 + $0x138] sm:$0xff]
    %v2058 = vld [vmem:[#allocation3] sm:$0xe]
    %v2059 = vld [vmem:[#allocation3 + $0x4] sm:$0x3]
    %v2060 = vld [vmem:[#allocation3 + $0x8] sm:$0xe]
    %v2061 = vld [vmem:[#allocation3 + $0xc] sm:$0x3]
    %v2062 = vld [vmem:[#allocation3 + $0x10] sm:$0xe]
    %v2063 = vld [vmem:[#allocation3 + $0x14] sm:$0x3]
    %v2064 = vld [vmem:[#allocation3 + $0x18] sm:$0xe]
    %v2065 = vld [vmem:[#allocation3 + $0x1c] sm:$0x3]
    %v2066 = vld [vmem:[#allocation3 + $0x20] sm:$0xe]
    %v2067 = vld [vmem:[#allocation3 + $0x24] sm:$0x3]
    %v2068 = vld [vmem:[#allocation3 + $0x28] sm:$0xe]
    %v2069 = vld [vmem:[#allocation3 + $0x2c] sm:$0x3]
    %v2070 = vld [vmem:[#allocation3 + $0x30] sm:$0xe]
    %v2071 = vld [vmem:[#allocation3 + $0x34] sm:$0x3]
    %v2072 = vld [vmem:[#allocation3 + $0x38] sm:$0xe]
    %v2073 = vld [vmem:[#allocation3 + $0x3c] sm:$0x3]
    %vm2074 = vsmask.f32 2304
    %vm2075 = vsmask.f32 6416
    %vm2076 = vmor %vm2074, %vm2075
    %v2078 = vshrl.u32 %v2058, 16
    %v2080 = vrot.slane %v2078, 5
    %v2081 = vshll.u32 %v2058, 16
    %v2083 = vrot.slane %v2081, 6
    %v2084 = vor.u32 %v2080, %v2083
    %v2085 = vrot.slane %v2084, 4
    %v2087 = vshrl.u32 %v2059, 16
    %v2089 = vrot.slane %v2087, 5
    %v2090 = vshll.u32 %v2059, 16
    %v2092 = vrot.slane %v2090, 6
    %v2093 = vor.u32 %v2089, %v2092
    %v2094 = vsel %vm2076, %v2085, %v2093
    %v2096 = vshrl.u32 %v2060, 16
    %v2098 = vrot.slane %v2096, 5
    %v2099 = vshll.u32 %v2060, 16
    %v2101 = vrot.slane %v2099, 6
    %v2102 = vor.u32 %v2098, %v2101
    %v2103 = vrot.slane %v2102, 4
    %v2105 = vshrl.u32 %v2061, 16
    %v2107 = vrot.slane %v2105, 5
    %v2108 = vshll.u32 %v2061, 16
    %v2110 = vrot.slane %v2108, 6
    %v2111 = vor.u32 %v2107, %v2110
    %v2112 = vsel %vm2076, %v2103, %v2111
    %v2114 = vshrl.u32 %v2062, 16
    %v2116 = vrot.slane %v2114, 5
    %v2117 = vshll.u32 %v2062, 16
    %v2119 = vrot.slane %v2117, 6
    %v2120 = vor.u32 %v2116, %v2119
    %v2121 = vrot.slane %v2120, 4
    %v2123 = vshrl.u32 %v2063, 16
    %v2125 = vrot.slane %v2123, 5
    %v2126 = vshll.u32 %v2063, 16
    %v2128 = vrot.slane %v2126, 6
    %v2129 = vor.u32 %v2125, %v2128
    %v2130 = vsel %vm2076, %v2121, %v2129
    %v2132 = vshrl.u32 %v2064, 16
    %v2134 = vrot.slane %v2132, 5
    %v2135 = vshll.u32 %v2064, 16
    %v2137 = vrot.slane %v2135, 6
    %v2138 = vor.u32 %v2134, %v2137
    %v2139 = vrot.slane %v2138, 4
    %v2141 = vshrl.u32 %v2065, 16
    %v2143 = vrot.slane %v2141, 5
    %v2144 = vshll.u32 %v2065, 16
    %v2146 = vrot.slane %v2144, 6
    %v2147 = vor.u32 %v2143, %v2146
    %v2148 = vsel %vm2076, %v2139, %v2147
    %v2150 = vshrl.u32 %v2066, 16
    %v2152 = vrot.slane %v2150, 5
    %v2153 = vshll.u32 %v2066, 16
    %v2155 = vrot.slane %v2153, 6
    %v2156 = vor.u32 %v2152, %v2155
    %v2157 = vrot.slane %v2156, 4
    %v2159 = vshrl.u32 %v2067, 16
    %v2161 = vrot.slane %v2159, 5
    %v2162 = vshll.u32 %v2067, 16
    %v2164 = vrot.slane %v2162, 6
    %v2165 = vor.u32 %v2161, %v2164
    %v2166 = vsel %vm2076, %v2157, %v2165
    %v2168 = vshrl.u32 %v2068, 16
    %v2170 = vrot.slane %v2168, 5
    %v2171 = vshll.u32 %v2068, 16
    %v2173 = vrot.slane %v2171, 6
    %v2174 = vor.u32 %v2170, %v2173
    %v2175 = vrot.slane %v2174, 4
    %v2177 = vshrl.u32 %v2069, 16
    %v2179 = vrot.slane %v2177, 5
    %v2180 = vshll.u32 %v2069, 16
    %v2182 = vrot.slane %v2180, 6
    %v2183 = vor.u32 %v2179, %v2182
    %v2184 = vsel %vm2076, %v2175, %v2183
    %v2186 = vshrl.u32 %v2070, 16
    %v2188 = vrot.slane %v2186, 5
    %v2189 = vshll.u32 %v2070, 16
    %v2191 = vrot.slane %v2189, 6
    %v2192 = vor.u32 %v2188, %v2191
    %v2193 = vrot.slane %v2192, 4
    %v2195 = vshrl.u32 %v2071, 16
    %v2197 = vrot.slane %v2195, 5
    %v2198 = vshll.u32 %v2071, 16
    %v2200 = vrot.slane %v2198, 6
    %v2201 = vor.u32 %v2197, %v2200
    %v2202 = vsel %vm2076, %v2193, %v2201
    %v2204 = vshrl.u32 %v2072, 16
    %v2206 = vrot.slane %v2204, 5
    %v2207 = vshll.u32 %v2072, 16
    %v2209 = vrot.slane %v2207, 6
    %v2210 = vor.u32 %v2206, %v2209
    %v2211 = vrot.slane %v2210, 4
    %v2213 = vshrl.u32 %v2073, 16
    %v2215 = vrot.slane %v2213, 5
    %v2216 = vshll.u32 %v2073, 16
    %v2218 = vrot.slane %v2216, 6
    %v2219 = vor.u32 %v2215, %v2218
    %v2220 = vsel %vm2076, %v2211, %v2219
    %v2221 = vld [vmem:[#allocation6 + $0x3c0] sm:$0xff]
    %v2222 = vld [vmem:[#allocation6 + $0x3c8] sm:$0xff]
    %v2223 = vld [vmem:[#allocation6 + $0x3d0] sm:$0xf]
    %v2224 = vld [vmem:[#allocation6 + $0x3d4] sm:$0xff]
    %v2225 = vld [vmem:[#allocation6 + $0x3dc] sm:$0xff]
    %v2226 = vld [vmem:[#allocation6 + $0x3e4] sm:$0xf]
    %v2227 = vld [vmem:[#allocation6 + $0x3e8] sm:$0xff]
    %v2228 = vld [vmem:[#allocation6 + $0x3f0] sm:$0xff]
    %v2229 = vld [vmem:[#allocation6 + $0x3f8] sm:$0xf]
    %v2230 = vld [vmem:[#allocation6 + $0x3fc] sm:$0xff]
    %v2231 = vld [vmem:[#allocation6 + $0x404] sm:$0xff]
    %v2232 = vld [vmem:[#allocation6 + $0x40c] sm:$0xf]
    %v2233 = vld [vmem:[#allocation6 + $0x410] sm:$0xff]
    %v2234 = vld [vmem:[#allocation6 + $0x418] sm:$0xff]
    %v2235 = vld [vmem:[#allocation6 + $0x420] sm:$0xf]
    %v2236 = vld [vmem:[#allocation6 + $0x424] sm:$0xff]
    %v2237 = vld [vmem:[#allocation6 + $0x42c] sm:$0xff]
    %v2238 = vld [vmem:[#allocation6 + $0x434] sm:$0xf]
    %v2239 = vld [vmem:[#allocation6 + $0x438] sm:$0xff]
    %v2240 = vld [vmem:[#allocation6 + $0x440] sm:$0xff]
    %v2241 = vld [vmem:[#allocation6 + $0x448] sm:$0xf]
    %v2242 = vld [vmem:[#allocation6 + $0x44c] sm:$0xff]
    %v2243 = vld [vmem:[#allocation6 + $0x454] sm:$0xff]
    %v2244 = vld [vmem:[#allocation6 + $0x45c] sm:$0xf]
    %v2245 = vld [vmem:[#allocation6 + $0x460] sm:$0xff]
    %v2246 = vld [vmem:[#allocation6 + $0x468] sm:$0xff]
    %v2247 = vld [vmem:[#allocation6 + $0x470] sm:$0xf]
    %v2248 = vld [vmem:[#allocation6 + $0x474] sm:$0xff]
    %v2249 = vld [vmem:[#allocation6 + $0x47c] sm:$0xff]
    %v2250 = vld [vmem:[#allocation6 + $0x484] sm:$0xf]
    %v2251 = vld [vmem:[#allocation6 + $0x488] sm:$0xff]
    %v2252 = vld [vmem:[#allocation6 + $0x490] sm:$0xff]
    %v2253 = vld [vmem:[#allocation6 + $0x498] sm:$0xf]
    %v2254 = vld [vmem:[#allocation6 + $0x49c] sm:$0xff]
    %v2255 = vld [vmem:[#allocation6 + $0x4a4] sm:$0xff]
    %v2256 = vld [vmem:[#allocation6 + $0x4ac] sm:$0xf]
    %v2257 = vld [vmem:[#allocation6 + $0x4b0] sm:$0xff]
    %v2258 = vld [vmem:[#allocation6 + $0x4b8] sm:$0xff]
    %v2259 = vld [vmem:[#allocation6 + $0x4c0] sm:$0xf]
    %v2260 = vld [vmem:[#allocation6 + $0x4c4] sm:$0xff]
    %v2261 = vld [vmem:[#allocation6 + $0x4cc] sm:$0xff]
    %v2262 = vld [vmem:[#allocation6 + $0x4d4] sm:$0xf]
    %v2263 = vld [vmem:[#allocation6 + $0x4d8] sm:$0xff]
    %v2264 = vld [vmem:[#allocation6 + $0x4e0] sm:$0xff]
    %v2265 = vld [vmem:[#allocation6 + $0x4e8] sm:$0xf]
    %v2266 = vld [vmem:[#allocation6 + $0x4ec] sm:$0xff]
    %v2267 = vld [vmem:[#allocation6 + $0x4f4] sm:$0xff]
    %v2268 = vld [vmem:[#allocation6 + $0x4fc] sm:$0xf]
    %v2269 = vunpack.c.l.b16 %v2094
    %v2270 = vunpack.c.l.b16 %v2112
    %v2271 = vunpack.c.l.b16 %v2130
    %v2272 = vunpack.c.l.b16 %v2148
    %v2273 = vunpack.c.l.b16 %v2166
    %v2274 = vunpack.c.l.b16 %v2184
    %v2275 = vunpack.c.l.b16 %v2202
    %v2276 = vunpack.c.l.b16 %v2220
    %v2277 = vpack.c.b16 %v2270, %v2269
    %v2278 = vpack.c.b16 %v2272, %v2271
    %v2279 = vpack.c.b16 %v2274, %v2273
    %v2280 = vpack.c.b16 %v2276, %v2275
    %v2333 = vunpack.c.l.b16 %v2221
    %v2334 = vunpack.c.h.b16 %v2221
    %v2335 = vunpack.c.l.b16 %v2222
    %v2336 = vunpack.c.h.b16 %v2222
    %v2337 = vunpack.c.l.b16 %v2223
    %v2338 = vunpack.c.l.b16 %v2224
    %v2339 = vunpack.c.h.b16 %v2224
    %v2340 = vunpack.c.l.b16 %v2225
    %v2341 = vunpack.c.h.b16 %v2225
    %v2342 = vunpack.c.l.b16 %v2226
    %v2343 = vunpack.c.l.b16 %v2227
    %v2344 = vunpack.c.h.b16 %v2227
    %v2345 = vunpack.c.l.b16 %v2228
    %v2346 = vunpack.c.h.b16 %v2228
    %v2347 = vunpack.c.l.b16 %v2229
    %v2348 = vunpack.c.l.b16 %v2230
    %v2349 = vunpack.c.h.b16 %v2230
    %v2350 = vunpack.c.l.b16 %v2231
    %v2351 = vunpack.c.h.b16 %v2231
    %v2352 = vunpack.c.l.b16 %v2232
    %v2353 = vunpack.c.l.b16 %v2233
    %v2354 = vunpack.c.h.b16 %v2233
    %v2355 = vunpack.c.l.b16 %v2234
    %v2356 = vunpack.c.h.b16 %v2234
    %v2357 = vunpack.c.l.b16 %v2235
    %v2358 = vunpack.c.l.b16 %v2236
    %v2359 = vunpack.c.h.b16 %v2236
    %v2360 = vunpack.c.l.b16 %v2237
    %v2361 = vunpack.c.h.b16 %v2237
    %v2362 = vunpack.c.l.b16 %v2238
    %v2363 = vunpack.c.l.b16 %v2239
    %v2364 = vunpack.c.h.b16 %v2239
    %v2365 = vunpack.c.l.b16 %v2240
    %v2366 = vunpack.c.h.b16 %v2240
    %v2367 = vunpack.c.l.b16 %v2241
    %v2368 = vunpack.c.l.b16 %v2242
    %v2369 = vunpack.c.h.b16 %v2242
    %v2370 = vunpack.c.l.b16 %v2243
    %v2371 = vunpack.c.h.b16 %v2243
    %v2372 = vunpack.c.l.b16 %v2244
    %v2373 = vunpack.c.l.b16 %v2245
    %v2374 = vunpack.c.h.b16 %v2245
    %v2375 = vunpack.c.l.b16 %v2246
    %v2376 = vunpack.c.h.b16 %v2246
    %v2377 = vunpack.c.l.b16 %v2247
    %v2378 = vunpack.c.l.b16 %v2248
    %v2379 = vunpack.c.h.b16 %v2248
    %v2380 = vunpack.c.l.b16 %v2249
    %v2381 = vunpack.c.h.b16 %v2249
    %v2382 = vunpack.c.l.b16 %v2250
    %v2383 = vunpack.c.l.b16 %v2251
    %v2384 = vunpack.c.h.b16 %v2251
    %v2385 = vunpack.c.l.b16 %v2252
    %v2386 = vunpack.c.h.b16 %v2252
    %v2387 = vunpack.c.l.b16 %v2253
    %v2388 = vunpack.c.l.b16 %v2254
    %v2389 = vunpack.c.h.b16 %v2254
    %v2390 = vunpack.c.l.b16 %v2255
    %v2391 = vunpack.c.h.b16 %v2255
    %v2392 = vunpack.c.l.b16 %v2256
    %v2393 = vunpack.c.l.b16 %v2257
    %v2394 = vunpack.c.h.b16 %v2257
    %v2395 = vunpack.c.l.b16 %v2258
    %v2396 = vunpack.c.h.b16 %v2258
    %v2397 = vunpack.c.l.b16 %v2259
    %v2398 = vunpack.c.l.b16 %v2260
    %v2399 = vunpack.c.h.b16 %v2260
    %v2400 = vunpack.c.l.b16 %v2261
    %v2401 = vunpack.c.h.b16 %v2261
    %v2402 = vunpack.c.l.b16 %v2262
    %v2403 = vunpack.c.l.b16 %v2263
    %v2404 = vunpack.c.h.b16 %v2263
    %v2405 = vunpack.c.l.b16 %v2264
    %v2406 = vunpack.c.h.b16 %v2264
    %v2407 = vunpack.c.l.b16 %v2265
    %v2408 = vunpack.c.l.b16 %v2266
    %v2409 = vunpack.c.h.b16 %v2266
    %v2410 = vunpack.c.l.b16 %v2267
    %v2411 = vunpack.c.h.b16 %v2267
    %v2412 = vunpack.c.l.b16 %v2268
    %v2413 = vpack.c.b16 %v2338, %v2333
    %v2414 = vpack.c.b16 %v2339, %v2334
    %v2415 = vpack.c.b16 %v2340, %v2335
    %v2416 = vpack.c.b16 %v2341, %v2336
    %v2417 = vpack.c.b16 %v2342, %v2337
    %v2418 = vpack.c.b16 %v2348, %v2343
    %v2419 = vpack.c.b16 %v2349, %v2344
    %v2420 = vpack.c.b16 %v2350, %v2345
    %v2421 = vpack.c.b16 %v2351, %v2346
    %v2422 = vpack.c.b16 %v2352, %v2347
    %v2423 = vpack.c.b16 %v2358, %v2353
    %v2424 = vpack.c.b16 %v2359, %v2354
    %v2425 = vpack.c.b16 %v2360, %v2355
    %v2426 = vpack.c.b16 %v2361, %v2356
    %v2427 = vpack.c.b16 %v2362, %v2357
    %v2428 = vpack.c.b16 %v2368, %v2363
    %v2429 = vpack.c.b16 %v2369, %v2364
    %v2430 = vpack.c.b16 %v2370, %v2365
    %v2431 = vpack.c.b16 %v2371, %v2366
    %v2432 = vpack.c.b16 %v2372, %v2367
    %v2433 = vpack.c.b16 %v2378, %v2373
    %v2434 = vpack.c.b16 %v2379, %v2374
    %v2435 = vpack.c.b16 %v2380, %v2375
    %v2436 = vpack.c.b16 %v2381, %v2376
    %v2437 = vpack.c.b16 %v2382, %v2377
    %v2438 = vpack.c.b16 %v2388, %v2383
    %v2439 = vpack.c.b16 %v2389, %v2384
    %v2440 = vpack.c.b16 %v2390, %v2385
    %v2441 = vpack.c.b16 %v2391, %v2386
    %v2442 = vpack.c.b16 %v2392, %v2387
    %v2443 = vpack.c.b16 %v2398, %v2393
    %v2444 = vpack.c.b16 %v2399, %v2394
    %v2445 = vpack.c.b16 %v2400, %v2395
    %v2446 = vpack.c.b16 %v2401, %v2396
    %v2447 = vpack.c.b16 %v2402, %v2397
    %v2448 = vpack.c.b16 %v2408, %v2403
    %v2449 = vpack.c.b16 %v2409, %v2404
    %v2450 = vpack.c.b16 %v2410, %v2405
    %v2451 = vpack.c.b16 %v2411, %v2406
    %v2452 = vpack.c.b16 %v2412, %v2407
    %2493 = vmatprep.subr.bf16.mxu0 %v2414
    %2494 = vmatpush1.bf16.msra.mxu0 %v2413
    %2495 = vmatprep.subr.bf16.mxu0 %v2419
    %2496 = vmatpush1.bf16.msra.mxu0 %v2418
    %2497 = vmatprep.subr.bf16.mxu0 %v2424
    %2498 = vmatpush1.bf16.msra.mxu0 %v2423
    %2499 = vmatprep.subr.bf16.mxu0 %v2429
    %2500 = vmatpush1.bf16.msra.mxu0 %v2428
    %2501 = vmatprep.subr.bf16.mxu0 %v2434
    %2502 = vmatpush1.bf16.msra.mxu0 %v2433
    %2503 = vmatprep.subr.bf16.mxu0 %v2439
    %2504 = vmatpush1.bf16.msra.mxu0 %v2438
    %2505 = vmatprep.subr.bf16.mxu0 %v2444
    %2506 = vmatpush1.bf16.msra.mxu0 %v2443
    %2507 = vmatprep.subr.bf16.mxu0 %v2449
    %2508 = vmatpush1.bf16.msra.mxu0 %v2448
    %2509 = vmatprep.subr.bf16.mxu0 0
    %2510 = vmatpush1.bf16.msra.mxu0 0
    %2511 = vmatprep.subr.bf16.mxu0 0
    %2512 = vmatpush1.bf16.msra.mxu0 0
    %2513 = vmatprep.subr.bf16.mxu0 0
    %2514 = vmatpush1.bf16.msra.mxu0 0
    %2515 = vmatprep.subr.bf16.mxu0 0
    %2516 = vmatpush1.bf16.msra.mxu0 0
    %2517 = vmatprep.subr.bf16.mxu0 0
    %2518 = vmatpush1.bf16.msra.mxu0 0
    %2519 = vmatprep.subr.bf16.mxu0 0
    %2520 = vmatpush1.bf16.msra.mxu0 0
    %2521 = vmatprep.subr.bf16.mxu0 0
    %2522 = vmatpush1.bf16.msra.mxu0 0
    %2523 = vmatprep.subr.bf16.mxu0 0
    %2524 = vmatpush1.bf16.msra.mxu0 0
    %2525 = vmatprep.mubr.bf16.mxu0 0
    %2526 = vmatmul.mubr.bf16.gmra.mrb[0].mxu0 %v2277
    %v2527 = vpop.f32.mrb[0].mxu0
    %v2528 = vadd.f32 0.0, %v2527
    %v2529 = vpop.f32.mrb[0].mxu0
    %v2530 = vadd.f32 0.0, %v2529
    %v2531 = vpop.f32.mrb[0].mxu0
    %v2532 = vadd.f32 0.0, %v2531
    %v2533 = vpop.f32.mrb[0].mxu0
    %v2534 = vadd.f32 0.0, %v2533
    %2535 = vmatprep.mubr.bf16.mxu0 0
    %2536 = vmatmul.mubr.bf16.gmra.mrb[0].mxu0 %v2278
    %v2537 = vpop.f32.mrb[0].mxu0
    %v2538 = vadd.f32 0.0, %v2537
    %v2539 = vpop.f32.mrb[0].mxu0
    %v2540 = vadd.f32 0.0, %v2539
    %v2541 = vpop.f32.mrb[0].mxu0
    %v2542 = vadd.f32 0.0, %v2541
    %v2543 = vpop.f32.mrb[0].mxu0
    %v2544 = vadd.f32 0.0, %v2543
    %2545 = vmatprep.mubr.bf16.mxu0 0
    %2546 = vmatmul.mubr.bf16.gmra.mrb[0].mxu0 %v2279
    %v2547 = vpop.f32.mrb[0].mxu0
    %v2548 = vadd.f32 0.0, %v2547
    %v2549 = vpop.f32.mrb[0].mxu0
    %v2550 = vadd.f32 0.0, %v2549
    %v2551 = vpop.f32.mrb[0].mxu0
    %v2552 = vadd.f32 0.0, %v2551
    %v2553 = vpop.f32.mrb[0].mxu0
    %v2554 = vadd.f32 0.0, %v2553
    %2555 = vmatprep.mubr.bf16.mxu0 0
    %2556 = vmatmul.mubr.bf16.gmra.mrb[0].mxu0 %v2280
    %v2557 = vpop.f32.mrb[0].mxu0
    %v2558 = vadd.f32 0.0, %v2557
    %v2559 = vpop.f32.mrb[0].mxu0
    %v2560 = vadd.f32 0.0, %v2559
    %v2561 = vpop.f32.mrb[0].mxu0
    %v2562 = vadd.f32 0.0, %v2561
    %v2563 = vpop.f32.mrb[0].mxu0
    %v2564 = vadd.f32 0.0, %v2563
    %2565 = vdwg.mxu0
    %2566 = vmatprep.subr.bf16.mxu0 %v2416
    %2567 = vmatpush1.bf16.msra.mxu0 %v2415
    %2568 = vmatprep.subr.bf16.mxu0 %v2421
    %2569 = vmatpush1.bf16.msra.mxu0 %v2420
    %2570 = vmatprep.subr.bf16.mxu0 %v2426
    %2571 = vmatpush1.bf16.msra.mxu0 %v2425
    %2572 = vmatprep.subr.bf16.mxu0 %v2431
    %2573 = vmatpush1.bf16.msra.mxu0 %v2430
    %2574 = vmatprep.subr.bf16.mxu0 %v2436
    %2575 = vmatpush1.bf16.msra.mxu0 %v2435
    %2576 = vmatprep.subr.bf16.mxu0 %v2441
    %2577 = vmatpush1.bf16.msra.mxu0 %v2440
    %2578 = vmatprep.subr.bf16.mxu0 %v2446
    %2579 = vmatpush1.bf16.msra.mxu0 %v2445
    %2580 = vmatprep.subr.bf16.mxu0 %v2451
    %2581 = vmatpush1.bf16.msra.mxu0 %v2450
    %2582 = vmatprep.subr.bf16.mxu0 0
    %2583 = vmatpush1.bf16.msra.mxu0 0
    %2584 = vmatprep.subr.bf16.mxu0 0
    %2585 = vmatpush1.bf16.msra.mxu0 0
    %2586 = vmatprep.subr.bf16.mxu0 0
    %2587 = vmatpush1.bf16.msra.mxu0 0
    %2588 = vmatprep.subr.bf16.mxu0 0
    %2589 = vmatpush1.bf16.msra.mxu0 0
    %2590 = vmatprep.subr.bf16.mxu0 0
    %2591 = vmatpush1.bf16.msra.mxu0 0
    %2592 = vmatprep.subr.bf16.mxu0 0
    %2593 = vmatpush1.bf16.msra.mxu0 0
    %2594 = vmatprep.subr.bf16.mxu0 0
    %2595 = vmatpush1.bf16.msra.mxu0 0
    %2596 = vmatprep.subr.bf16.mxu0 0
    %2597 = vmatpush1.bf16.msra.mxu0 0
    %2598 = vmatprep.mubr.bf16.mxu0 0
    %2599 = vmatmul.mubr.bf16.gmra.mrb[0].mxu0 %v2277
    %v2600 = vpop.f32.mrb[0].mxu0
    %v2601 = vadd.f32 0.0, %v2600
    %v2602 = vpop.f32.mrb[0].mxu0
    %v2603 = vadd.f32 0.0, %v2602
    %v2604 = vpop.f32.mrb[0].mxu0
    %v2605 = vadd.f32 0.0, %v2604
    %v2606 = vpop.f32.mrb[0].mxu0
    %v2607 = vadd.f32 0.0, %v2606
    %2608 = vmatprep.mubr.bf16.mxu0 0
    %2609 = vmatmul.mubr.bf16.gmra.mrb[0].mxu0 %v2278
    %v2610 = vpop.f32.mrb[0].mxu0
    %v2611 = vadd.f32 0.0, %v2610
    %v2612 = vpop.f32.mrb[0].mxu0
    %v2613 = vadd.f32 0.0, %v2612
    %v2614 = vpop.f32.mrb[0].mxu0
    %v2615 = vadd.f32 0.0, %v2614
    %v2616 = vpop.f32.mrb[0].mxu0
    %v2617 = vadd.f32 0.0, %v2616
    %2618 = vmatprep.mubr.bf16.mxu0 0
    %2619 = vmatmul.mubr.bf16.gmra.mrb[0].mxu0 %v2279
    %v2620 = vpop.f32.mrb[0].mxu0
    %v2621 = vadd.f32 0.0, %v2620
    %v2622 = vpop.f32.mrb[0].mxu0
    %v2623 = vadd.f32 0.0, %v2622
    %v2624 = vpop.f32.mrb[0].mxu0
    %v2625 = vadd.f32 0.0, %v2624
    %v2626 = vpop.f32.mrb[0].mxu0
    %v2627 = vadd.f32 0.0, %v2626
    %2628 = vmatprep.mubr.bf16.mxu0 0
    %2629 = vmatmul.mubr.bf16.gmra.mrb[0].mxu0 %v2280
    %v2630 = vpop.f32.mrb[0].mxu0
    %v2631 = vadd.f32 0.0, %v2630
    %v2632 = vpop.f32.mrb[0].mxu0
    %v2633 = vadd.f32 0.0, %v2632
    %v2634 = vpop.f32.mrb[0].mxu0
    %v2635 = vadd.f32 0.0, %v2634
    %v2636 = vpop.f32.mrb[0].mxu0
    %v2637 = vadd.f32 0.0, %v2636
    %2638 = vdwg.mxu0
    %2639 = vmatprep.subr.bf16.mxu0 0
    %2640 = vmatpush1.bf16.msra.mxu0 %v2417
    %2641 = vmatprep.subr.bf16.mxu0 0
    %2642 = vmatpush1.bf16.msra.mxu0 %v2422
    %2643 = vmatprep.subr.bf16.mxu0 0
    %2644 = vmatpush1.bf16.msra.mxu0 %v2427
    %2645 = vmatprep.subr.bf16.mxu0 0
    %2646 = vmatpush1.bf16.msra.mxu0 %v2432
    %2647 = vmatprep.subr.bf16.mxu0 0
    %2648 = vmatpush1.bf16.msra.mxu0 %v2437
    %2649 = vmatprep.subr.bf16.mxu0 0
    %2650 = vmatpush1.bf16.msra.mxu0 %v2442
    %2651 = vmatprep.subr.bf16.mxu0 0
    %2652 = vmatpush1.bf16.msra.mxu0 %v2447
    %2653 = vmatprep.subr.bf16.mxu0 0
    %2654 = vmatpush1.bf16.msra.mxu0 %v2452
    %2655 = vmatprep.subr.bf16.mxu0 0
    %2656 = vmatpush1.bf16.msra.mxu0 0
    %2657 = vmatprep.subr.bf16.mxu0 0
    %2658 = vmatpush1.bf16.msra.mxu0 0
    %2659 = vmatprep.subr.bf16.mxu0 0
    %2660 = vmatpush1.bf16.msra.mxu0 0
    %2661 = vmatprep.subr.bf16.mxu0 0
    %2662 = vmatpush1.bf16.msra.mxu0 0
    %2663 = vmatprep.subr.bf16.mxu0 0
    %2664 = vmatpush1.bf16.msra.mxu0 0
    %2665 = vmatprep.subr.bf16.mxu0 0
    %2666 = vmatpush1.bf16.msra.mxu0 0
    %2667 = vmatprep.subr.bf16.mxu0 0
    %2668 = vmatpush1.bf16.msra.mxu0 0
    %2669 = vmatprep.subr.bf16.mxu0 0
    %2670 = vmatpush1.bf16.msra.mxu0 0
    %2671 = vmatprep.mubr.bf16.mxu0 0
    %2672 = vmatmul.mubr.bf16.gmra.mrb[0].mxu0 %v2277
    %v2673 = vpop.f32.mrb[0].mxu0
    %v2674 = vadd.f32 0.0, %v2673
    %v2675 = vpop.f32.mrb[0].mxu0
    %v2676 = vpop.f32.mrb[0].mxu0
    %v2677 = vadd.f32 0.0, %v2676
    %v2678 = vpop.f32.mrb[0].mxu0
    %2679 = vmatprep.mubr.bf16.mxu0 0
    %2680 = vmatmul.mubr.bf16.gmra.mrb[0].mxu0 %v2278
    %v2681 = vpop.f32.mrb[0].mxu0
    %v2682 = vadd.f32 0.0, %v2681
    %v2683 = vpop.f32.mrb[0].mxu0
    %v2684 = vpop.f32.mrb[0].mxu0
    %v2685 = vadd.f32 0.0, %v2684
    %v2686 = vpop.f32.mrb[0].mxu0
    %2687 = vmatprep.mubr.bf16.mxu0 0
    %2688 = vmatmul.mubr.bf16.gmra.mrb[0].mxu0 %v2279
    %v2689 = vpop.f32.mrb[0].mxu0
    %v2690 = vadd.f32 0.0, %v2689
    %v2691 = vpop.f32.mrb[0].mxu0
    %v2692 = vpop.f32.mrb[0].mxu0
    %v2693 = vadd.f32 0.0, %v2692
    %v2694 = vpop.f32.mrb[0].mxu0
    %2695 = vmatprep.mubr.bf16.mxu0 0
    %2696 = vmatmul.mubr.bf16.gmra.mrb[0].mxu0 %v2280
    %v2697 = vpop.f32.mrb[0].mxu0
    %v2698 = vadd.f32 0.0, %v2697
    %v2699 = vpop.f32.mrb[0].mxu0
    %v2700 = vpop.f32.mrb[0].mxu0
    %v2701 = vadd.f32 0.0, %v2700
    %v2702 = vpop.f32.mrb[0].mxu0
    %2703 = vdwg.mxu0
    %v2704 = vadd.f32 %v2018, %v2528
    %v2705 = vadd.f32 %v2019, %v2530
    %v2706 = vadd.f32 %v2020, %v2601
    %v2707 = vadd.f32 %v2021, %v2603
    %v2708 = vadd.f32 %v2022, %v2674
    %v2709 = vadd.f32 %v2023, %v2532
    %v2710 = vadd.f32 %v2024, %v2534
    %v2711 = vadd.f32 %v2025, %v2605
    %v2712 = vadd.f32 %v2026, %v2607
    %v2713 = vadd.f32 %v2027, %v2677
    %v2714 = vadd.f32 %v2028, %v2538
    %v2715 = vadd.f32 %v2029, %v2540
    %v2716 = vadd.f32 %v2030, %v2611
    %v2717 = vadd.f32 %v2031, %v2613
    %v2718 = vadd.f32 %v2032, %v2682
    %v2719 = vadd.f32 %v2033, %v2542
    %v2720 = vadd.f32 %v2034, %v2544
    %v2721 = vadd.f32 %v2035, %v2615
    %v2722 = vadd.f32 %v2036, %v2617
    %v2723 = vadd.f32 %v2037, %v2685
    %v2724 = vadd.f32 %v2038, %v2548
    %v2725 = vadd.f32 %v2039, %v2550
    %v2726 = vadd.f32 %v2040, %v2621
    %v2727 = vadd.f32 %v2041, %v2623
    %v2728 = vadd.f32 %v2042, %v2690
    %v2729 = vadd.f32 %v2043, %v2552
    %v2730 = vadd.f32 %v2044, %v2554
    %v2731 = vadd.f32 %v2045, %v2625
    %v2732 = vadd.f32 %v2046, %v2627
    %v2733 = vadd.f32 %v2047, %v2693
    %v2734 = vadd.f32 %v2048, %v2558
    %v2735 = vadd.f32 %v2049, %v2560
    %v2736 = vadd.f32 %v2050, %v2631
    %v2737 = vadd.f32 %v2051, %v2633
    %v2738 = vadd.f32 %v2052, %v2698
    %v2739 = vadd.f32 %v2053, %v2562
    %v2740 = vadd.f32 %v2054, %v2564
    %v2741 = vadd.f32 %v2055, %v2635
    %v2742 = vadd.f32 %v2056, %v2637
    %v2743 = vadd.f32 %v2057, %v2701
    %2744 = vst [vmem:[#allocation2] sm:$0xff] %v2704
    %2745 = vst [vmem:[#allocation2 + $0x8] sm:$0xff] %v2705
    %2746 = vst [vmem:[#allocation2 + $0x10] sm:$0xff] %v2706
    %2747 = vst [vmem:[#allocation2 + $0x18] sm:$0xff] %v2707
    %2748 = vst [vmem:[#allocation2 + $0x20] sm:$0xff] %v2708
    %2749 = vst [vmem:[#allocation2 + $0x28] sm:$0xff] %v2709
    %2750 = vst [vmem:[#allocation2 + $0x30] sm:$0xff] %v2710
    %2751 = vst [vmem:[#allocation2 + $0x38] sm:$0xff] %v2711
    %2752 = vst [vmem:[#allocation2 + $0x40] sm:$0xff] %v2712
    %2753 = vst [vmem:[#allocation2 + $0x48] sm:$0xff] %v2713
    %2754 = vst [vmem:[#allocation2 + $0x50] sm:$0xff] %v2714
    %2755 = vst [vmem:[#allocation2 + $0x58] sm:$0xff] %v2715
    %2756 = vst [vmem:[#allocation2 + $0x60] sm:$0xff] %v2716
    %2757 = vst [vmem:[#allocation2 + $0x68] sm:$0xff] %v2717
    %2758 = vst [vmem:[#allocation2 + $0x70] sm:$0xff] %v2718
    %2759 = vst [vmem:[#allocation2 + $0x78] sm:$0xff] %v2719
    %2760 = vst [vmem:[#allocation2 + $0x80] sm:$0xff] %v2720
    %2761 = vst [vmem:[#allocation2 + $0x88] sm:$0xff] %v2721
    %2762 = vst [vmem:[#allocation2 + $0x90] sm:$0xff] %v2722
    %2763 = vst [vmem:[#allocation2 + $0x98] sm:$0xff] %v2723
    %2764 = vst [vmem:[#allocation2 + $0xa0] sm:$0xff] %v2724
    %2765 = vst [vmem:[#allocation2 + $0xa8] sm:$0xff] %v2725
    %2766 = vst [vmem:[#allocation2 + $0xb0] sm:$0xff] %v2726
    %2767 = vst [vmem:[#allocation2 + $0xb8] sm:$0xff] %v2727
    %2768 = vst [vmem:[#allocation2 + $0xc0] sm:$0xff] %v2728
    %2769 = vst [vmem:[#allocation2 + $0xc8] sm:$0xff] %v2729
    %2770 = vst [vmem:[#allocation2 + $0xd0] sm:$0xff] %v2730
    %2771 = vst [vmem:[#allocation2 + $0xd8] sm:$0xff] %v2731
    %2772 = vst [vmem:[#allocation2 + $0xe0] sm:$0xff] %v2732
    %2773 = vst [vmem:[#allocation2 + $0xe8] sm:$0xff] %v2733
    %2774 = vst [vmem:[#allocation2 + $0xf0] sm:$0xff] %v2734
    %2775 = vst [vmem:[#allocation2 + $0xf8] sm:$0xff] %v2735
    %2776 = vst [vmem:[#allocation2 + $0x100] sm:$0xff] %v2736
    %2777 = vst [vmem:[#allocation2 + $0x108] sm:$0xff] %v2737
    %2778 = vst [vmem:[#allocation2 + $0x110] sm:$0xff] %v2738
    %2779 = vst [vmem:[#allocation2 + $0x118] sm:$0xff] %v2739
    %2780 = vst [vmem:[#allocation2 + $0x120] sm:$0xff] %v2740
    %2781 = vst [vmem:[#allocation2 + $0x128] sm:$0xff] %v2741
    %2782 = vst [vmem:[#allocation2 + $0x130] sm:$0xff] %v2742
    %2783 = vst [vmem:[#allocation2 + $0x138] sm:$0xff] %v2743
    %v2784 = vld [vmem:[#allocation2] sm:$0xff]
    %v2785 = vld [vmem:[#allocation2 + $0x8] sm:$0xff]
    %v2786 = vld [vmem:[#allocation2 + $0x10] sm:$0xff]
    %v2787 = vld [vmem:[#allocation2 + $0x18] sm:$0xff]
    %v2788 = vld [vmem:[#allocation2 + $0x20] sm:$0xff]
    %v2789 = vld [vmem:[#allocation2 + $0x28] sm:$0xff]
    %v2790 = vld [vmem:[#allocation2 + $0x30] sm:$0xff]
    %v2791 = vld [vmem:[#allocation2 + $0x38] sm:$0xff]
    %v2792 = vld [vmem:[#allocation2 + $0x40] sm:$0xff]
    %v2793 = vld [vmem:[#allocation2 + $0x48] sm:$0xff]
    %v2794 = vld [vmem:[#allocation2 + $0x50] sm:$0xff]
    %v2795 = vld [vmem:[#allocation2 + $0x58] sm:$0xff]
    %v2796 = vld [vmem:[#allocation2 + $0x60] sm:$0xff]
    %v2797 = vld [vmem:[#allocation2 + $0x68] sm:$0xff]
    %v2798 = vld [vmem:[#allocation2 + $0x70] sm:$0xff]
    %v2799 = vld [vmem:[#allocation2 + $0x78] sm:$0xff]
    %v2800 = vld [vmem:[#allocation2 + $0x80] sm:$0xff]
    %v2801 = vld [vmem:[#allocation2 + $0x88] sm:$0xff]
    %v2802 = vld [vmem:[#allocation2 + $0x90] sm:$0xff]
    %v2803 = vld [vmem:[#allocation2 + $0x98] sm:$0xff]
    %v2804 = vld [vmem:[#allocation2 + $0xa0] sm:$0xff]
    %v2805 = vld [vmem:[#allocation2 + $0xa8] sm:$0xff]
    %v2806 = vld [vmem:[#allocation2 + $0xb0] sm:$0xff]
    %v2807 = vld [vmem:[#allocation2 + $0xb8] sm:$0xff]
    %v2808 = vld [vmem:[#allocation2 + $0xc0] sm:$0xff]
    %v2809 = vld [vmem:[#allocation2 + $0xc8] sm:$0xff]
    %v2810 = vld [vmem:[#allocation2 + $0xd0] sm:$0xff]
    %v2811 = vld [vmem:[#allocation2 + $0xd8] sm:$0xff]
    %v2812 = vld [vmem:[#allocation2 + $0xe0] sm:$0xff]
    %v2813 = vld [vmem:[#allocation2 + $0xe8] sm:$0xff]
    %v2814 = vld [vmem:[#allocation2 + $0xf0] sm:$0xff]
    %v2815 = vld [vmem:[#allocation2 + $0xf8] sm:$0xff]
    %v2816 = vld [vmem:[#allocation2 + $0x100] sm:$0xff]
    %v2817 = vld [vmem:[#allocation2 + $0x108] sm:$0xff]
    %v2818 = vld [vmem:[#allocation2 + $0x110] sm:$0xff]
    %v2819 = vld [vmem:[#allocation2 + $0x118] sm:$0xff]
    %v2820 = vld [vmem:[#allocation2 + $0x120] sm:$0xff]
    %v2821 = vld [vmem:[#allocation2 + $0x128] sm:$0xff]
    %v2822 = vld [vmem:[#allocation2 + $0x130] sm:$0xff]
    %v2823 = vld [vmem:[#allocation2 + $0x138] sm:$0xff]
    %v2824 = vld [vmem:[#allocation3] sm:$0xc]
    %v2825 = vld [vmem:[#allocation3 + $0x4] sm:$0x3]
    %v2826 = vld [vmem:[#allocation3 + $0x8] sm:$0xc]
    %v2827 = vld [vmem:[#allocation3 + $0xc] sm:$0x3]
    %v2828 = vld [vmem:[#allocation3 + $0x10] sm:$0xc]
    %v2829 = vld [vmem:[#allocation3 + $0x14] sm:$0x3]
    %v2830 = vld [vmem:[#allocation3 + $0x18] sm:$0xc]
    %v2831 = vld [vmem:[#allocation3 + $0x1c] sm:$0x3]
    %v2832 = vld [vmem:[#allocation3 + $0x20] sm:$0xc]
    %v2833 = vld [vmem:[#allocation3 + $0x24] sm:$0x3]
    %v2834 = vld [vmem:[#allocation3 + $0x28] sm:$0xc]
    %v2835 = vld [vmem:[#allocation3 + $0x2c] sm:$0x3]
    %v2836 = vld [vmem:[#allocation3 + $0x30] sm:$0xc]
    %v2837 = vld [vmem:[#allocation3 + $0x34] sm:$0x3]
    %v2838 = vld [vmem:[#allocation3 + $0x38] sm:$0xc]
    %v2839 = vld [vmem:[#allocation3 + $0x3c] sm:$0x3]
    %vm2856 = vcmask 1041408
    %vm2857 = vcmask 1045508
    %vm2858 = vmor %vm2856, %vm2857
    %v2859 = vrot.slane %v2824, 6
    %v2860 = vrot.slane %v2859, 4
    %v2861 = vrot.slane %v2825, 6
    %v2862 = vsel %vm2858, %v2860, %v2861
    %v2863 = vrot.slane %v2826, 6
    %v2864 = vrot.slane %v2863, 4
    %v2865 = vrot.slane %v2827, 6
    %v2866 = vsel %vm2858, %v2864, %v2865
    %v2867 = vrot.slane %v2828, 6
    %v2868 = vrot.slane %v2867, 4
    %v2869 = vrot.slane %v2829, 6
    %v2870 = vsel %vm2858, %v2868, %v2869
    %v2871 = vrot.slane %v2830, 6
    %v2872 = vrot.slane %v2871, 4
    %v2873 = vrot.slane %v2831, 6
    %v2874 = vsel %vm2858, %v2872, %v2873
    %v2875 = vrot.slane %v2832, 6
    %v2876 = vrot.slane %v2875, 4
    %v2877 = vrot.slane %v2833, 6
    %v2878 = vsel %vm2858, %v2876, %v2877
    %v2879 = vrot.slane %v2834, 6
    %v2880 = vrot.slane %v2879, 4
    %v2881 = vrot.slane %v2835, 6
    %v2882 = vsel %vm2858, %v2880, %v2881
    %v2883 = vrot.slane %v2836, 6
    %v2884 = vrot.slane %v2883, 4
    %v2885 = vrot.slane %v2837, 6
    %v2886 = vsel %vm2858, %v2884, %v2885
    %v2887 = vrot.slane %v2838, 6
    %v2888 = vrot.slane %v2887, 4
    %v2889 = vrot.slane %v2839, 6
    %v2890 = vsel %vm2858, %v2888, %v2889
    %v2891 = vld [vmem:[#allocation6 + $0x500] sm:$0xff]
    %v2892 = vld [vmem:[#allocation6 + $0x508] sm:$0xff]
    %v2893 = vld [vmem:[#allocation6 + $0x510] sm:$0xf]
    %v2894 = vld [vmem:[#allocation6 + $0x514] sm:$0xff]
    %v2895 = vld [vmem:[#allocation6 + $0x51c] sm:$0xff]
    %v2896 = vld [vmem:[#allocation6 + $0x524] sm:$0xf]
    %v2897 = vld [vmem:[#allocation6 + $0x528] sm:$0xff]
    %v2898 = vld [vmem:[#allocation6 + $0x530] sm:$0xff]
    %v2899 = vld [vmem:[#allocation6 + $0x538] sm:$0xf]
    %v2900 = vld [vmem:[#allocation6 + $0x53c] sm:$0xff]
    %v2901 = vld [vmem:[#allocation6 + $0x544] sm:$0xff]
    %v2902 = vld [vmem:[#allocation6 + $0x54c] sm:$0xf]
    %v2903 = vld [vmem:[#allocation6 + $0x550] sm:$0xff]
    %v2904 = vld [vmem:[#allocation6 + $0x558] sm:$0xff]
    %v2905 = vld [vmem:[#allocation6 + $0x560] sm:$0xf]
    %v2906 = vld [vmem:[#allocation6 + $0x564] sm:$0xff]
    %v2907 = vld [vmem:[#allocation6 + $0x56c] sm:$0xff]
    %v2908 = vld [vmem:[#allocation6 + $0x574] sm:$0xf]
    %v2909 = vld [vmem:[#allocation6 + $0x578] sm:$0xff]
    %v2910 = vld [vmem:[#allocation6 + $0x580] sm:$0xff]
    %v2911 = vld [vmem:[#allocation6 + $0x588] sm:$0xf]
    %v2912 = vld [vmem:[#allocation6 + $0x58c] sm:$0xff]
    %v2913 = vld [vmem:[#allocation6 + $0x594] sm:$0xff]
    %v2914 = vld [vmem:[#allocation6 + $0x59c] sm:$0xf]
    %v2915 = vld [vmem:[#allocation6 + $0x5a0] sm:$0xff]
    %v2916 = vld [vmem:[#allocation6 + $0x5a8] sm:$0xff]
    %v2917 = vld [vmem:[#allocation6 + $0x5b0] sm:$0xf]
    %v2918 = vld [vmem:[#allocation6 + $0x5b4] sm:$0xff]
    %v2919 = vld [vmem:[#allocation6 + $0x5bc] sm:$0xff]
    %v2920 = vld [vmem:[#allocation6 + $0x5c4] sm:$0xf]
    %v2921 = vld [vmem:[#allocation6 + $0x5c8] sm:$0xff]
    %v2922 = vld [vmem:[#allocation6 + $0x5d0] sm:$0xff]
    %v2923 = vld [vmem:[#allocation6 + $0x5d8] sm:$0xf]
    %v2924 = vld [vmem:[#allocation6 + $0x5dc] sm:$0xff]
    %v2925 = vld [vmem:[#allocation6 + $0x5e4] sm:$0xff]
    %v2926 = vld [vmem:[#allocation6 + $0x5ec] sm:$0xf]
    %v2927 = vld [vmem:[#allocation6 + $0x5f0] sm:$0xff]
    %v2928 = vld [vmem:[#allocation6 + $0x5f8] sm:$0xff]
    %v2929 = vld [vmem:[#allocation6 + $0x600] sm:$0xf]
    %v2930 = vld [vmem:[#allocation6 + $0x604] sm:$0xff]
    %v2931 = vld [vmem:[#allocation6 + $0x60c] sm:$0xff]
    %v2932 = vld [vmem:[#allocation6 + $0x614] sm:$0xf]
    %v2933 = vld [vmem:[#allocation6 + $0x618] sm:$0xff]
    %v2934 = vld [vmem:[#allocation6 + $0x620] sm:$0xff]
    %v2935 = vld [vmem:[#allocation6 + $0x628] sm:$0xf]
    %v2936 = vld [vmem:[#allocation6 + $0x62c] sm:$0xff]
    %v2937 = vld [vmem:[#allocation6 + $0x634] sm:$0xff]
    %v2938 = vld [vmem:[#allocation6 + $0x63c] sm:$0xf]
    %v2939 = vunpack.c.l.b16 %v2862
    %v2940 = vunpack.c.l.b16 %v2866
    %v2941 = vunpack.c.l.b16 %v2870
    %v2942 = vunpack.c.l.b16 %v2874
    %v2943 = vunpack.c.l.b16 %v2878
    %v2944 = vunpack.c.l.b16 %v2882
    %v2945 = vunpack.c.l.b16 %v2886
    %v2946 = vunpack.c.l.b16 %v2890
    %v2947 = vpack.c.b16 %v2940, %v2939
    %v2948 = vpack.c.b16 %v2942, %v2941
    %v2949 = vpack.c.b16 %v2944, %v2943
    %v2950 = vpack.c.b16 %v2946, %v2945
    %v3003 = vunpack.c.l.b16 %v2891
    %v3004 = vunpack.c.h.b16 %v2891
    %v3005 = vunpack.c.l.b16 %v2892
    %v3006 = vunpack.c.h.b16 %v2892
    %v3007 = vunpack.c.l.b16 %v2893
    %v3008 = vunpack.c.l.b16 %v2894
    %v3009 = vunpack.c.h.b16 %v2894
    %v3010 = vunpack.c.l.b16 %v2895
    %v3011 = vunpack.c.h.b16 %v2895
    %v3012 = vunpack.c.l.b16 %v2896
    %v3013 = vunpack.c.l.b16 %v2897
    %v3014 = vunpack.c.h.b16 %v2897
    %v3015 = vunpack.c.l.b16 %v2898
    %v3016 = vunpack.c.h.b16 %v2898
    %v3017 = vunpack.c.l.b16 %v2899
    %v3018 = vunpack.c.l.b16 %v2900
    %v3019 = vunpack.c.h.b16 %v2900
    %v3020 = vunpack.c.l.b16 %v2901
    %v3021 = vunpack.c.h.b16 %v2901
    %v3022 = vunpack.c.l.b16 %v2902
    %v3023 = vunpack.c.l.b16 %v2903
    %v3024 = vunpack.c.h.b16 %v2903
    %v3025 = vunpack.c.l.b16 %v2904
    %v3026 = vunpack.c.h.b16 %v2904
    %v3027 = vunpack.c.l.b16 %v2905
    %v3028 = vunpack.c.l.b16 %v2906
    %v3029 = vunpack.c.h.b16 %v2906
    %v3030 = vunpack.c.l.b16 %v2907
    %v3031 = vunpack.c.h.b16 %v2907
    %v3032 = vunpack.c.l.b16 %v2908
    %v3033 = vunpack.c.l.b16 %v2909
    %v3034 = vunpack.c.h.b16 %v2909
    %v3035 = vunpack.c.l.b16 %v2910
    %v3036 = vunpack.c.h.b16 %v2910
    %v3037 = vunpack.c.l.b16 %v2911
    %v3038 = vunpack.c.l.b16 %v2912
    %v3039 = vunpack.c.h.b16 %v2912
    %v3040 = vunpack.c.l.b16 %v2913
    %v3041 = vunpack.c.h.b16 %v2913
    %v3042 = vunpack.c.l.b16 %v2914
    %v3043 = vunpack.c.l.b16 %v2915
    %v3044 = vunpack.c.h.b16 %v2915
    %v3045 = vunpack.c.l.b16 %v2916
    %v3046 = vunpack.c.h.b16 %v2916
    %v3047 = vunpack.c.l.b16 %v2917
    %v3048 = vunpack.c.l.b16 %v2918
    %v3049 = vunpack.c.h.b16 %v2918
    %v3050 = vunpack.c.l.b16 %v2919
    %v3051 = vunpack.c.h.b16 %v2919
    %v3052 = vunpack.c.l.b16 %v2920
    %v3053 = vunpack.c.l.b16 %v2921
    %v3054 = vunpack.c.h.b16 %v2921
    %v3055 = vunpack.c.l.b16 %v2922
    %v3056 = vunpack.c.h.b16 %v2922
    %v3057 = vunpack.c.l.b16 %v2923
    %v3058 = vunpack.c.l.b16 %v2924
    %v3059 = vunpack.c.h.b16 %v2924
    %v3060 = vunpack.c.l.b16 %v2925
    %v3061 = vunpack.c.h.b16 %v2925
    %v3062 = vunpack.c.l.b16 %v2926
    %v3063 = vunpack.c.l.b16 %v2927
    %v3064 = vunpack.c.h.b16 %v2927
    %v3065 = vunpack.c.l.b16 %v2928
    %v3066 = vunpack.c.h.b16 %v2928
    %v3067 = vunpack.c.l.b16 %v2929
    %v3068 = vunpack.c.l.b16 %v2930
    %v3069 = vunpack.c.h.b16 %v2930
    %v3070 = vunpack.c.l.b16 %v2931
    %v3071 = vunpack.c.h.b16 %v2931
    %v3072 = vunpack.c.l.b16 %v2932
    %v3073 = vunpack.c.l.b16 %v2933
    %v3074 = vunpack.c.h.b16 %v2933
    %v3075 = vunpack.c.l.b16 %v2934
    %v3076 = vunpack.c.h.b16 %v2934
    %v3077 = vunpack.c.l.b16 %v2935
    %v3078 = vunpack.c.l.b16 %v2936
    %v3079 = vunpack.c.h.b16 %v2936
    %v3080 = vunpack.c.l.b16 %v2937
    %v3081 = vunpack.c.h.b16 %v2937
    %v3082 = vunpack.c.l.b16 %v2938
    %v3083 = vpack.c.b16 %v3008, %v3003
    %v3084 = vpack.c.b16 %v3009, %v3004
    %v3085 = vpack.c.b16 %v3010, %v3005
    %v3086 = vpack.c.b16 %v3011, %v3006
    %v3087 = vpack.c.b16 %v3012, %v3007
    %v3088 = vpack.c.b16 %v3018, %v3013
    %v3089 = vpack.c.b16 %v3019, %v3014
    %v3090 = vpack.c.b16 %v3020, %v3015
    %v3091 = vpack.c.b16 %v3021, %v3016
    %v3092 = vpack.c.b16 %v3022, %v3017
    %v3093 = vpack.c.b16 %v3028, %v3023
    %v3094 = vpack.c.b16 %v3029, %v3024
    %v3095 = vpack.c.b16 %v3030, %v3025
    %v3096 = vpack.c.b16 %v3031, %v3026
    %v3097 = vpack.c.b16 %v3032, %v3027
    %v3098 = vpack.c.b16 %v3038, %v3033
    %v3099 = vpack.c.b16 %v3039, %v3034
    %v3100 = vpack.c.b16 %v3040, %v3035
    %v3101 = vpack.c.b16 %v3041, %v3036
    %v3102 = vpack.c.b16 %v3042, %v3037
    %v3103 = vpack.c.b16 %v3048, %v3043
    %v3104 = vpack.c.b16 %v3049, %v3044
    %v3105 = vpack.c.b16 %v3050, %v3045
    %v3106 = vpack.c.b16 %v3051, %v3046
    %v3107 = vpack.c.b16 %v3052, %v3047
    %v3108 = vpack.c.b16 %v3058, %v3053
    %v3109 = vpack.c.b16 %v3059, %v3054
    %v3110 = vpack.c.b16 %v3060, %v3055
    %v3111 = vpack.c.b16 %v3061, %v3056
    %v3112 = vpack.c.b16 %v3062, %v3057
    %v3113 = vpack.c.b16 %v3068, %v3063
    %v3114 = vpack.c.b16 %v3069, %v3064
    %v3115 = vpack.c.b16 %v3070, %v3065
    %v3116 = vpack.c.b16 %v3071, %v3066
    %v3117 = vpack.c.b16 %v3072, %v3067
    %v3118 = vpack.c.b16 %v3078, %v3073
    %v3119 = vpack.c.b16 %v3079, %v3074
    %v3120 = vpack.c.b16 %v3080, %v3075
    %v3121 = vpack.c.b16 %v3081, %v3076
    %v3122 = vpack.c.b16 %v3082, %v3077
    %3163 = vmatprep.subr.bf16.mxu0 %v3084
    %3164 = vmatpush1.bf16.msra.mxu0 %v3083
    %3165 = vmatprep.subr.bf16.mxu0 %v3089
    %3166 = vmatpush1.bf16.msra.mxu0 %v3088
    %3167 = vmatprep.subr.bf16.mxu0 %v3094
    %3168 = vmatpush1.bf16.msra.mxu0 %v3093
    %3169 = vmatprep.subr.bf16.mxu0 %v3099
    %3170 = vmatpush1.bf16.msra.mxu0 %v3098
    %3171 = vmatprep.subr.bf16.mxu0 %v3104
    %3172 = vmatpush1.bf16.msra.mxu0 %v3103
    %3173 = vmatprep.subr.bf16.mxu0 %v3109
    %3174 = vmatpush1.bf16.msra.mxu0 %v3108
    %3175 = vmatprep.subr.bf16.mxu0 %v3114
    %3176 = vmatpush1.bf16.msra.mxu0 %v3113
    %3177 = vmatprep.subr.bf16.mxu0 %v3119
    %3178 = vmatpush1.bf16.msra.mxu0 %v3118
    %3179 = vmatprep.subr.bf16.mxu0 0
    %3180 = vmatpush1.bf16.msra.mxu0 0
    %3181 = vmatprep.subr.bf16.mxu0 0
    %3182 = vmatpush1.bf16.msra.mxu0 0
    %3183 = vmatprep.subr.bf16.mxu0 0
    %3184 = vmatpush1.bf16.msra.mxu0 0
    %3185 = vmatprep.subr.bf16.mxu0 0
    %3186 = vmatpush1.bf16.msra.mxu0 0
    %3187 = vmatprep.subr.bf16.mxu0 0
    %3188 = vmatpush1.bf16.msra.mxu0 0
    %3189 = vmatprep.subr.bf16.mxu0 0
    %3190 = vmatpush1.bf16.msra.mxu0 0
    %3191 = vmatprep.subr.bf16.mxu0 0
    %3192 = vmatpush1.bf16.msra.mxu0 0
    %3193 = vmatprep.subr.bf16.mxu0 0
    %3194 = vmatpush1.bf16.msra.mxu0 0
    %3195 = vmatprep.mubr.bf16.mxu0 0
    %3196 = vmatmul.mubr.bf16.gmra.mrb[0].mxu0 %v2947
    %v3197 = vpop.f32.mrb[0].mxu0
    %v3198 = vadd.f32 0.0, %v3197
    %v3199 = vpop.f32.mrb[0].mxu0
    %v3200 = vadd.f32 0.0, %v3199
    %v3201 = vpop.f32.mrb[0].mxu0
    %v3202 = vadd.f32 0.0, %v3201
    %v3203 = vpop.f32.mrb[0].mxu0
    %v3204 = vadd.f32 0.0, %v3203
    %3205 = vmatprep.mubr.bf16.mxu0 0
    %3206 = vmatmul.mubr.bf16.gmra.mrb[0].mxu0 %v2948
    %v3207 = vpop.f32.mrb[0].mxu0
    %v3208 = vadd.f32 0.0, %v3207
    %v3209 = vpop.f32.mrb[0].mxu0
    %v3210 = vadd.f32 0.0, %v3209
    %v3211 = vpop.f32.mrb[0].mxu0
    %v3212 = vadd.f32 0.0, %v3211
    %v3213 = vpop.f32.mrb[0].mxu0
    %v3214 = vadd.f32 0.0, %v3213
    %3215 = vmatprep.mubr.bf16.mxu0 0
    %3216 = vmatmul.mubr.bf16.gmra.mrb[0].mxu0 %v2949
    %v3217 = vpop.f32.mrb[0].mxu0
    %v3218 = vadd.f32 0.0, %v3217
    %v3219 = vpop.f32.mrb[0].mxu0
    %v3220 = vadd.f32 0.0, %v3219
    %v3221 = vpop.f32.mrb[0].mxu0
    %v3222 = vadd.f32 0.0, %v3221
    %v3223 = vpop.f32.mrb[0].mxu0
    %v3224 = vadd.f32 0.0, %v3223
    %3225 = vmatprep.mubr.bf16.mxu0 0
    %3226 = vmatmul.mubr.bf16.gmra.mrb[0].mxu0 %v2950
    %v3227 = vpop.f32.mrb[0].mxu0
    %v3228 = vadd.f32 0.0, %v3227
    %v3229 = vpop.f32.mrb[0].mxu0
    %v3230 = vadd.f32 0.0, %v3229
    %v3231 = vpop.f32.mrb[0].mxu0
    %v3232 = vadd.f32 0.0, %v3231
    %v3233 = vpop.f32.mrb[0].mxu0
    %v3234 = vadd.f32 0.0, %v3233
    %3235 = vdwg.mxu0
    %3236 = vmatprep.subr.bf16.mxu0 %v3086
    %3237 = vmatpush1.bf16.msra.mxu0 %v3085
    %3238 = vmatprep.subr.bf16.mxu0 %v3091
    %3239 = vmatpush1.bf16.msra.mxu0 %v3090
    %3240 = vmatprep.subr.bf16.mxu0 %v3096
    %3241 = vmatpush1.bf16.msra.mxu0 %v3095
    %3242 = vmatprep.subr.bf16.mxu0 %v3101
    %3243 = vmatpush1.bf16.msra.mxu0 %v3100
    %3244 = vmatprep.subr.bf16.mxu0 %v3106
    %3245 = vmatpush1.bf16.msra.mxu0 %v3105
    %3246 = vmatprep.subr.bf16.mxu0 %v3111
    %3247 = vmatpush1.bf16.msra.mxu0 %v3110
    %3248 = vmatprep.subr.bf16.mxu0 %v3116
    %3249 = vmatpush1.bf16.msra.mxu0 %v3115
    %3250 = vmatprep.subr.bf16.mxu0 %v3121
    %3251 = vmatpush1.bf16.msra.mxu0 %v3120
    %3252 = vmatprep.subr.bf16.mxu0 0
    %3253 = vmatpush1.bf16.msra.mxu0 0
    %3254 = vmatprep.subr.bf16.mxu0 0
    %3255 = vmatpush1.bf16.msra.mxu0 0
    %3256 = vmatprep.subr.bf16.mxu0 0
    %3257 = vmatpush1.bf16.msra.mxu0 0
    %3258 = vmatprep.subr.bf16.mxu0 0
    %3259 = vmatpush1.bf16.msra.mxu0 0
    %3260 = vmatprep.subr.bf16.mxu0 0
    %3261 = vmatpush1.bf16.msra.mxu0 0
    %3262 = vmatprep.subr.bf16.mxu0 0
    %3263 = vmatpush1.bf16.msra.mxu0 0
    %3264 = vmatprep.subr.bf16.mxu0 0
    %3265 = vmatpush1.bf16.msra.mxu0 0
    %3266 = vmatprep.subr.bf16.mxu0 0
    %3267 = vmatpush1.bf16.msra.mxu0 0
    %3268 = vmatprep.mubr.bf16.mxu0 0
    %3269 = vmatmul.mubr.bf16.gmra.mrb[0].mxu0 %v2947
    %v3270 = vpop.f32.mrb[0].mxu0
    %v3271 = vadd.f32 0.0, %v3270
    %v3272 = vpop.f32.mrb[0].mxu0
    %v3273 = vadd.f32 0.0, %v3272
    %v3274 = vpop.f32.mrb[0].mxu0
    %v3275 = vadd.f32 0.0, %v3274
    %v3276 = vpop.f32.mrb[0].mxu0
    %v3277 = vadd.f32 0.0, %v3276
    %3278 = vmatprep.mubr.bf16.mxu0 0
    %3279 = vmatmul.mubr.bf16.gmra.mrb[0].mxu0 %v2948
    %v3280 = vpop.f32.mrb[0].mxu0
    %v3281 = vadd.f32 0.0, %v3280
    %v3282 = vpop.f32.mrb[0].mxu0
    %v3283 = vadd.f32 0.0, %v3282
    %v3284 = vpop.f32.mrb[0].mxu0
    %v3285 = vadd.f32 0.0, %v3284
    %v3286 = vpop.f32.mrb[0].mxu0
    %v3287 = vadd.f32 0.0, %v3286
    %3288 = vmatprep.mubr.bf16.mxu0 0
    %3289 = vmatmul.mubr.bf16.gmra.mrb[0].mxu0 %v2949
    %v3290 = vpop.f32.mrb[0].mxu0
    %v3291 = vadd.f32 0.0, %v3290
    %v3292 = vpop.f32.mrb[0].mxu0
    %v3293 = vadd.f32 0.0, %v3292
    %v3294 = vpop.f32.mrb[0].mxu0
    %v3295 = vadd.f32 0.0, %v3294
    %v3296 = vpop.f32.mrb[0].mxu0
    %v3297 = vadd.f32 0.0, %v3296
    %3298 = vmatprep.mubr.bf16.mxu0 0
    %3299 = vmatmul.mubr.bf16.gmra.mrb[0].mxu0 %v2950
    %v3300 = vpop.f32.mrb[0].mxu0
    %v3301 = vadd.f32 0.0, %v3300
    %v3302 = vpop.f32.mrb[0].mxu0
    %v3303 = vadd.f32 0.0, %v3302
    %v3304 = vpop.f32.mrb[0].mxu0
    %v3305 = vadd.f32 0.0, %v3304
    %v3306 = vpop.f32.mrb[0].mxu0
    %v3307 = vadd.f32 0.0, %v3306
    %3308 = vdwg.mxu0
    %3309 = vmatprep.subr.bf16.mxu0 0
    %3310 = vmatpush1.bf16.msra.mxu0 %v3087
    %3311 = vmatprep.subr.bf16.mxu0 0
    %3312 = vmatpush1.bf16.msra.mxu0 %v3092
    %3313 = vmatprep.subr.bf16.mxu0 0
    %3314 = vmatpush1.bf16.msra.mxu0 %v3097
    %3315 = vmatprep.subr.bf16.mxu0 0
    %3316 = vmatpush1.bf16.msra.mxu0 %v3102
    %3317 = vmatprep.subr.bf16.mxu0 0
    %3318 = vmatpush1.bf16.msra.mxu0 %v3107
    %3319 = vmatprep.subr.bf16.mxu0 0
    %3320 = vmatpush1.bf16.msra.mxu0 %v3112
    %3321 = vmatprep.subr.bf16.mxu0 0
    %3322 = vmatpush1.bf16.msra.mxu0 %v3117
    %3323 = vmatprep.subr.bf16.mxu0 0
    %3324 = vmatpush1.bf16.msra.mxu0 %v3122
    %3325 = vmatprep.subr.bf16.mxu0 0
    %3326 = vmatpush1.bf16.msra.mxu0 0
    %3327 = vmatprep.subr.bf16.mxu0 0
    %3328 = vmatpush1.bf16.msra.mxu0 0
    %3329 = vmatprep.subr.bf16.mxu0 0
    %3330 = vmatpush1.bf16.msra.mxu0 0
    %3331 = vmatprep.subr.bf16.mxu0 0
    %3332 = vmatpush1.bf16.msra.mxu0 0
    %3333 = vmatprep.subr.bf16.mxu0 0
    %3334 = vmatpush1.bf16.msra.mxu0 0
    %3335 = vmatprep.subr.bf16.mxu0 0
    %3336 = vmatpush1.bf16.msra.mxu0 0
    %3337 = vmatprep.subr.bf16.mxu0 0
    %3338 = vmatpush1.bf16.msra.mxu0 0
    %3339 = vmatprep.subr.bf16.mxu0 0
    %3340 = vmatpush1.bf16.msra.mxu0 0
    %3341 = vmatprep.mubr.bf16.mxu0 0
    %3342 = vmatmul.mubr.bf16.gmra.mrb[0].mxu0 %v2947
    %v3343 = vpop.f32.mrb[0].mxu0
    %v3344 = vadd.f32 0.0, %v3343
    %v3345 = vpop.f32.mrb[0].mxu0
    %v3346 = vpop.f32.mrb[0].mxu0
    %v3347 = vadd.f32 0.0, %v3346
    %v3348 = vpop.f32.mrb[0].mxu0
    %3349 = vmatprep.mubr.bf16.mxu0 0
    %3350 = vmatmul.mubr.bf16.gmra.mrb[0].mxu0 %v2948
    %v3351 = vpop.f32.mrb[0].mxu0
    %v3352 = vadd.f32 0.0, %v3351
    %v3353 = vpop.f32.mrb[0].mxu0
    %v3354 = vpop.f32.mrb[0].mxu0
    %v3355 = vadd.f32 0.0, %v3354
    %v3356 = vpop.f32.mrb[0].mxu0
    %3357 = vmatprep.mubr.bf16.mxu0 0
    %3358 = vmatmul.mubr.bf16.gmra.mrb[0].mxu0 %v2949
    %v3359 = vpop.f32.mrb[0].mxu0
    %v3360 = vadd.f32 0.0, %v3359
    %v3361 = vpop.f32.mrb[0].mxu0
    %v3362 = vpop.f32.mrb[0].mxu0
    %v3363 = vadd.f32 0.0, %v3362
    %v3364 = vpop.f32.mrb[0].mxu0
    %3365 = vmatprep.mubr.bf16.mxu0 0
    %3366 = vmatmul.mubr.bf16.gmra.mrb[0].mxu0 %v2950
    %v3367 = vpop.f32.mrb[0].mxu0
    %v3368 = vadd.f32 0.0, %v3367
    %v3369 = vpop.f32.mrb[0].mxu0
    %v3370 = vpop.f32.mrb[0].mxu0
    %v3371 = vadd.f32 0.0, %v3370
    %v3372 = vpop.f32.mrb[0].mxu0
    %3373 = vdwg.mxu0
    %v3374 = vadd.f32 %v2784, %v3198
    %v3375 = vadd.f32 %v2785, %v3200
    %v3376 = vadd.f32 %v2786, %v3271
    %v3377 = vadd.f32 %v2787, %v3273
    %v3378 = vadd.f32 %v2788, %v3344
    %v3379 = vadd.f32 %v2789, %v3202
    %v3380 = vadd.f32 %v2790, %v3204
    %v3381 = vadd.f32 %v2791, %v3275
    %v3382 = vadd.f32 %v2792, %v3277
    %v3383 = vadd.f32 %v2793, %v3347
    %v3384 = vadd.f32 %v2794, %v3208
    %v3385 = vadd.f32 %v2795, %v3210
    %v3386 = vadd.f32 %v2796, %v3281
    %v3387 = vadd.f32 %v2797, %v3283
    %v3388 = vadd.f32 %v2798, %v3352
    %v3389 = vadd.f32 %v2799, %v3212
    %v3390 = vadd.f32 %v2800, %v3214
    %v3391 = vadd.f32 %v2801, %v3285
    %v3392 = vadd.f32 %v2802, %v3287
    %v3393 = vadd.f32 %v2803, %v3355
    %v3394 = vadd.f32 %v2804, %v3218
    %v3395 = vadd.f32 %v2805, %v3220
    %v3396 = vadd.f32 %v2806, %v3291
    %v3397 = vadd.f32 %v2807, %v3293
    %v3398 = vadd.f32 %v2808, %v3360
    %v3399 = vadd.f32 %v2809, %v3222
    %v3400 = vadd.f32 %v2810, %v3224
    %v3401 = vadd.f32 %v2811, %v3295
    %v3402 = vadd.f32 %v2812, %v3297
    %v3403 = vadd.f32 %v2813, %v3363
    %v3404 = vadd.f32 %v2814, %v3228
    %v3405 = vadd.f32 %v2815, %v3230
    %v3406 = vadd.f32 %v2816, %v3301
    %v3407 = vadd.f32 %v2817, %v3303
    %v3408 = vadd.f32 %v2818, %v3368
    %v3409 = vadd.f32 %v2819, %v3232
    %v3410 = vadd.f32 %v2820, %v3234
    %v3411 = vadd.f32 %v2821, %v3305
    %v3412 = vadd.f32 %v2822, %v3307
    %v3413 = vadd.f32 %v2823, %v3371
    %3414 = vst [vmem:[#allocation2] sm:$0xff] %v3374
    %3415 = vst [vmem:[#allocation2 + $0x8] sm:$0xff] %v3375
    %3416 = vst [vmem:[#allocation2 + $0x10] sm:$0xff] %v3376
    %3417 = vst [vmem:[#allocation2 + $0x18] sm:$0xff] %v3377
    %3418 = vst [vmem:[#allocation2 + $0x20] sm:$0xff] %v3378
    %3419 = vst [vmem:[#allocation2 + $0x28] sm:$0xff] %v3379
    %3420 = vst [vmem:[#allocation2 + $0x30] sm:$0xff] %v3380
    %3421 = vst [vmem:[#allocation2 + $0x38] sm:$0xff] %v3381
    %3422 = vst [vmem:[#allocation2 + $0x40] sm:$0xff] %v3382
    %3423 = vst [vmem:[#allocation2 + $0x48] sm:$0xff] %v3383
    %3424 = vst [vmem:[#allocation2 + $0x50] sm:$0xff] %v3384
    %3425 = vst [vmem:[#allocation2 + $0x58] sm:$0xff] %v3385
    %3426 = vst [vmem:[#allocation2 + $0x60] sm:$0xff] %v3386
    %3427 = vst [vmem:[#allocation2 + $0x68] sm:$0xff] %v3387
    %3428 = vst [vmem:[#allocation2 + $0x70] sm:$0xff] %v3388
    %3429 = vst [vmem:[#allocation2 + $0x78] sm:$0xff] %v3389
    %3430 = vst [vmem:[#allocation2 + $0x80] sm:$0xff] %v3390
    %3431 = vst [vmem:[#allocation2 + $0x88] sm:$0xff] %v3391
    %3432 = vst [vmem:[#allocation2 + $0x90] sm:$0xff] %v3392
    %3433 = vst [vmem:[#allocation2 + $0x98] sm:$0xff] %v3393
    %3434 = vst [vmem:[#allocation2 + $0xa0] sm:$0xff] %v3394
    %3435 = vst [vmem:[#allocation2 + $0xa8] sm:$0xff] %v3395
    %3436 = vst [vmem:[#allocation2 + $0xb0] sm:$0xff] %v3396
    %3437 = vst [vmem:[#allocation2 + $0xb8] sm:$0xff] %v3397
    %3438 = vst [vmem:[#allocation2 + $0xc0] sm:$0xff] %v3398
    %3439 = vst [vmem:[#allocation2 + $0xc8] sm:$0xff] %v3399
    %3440 = vst [vmem:[#allocation2 + $0xd0] sm:$0xff] %v3400
    %3441 = vst [vmem:[#allocation2 + $0xd8] sm:$0xff] %v3401
    %3442 = vst [vmem:[#allocation2 + $0xe0] sm:$0xff] %v3402
    %3443 = vst [vmem:[#allocation2 + $0xe8] sm:$0xff] %v3403
    %3444 = vst [vmem:[#allocation2 + $0xf0] sm:$0xff] %v3404
    %3445 = vst [vmem:[#allocation2 + $0xf8] sm:$0xff] %v3405
    %3446 = vst [vmem:[#allocation2 + $0x100] sm:$0xff] %v3406
    %3447 = vst [vmem:[#allocation2 + $0x108] sm:$0xff] %v3407
    %3448 = vst [vmem:[#allocation2 + $0x110] sm:$0xff] %v3408
    %3449 = vst [vmem:[#allocation2 + $0x118] sm:$0xff] %v3409
    %3450 = vst [vmem:[#allocation2 + $0x120] sm:$0xff] %v3410
    %3451 = vst [vmem:[#allocation2 + $0x128] sm:$0xff] %v3411
    %3452 = vst [vmem:[#allocation2 + $0x130] sm:$0xff] %v3412
    %3453 = vst [vmem:[#allocation2 + $0x138] sm:$0xff] %v3413
    %v3454 = vld [vmem:[#allocation2] sm:$0xff]
    %v3455 = vld [vmem:[#allocation2 + $0x8] sm:$0xff]
    %v3456 = vld [vmem:[#allocation2 + $0x10] sm:$0xff]
    %v3457 = vld [vmem:[#allocation2 + $0x18] sm:$0xff]
    %v3458 = vld [vmem:[#allocation2 + $0x20] sm:$0xff]
    %v3459 = vld [vmem:[#allocation2 + $0x28] sm:$0xff]
    %v3460 = vld [vmem:[#allocation2 + $0x30] sm:$0xff]
    %v3461 = vld [vmem:[#allocation2 + $0x38] sm:$0xff]
    %v3462 = vld [vmem:[#allocation2 + $0x40] sm:$0xff]
    %v3463 = vld [vmem:[#allocation2 + $0x48] sm:$0xff]
    %v3464 = vld [vmem:[#allocation2 + $0x50] sm:$0xff]
    %v3465 = vld [vmem:[#allocation2 + $0x58] sm:$0xff]
    %v3466 = vld [vmem:[#allocation2 + $0x60] sm:$0xff]
    %v3467 = vld [vmem:[#allocation2 + $0x68] sm:$0xff]
    %v3468 = vld [vmem:[#allocation2 + $0x70] sm:$0xff]
    %v3469 = vld [vmem:[#allocation2 + $0x78] sm:$0xff]
    %v3470 = vld [vmem:[#allocation2 + $0x80] sm:$0xff]
    %v3471 = vld [vmem:[#allocation2 + $0x88] sm:$0xff]
    %v3472 = vld [vmem:[#allocation2 + $0x90] sm:$0xff]
    %v3473 = vld [vmem:[#allocation2 + $0x98] sm:$0xff]
    %v3474 = vld [vmem:[#allocation2 + $0xa0] sm:$0xff]
    %v3475 = vld [vmem:[#allocation2 + $0xa8] sm:$0xff]
    %v3476 = vld [vmem:[#allocation2 + $0xb0] sm:$0xff]
    %v3477 = vld [vmem:[#allocation2 + $0xb8] sm:$0xff]
    %v3478 = vld [vmem:[#allocation2 + $0xc0] sm:$0xff]
    %v3479 = vld [vmem:[#allocation2 + $0xc8] sm:$0xff]
    %v3480 = vld [vmem:[#allocation2 + $0xd0] sm:$0xff]
    %v3481 = vld [vmem:[#allocation2 + $0xd8] sm:$0xff]
    %v3482 = vld [vmem:[#allocation2 + $0xe0] sm:$0xff]
    %v3483 = vld [vmem:[#allocation2 + $0xe8] sm:$0xff]
    %v3484 = vld [vmem:[#allocation2 + $0xf0] sm:$0xff]
    %v3485 = vld [vmem:[#allocation2 + $0xf8] sm:$0xff]
    %v3486 = vld [vmem:[#allocation2 + $0x100] sm:$0xff]
    %v3487 = vld [vmem:[#allocation2 + $0x108] sm:$0xff]
    %v3488 = vld [vmem:[#allocation2 + $0x110] sm:$0xff]
    %v3489 = vld [vmem:[#allocation2 + $0x118] sm:$0xff]
    %v3490 = vld [vmem:[#allocation2 + $0x120] sm:$0xff]
    %v3491 = vld [vmem:[#allocation2 + $0x128] sm:$0xff]
    %v3492 = vld [vmem:[#allocation2 + $0x130] sm:$0xff]
    %v3493 = vld [vmem:[#allocation2 + $0x138] sm:$0xff]
    %v3494 = vld [vmem:[#allocation8] sm:$0xff]
    %v3495 = vld [vmem:[#allocation8 + $0x8] sm:$0xff]
    %v3496 = vld [vmem:[#allocation8 + $0x10] sm:$0xff]
    %v3497 = vld [vmem:[#allocation8 + $0x18] sm:$0xff]
    %v3498 = vld [vmem:[#allocation8 + $0x20] sm:$0xff]
    %v3499 = vadd.f32 %v3454, %v3494
    %v3500 = vadd.f32 %v3455, %v3495
    %v3501 = vadd.f32 %v3456, %v3496
    %v3502 = vadd.f32 %v3457, %v3497
    %v3503 = vadd.f32 %v3458, %v3498
    %v3504 = vadd.f32 %v3459, %v3494
    %v3505 = vadd.f32 %v3460, %v3495
    %v3506 = vadd.f32 %v3461, %v3496
    %v3507 = vadd.f32 %v3462, %v3497
    %v3508 = vadd.f32 %v3463, %v3498
    %v3509 = vadd.f32 %v3464, %v3494
    %v3510 = vadd.f32 %v3465, %v3495
    %v3511 = vadd.f32 %v3466, %v3496
    %v3512 = vadd.f32 %v3467, %v3497
    %v3513 = vadd.f32 %v3468, %v3498
    %v3514 = vadd.f32 %v3469, %v3494
    %v3515 = vadd.f32 %v3470, %v3495
    %v3516 = vadd.f32 %v3471, %v3496
    %v3517 = vadd.f32 %v3472, %v3497
    %v3518 = vadd.f32 %v3473, %v3498
    %v3519 = vadd.f32 %v3474, %v3494
    %v3520 = vadd.f32 %v3475, %v3495
    %v3521 = vadd.f32 %v3476, %v3496
    %v3522 = vadd.f32 %v3477, %v3497
    %v3523 = vadd.f32 %v3478, %v3498
    %v3524 = vadd.f32 %v3479, %v3494
    %v3525 = vadd.f32 %v3480, %v3495
    %v3526 = vadd.f32 %v3481, %v3496
    %v3527 = vadd.f32 %v3482, %v3497
    %v3528 = vadd.f32 %v3483, %v3498
    %v3529 = vadd.f32 %v3484, %v3494
    %v3530 = vadd.f32 %v3485, %v3495
    %v3531 = vadd.f32 %v3486, %v3496
    %v3532 = vadd.f32 %v3487, %v3497
    %v3533 = vadd.f32 %v3488, %v3498
    %v3534 = vadd.f32 %v3489, %v3494
    %v3535 = vadd.f32 %v3490, %v3495
    %v3536 = vadd.f32 %v3491, %v3496
    %v3537 = vadd.f32 %v3492, %v3497
    %v3538 = vadd.f32 %v3493, %v3498
    %v3539 = vmax.f32 %v3499, 0.0
    %v3540 = vmax.f32 %v3500, 0.0
    %v3541 = vmax.f32 %v3501, 0.0
    %v3542 = vmax.f32 %v3502, 0.0
    %v3543 = vmax.f32 %v3503, 0.0
    %v3544 = vmax.f32 %v3504, 0.0
    %v3545 = vmax.f32 %v3505, 0.0
    %v3546 = vmax.f32 %v3506, 0.0
    %v3547 = vmax.f32 %v3507, 0.0
    %v3548 = vmax.f32 %v3508, 0.0
    %v3549 = vmax.f32 %v3509, 0.0
    %v3550 = vmax.f32 %v3510, 0.0
    %v3551 = vmax.f32 %v3511, 0.0
    %v3552 = vmax.f32 %v3512, 0.0
    %v3553 = vmax.f32 %v3513, 0.0
    %v3554 = vmax.f32 %v3514, 0.0
    %v3555 = vmax.f32 %v3515, 0.0
    %v3556 = vmax.f32 %v3516, 0.0
    %v3557 = vmax.f32 %v3517, 0.0
    %v3558 = vmax.f32 %v3518, 0.0
    %v3559 = vmax.f32 %v3519, 0.0
    %v3560 = vmax.f32 %v3520, 0.0
    %v3561 = vmax.f32 %v3521, 0.0
    %v3562 = vmax.f32 %v3522, 0.0
    %v3563 = vmax.f32 %v3523, 0.0
    %v3564 = vmax.f32 %v3524, 0.0
    %v3565 = vmax.f32 %v3525, 0.0
    %v3566 = vmax.f32 %v3526, 0.0
    %v3567 = vmax.f32 %v3527, 0.0
    %v3568 = vmax.f32 %v3528, 0.0
    %v3569 = vmax.f32 %v3529, 0.0
    %v3570 = vmax.f32 %v3530, 0.0
    %v3571 = vmax.f32 %v3531, 0.0
    %v3572 = vmax.f32 %v3532, 0.0
    %v3573 = vmax.f32 %v3533, 0.0
    %v3574 = vmax.f32 %v3534, 0.0
    %v3575 = vmax.f32 %v3535, 0.0
    %v3576 = vmax.f32 %v3536, 0.0
    %v3577 = vmax.f32 %v3537, 0.0
    %v3578 = vmax.f32 %v3538, 0.0
    %v3579 = vrot.slane %v3539, 4
    %v3580 = vmax.f32 %v3539, %v3579
    %v3581 = vrot.slane %v3580, 2
    %v3582 = vmax.f32 %v3580, %v3581
    %v3583 = vrot.slane %v3582, 1
    %v3584 = vmax.f32 %v3582, %v3583
    %v3585 = vrot.slane %v3540, 4
    %v3586 = vmax.f32 %v3540, %v3585
    %v3587 = vrot.slane %v3586, 2
    %v3588 = vmax.f32 %v3586, %v3587
    %v3589 = vrot.slane %v3588, 1
    %v3590 = vmax.f32 %v3588, %v3589
    %v3591 = vrot.slane %v3541, 4
    %v3592 = vmax.f32 %v3541, %v3591
    %v3593 = vrot.slane %v3592, 2
    %v3594 = vmax.f32 %v3592, %v3593
    %v3595 = vrot.slane %v3594, 1
    %v3596 = vmax.f32 %v3594, %v3595
    %v3597 = vrot.slane %v3542, 4
    %v3598 = vmax.f32 %v3542, %v3597
    %v3599 = vrot.slane %v3598, 2
    %v3600 = vmax.f32 %v3598, %v3599
    %v3601 = vrot.slane %v3600, 1
    %v3602 = vmax.f32 %v3600, %v3601
    %v3603 = vrot.slane %v3543, 4
    %v3604 = vmax.f32 %v3543, %v3603
    %v3605 = vrot.slane %v3604, 2
    %v3606 = vmax.f32 %v3604, %v3605
    %v3607 = vrot.slane %v3606, 1
    %v3608 = vmax.f32 %v3606, %v3607
    %v3609 = vrot.slane %v3544, 4
    %v3610 = vmax.f32 %v3544, %v3609
    %v3611 = vrot.slane %v3610, 2
    %v3612 = vmax.f32 %v3610, %v3611
    %v3613 = vrot.slane %v3612, 1
    %v3614 = vmax.f32 %v3612, %v3613
    %v3615 = vrot.slane %v3545, 4
    %v3616 = vmax.f32 %v3545, %v3615
    %v3617 = vrot.slane %v3616, 2
    %v3618 = vmax.f32 %v3616, %v3617
    %v3619 = vrot.slane %v3618, 1
    %v3620 = vmax.f32 %v3618, %v3619
    %v3621 = vrot.slane %v3546, 4
    %v3622 = vmax.f32 %v3546, %v3621
    %v3623 = vrot.slane %v3622, 2
    %v3624 = vmax.f32 %v3622, %v3623
    %v3625 = vrot.slane %v3624, 1
    %v3626 = vmax.f32 %v3624, %v3625
    %v3627 = vrot.slane %v3547, 4
    %v3628 = vmax.f32 %v3547, %v3627
    %v3629 = vrot.slane %v3628, 2
    %v3630 = vmax.f32 %v3628, %v3629
    %v3631 = vrot.slane %v3630, 1
    %v3632 = vmax.f32 %v3630, %v3631
    %v3633 = vrot.slane %v3548, 4
    %v3634 = vmax.f32 %v3548, %v3633
    %v3635 = vrot.slane %v3634, 2
    %v3636 = vmax.f32 %v3634, %v3635
    %v3637 = vrot.slane %v3636, 1
    %v3638 = vmax.f32 %v3636, %v3637
    %v3639 = vrot.slane %v3549, 4
    %v3640 = vmax.f32 %v3549, %v3639
    %v3641 = vrot.slane %v3640, 2
    %v3642 = vmax.f32 %v3640, %v3641
    %v3643 = vrot.slane %v3642, 1
    %v3644 = vmax.f32 %v3642, %v3643
    %v3645 = vrot.slane %v3550, 4
    %v3646 = vmax.f32 %v3550, %v3645
    %v3647 = vrot.slane %v3646, 2
    %v3648 = vmax.f32 %v3646, %v3647
    %v3649 = vrot.slane %v3648, 1
    %v3650 = vmax.f32 %v3648, %v3649
    %v3651 = vrot.slane %v3551, 4
    %v3652 = vmax.f32 %v3551, %v3651
    %v3653 = vrot.slane %v3652, 2
    %v3654 = vmax.f32 %v3652, %v3653
    %v3655 = vrot.slane %v3654, 1
    %v3656 = vmax.f32 %v3654, %v3655
    %v3657 = vrot.slane %v3552, 4
    %v3658 = vmax.f32 %v3552, %v3657
    %v3659 = vrot.slane %v3658, 2
    %v3660 = vmax.f32 %v3658, %v3659
    %v3661 = vrot.slane %v3660, 1
    %v3662 = vmax.f32 %v3660, %v3661
    %v3663 = vrot.slane %v3553, 4
    %v3664 = vmax.f32 %v3553, %v3663
    %v3665 = vrot.slane %v3664, 2
    %v3666 = vmax.f32 %v3664, %v3665
    %v3667 = vrot.slane %v3666, 1
    %v3668 = vmax.f32 %v3666, %v3667
    %v3669 = vrot.slane %v3554, 4
    %v3670 = vmax.f32 %v3554, %v3669
    %v3671 = vrot.slane %v3670, 2
    %v3672 = vmax.f32 %v3670, %v3671
    %v3673 = vrot.slane %v3672, 1
    %v3674 = vmax.f32 %v3672, %v3673
    %v3675 = vrot.slane %v3555, 4
    %v3676 = vmax.f32 %v3555, %v3675
    %v3677 = vrot.slane %v3676, 2
    %v3678 = vmax.f32 %v3676, %v3677
    %v3679 = vrot.slane %v3678, 1
    %v3680 = vmax.f32 %v3678, %v3679
    %v3681 = vrot.slane %v3556, 4
    %v3682 = vmax.f32 %v3556, %v3681
    %v3683 = vrot.slane %v3682, 2
    %v3684 = vmax.f32 %v3682, %v3683
    %v3685 = vrot.slane %v3684, 1
    %v3686 = vmax.f32 %v3684, %v3685
    %v3687 = vrot.slane %v3557, 4
    %v3688 = vmax.f32 %v3557, %v3687
    %v3689 = vrot.slane %v3688, 2
    %v3690 = vmax.f32 %v3688, %v3689
    %v3691 = vrot.slane %v3690, 1
    %v3692 = vmax.f32 %v3690, %v3691
    %v3693 = vrot.slane %v3558, 4
    %v3694 = vmax.f32 %v3558, %v3693
    %v3695 = vrot.slane %v3694, 2
    %v3696 = vmax.f32 %v3694, %v3695
    %v3697 = vrot.slane %v3696, 1
    %v3698 = vmax.f32 %v3696, %v3697
    %v3699 = vrot.slane %v3559, 4
    %v3700 = vmax.f32 %v3559, %v3699
    %v3701 = vrot.slane %v3700, 2
    %v3702 = vmax.f32 %v3700, %v3701
    %v3703 = vrot.slane %v3702, 1
    %v3704 = vmax.f32 %v3702, %v3703
    %v3705 = vrot.slane %v3560, 4
    %v3706 = vmax.f32 %v3560, %v3705
    %v3707 = vrot.slane %v3706, 2
    %v3708 = vmax.f32 %v3706, %v3707
    %v3709 = vrot.slane %v3708, 1
    %v3710 = vmax.f32 %v3708, %v3709
    %v3711 = vrot.slane %v3561, 4
    %v3712 = vmax.f32 %v3561, %v3711
    %v3713 = vrot.slane %v3712, 2
    %v3714 = vmax.f32 %v3712, %v3713
    %v3715 = vrot.slane %v3714, 1
    %v3716 = vmax.f32 %v3714, %v3715
    %v3717 = vrot.slane %v3562, 4
    %v3718 = vmax.f32 %v3562, %v3717
    %v3719 = vrot.slane %v3718, 2
    %v3720 = vmax.f32 %v3718, %v3719
    %v3721 = vrot.slane %v3720, 1
    %v3722 = vmax.f32 %v3720, %v3721
    %v3723 = vrot.slane %v3563, 4
    %v3724 = vmax.f32 %v3563, %v3723
    %v3725 = vrot.slane %v3724, 2
    %v3726 = vmax.f32 %v3724, %v3725
    %v3727 = vrot.slane %v3726, 1
    %v3728 = vmax.f32 %v3726, %v3727
    %v3729 = vrot.slane %v3564, 4
    %v3730 = vmax.f32 %v3564, %v3729
    %v3731 = vrot.slane %v3730, 2
    %v3732 = vmax.f32 %v3730, %v3731
    %v3733 = vrot.slane %v3732, 1
    %v3734 = vmax.f32 %v3732, %v3733
    %v3735 = vrot.slane %v3565, 4
    %v3736 = vmax.f32 %v3565, %v3735
    %v3737 = vrot.slane %v3736, 2
    %v3738 = vmax.f32 %v3736, %v3737
    %v3739 = vrot.slane %v3738, 1
    %v3740 = vmax.f32 %v3738, %v3739
    %v3741 = vrot.slane %v3566, 4
    %v3742 = vmax.f32 %v3566, %v3741
    %v3743 = vrot.slane %v3742, 2
    %v3744 = vmax.f32 %v3742, %v3743
    %v3745 = vrot.slane %v3744, 1
    %v3746 = vmax.f32 %v3744, %v3745
    %v3747 = vrot.slane %v3567, 4
    %v3748 = vmax.f32 %v3567, %v3747
    %v3749 = vrot.slane %v3748, 2
    %v3750 = vmax.f32 %v3748, %v3749
    %v3751 = vrot.slane %v3750, 1
    %v3752 = vmax.f32 %v3750, %v3751
    %v3753 = vrot.slane %v3568, 4
    %v3754 = vmax.f32 %v3568, %v3753
    %v3755 = vrot.slane %v3754, 2
    %v3756 = vmax.f32 %v3754, %v3755
    %v3757 = vrot.slane %v3756, 1
    %v3758 = vmax.f32 %v3756, %v3757
    %v3759 = vrot.slane %v3569, 4
    %v3760 = vmax.f32 %v3569, %v3759
    %v3761 = vrot.slane %v3760, 2
    %v3762 = vmax.f32 %v3760, %v3761
    %v3763 = vrot.slane %v3762, 1
    %v3764 = vmax.f32 %v3762, %v3763
    %v3765 = vrot.slane %v3570, 4
    %v3766 = vmax.f32 %v3570, %v3765
    %v3767 = vrot.slane %v3766, 2
    %v3768 = vmax.f32 %v3766, %v3767
    %v3769 = vrot.slane %v3768, 1
    %v3770 = vmax.f32 %v3768, %v3769
    %v3771 = vrot.slane %v3571, 4
    %v3772 = vmax.f32 %v3571, %v3771
    %v3773 = vrot.slane %v3772, 2
    %v3774 = vmax.f32 %v3772, %v3773
    %v3775 = vrot.slane %v3774, 1
    %v3776 = vmax.f32 %v3774, %v3775
    %v3777 = vrot.slane %v3572, 4
    %v3778 = vmax.f32 %v3572, %v3777
    %v3779 = vrot.slane %v3778, 2
    %v3780 = vmax.f32 %v3778, %v3779
    %v3781 = vrot.slane %v3780, 1
    %v3782 = vmax.f32 %v3780, %v3781
    %v3783 = vrot.slane %v3573, 4
    %v3784 = vmax.f32 %v3573, %v3783
    %v3785 = vrot.slane %v3784, 2
    %v3786 = vmax.f32 %v3784, %v3785
    %v3787 = vrot.slane %v3786, 1
    %v3788 = vmax.f32 %v3786, %v3787
    %v3789 = vrot.slane %v3574, 4
    %v3790 = vmax.f32 %v3574, %v3789
    %v3791 = vrot.slane %v3790, 2
    %v3792 = vmax.f32 %v3790, %v3791
    %v3793 = vrot.slane %v3792, 1
    %v3794 = vmax.f32 %v3792, %v3793
    %v3795 = vrot.slane %v3575, 4
    %v3796 = vmax.f32 %v3575, %v3795
    %v3797 = vrot.slane %v3796, 2
    %v3798 = vmax.f32 %v3796, %v3797
    %v3799 = vrot.slane %v3798, 1
    %v3800 = vmax.f32 %v3798, %v3799
    %v3801 = vrot.slane %v3576, 4
    %v3802 = vmax.f32 %v3576, %v3801
    %v3803 = vrot.slane %v3802, 2
    %v3804 = vmax.f32 %v3802, %v3803
    %v3805 = vrot.slane %v3804, 1
    %v3806 = vmax.f32 %v3804, %v3805
    %v3807 = vrot.slane %v3577, 4
    %v3808 = vmax.f32 %v3577, %v3807
    %v3809 = vrot.slane %v3808, 2
    %v3810 = vmax.f32 %v3808, %v3809
    %v3811 = vrot.slane %v3810, 1
    %v3812 = vmax.f32 %v3810, %v3811
    %v3813 = vrot.slane %v3578, 4
    %v3814 = vmax.f32 %v3578, %v3813
    %v3815 = vrot.slane %v3814, 2
    %v3816 = vmax.f32 %v3814, %v3815
    %v3817 = vrot.slane %v3816, 1
    %v3818 = vmax.f32 %v3816, %v3817
    %v3819 = vld [vmem:[#allocation9] sm:$0xff]
    %v3820 = vld [vmem:[#allocation9 + $0x8] sm:$0xff]
    %v3821 = vld [vmem:[#allocation9 + $0x10] sm:$0xff]
    %v3822 = vld [vmem:[#allocation9 + $0x18] sm:$0xff]
    %v3823 = vld [vmem:[#allocation9 + $0x20] sm:$0xff]
    %v3824 = vld [vmem:[#allocation9 + $0x28] sm:$0xff]
    %v3825 = vld [vmem:[#allocation9 + $0x30] sm:$0xff]
    %v3826 = vld [vmem:[#allocation9 + $0x38] sm:$0xff]
    %v3827 = vld [vmem:[#allocation9 + $0x40] sm:$0xff]
    %v3828 = vld [vmem:[#allocation9 + $0x48] sm:$0xff]
    %v3829 = vld [vmem:[#allocation9 + $0x50] sm:$0xff]
    %v3830 = vld [vmem:[#allocation9 + $0x58] sm:$0xff]
    %v3831 = vld [vmem:[#allocation9 + $0x60] sm:$0xff]
    %v3832 = vld [vmem:[#allocation9 + $0x68] sm:$0xff]
    %v3833 = vld [vmem:[#allocation9 + $0x70] sm:$0xff]
    %v3834 = vld [vmem:[#allocation9 + $0x78] sm:$0xff]
    %v3835 = vld [vmem:[#allocation9 + $0x80] sm:$0xff]
    %v3836 = vld [vmem:[#allocation9 + $0x88] sm:$0xff]
    %v3837 = vld [vmem:[#allocation9 + $0x90] sm:$0xff]
    %v3838 = vld [vmem:[#allocation9 + $0x98] sm:$0xff]
    %v3839 = vld [vmem:[#allocation9 + $0xa0] sm:$0xff]
    %v3840 = vld [vmem:[#allocation9 + $0xa8] sm:$0xff]
    %v3841 = vld [vmem:[#allocation9 + $0xb0] sm:$0xff]
    %v3842 = vld [vmem:[#allocation9 + $0xb8] sm:$0xff]
    %v3843 = vld [vmem:[#allocation9 + $0xc0] sm:$0xff]
    %v3844 = vld [vmem:[#allocation9 + $0xc8] sm:$0xff]
    %v3845 = vld [vmem:[#allocation9 + $0xd0] sm:$0xff]
    %v3846 = vld [vmem:[#allocation9 + $0xd8] sm:$0xff]
    %v3847 = vld [vmem:[#allocation9 + $0xe0] sm:$0xff]
    %v3848 = vld [vmem:[#allocation9 + $0xe8] sm:$0xff]
    %v3849 = vld [vmem:[#allocation9 + $0xf0] sm:$0xff]
    %v3850 = vld [vmem:[#allocation9 + $0xf8] sm:$0xff]
    %v3851 = vld [vmem:[#allocation9 + $0x100] sm:$0xff]
    %v3852 = vld [vmem:[#allocation9 + $0x108] sm:$0xff]
    %v3853 = vld [vmem:[#allocation9 + $0x110] sm:$0xff]
    %v3854 = vld [vmem:[#allocation9 + $0x118] sm:$0xff]
    %v3855 = vld [vmem:[#allocation9 + $0x120] sm:$0xff]
    %v3856 = vld [vmem:[#allocation9 + $0x128] sm:$0xff]
    %v3857 = vld [vmem:[#allocation9 + $0x130] sm:$0xff]
    %v3858 = vld [vmem:[#allocation9 + $0x138] sm:$0xff]
    %v3859 = vld [vmem:[#allocation9 + $0x140] sm:$0xff]
    %v3860 = vld [vmem:[#allocation9 + $0x148] sm:$0xff]
    %v3861 = vld [vmem:[#allocation9 + $0x150] sm:$0xff]
    %v3862 = vld [vmem:[#allocation9 + $0x158] sm:$0xff]
    %v3863 = vld [vmem:[#allocation9 + $0x160] sm:$0xff]
    %v3864 = vld [vmem:[#allocation9 + $0x168] sm:$0xff]
    %v3865 = vld [vmem:[#allocation9 + $0x170] sm:$0xff]
    %v3866 = vld [vmem:[#allocation9 + $0x178] sm:$0xff]
    %v3867 = vld [vmem:[#allocation9 + $0x180] sm:$0xff]
    %v3868 = vld [vmem:[#allocation9 + $0x188] sm:$0xff]
    %v3869 = vld [vmem:[#allocation9 + $0x190] sm:$0xff]
    %v3870 = vld [vmem:[#allocation9 + $0x198] sm:$0xff]
    %v3871 = vld [vmem:[#allocation9 + $0x1a0] sm:$0xff]
    %v3872 = vld [vmem:[#allocation9 + $0x1a8] sm:$0xff]
    %v3873 = vld [vmem:[#allocation9 + $0x1b0] sm:$0xff]
    %v3874 = vld [vmem:[#allocation9 + $0x1b8] sm:$0xff]
    %v3875 = vld [vmem:[#allocation9 + $0x1c0] sm:$0xff]
    %v3876 = vld [vmem:[#allocation9 + $0x1c8] sm:$0xff]
    %v3877 = vld [vmem:[#allocation9 + $0x1d0] sm:$0xff]
    %v3878 = vld [vmem:[#allocation9 + $0x1d8] sm:$0xff]
    %v3879 = vld [vmem:[#allocation9 + $0x1e0] sm:$0xff]
    %v3880 = vld [vmem:[#allocation9 + $0x1e8] sm:$0xff]
    %v3881 = vld [vmem:[#allocation9 + $0x1f0] sm:$0xff]
    %v3882 = vld [vmem:[#allocation9 + $0x1f8] sm:$0xff]
    %v3883 = vld [vmem:[#allocation9 + $0x200] sm:$0xff]
    %v3884 = vld [vmem:[#allocation9 + $0x208] sm:$0xff]
    %v3885 = vld [vmem:[#allocation9 + $0x210] sm:$0xff]
    %v3886 = vld [vmem:[#allocation9 + $0x218] sm:$0xff]
    %v3887 = vld [vmem:[#allocation9 + $0x220] sm:$0xff]
    %v3888 = vld [vmem:[#allocation9 + $0x228] sm:$0xff]
    %v3889 = vld [vmem:[#allocation9 + $0x230] sm:$0xff]
    %v3890 = vld [vmem:[#allocation9 + $0x238] sm:$0xff]
    %v3891 = vld [vmem:[#allocation9 + $0x240] sm:$0xff]
    %v3892 = vld [vmem:[#allocation9 + $0x248] sm:$0xff]
    %v3893 = vld [vmem:[#allocation9 + $0x250] sm:$0xff]
    %v3894 = vld [vmem:[#allocation9 + $0x258] sm:$0xff]
    %v3895 = vld [vmem:[#allocation9 + $0x260] sm:$0xff]
    %v3896 = vld [vmem:[#allocation9 + $0x268] sm:$0xff]
    %v3897 = vld [vmem:[#allocation9 + $0x270] sm:$0xff]
    %v3898 = vld [vmem:[#allocation9 + $0x278] sm:$0xff]
    %v3899 = vld [vmem:[%s4] sm:$0x1]
    %v3901 = vlaneseq
    %v3902 = vshrl.u32 %v3901, 7
    %v3903 = vsub.s32 0, %v3902
    %v3904 = vrot.slane %v3899, %v3903
    %vm3946 = vcmask 1041409
    %v3947 = vsel %vm3946, %v3614, %v3584
    %vm3948 = vcmask 1042434
    %v3949 = vsel %vm3948, %v3644, %v3947
    %vm3950 = vcmask 1043459
    %v3951 = vsel %vm3950, %v3674, %v3949
    %vm3952 = vcmask 1044484
    %v3953 = vsel %vm3952, %v3704, %v3951
    %vm3954 = vcmask 1045509
    %v3955 = vsel %vm3954, %v3734, %v3953
    %vm3956 = vcmask 1046534
    %v3957 = vsel %vm3956, %v3764, %v3955
    %vm3958 = vcmask 1047559
    %v3959 = vsel %vm3958, %v3794, %v3957
    %v3960 = vsel %vm3946, %v3620, %v3590
    %v3961 = vsel %vm3948, %v3650, %v3960
    %v3962 = vsel %vm3950, %v3680, %v3961
    %v3963 = vsel %vm3952, %v3710, %v3962
    %v3964 = vsel %vm3954, %v3740, %v3963
    %v3965 = vsel %vm3956, %v3770, %v3964
    %v3966 = vsel %vm3958, %v3800, %v3965
    %v3967 = vsel %vm3946, %v3626, %v3596
    %v3968 = vsel %vm3948, %v3656, %v3967
    %v3969 = vsel %vm3950, %v3686, %v3968
    %v3970 = vsel %vm3952, %v3716, %v3969
    %v3971 = vsel %vm3954, %v3746, %v3970
    %v3972 = vsel %vm3956, %v3776, %v3971
    %v3973 = vsel %vm3958, %v3806, %v3972
    %v3974 = vsel %vm3946, %v3632, %v3602
    %v3975 = vsel %vm3948, %v3662, %v3974
    %v3976 = vsel %vm3950, %v3692, %v3975
    %v3977 = vsel %vm3952, %v3722, %v3976
    %v3978 = vsel %vm3954, %v3752, %v3977
    %v3979 = vsel %vm3956, %v3782, %v3978
    %v3980 = vsel %vm3958, %v3812, %v3979
    %v3981 = vsel %vm3946, %v3638, %v3608
    %v3982 = vsel %vm3948, %v3668, %v3981
    %v3983 = vsel %vm3950, %v3698, %v3982
    %v3984 = vsel %vm3952, %v3728, %v3983
    %v3985 = vsel %vm3954, %v3758, %v3984
    %v3986 = vsel %vm3956, %v3788, %v3985
    %v3987 = vsel %vm3958, %v3818, %v3986
    %3993 = vmatprep.subr.mxu0 0.0
    %3994 = vmatpush1.msra.mxu0 %v3819
    %3995 = vmatprep.subr.mxu0 0.0
    %3996 = vmatpush1.msra.mxu0 %v3820
    %3997 = vmatprep.subr.mxu0 0.0
    %3998 = vmatpush1.msra.mxu0 %v3821
    %3999 = vmatprep.subr.mxu0 0.0
    %4000 = vmatpush1.msra.mxu0 %v3822
    %4001 = vmatprep.subr.mxu0 0.0
    %4002 = vmatpush1.msra.mxu0 %v3823
    %4003 = vmatprep.subr.mxu0 0.0
    %4004 = vmatpush1.msra.mxu0 %v3824
    %4005 = vmatprep.subr.mxu0 0.0
    %4006 = vmatpush1.msra.mxu0 %v3825
    %4007 = vmatprep.subr.mxu0 0.0
    %4008 = vmatpush1.msra.mxu0 %v3826
    %4009 = vmatprep.subr.mxu0 0.0
    %4010 = vmatpush1.msra.mxu0 %v3827
    %4011 = vmatprep.subr.mxu0 0.0
    %4012 = vmatpush1.msra.mxu0 %v3828
    %4013 = vmatprep.subr.mxu0 0.0
    %4014 = vmatpush1.msra.mxu0 %v3829
    %4015 = vmatprep.subr.mxu0 0.0
    %4016 = vmatpush1.msra.mxu0 %v3830
    %4017 = vmatprep.subr.mxu0 0.0
    %4018 = vmatpush1.msra.mxu0 %v3831
    %4019 = vmatprep.subr.mxu0 0.0
    %4020 = vmatpush1.msra.mxu0 %v3832
    %4021 = vmatprep.subr.mxu0 0.0
    %4022 = vmatpush1.msra.mxu0 %v3833
    %4023 = vmatprep.subr.mxu0 0.0
    %4024 = vmatpush1.msra.mxu0 %v3834
    %4025 = vmatprep.subr.mxu0 0.0
    %4026 = vmatpush1.msra.mxu0 %v3835
    %4027 = vmatprep.subr.mxu0 0.0
    %4028 = vmatpush1.msra.mxu0 %v3836
    %4029 = vmatprep.subr.mxu0 0.0
    %4030 = vmatpush1.msra.mxu0 %v3837
    %4031 = vmatprep.subr.mxu0 0.0
    %4032 = vmatpush1.msra.mxu0 %v3838
    %4033 = vmatprep.subr.mxu0 0.0
    %4034 = vmatpush1.msra.mxu0 %v3839
    %4035 = vmatprep.subr.mxu0 0.0
    %4036 = vmatpush1.msra.mxu0 %v3840
    %4037 = vmatprep.subr.mxu0 0.0
    %4038 = vmatpush1.msra.mxu0 %v3841
    %4039 = vmatprep.subr.mxu0 0.0
    %4040 = vmatpush1.msra.mxu0 %v3842
    %4041 = vmatprep.subr.mxu0 0.0
    %4042 = vmatpush1.msra.mxu0 %v3843
    %4043 = vmatprep.subr.mxu0 0.0
    %4044 = vmatpush1.msra.mxu0 %v3844
    %4045 = vmatprep.subr.mxu0 0.0
    %4046 = vmatpush1.msra.mxu0 %v3845
    %4047 = vmatprep.subr.mxu0 0.0
    %4048 = vmatpush1.msra.mxu0 %v3846
    %4049 = vmatprep.subr.mxu0 0.0
    %4050 = vmatpush1.msra.mxu0 %v3847
    %4051 = vmatprep.subr.mxu0 0.0
    %4052 = vmatpush1.msra.mxu0 %v3848
    %4053 = vmatprep.subr.mxu0 0.0
    %4054 = vmatpush1.msra.mxu0 %v3849
    %4055 = vmatprep.subr.mxu0 0.0
    %4056 = vmatpush1.msra.mxu0 %v3850
    %4057 = vmatprep.mubr.f32.mxu0 %v3966
    %4058 = vmatmul.mubr.f32.gmra.mrb[0].mxu0 %v3959
    %v4059 = vpop.f32.mrb[0].mxu0
    %v4060 = vadd.f32 %v3904, %v4059
    %v4061 = vpop.f32.mrb[0].mxu0
    %4062 = vdwg.mxu0
    %4063 = vmatprep.subr.mxu0 0.0
    %4064 = vmatpush1.msra.mxu0 %v3851
    %4065 = vmatprep.subr.mxu0 0.0
    %4066 = vmatpush1.msra.mxu0 %v3852
    %4067 = vmatprep.subr.mxu0 0.0
    %4068 = vmatpush1.msra.mxu0 %v3853
    %4069 = vmatprep.subr.mxu0 0.0
    %4070 = vmatpush1.msra.mxu0 %v3854
    %4071 = vmatprep.subr.mxu0 0.0
    %4072 = vmatpush1.msra.mxu0 %v3855
    %4073 = vmatprep.subr.mxu0 0.0
    %4074 = vmatpush1.msra.mxu0 %v3856
    %4075 = vmatprep.subr.mxu0 0.0
    %4076 = vmatpush1.msra.mxu0 %v3857
    %4077 = vmatprep.subr.mxu0 0.0
    %4078 = vmatpush1.msra.mxu0 %v3858
    %4079 = vmatprep.subr.mxu0 0.0
    %4080 = vmatpush1.msra.mxu0 %v3859
    %4081 = vmatprep.subr.mxu0 0.0
    %4082 = vmatpush1.msra.mxu0 %v3860
    %4083 = vmatprep.subr.mxu0 0.0
    %4084 = vmatpush1.msra.mxu0 %v3861
    %4085 = vmatprep.subr.mxu0 0.0
    %4086 = vmatpush1.msra.mxu0 %v3862
    %4087 = vmatprep.subr.mxu0 0.0
    %4088 = vmatpush1.msra.mxu0 %v3863
    %4089 = vmatprep.subr.mxu0 0.0
    %4090 = vmatpush1.msra.mxu0 %v3864
    %4091 = vmatprep.subr.mxu0 0.0
    %4092 = vmatpush1.msra.mxu0 %v3865
    %4093 = vmatprep.subr.mxu0 0.0
    %4094 = vmatpush1.msra.mxu0 %v3866
    %4095 = vmatprep.subr.mxu0 0.0
    %4096 = vmatpush1.msra.mxu0 %v3867
    %4097 = vmatprep.subr.mxu0 0.0
    %4098 = vmatpush1.msra.mxu0 %v3868
    %4099 = vmatprep.subr.mxu0 0.0
    %4100 = vmatpush1.msra.mxu0 %v3869
    %4101 = vmatprep.subr.mxu0 0.0
    %4102 = vmatpush1.msra.mxu0 %v3870
    %4103 = vmatprep.subr.mxu0 0.0
    %4104 = vmatpush1.msra.mxu0 %v3871
    %4105 = vmatprep.subr.mxu0 0.0
    %4106 = vmatpush1.msra.mxu0 %v3872
    %4107 = vmatprep.subr.mxu0 0.0
    %4108 = vmatpush1.msra.mxu0 %v3873
    %4109 = vmatprep.subr.mxu0 0.0
    %4110 = vmatpush1.msra.mxu0 %v3874
    %4111 = vmatprep.subr.mxu0 0.0
    %4112 = vmatpush1.msra.mxu0 %v3875
    %4113 = vmatprep.subr.mxu0 0.0
    %4114 = vmatpush1.msra.mxu0 %v3876
    %4115 = vmatprep.subr.mxu0 0.0
    %4116 = vmatpush1.msra.mxu0 %v3877
    %4117 = vmatprep.subr.mxu0 0.0
    %4118 = vmatpush1.msra.mxu0 %v3878
    %4119 = vmatprep.subr.mxu0 0.0
    %4120 = vmatpush1.msra.mxu0 %v3879
    %4121 = vmatprep.subr.mxu0 0.0
    %4122 = vmatpush1.msra.mxu0 %v3880
    %4123 = vmatprep.subr.mxu0 0.0
    %4124 = vmatpush1.msra.mxu0 %v3881
    %4125 = vmatprep.subr.mxu0 0.0
    %4126 = vmatpush1.msra.mxu0 %v3882
    %4127 = vmatprep.mubr.f32.mxu0 %v3980
    %4128 = vmatmul.mubr.f32.gmra.mrb[0].mxu0 %v3973
    %v4129 = vpop.f32.mrb[0].mxu0
    %v4130 = vadd.f32 %v4060, %v4129
    %v4131 = vpop.f32.mrb[0].mxu0
    %4132 = vdwg.mxu0
    %4133 = vmatprep.subr.mxu0 0.0
    %4134 = vmatpush1.msra.mxu0 %v3883
    %4135 = vmatprep.subr.mxu0 0.0
    %4136 = vmatpush1.msra.mxu0 %v3884
    %4137 = vmatprep.subr.mxu0 0.0
    %4138 = vmatpush1.msra.mxu0 %v3885
    %4139 = vmatprep.subr.mxu0 0.0
    %4140 = vmatpush1.msra.mxu0 %v3886
    %4141 = vmatprep.subr.mxu0 0.0
    %4142 = vmatpush1.msra.mxu0 %v3887
    %4143 = vmatprep.subr.mxu0 0.0
    %4144 = vmatpush1.msra.mxu0 %v3888
    %4145 = vmatprep.subr.mxu0 0.0
    %4146 = vmatpush1.msra.mxu0 %v3889
    %4147 = vmatprep.subr.mxu0 0.0
    %4148 = vmatpush1.msra.mxu0 %v3890
    %4149 = vmatprep.subr.mxu0 0.0
    %4150 = vmatpush1.msra.mxu0 %v3891
    %4151 = vmatprep.subr.mxu0 0.0
    %4152 = vmatpush1.msra.mxu0 %v3892
    %4153 = vmatprep.subr.mxu0 0.0
    %4154 = vmatpush1.msra.mxu0 %v3893
    %4155 = vmatprep.subr.mxu0 0.0
    %4156 = vmatpush1.msra.mxu0 %v3894
    %4157 = vmatprep.subr.mxu0 0.0
    %4158 = vmatpush1.msra.mxu0 %v3895
    %4159 = vmatprep.subr.mxu0 0.0
    %4160 = vmatpush1.msra.mxu0 %v3896
    %4161 = vmatprep.subr.mxu0 0.0
    %4162 = vmatpush1.msra.mxu0 %v3897
    %4163 = vmatprep.subr.mxu0 0.0
    %4164 = vmatpush1.msra.mxu0 %v3898
    %4165 = vmatprep.subr.mxu0 0.0
    %4166 = vmatpush1.msra.mxu0 0.0
    %4167 = vmatprep.subr.mxu0 0.0
    %4168 = vmatpush1.msra.mxu0 0.0
    %4169 = vmatprep.subr.mxu0 0.0
    %4170 = vmatpush1.msra.mxu0 0.0
    %4171 = vmatprep.subr.mxu0 0.0
    %4172 = vmatpush1.msra.mxu0 0.0
    %4173 = vmatprep.subr.mxu0 0.0
    %4174 = vmatpush1.msra.mxu0 0.0
    %4175 = vmatprep.subr.mxu0 0.0
    %4176 = vmatpush1.msra.mxu0 0.0
    %4177 = vmatprep.subr.mxu0 0.0
    %4178 = vmatpush1.msra.mxu0 0.0
    %4179 = vmatprep.subr.mxu0 0.0
    %4180 = vmatpush1.msra.mxu0 0.0
    %4181 = vmatprep.subr.mxu0 0.0
    %4182 = vmatpush1.msra.mxu0 0.0
    %4183 = vmatprep.subr.mxu0 0.0
    %4184 = vmatpush1.msra.mxu0 0.0
    %4185 = vmatprep.subr.mxu0 0.0
    %4186 = vmatpush1.msra.mxu0 0.0
    %4187 = vmatprep.subr.mxu0 0.0
    %4188 = vmatpush1.msra.mxu0 0.0
    %4189 = vmatprep.subr.mxu0 0.0
    %4190 = vmatpush1.msra.mxu0 0.0
    %4191 = vmatprep.subr.mxu0 0.0
    %4192 = vmatpush1.msra.mxu0 0.0
    %4193 = vmatprep.subr.mxu0 0.0
    %4194 = vmatpush1.msra.mxu0 0.0
    %4195 = vmatprep.subr.mxu0 0.0
    %4196 = vmatpush1.msra.mxu0 0.0
    %4197 = vmatprep.mubr.f32.mxu0 0.0
    %4198 = vmatmul.mubr.f32.gmra.mrb[0].mxu0 %v3987
    %v4199 = vpop.f32.mrb[0].mxu0
    %v4200 = vadd.f32 %v4130, %v4199
    %v4201 = vpop.f32.mrb[0].mxu0
    %4202 = vdwg.mxu0
    %4203 = vst [vmem:[#allocation11] sm:$0xff] %v4200
    // Predicated region
    $region38: #{tpu_custom_call.1} parent=1 // pred_check
      _
    $region39: #{tpu_custom_call.1} parent=1 // pred_check_branch
      %4205 = sbr.rel (0) target = $region41
    $region40: #{tpu_custom_call.1} parent=1 // pred_region
      %s4207 = ssub.s32 128, 128
      %4208 = vsyncadd [#allocation5], %s4207
      %s4210 = sshll.u32 [#allocation11], 4
      %s4211 = int_to_ptr.vmem [resolvable:$true] %s4210
      %4213 = dma.vmem_to_hbm [thread:$0]  %s4211, 128, %s5, [#allocation5]
    $region41: #{tpu_custom_call.1} parent=1 // pred_fallthru
      _
    // Predicated region
    $region42: #{tpu_custom_call.1} parent=1 // pred_check
      _
    $region43: #{tpu_custom_call.1} parent=1 // pred_check_branch
      %4215 = sbr.rel (0) target = $region45
    $region44: #{tpu_custom_call.1} parent=1 // pred_region
      %4216 = dma.done [#allocation5], 128
    $region45: #{tpu_custom_call.1} parent=1 // pred_fallthru
      _
    %4217 = vsyncpa [#allocation4], 1
    %4218 = vsyncpa [#allocation7], 1
    %4219 = vsyncpa [#allocation10], 1
    %4220 = vsyncpa [#allocation5], 1

// kernel: tpu_custom_call.1
$region0: #{tpu_custom_call.1}
  #allocation0 [shape = 'u32[]', space=smem, size = 0x4, offset = 0x4, fixed_abs, tag = 'smem constant byte address 0x4 - core index']
  #allocation1 [shape = 'u32[144,128]{1,0:T(1,128)}', space=vmem, size = 0x12000, scoped, tag = 'internal scratch']
  #allocation2 [shape = 'f32[64,640]{1,0:T(8,128)}', space=vmem, size = 0x28000, scoped, tag = 'scratch operand']
  %s0 = inlined_call_operand.hbm [shape: bf16[8,16,128], index: 0, kind: input, shape index: {}]
  %s1 = inlined_call_operand.hbm [shape: bf16[640,640], index: 1, kind: input, shape index: {}]
  %s2 = inlined_call_operand.hbm [shape: f32[1,8,640], index: 2, kind: input, shape index: {}]
  %s3 = inlined_call_operand.hbm [shape: f32[640,128], index: 3, kind: input, shape index: {}]
  %s4 = inlined_call_operand.vmem [shape: f32[1,128], index: 4, kind: input, shape index: {}]
  %s5 = inlined_call_operand.hbm [shape: f32[8,128], index: 5, kind: output, shape index: {}]
  %s6 = sld [smem:[#allocation0]]
  $region46: #{tpu_custom_call.1} parent=0
    _
  %s8 = ssub.s32 1, %s6
  %s9 = scalar_select 0, %s8, %s6
  $region1: #{tpu_custom_call.1} parent=0
    #allocation3 [shape = 'u8[32768]{0}', space=vmem, size = 0x8000, scoped, tag = 'input window, operand 0, single buffered']
    #allocation4 [shape = 's32[1]{0}', space=sflag, size = 0x4, scoped, tag = 'scoped memory for tpu_custom_call.1']
    #allocation5 [shape = 's32[1]{0}', space=sflag, size = 0x4, scoped, tag = 'scoped memory for tpu_custom_call.1']
    #allocation6 [shape = 'u8[819200]{0}', space=vmem, size = 0xc8000, scoped, tag = 'input window, operand 1, single buffered']
    #allocation7 [shape = 's32[1]{0}', space=sflag, size = 0x4, scoped, tag = 'scoped memory for tpu_custom_call.1']
    #allocation8 [shape = 'u8[20480]{0}', space=vmem, size = 0x5000, scoped, tag = 'input window, operand 2, single buffered']
    #allocation9 [shape = 'u8[327680]{0}', space=vmem, size = 0x50000, scoped, tag = 'input window, operand 3, single buffered']
    #allocation10 [shape = 's32[1]{0}', space=sflag, size = 0x4, scoped, tag = 'scoped memory for tpu_custom_call.1']
    #allocation11 [shape = 'u8[4096]{0}', space=vmem, size = 0x1000, scoped, tag = 'output window, operand 0, single buffered']
    %10 = vsyncpa [#allocation4], 0
    %11 = vsyncpa [#allocation7], 0
    %12 = vsyncpa [#allocation10], 0
    %13 = vsyncpa [#allocation5], 0
    // Predicated region
    $region2: #{tpu_custom_call.1} parent=1 // pred_check
      _
    $region3: #{tpu_custom_call.1} parent=1 // pred_check_branch
      %15 = sbr.rel (0) target = $region5
    $region4: #{tpu_custom_call.1} parent=1 // pred_region
      %s17 = ssub.s32 1024, 1024
      %18 = vsyncadd [#allocation4], %s17
      %s19 = sshll.u32 [#allocation3], 4
      %s20 = int_to_ptr.vmem [resolvable:$true] %s19
      %25 = dma.hbm_to_vmem [thread:$0]  %s0, 1024, %s20, [#allocation4], 64, 64, 4
    $region5: #{tpu_custom_call.1} parent=1 // pred_fallthru
      _
    // Predicated region
    $region6: #{tpu_custom_call.1} parent=1 // pred_check
      _
    $region7: #{tpu_custom_call.1} parent=1 // pred_check_branch
      %27 = sbr.rel (0) target = $region9
    $region8: #{tpu_custom_call.1} parent=1 // pred_region
      %s29 = ssub.s32 25600, 25600
      %30 = vsyncadd [#allocation7], %s29
      %s31 = sshll.u32 [#allocation6], 4
      %s32 = int_to_ptr.vmem [resolvable:$true] %s31
      %37 = dma.hbm_to_vmem [thread:$0]  %s1, 25600, %s32, [#allocation7], 320, 320, 20
    $region9: #{tpu_custom_call.1} parent=1 // pred_fallthru
      _
    // Predicated region
    $region10: #{tpu_custom_call.1} parent=1 // pred_check
      _
    $region11: #{tpu_custom_call.1} parent=1 // pred_check_branch
      %39 = sbr.rel (0) target = $region13
    $region12: #{tpu_custom_call.1} parent=1 // pred_region
      %s41 = ssub.s32 640, 640
      %42 = vsyncadd [#allocation7], %s41
      %s44 = sshll.u32 [#allocation8], 4
      %s45 = int_to_ptr.vmem [resolvable:$true] %s44
      %47 = dma.hbm_to_vmem [thread:$0]  %s2, 640, %s45, [#allocation7]
    $region13: #{tpu_custom_call.1} parent=1 // pred_fallthru
      _
    // Predicated region
    $region14: #{tpu_custom_call.1} parent=1 // pred_check
      _
    $region15: #{tpu_custom_call.1} parent=1 // pred_check_branch
      %49 = sbr.rel (0) target = $region17
    $region16: #{tpu_custom_call.1} parent=1 // pred_region
      %s51 = ssub.s32 10240, 10240
      %52 = vsyncadd [#allocation10], %s51
      %s53 = sshll.u32 [#allocation9], 4
      %s54 = int_to_ptr.vmem [resolvable:$true] %s53
      %59 = dma.hbm_to_vmem [thread:$0]  %s3, 10240, %s54, [#allocation10], 128, 128, 8
    $region17: #{tpu_custom_call.1} parent=1 // pred_fallthru
      _
    // Predicated region
    $region18: #{tpu_custom_call.1} parent=1 // pred_check
      _
    $region19: #{tpu_custom_call.1} parent=1 // pred_check_branch
      %61 = sbr.rel (0) target = $region21
    $region20: #{tpu_custom_call.1} parent=1 // pred_region
      _
    $region21: #{tpu_custom_call.1} parent=1 // pred_fallthru
      _
    // Predicated region
    $region22: #{tpu_custom_call.1} parent=1 // pred_check
      _
    $region23: #{tpu_custom_call.1} parent=1 // pred_check_branch
      %63 = sbr.rel (0) target = $region25
    $region24: #{tpu_custom_call.1} parent=1 // pred_region
      %64 = dma.done [#allocation4], 1024
    $region25: #{tpu_custom_call.1} parent=1 // pred_fallthru
      _
    // Predicated region
    $region26: #{tpu_custom_call.1} parent=1 // pred_check
      _
    $region27: #{tpu_custom_call.1} parent=1 // pred_check_branch
      %66 = sbr.rel (0) target = $region29
    $region28: #{tpu_custom_call.1} parent=1 // pred_region
      %67 = dma.done [#allocation7], 25600
    $region29: #{tpu_custom_call.1} parent=1 // pred_fallthru
      _
    // Predicated region
    $region30: #{tpu_custom_call.1} parent=1 // pred_check
      _
    $region31: #{tpu_custom_call.1} parent=1 // pred_check_branch
      %69 = sbr.rel (0) target = $region33
    $region32: #{tpu_custom_call.1} parent=1 // pred_region
      %70 = dma.done [#allocation7], 640
    $region33: #{tpu_custom_call.1} parent=1 // pred_fallthru
      _
    // Predicated region
    $region34: #{tpu_custom_call.1} parent=1 // pred_check
      _
    $region35: #{tpu_custom_call.1} parent=1 // pred_check_branch
      %72 = sbr.rel (0) target = $region37
    $region36: #{tpu_custom_call.1} parent=1 // pred_region
      %73 = dma.done [#allocation10], 10240
    $region37: #{tpu_custom_call.1} parent=1 // pred_fallthru
      _
    %v75 = vld [vmem:[#allocation3] sm:$0xf]
    %v76 = vld [vmem:[#allocation3 + $0x8] sm:$0xf]
    %v77 = vld [vmem:[#allocation3 + $0x10] sm:$0xf]
    %v78 = vld [vmem:[#allocation3 + $0x18] sm:$0xf]
    %v79 = vld [vmem:[#allocation3 + $0x20] sm:$0xf]
    %v80 = vld [vmem:[#allocation3 + $0x28] sm:$0xf]
    %v81 = vld [vmem:[#allocation3 + $0x30] sm:$0xf]
    %v82 = vld [vmem:[#allocation3 + $0x38] sm:$0xf]
    %v83 = vld [vmem:[#allocation6] sm:$0xff]
    %v84 = vld [vmem:[#allocation6 + $0x8] sm:$0xff]
    %v85 = vld [vmem:[#allocation6 + $0x10] sm:$0xf]
    %v86 = vld [vmem:[#allocation6 + $0x14] sm:$0xff]
    %v87 = vld [vmem:[#allocation6 + $0x1c] sm:$0xff]
    %v88 = vld [vmem:[#allocation6 + $0x24] sm:$0xf]
    %v89 = vld [vmem:[#allocation6 + $0x28] sm:$0xff]
    %v90 = vld [vmem:[#allocation6 + $0x30] sm:$0xff]
    %v91 = vld [vmem:[#allocation6 + $0x38] sm:$0xf]
    %v92 = vld [vmem:[#allocation6 + $0x3c] sm:$0xff]
    %v93 = vld [vmem:[#allocation6 + $0x44] sm:$0xff]
    %v94 = vld [vmem:[#allocation6 + $0x4c] sm:$0xf]
    %v95 = vld [vmem:[#allocation6 + $0x50] sm:$0xff]
    %v96 = vld [vmem:[#allocation6 + $0x58] sm:$0xff]
    %v97 = vld [vmem:[#allocation6 + $0x60] sm:$0xf]
    %v98 = vld [vmem:[#allocation6 + $0x64] sm:$0xff]
    %v99 = vld [vmem:[#allocation6 + $0x6c] sm:$0xff]
    %v100 = vld [vmem:[#allocation6 + $0x74] sm:$0xf]
    %v101 = vld [vmem:[#allocation6 + $0x78] sm:$0xff]
    %v102 = vld [vmem:[#allocation6 + $0x80] sm:$0xff]
    %v103 = vld [vmem:[#allocation6 + $0x88] sm:$0xf]
    %v104 = vld [vmem:[#allocation6 + $0x8c] sm:$0xff]
    %v105 = vld [vmem:[#allocation6 + $0x94] sm:$0xff]
    %v106 = vld [vmem:[#allocation6 + $0x9c] sm:$0xf]
    %v107 = vld [vmem:[#allocation6 + $0xa0] sm:$0xff]
    %v108 = vld [vmem:[#allocation6 + $0xa8] sm:$0xff]
    %v109 = vld [vmem:[#allocation6 + $0xb0] sm:$0xf]
    %v110 = vld [vmem:[#allocation6 + $0xb4] sm:$0xff]
    %v111 = vld [vmem:[#allocation6 + $0xbc] sm:$0xff]
    %v112 = vld [vmem:[#allocation6 + $0xc4] sm:$0xf]
    %v113 = vld [vmem:[#allocation6 + $0xc8] sm:$0xff]
    %v114 = vld [vmem:[#allocation6 + $0xd0] sm:$0xff]
    %v115 = vld [vmem:[#allocation6 + $0xd8] sm:$0xf]
    %v116 = vld [vmem:[#allocation6 + $0xdc] sm:$0xff]
    %v117 = vld [vmem:[#allocation6 + $0xe4] sm:$0xff]
    %v118 = vld [vmem:[#allocation6 + $0xec] sm:$0xf]
    %v119 = vld [vmem:[#allocation6 + $0xf0] sm:$0xff]
    %v120 = vld [vmem:[#allocation6 + $0xf8] sm:$0xff]
    %v121 = vld [vmem:[#allocation6 + $0x100] sm:$0xf]
    %v122 = vld [vmem:[#allocation6 + $0x104] sm:$0xff]
    %v123 = vld [vmem:[#allocation6 + $0x10c] sm:$0xff]
    %v124 = vld [vmem:[#allocation6 + $0x114] sm:$0xf]
    %v125 = vld [vmem:[#allocation6 + $0x118] sm:$0xff]
    %v126 = vld [vmem:[#allocation6 + $0x120] sm:$0xff]
    %v127 = vld [vmem:[#allocation6 + $0x128] sm:$0xf]
    %v128 = vld [vmem:[#allocation6 + $0x12c] sm:$0xff]
    %v129 = vld [vmem:[#allocation6 + $0x134] sm:$0xff]
    %v130 = vld [vmem:[#allocation6 + $0x13c] sm:$0xf]
    %v139 = vunpack.c.l.b16 %v75
    %v140 = vunpack.c.l.b16 %v76
    %v141 = vunpack.c.l.b16 %v77
    %v142 = vunpack.c.l.b16 %v78
    %v143 = vunpack.c.l.b16 %v79
    %v144 = vunpack.c.l.b16 %v80
    %v145 = vunpack.c.l.b16 %v81
    %v146 = vunpack.c.l.b16 %v82
    %v147 = vpack.c.b16 %v140, %v139
    %v148 = vpack.c.b16 %v142, %v141
    %v149 = vpack.c.b16 %v144, %v143
    %v150 = vpack.c.b16 %v146, %v145
    %v203 = vunpack.c.l.b16 %v83
    %v204 = vunpack.c.h.b16 %v83
    %v205 = vunpack.c.l.b16 %v84
    %v206 = vunpack.c.h.b16 %v84
    %v207 = vunpack.c.l.b16 %v85
    %v208 = vunpack.c.l.b16 %v86
    %v209 = vunpack.c.h.b16 %v86
    %v210 = vunpack.c.l.b16 %v87
    %v211 = vunpack.c.h.b16 %v87
    %v212 = vunpack.c.l.b16 %v88
    %v213 = vunpack.c.l.b16 %v89
    %v214 = vunpack.c.h.b16 %v89
    %v215 = vunpack.c.l.b16 %v90
    %v216 = vunpack.c.h.b16 %v90
    %v217 = vunpack.c.l.b16 %v91
    %v218 = vunpack.c.l.b16 %v92
    %v219 = vunpack.c.h.b16 %v92
    %v220 = vunpack.c.l.b16 %v93
    %v221 = vunpack.c.h.b16 %v93
    %v222 = vunpack.c.l.b16 %v94
    %v223 = vunpack.c.l.b16 %v95
    %v224 = vunpack.c.h.b16 %v95
    %v225 = vunpack.c.l.b16 %v96
    %v226 = vunpack.c.h.b16 %v96
    %v227 = vunpack.c.l.b16 %v97
    %v228 = vunpack.c.l.b16 %v98
    %v229 = vunpack.c.h.b16 %v98
    %v230 = vunpack.c.l.b16 %v99
    %v231 = vunpack.c.h.b16 %v99
    %v232 = vunpack.c.l.b16 %v100
    %v233 = vunpack.c.l.b16 %v101
    %v234 = vunpack.c.h.b16 %v101
    %v235 = vunpack.c.l.b16 %v102
    %v236 = vunpack.c.h.b16 %v102
    %v237 = vunpack.c.l.b16 %v103
    %v238 = vunpack.c.l.b16 %v104
    %v239 = vunpack.c.h.b16 %v104
    %v240 = vunpack.c.l.b16 %v105
    %v241 = vunpack.c.h.b16 %v105
    %v242 = vunpack.c.l.b16 %v106
    %v243 = vunpack.c.l.b16 %v107
    %v244 = vunpack.c.h.b16 %v107
    %v245 = vunpack.c.l.b16 %v108
    %v246 = vunpack.c.h.b16 %v108
    %v247 = vunpack.c.l.b16 %v109
    %v248 = vunpack.c.l.b16 %v110
    %v249 = vunpack.c.h.b16 %v110
    %v250 = vunpack.c.l.b16 %v111
    %v251 = vunpack.c.h.b16 %v111
    %v252 = vunpack.c.l.b16 %v112
    %v253 = vunpack.c.l.b16 %v113
    %v254 = vunpack.c.h.b16 %v113
    %v255 = vunpack.c.l.b16 %v114
    %v256 = vunpack.c.h.b16 %v114
    %v257 = vunpack.c.l.b16 %v115
    %v258 = vunpack.c.l.b16 %v116
    %v259 = vunpack.c.h.b16 %v116
    %v260 = vunpack.c.l.b16 %v117
    %v261 = vunpack.c.h.b16 %v117
    %v262 = vunpack.c.l.b16 %v118
    %v263 = vunpack.c.l.b16 %v119
    %v264 = vunpack.c.h.b16 %v119
    %v265 = vunpack.c.l.b16 %v120
    %v266 = vunpack.c.h.b16 %v120
    %v267 = vunpack.c.l.b16 %v121
    %v268 = vunpack.c.l.b16 %v122
    %v269 = vunpack.c.h.b16 %v122
    %v270 = vunpack.c.l.b16 %v123
    %v271 = vunpack.c.h.b16 %v123
    %v272 = vunpack.c.l.b16 %v124
    %v273 = vunpack.c.l.b16 %v125
    %v274 = vunpack.c.h.b16 %v125
    %v275 = vunpack.c.l.b16 %v126
    %v276 = vunpack.c.h.b16 %v126
    %v277 = vunpack.c.l.b16 %v127
    %v278 = vunpack.c.l.b16 %v128
    %v279 = vunpack.c.h.b16 %v128
    %v280 = vunpack.c.l.b16 %v129
    %v281 = vunpack.c.h.b16 %v129
    %v282 = vunpack.c.l.b16 %v130
    %v283 = vpack.c.b16 %v208, %v203
    %v284 = vpack.c.b16 %v209, %v204
    %v285 = vpack.c.b16 %v210, %v205
    %v286 = vpack.c.b16 %v211, %v206
    %v287 = vpack.c.b16 %v212, %v207
    %v288 = vpack.c.b16 %v218, %v213
    %v289 = vpack.c.b16 %v219, %v214
    %v290 = vpack.c.b16 %v220, %v215
    %v291 = vpack.c.b16 %v221, %v216
    %v292 = vpack.c.b16 %v222, %v217
    %v293 = vpack.c.b16 %v228, %v223
    %v294 = vpack.c.b16 %v229, %v224
    %v295 = vpack.c.b16 %v230, %v225
    %v296 = vpack.c.b16 %v231, %v226
    %v297 = vpack.c.b16 %v232, %v227
    %v298 = vpack.c.b16 %v238, %v233
    %v299 = vpack.c.b16 %v239, %v234
    %v300 = vpack.c.b16 %v240, %v235
    %v301 = vpack.c.b16 %v241, %v236
    %v302 = vpack.c.b16 %v242, %v237
    %v303 = vpack.c.b16 %v248, %v243
    %v304 = vpack.c.b16 %v249, %v244
    %v305 = vpack.c.b16 %v250, %v245
    %v306 = vpack.c.b16 %v251, %v246
    %v307 = vpack.c.b16 %v252, %v247
    %v308 = vpack.c.b16 %v258, %v253
    %v309 = vpack.c.b16 %v259, %v254
    %v310 = vpack.c.b16 %v260, %v255
    %v311 = vpack.c.b16 %v261, %v256
    %v312 = vpack.c.b16 %v262, %v257
    %v313 = vpack.c.b16 %v268, %v263
    %v314 = vpack.c.b16 %v269, %v264
    %v315 = vpack.c.b16 %v270, %v265
    %v316 = vpack.c.b16 %v271, %v266
    %v317 = vpack.c.b16 %v272, %v267
    %v318 = vpack.c.b16 %v278, %v273
    %v319 = vpack.c.b16 %v279, %v274
    %v320 = vpack.c.b16 %v280, %v275
    %v321 = vpack.c.b16 %v281, %v276
    %v322 = vpack.c.b16 %v282, %v277
    %363 = vmatprep.subr.bf16.mxu0 %v284
    %364 = vmatpush1.bf16.msra.mxu0 %v283
    %365 = vmatprep.subr.bf16.mxu0 %v289
    %366 = vmatpush1.bf16.msra.mxu0 %v288
    %367 = vmatprep.subr.bf16.mxu0 %v294
    %368 = vmatpush1.bf16.msra.mxu0 %v293
    %369 = vmatprep.subr.bf16.mxu0 %v299
    %370 = vmatpush1.bf16.msra.mxu0 %v298
    %371 = vmatprep.subr.bf16.mxu0 %v304
    %372 = vmatpush1.bf16.msra.mxu0 %v303
    %373 = vmatprep.subr.bf16.mxu0 %v309
    %374 = vmatpush1.bf16.msra.mxu0 %v308
    %375 = vmatprep.subr.bf16.mxu0 %v314
    %376 = vmatpush1.bf16.msra.mxu0 %v313
    %377 = vmatprep.subr.bf16.mxu0 %v319
    %378 = vmatpush1.bf16.msra.mxu0 %v318
    %379 = vmatprep.subr.bf16.mxu0 0
    %380 = vmatpush1.bf16.msra.mxu0 0
    %381 = vmatprep.subr.bf16.mxu0 0
    %382 = vmatpush1.bf16.msra.mxu0 0
    %383 = vmatprep.subr.bf16.mxu0 0
    %384 = vmatpush1.bf16.msra.mxu0 0
    %385 = vmatprep.subr.bf16.mxu0 0
    %386 = vmatpush1.bf16.msra.mxu0 0
    %387 = vmatprep.subr.bf16.mxu0 0
    %388 = vmatpush1.bf16.msra.mxu0 0
    %389 = vmatprep.subr.bf16.mxu0 0
    %390 = vmatpush1.bf16.msra.mxu0 0
    %391 = vmatprep.subr.bf16.mxu0 0
    %392 = vmatpush1.bf16.msra.mxu0 0
    %393 = vmatprep.subr.bf16.mxu0 0
    %394 = vmatpush1.bf16.msra.mxu0 0
    %395 = vmatprep.mubr.bf16.mxu0 0
    %396 = vmatmul.mubr.bf16.gmra.mrb[0].mxu0 %v147
    %v397 = vpop.f32.mrb[0].mxu0
    %v398 = vadd.f32 0.0, %v397
    %v399 = vpop.f32.mrb[0].mxu0
    %v400 = vadd.f32 0.0, %v399
    %v401 = vpop.f32.mrb[0].mxu0
    %v402 = vadd.f32 0.0, %v401
    %v403 = vpop.f32.mrb[0].mxu0
    %v404 = vadd.f32 0.0, %v403
    %405 = vmatprep.mubr.bf16.mxu0 0
    %406 = vmatmul.mubr.bf16.gmra.mrb[0].mxu0 %v148
    %v407 = vpop.f32.mrb[0].mxu0
    %v408 = vadd.f32 0.0, %v407
    %v409 = vpop.f32.mrb[0].mxu0
    %v410 = vadd.f32 0.0, %v409
    %v411 = vpop.f32.mrb[0].mxu0
    %v412 = vadd.f32 0.0, %v411
    %v413 = vpop.f32.mrb[0].mxu0
    %v414 = vadd.f32 0.0, %v413
    %415 = vmatprep.mubr.bf16.mxu0 0
    %416 = vmatmul.mubr.bf16.gmra.mrb[0].mxu0 %v149
    %v417 = vpop.f32.mrb[0].mxu0
    %v418 = vadd.f32 0.0, %v417
    %v419 = vpop.f32.mrb[0].mxu0
    %v420 = vadd.f32 0.0, %v419
    %v421 = vpop.f32.mrb[0].mxu0
    %v422 = vadd.f32 0.0, %v421
    %v423 = vpop.f32.mrb[0].mxu0
    %v424 = vadd.f32 0.0, %v423
    %425 = vmatprep.mubr.bf16.mxu0 0
    %426 = vmatmul.mubr.bf16.gmra.mrb[0].mxu0 %v150
    %v427 = vpop.f32.mrb[0].mxu0
    %v428 = vadd.f32 0.0, %v427
    %v429 = vpop.f32.mrb[0].mxu0
    %v430 = vadd.f32 0.0, %v429
    %v431 = vpop.f32.mrb[0].mxu0
    %v432 = vadd.f32 0.0, %v431
    %v433 = vpop.f32.mrb[0].mxu0
    %v434 = vadd.f32 0.0, %v433
    %435 = vdwg.mxu0
    %436 = vmatprep.subr.bf16.mxu0 %v286
    %437 = vmatpush1.bf16.msra.mxu0 %v285
    %438 = vmatprep.subr.bf16.mxu0 %v291
    %439 = vmatpush1.bf16.msra.mxu0 %v290
    %440 = vmatprep.subr.bf16.mxu0 %v296
    %441 = vmatpush1.bf16.msra.mxu0 %v295
    %442 = vmatprep.subr.bf16.mxu0 %v301
    %443 = vmatpush1.bf16.msra.mxu0 %v300
    %444 = vmatprep.subr.bf16.mxu0 %v306
    %445 = vmatpush1.bf16.msra.mxu0 %v305
    %446 = vmatprep.subr.bf16.mxu0 %v311
    %447 = vmatpush1.bf16.msra.mxu0 %v310
    %448 = vmatprep.subr.bf16.mxu0 %v316
    %449 = vmatpush1.bf16.msra.mxu0 %v315
    %450 = vmatprep.subr.bf16.mxu0 %v321
    %451 = vmatpush1.bf16.msra.mxu0 %v320
    %452 = vmatprep.subr.bf16.mxu0 0
    %453 = vmatpush1.bf16.msra.mxu0 0
    %454 = vmatprep.subr.bf16.mxu0 0
    %455 = vmatpush1.bf16.msra.mxu0 0
    %456 = vmatprep.subr.bf16.mxu0 0
    %457 = vmatpush1.bf16.msra.mxu0 0
    %458 = vmatprep.subr.bf16.mxu0 0
    %459 = vmatpush1.bf16.msra.mxu0 0
    %460 = vmatprep.subr.bf16.mxu0 0
    %461 = vmatpush1.bf16.msra.mxu0 0
    %462 = vmatprep.subr.bf16.mxu0 0
    %463 = vmatpush1.bf16.msra.mxu0 0
    %464 = vmatprep.subr.bf16.mxu0 0
    %465 = vmatpush1.bf16.msra.mxu0 0
    %466 = vmatprep.subr.bf16.mxu0 0
    %467 = vmatpush1.bf16.msra.mxu0 0
    %468 = vmatprep.mubr.bf16.mxu0 0
    %469 = vmatmul.mubr.bf16.gmra.mrb[0].mxu0 %v147
    %v470 = vpop.f32.mrb[0].mxu0
    %v471 = vadd.f32 0.0, %v470
    %v472 = vpop.f32.mrb[0].mxu0
    %v473 = vadd.f32 0.0, %v472
    %v474 = vpop.f32.mrb[0].mxu0
    %v475 = vadd.f32 0.0, %v474
    %v476 = vpop.f32.mrb[0].mxu0
    %v477 = vadd.f32 0.0, %v476
    %478 = vmatprep.mubr.bf16.mxu0 0
    %479 = vmatmul.mubr.bf16.gmra.mrb[0].mxu0 %v148
    %v480 = vpop.f32.mrb[0].mxu0
    %v481 = vadd.f32 0.0, %v480
    %v482 = vpop.f32.mrb[0].mxu0
    %v483 = vadd.f32 0.0, %v482
    %v484 = vpop.f32.mrb[0].mxu0
    %v485 = vadd.f32 0.0, %v484
    %v486 = vpop.f32.mrb[0].mxu0
    %v487 = vadd.f32 0.0, %v486
    %488 = vmatprep.mubr.bf16.mxu0 0
    %489 = vmatmul.mubr.bf16.gmra.mrb[0].mxu0 %v149
    %v490 = vpop.f32.mrb[0].mxu0
    %v491 = vadd.f32 0.0, %v490
    %v492 = vpop.f32.mrb[0].mxu0
    %v493 = vadd.f32 0.0, %v492
    %v494 = vpop.f32.mrb[0].mxu0
    %v495 = vadd.f32 0.0, %v494
    %v496 = vpop.f32.mrb[0].mxu0
    %v497 = vadd.f32 0.0, %v496
    %498 = vmatprep.mubr.bf16.mxu0 0
    %499 = vmatmul.mubr.bf16.gmra.mrb[0].mxu0 %v150
    %v500 = vpop.f32.mrb[0].mxu0
    %v501 = vadd.f32 0.0, %v500
    %v502 = vpop.f32.mrb[0].mxu0
    %v503 = vadd.f32 0.0, %v502
    %v504 = vpop.f32.mrb[0].mxu0
    %v505 = vadd.f32 0.0, %v504
    %v506 = vpop.f32.mrb[0].mxu0
    %v507 = vadd.f32 0.0, %v506
    %508 = vdwg.mxu0
    %509 = vmatprep.subr.bf16.mxu0 0
    %510 = vmatpush1.bf16.msra.mxu0 %v287
    %511 = vmatprep.subr.bf16.mxu0 0
    %512 = vmatpush1.bf16.msra.mxu0 %v292
    %513 = vmatprep.subr.bf16.mxu0 0
    %514 = vmatpush1.bf16.msra.mxu0 %v297
    %515 = vmatprep.subr.bf16.mxu0 0
    %516 = vmatpush1.bf16.msra.mxu0 %v302
    %517 = vmatprep.subr.bf16.mxu0 0
    %518 = vmatpush1.bf16.msra.mxu0 %v307
    %519 = vmatprep.subr.bf16.mxu0 0
    %520 = vmatpush1.bf16.msra.mxu0 %v312
    %521 = vmatprep.subr.bf16.mxu0 0
    %522 = vmatpush1.bf16.msra.mxu0 %v317
    %523 = vmatprep.subr.bf16.mxu0 0
    %524 = vmatpush1.bf16.msra.mxu0 %v322
    %525 = vmatprep.subr.bf16.mxu0 0
    %526 = vmatpush1.bf16.msra.mxu0 0
    %527 = vmatprep.subr.bf16.mxu0 0
    %528 = vmatpush1.bf16.msra.mxu0 0
    %529 = vmatprep.subr.bf16.mxu0 0
    %530 = vmatpush1.bf16.msra.mxu0 0
    %531 = vmatprep.subr.bf16.mxu0 0
    %532 = vmatpush1.bf16.msra.mxu0 0
    %533 = vmatprep.subr.bf16.mxu0 0
    %534 = vmatpush1.bf16.msra.mxu0 0
    %535 = vmatprep.subr.bf16.mxu0 0
    %536 = vmatpush1.bf16.msra.mxu0 0
    %537 = vmatprep.subr.bf16.mxu0 0
    %538 = vmatpush1.bf16.msra.mxu0 0
    %539 = vmatprep.subr.bf16.mxu0 0
    %540 = vmatpush1.bf16.msra.mxu0 0
    %541 = vmatprep.mubr.bf16.mxu0 0
    %542 = vmatmul.mubr.bf16.gmra.mrb[0].mxu0 %v147
    %v543 = vpop.f32.mrb[0].mxu0
    %v544 = vadd.f32 0.0, %v543
    %v545 = vpop.f32.mrb[0].mxu0
    %v546 = vpop.f32.mrb[0].mxu0
    %v547 = vadd.f32 0.0, %v546
    %v548 = vpop.f32.mrb[0].mxu0
    %549 = vmatprep.mubr.bf16.mxu0 0
    %550 = vmatmul.mubr.bf16.gmra.mrb[0].mxu0 %v148
    %v551 = vpop.f32.mrb[0].mxu0
    %v552 = vadd.f32 0.0, %v551
    %v553 = vpop.f32.mrb[0].mxu0
    %v554 = vpop.f32.mrb[0].mxu0
    %v555 = vadd.f32 0.0, %v554
    %v556 = vpop.f32.mrb[0].mxu0
    %557 = vmatprep.mubr.bf16.mxu0 0
    %558 = vmatmul.mubr.bf16.gmra.mrb[0].mxu0 %v149
    %v559 = vpop.f32.mrb[0].mxu0
    %v560 = vadd.f32 0.0, %v559
    %v561 = vpop.f32.mrb[0].mxu0
    %v562 = vpop.f32.mrb[0].mxu0
    %v563 = vadd.f32 0.0, %v562
    %v564 = vpop.f32.mrb[0].mxu0
    %565 = vmatprep.mubr.bf16.mxu0 0
    %566 = vmatmul.mubr.bf16.gmra.mrb[0].mxu0 %v150
    %v567 = vpop.f32.mrb[0].mxu0
    %v568 = vadd.f32 0.0, %v567
    %v569 = vpop.f32.mrb[0].mxu0
    %v570 = vpop.f32.mrb[0].mxu0
    %v571 = vadd.f32 0.0, %v570
    %v572 = vpop.f32.mrb[0].mxu0
    %573 = vdwg.mxu0
    %574 = vst [vmem:[#allocation2] sm:$0xff] %v398
    %575 = vst [vmem:[#allocation2 + $0x8] sm:$0xff] %v400
    %576 = vst [vmem:[#allocation2 + $0x10] sm:$0xff] %v471
    %577 = vst [vmem:[#allocation2 + $0x18] sm:$0xff] %v473
    %578 = vst [vmem:[#allocation2 + $0x20] sm:$0xff] %v544
    %579 = vst [vmem:[#allocation2 + $0x28] sm:$0xff] %v402
    %580 = vst [vmem:[#allocation2 + $0x30] sm:$0xff] %v404
    %581 = vst [vmem:[#allocation2 + $0x38] sm:$0xff] %v475
    %582 = vst [vmem:[#allocation2 + $0x40] sm:$0xff] %v477
    %583 = vst [vmem:[#allocation2 + $0x48] sm:$0xff] %v547
    %584 = vst [vmem:[#allocation2 + $0x50] sm:$0xff] %v408
    %585 = vst [vmem:[#allocation2 + $0x58] sm:$0xff] %v410
    %586 = vst [vmem:[#allocation2 + $0x60] sm:$0xff] %v481
    %587 = vst [vmem:[#allocation2 + $0x68] sm:$0xff] %v483
    %588 = vst [vmem:[#allocation2 + $0x70] sm:$0xff] %v552
    %589 = vst [vmem:[#allocation2 + $0x78] sm:$0xff] %v412
    %590 = vst [vmem:[#allocation2 + $0x80] sm:$0xff] %v414
    %591 = vst [vmem:[#allocation2 + $0x88] sm:$0xff] %v485
    %592 = vst [vmem:[#allocation2 + $0x90] sm:$0xff] %v487
    %593 = vst [vmem:[#allocation2 + $0x98] sm:$0xff] %v555
    %594 = vst [vmem:[#allocation2 + $0xa0] sm:$0xff] %v418
    %595 = vst [vmem:[#allocation2 + $0xa8] sm:$0xff] %v420
    %596 = vst [vmem:[#allocation2 + $0xb0] sm:$0xff] %v491
    %597 = vst [vmem:[#allocation2 + $0xb8] sm:$0xff] %v493
    %598 = vst [vmem:[#allocation2 + $0xc0] sm:$0xff] %v560
    %599 = vst [vmem:[#allocation2 + $0xc8] sm:$0xff] %v422
    %600 = vst [vmem:[#allocation2 + $0xd0] sm:$0xff] %v424
    %601 = vst [vmem:[#allocation2 + $0xd8] sm:$0xff] %v495
    %602 = vst [vmem:[#allocation2 + $0xe0] sm:$0xff] %v497
    %603 = vst [vmem:[#allocation2 + $0xe8] sm:$0xff] %v563
    %604 = vst [vmem:[#allocation2 + $0xf0] sm:$0xff] %v428
    %605 = vst [vmem:[#allocation2 + $0xf8] sm:$0xff] %v430
    %606 = vst [vmem:[#allocation2 + $0x100] sm:$0xff] %v501
    %607 = vst [vmem:[#allocation2 + $0x108] sm:$0xff] %v503
    %608 = vst [vmem:[#allocation2 + $0x110] sm:$0xff] %v568
    %609 = vst [vmem:[#allocation2 + $0x118] sm:$0xff] %v432
    %610 = vst [vmem:[#allocation2 + $0x120] sm:$0xff] %v434
    %611 = vst [vmem:[#allocation2 + $0x128] sm:$0xff] %v505
    %612 = vst [vmem:[#allocation2 + $0x130] sm:$0xff] %v507
    %613 = vst [vmem:[#allocation2 + $0x138] sm:$0xff] %v571
    %v614 = vld [vmem:[#allocation2] sm:$0xff]
    %v615 = vld [vmem:[#allocation2 + $0x8] sm:$0xff]
    %v616 = vld [vmem:[#allocation2 + $0x10] sm:$0xff]
    %v617 = vld [vmem:[#allocation2 + $0x18] sm:$0xff]
    %v618 = vld [vmem:[#allocation2 + $0x20] sm:$0xff]
    %v619 = vld [vmem:[#allocation2 + $0x28] sm:$0xff]
    %v620 = vld [vmem:[#allocation2 + $0x30] sm:$0xff]
    %v621 = vld [vmem:[#allocation2 + $0x38] sm:$0xff]
    %v622 = vld [vmem:[#allocation2 + $0x40] sm:$0xff]
    %v623 = vld [vmem:[#allocation2 + $0x48] sm:$0xff]
    %v624 = vld [vmem:[#allocation2 + $0x50] sm:$0xff]
    %v625 = vld [vmem:[#allocation2 + $0x58] sm:$0xff]
    %v626 = vld [vmem:[#allocation2 + $0x60] sm:$0xff]
    %v627 = vld [vmem:[#allocation2 + $0x68] sm:$0xff]
    %v628 = vld [vmem:[#allocation2 + $0x70] sm:$0xff]
    %v629 = vld [vmem:[#allocation2 + $0x78] sm:$0xff]
    %v630 = vld [vmem:[#allocation2 + $0x80] sm:$0xff]
    %v631 = vld [vmem:[#allocation2 + $0x88] sm:$0xff]
    %v632 = vld [vmem:[#allocation2 + $0x90] sm:$0xff]
    %v633 = vld [vmem:[#allocation2 + $0x98] sm:$0xff]
    %v634 = vld [vmem:[#allocation2 + $0xa0] sm:$0xff]
    %v635 = vld [vmem:[#allocation2 + $0xa8] sm:$0xff]
    %v636 = vld [vmem:[#allocation2 + $0xb0] sm:$0xff]
    %v637 = vld [vmem:[#allocation2 + $0xb8] sm:$0xff]
    %v638 = vld [vmem:[#allocation2 + $0xc0] sm:$0xff]
    %v639 = vld [vmem:[#allocation2 + $0xc8] sm:$0xff]
    %v640 = vld [vmem:[#allocation2 + $0xd0] sm:$0xff]
    %v641 = vld [vmem:[#allocation2 + $0xd8] sm:$0xff]
    %v642 = vld [vmem:[#allocation2 + $0xe0] sm:$0xff]
    %v643 = vld [vmem:[#allocation2 + $0xe8] sm:$0xff]
    %v644 = vld [vmem:[#allocation2 + $0xf0] sm:$0xff]
    %v645 = vld [vmem:[#allocation2 + $0xf8] sm:$0xff]
    %v646 = vld [vmem:[#allocation2 + $0x100] sm:$0xff]
    %v647 = vld [vmem:[#allocation2 + $0x108] sm:$0xff]
    %v648 = vld [vmem:[#allocation2 + $0x110] sm:$0xff]
    %v649 = vld [vmem:[#allocation2 + $0x118] sm:$0xff]
    %v650 = vld [vmem:[#allocation2 + $0x120] sm:$0xff]
    %v651 = vld [vmem:[#allocation2 + $0x128] sm:$0xff]
    %v652 = vld [vmem:[#allocation2 + $0x130] sm:$0xff]
    %v653 = vld [vmem:[#allocation2 + $0x138] sm:$0xff]
    %v654 = vld [vmem:[#allocation3] sm:$0xf]
    %v655 = vld [vmem:[#allocation3 + $0x4] sm:$0x1]
    %v656 = vld [vmem:[#allocation3 + $0x8] sm:$0xf]
    %v657 = vld [vmem:[#allocation3 + $0xc] sm:$0x1]
    %v658 = vld [vmem:[#allocation3 + $0x10] sm:$0xf]
    %v659 = vld [vmem:[#allocation3 + $0x14] sm:$0x1]
    %v660 = vld [vmem:[#allocation3 + $0x18] sm:$0xf]
    %v661 = vld [vmem:[#allocation3 + $0x1c] sm:$0x1]
    %v662 = vld [vmem:[#allocation3 + $0x20] sm:$0xf]
    %v663 = vld [vmem:[#allocation3 + $0x24] sm:$0x1]
    %v664 = vld [vmem:[#allocation3 + $0x28] sm:$0xf]
    %v665 = vld [vmem:[#allocation3 + $0x2c] sm:$0x1]
    %v666 = vld [vmem:[#allocation3 + $0x30] sm:$0xf]
    %v667 = vld [vmem:[#allocation3 + $0x34] sm:$0x1]
    %v668 = vld [vmem:[#allocation3 + $0x38] sm:$0xf]
    %v669 = vld [vmem:[#allocation3 + $0x3c] sm:$0x1]
    %vm670 = vsmask.f32 3328
    %vm671 = vsmask.f32 7440
    %vm672 = vmor %vm670, %vm671
    %v674 = vshrl.u32 %v654, 16
    %v676 = vrot.slane %v674, 4
    %v677 = vshll.u32 %v654, 16
    %v679 = vrot.slane %v677, 5
    %v680 = vor.u32 %v676, %v679
    %v681 = vrot.slane %v680, 4
    %v683 = vshll.u32 %v655, 16
    %v685 = vrot.slane %v683, 5
    %v686 = vsel %vm672, %v681, %v685
    %v688 = vshrl.u32 %v656, 16
    %v690 = vrot.slane %v688, 4
    %v691 = vshll.u32 %v656, 16
    %v693 = vrot.slane %v691, 5
    %v694 = vor.u32 %v690, %v693
    %v695 = vrot.slane %v694, 4
    %v697 = vshll.u32 %v657, 16
    %v699 = vrot.slane %v697, 5
    %v700 = vsel %vm672, %v695, %v699
    %v702 = vshrl.u32 %v658, 16
    %v704 = vrot.slane %v702, 4
    %v705 = vshll.u32 %v658, 16
    %v707 = vrot.slane %v705, 5
    %v708 = vor.u32 %v704, %v707
    %v709 = vrot.slane %v708, 4
    %v711 = vshll.u32 %v659, 16
    %v713 = vrot.slane %v711, 5
    %v714 = vsel %vm672, %v709, %v713
    %v716 = vshrl.u32 %v660, 16
    %v718 = vrot.slane %v716, 4
    %v719 = vshll.u32 %v660, 16
    %v721 = vrot.slane %v719, 5
    %v722 = vor.u32 %v718, %v721
    %v723 = vrot.slane %v722, 4
    %v725 = vshll.u32 %v661, 16
    %v727 = vrot.slane %v725, 5
    %v728 = vsel %vm672, %v723, %v727
    %v730 = vshrl.u32 %v662, 16
    %v732 = vrot.slane %v730, 4
    %v733 = vshll.u32 %v662, 16
    %v735 = vrot.slane %v733, 5
    %v736 = vor.u32 %v732, %v735
    %v737 = vrot.slane %v736, 4
    %v739 = vshll.u32 %v663, 16
    %v741 = vrot.slane %v739, 5
    %v742 = vsel %vm672, %v737, %v741
    %v744 = vshrl.u32 %v664, 16
    %v746 = vrot.slane %v744, 4
    %v747 = vshll.u32 %v664, 16
    %v749 = vrot.slane %v747, 5
    %v750 = vor.u32 %v746, %v749
    %v751 = vrot.slane %v750, 4
    %v753 = vshll.u32 %v665, 16
    %v755 = vrot.slane %v753, 5
    %v756 = vsel %vm672, %v751, %v755
    %v758 = vshrl.u32 %v666, 16
    %v760 = vrot.slane %v758, 4
    %v761 = vshll.u32 %v666, 16
    %v763 = vrot.slane %v761, 5
    %v764 = vor.u32 %v760, %v763
    %v765 = vrot.slane %v764, 4
    %v767 = vshll.u32 %v667, 16
    %v769 = vrot.slane %v767, 5
    %v770 = vsel %vm672, %v765, %v769
    %v772 = vshrl.u32 %v668, 16
    %v774 = vrot.slane %v772, 4
    %v775 = vshll.u32 %v668, 16
    %v777 = vrot.slane %v775, 5
    %v778 = vor.u32 %v774, %v777
    %v779 = vrot.slane %v778, 4
    %v781 = vshll.u32 %v669, 16
    %v783 = vrot.slane %v781, 5
    %v784 = vsel %vm672, %v779, %v783
    %v785 = vld [vmem:[#allocation6 + $0x140] sm:$0xff]
    %v786 = vld [vmem:[#allocation6 + $0x148] sm:$0xff]
    %v787 = vld [vmem:[#allocation6 + $0x150] sm:$0xf]
    %v788 = vld [vmem:[#allocation6 + $0x154] sm:$0xff]
    %v789 = vld [vmem:[#allocation6 + $0x15c] sm:$0xff]
    %v790 = vld [vmem:[#allocation6 + $0x164] sm:$0xf]
    %v791 = vld [vmem:[#allocation6 + $0x168] sm:$0xff]
    %v792 = vld [vmem:[#allocation6 + $0x170] sm:$0xff]
    %v793 = vld [vmem:[#allocation6 + $0x178] sm:$0xf]
    %v794 = vld [vmem:[#allocation6 + $0x17c] sm:$0xff]
    %v795 = vld [vmem:[#allocation6 + $0x184] sm:$0xff]
    %v796 = vld [vmem:[#allocation6 + $0x18c] sm:$0xf]
    %v797 = vld [vmem:[#allocation6 + $0x190] sm:$0xff]
    %v798 = vld [vmem:[#allocation6 + $0x198] sm:$0xff]
    %v799 = vld [vmem:[#allocation6 + $0x1a0] sm:$0xf]
    %v800 = vld [vmem:[#allocation6 + $0x1a4] sm:$0xff]
    %v801 = vld [vmem:[#allocation6 + $0x1ac] sm:$0xff]
    %v802 = vld [vmem:[#allocation6 + $0x1b4] sm:$0xf]
    %v803 = vld [vmem:[#allocation6 + $0x1b8] sm:$0xff]
    %v804 = vld [vmem:[#allocation6 + $0x1c0] sm:$0xff]
    %v805 = vld [vmem:[#allocation6 + $0x1c8] sm:$0xf]
    %v806 = vld [vmem:[#allocation6 + $0x1cc] sm:$0xff]
    %v807 = vld [vmem:[#allocation6 + $0x1d4] sm:$0xff]
    %v808 = vld [vmem:[#allocation6 + $0x1dc] sm:$0xf]
    %v809 = vld [vmem:[#allocation6 + $0x1e0] sm:$0xff]
    %v810 = vld [vmem:[#allocation6 + $0x1e8] sm:$0xff]
    %v811 = vld [vmem:[#allocation6 + $0x1f0] sm:$0xf]
    %v812 = vld [vmem:[#allocation6 + $0x1f4] sm:$0xff]
    %v813 = vld [vmem:[#allocation6 + $0x1fc] sm:$0xff]
    %v814 = vld [vmem:[#allocation6 + $0x204] sm:$0xf]
    %v815 = vld [vmem:[#allocation6 + $0x208] sm:$0xff]
    %v816 = vld [vmem:[#allocation6 + $0x210] sm:$0xff]
    %v817 = vld [vmem:[#allocation6 + $0x218] sm:$0xf]
    %v818 = vld [vmem:[#allocation6 + $0x21c] sm:$0xff]
    %v819 = vld [vmem:[#allocation6 + $0x224] sm:$0xff]
    %v820 = vld [vmem:[#allocation6 + $0x22c] sm:$0xf]
    %v821 = vld [vmem:[#allocation6 + $0x230] sm:$0xff]
    %v822 = vld [vmem:[#allocation6 + $0x238] sm:$0xff]
    %v823 = vld [vmem:[#allocation6 + $0x240] sm:$0xf]
    %v824 = vld [vmem:[#allocation6 + $0x244] sm:$0xff]
    %v825 = vld [vmem:[#allocation6 + $0x24c] sm:$0xff]
    %v826 = vld [vmem:[#allocation6 + $0x254] sm:$0xf]
    %v827 = vld [vmem:[#allocation6 + $0x258] sm:$0xff]
    %v828 = vld [vmem:[#allocation6 + $0x260] sm:$0xff]
    %v829 = vld [vmem:[#allocation6 + $0x268] sm:$0xf]
    %v830 = vld [vmem:[#allocation6 + $0x26c] sm:$0xff]
    %v831 = vld [vmem:[#allocation6 + $0x274] sm:$0xff]
    %v832 = vld [vmem:[#allocation6 + $0x27c] sm:$0xf]
    %v833 = vunpack.c.l.b16 %v686
    %v834 = vunpack.c.l.b16 %v700
    %v835 = vunpack.c.l.b16 %v714
    %v836 = vunpack.c.l.b16 %v728
    %v837 = vunpack.c.l.b16 %v742
    %v838 = vunpack.c.l.b16 %v756
    %v839 = vunpack.c.l.b16 %v770
    %v840 = vunpack.c.l.b16 %v784
    %v841 = vpack.c.b16 %v834, %v833
    %v842 = vpack.c.b16 %v836, %v835
    %v843 = vpack.c.b16 %v838, %v837
    %v844 = vpack.c.b16 %v840, %v839
    %v897 = vunpack.c.l.b16 %v785
    %v898 = vunpack.c.h.b16 %v785
    %v899 = vunpack.c.l.b16 %v786
    %v900 = vunpack.c.h.b16 %v786
    %v901 = vunpack.c.l.b16 %v787
    %v902 = vunpack.c.l.b16 %v788
    %v903 = vunpack.c.h.b16 %v788
    %v904 = vunpack.c.l.b16 %v789
    %v905 = vunpack.c.h.b16 %v789
    %v906 = vunpack.c.l.b16 %v790
    %v907 = vunpack.c.l.b16 %v791
    %v908 = vunpack.c.h.b16 %v791
    %v909 = vunpack.c.l.b16 %v792
    %v910 = vunpack.c.h.b16 %v792
    %v911 = vunpack.c.l.b16 %v793
    %v912 = vunpack.c.l.b16 %v794
    %v913 = vunpack.c.h.b16 %v794
    %v914 = vunpack.c.l.b16 %v795
    %v915 = vunpack.c.h.b16 %v795
    %v916 = vunpack.c.l.b16 %v796
    %v917 = vunpack.c.l.b16 %v797
    %v918 = vunpack.c.h.b16 %v797
    %v919 = vunpack.c.l.b16 %v798
    %v920 = vunpack.c.h.b16 %v798
    %v921 = vunpack.c.l.b16 %v799
    %v922 = vunpack.c.l.b16 %v800
    %v923 = vunpack.c.h.b16 %v800
    %v924 = vunpack.c.l.b16 %v801
    %v925 = vunpack.c.h.b16 %v801
    %v926 = vunpack.c.l.b16 %v802
    %v927 = vunpack.c.l.b16 %v803
    %v928 = vunpack.c.h.b16 %v803
    %v929 = vunpack.c.l.b16 %v804
    %v930 = vunpack.c.h.b16 %v804
    %v931 = vunpack.c.l.b16 %v805
    %v932 = vunpack.c.l.b16 %v806
    %v933 = vunpack.c.h.b16 %v806
    %v934 = vunpack.c.l.b16 %v807
    %v935 = vunpack.c.h.b16 %v807
    %v936 = vunpack.c.l.b16 %v808
    %v937 = vunpack.c.l.b16 %v809
    %v938 = vunpack.c.h.b16 %v809
    %v939 = vunpack.c.l.b16 %v810
    %v940 = vunpack.c.h.b16 %v810
    %v941 = vunpack.c.l.b16 %v811
    %v942 = vunpack.c.l.b16 %v812
    %v943 = vunpack.c.h.b16 %v812
    %v944 = vunpack.c.l.b16 %v813
    %v945 = vunpack.c.h.b16 %v813
    %v946 = vunpack.c.l.b16 %v814
    %v947 = vunpack.c.l.b16 %v815
    %v948 = vunpack.c.h.b16 %v815
    %v949 = vunpack.c.l.b16 %v816
    %v950 = vunpack.c.h.b16 %v816
    %v951 = vunpack.c.l.b16 %v817
    %v952 = vunpack.c.l.b16 %v818
    %v953 = vunpack.c.h.b16 %v818
    %v954 = vunpack.c.l.b16 %v819
    %v955 = vunpack.c.h.b16 %v819
    %v956 = vunpack.c.l.b16 %v820
    %v957 = vunpack.c.l.b16 %v821
    %v958 = vunpack.c.h.b16 %v821
    %v959 = vunpack.c.l.b16 %v822
    %v960 = vunpack.c.h.b16 %v822
    %v961 = vunpack.c.l.b16 %v823
    %v962 = vunpack.c.l.b16 %v824
    %v963 = vunpack.c.h.b16 %v824
    %v964 = vunpack.c.l.b16 %v825
    %v965 = vunpack.c.h.b16 %v825
    %v966 = vunpack.c.l.b16 %v826
    %v967 = vunpack.c.l.b16 %v827
    %v968 = vunpack.c.h.b16 %v827
    %v969 = vunpack.c.l.b16 %v828
    %v970 = vunpack.c.h.b16 %v828
    %v971 = vunpack.c.l.b16 %v829
    %v972 = vunpack.c.l.b16 %v830
    %v973 = vunpack.c.h.b16 %v830
    %v974 = vunpack.c.l.b16 %v831
    %v975 = vunpack.c.h.b16 %v831
    %v976 = vunpack.c.l.b16 %v832
    %v977 = vpack.c.b16 %v902, %v897
    %v978 = vpack.c.b16 %v903, %v898
    %v979 = vpack.c.b16 %v904, %v899
    %v980 = vpack.c.b16 %v905, %v900
    %v981 = vpack.c.b16 %v906, %v901
    %v982 = vpack.c.b16 %v912, %v907
    %v983 = vpack.c.b16 %v913, %v908
    %v984 = vpack.c.b16 %v914, %v909
    %v985 = vpack.c.b16 %v915, %v910
    %v986 = vpack.c.b16 %v916, %v911
    %v987 = vpack.c.b16 %v922, %v917
    %v988 = vpack.c.b16 %v923, %v918
    %v989 = vpack.c.b16 %v924, %v919
    %v990 = vpack.c.b16 %v925, %v920
    %v991 = vpack.c.b16 %v926, %v921
    %v992 = vpack.c.b16 %v932, %v927
    %v993 = vpack.c.b16 %v933, %v928
    %v994 = vpack.c.b16 %v934, %v929
    %v995 = vpack.c.b16 %v935, %v930
    %v996 = vpack.c.b16 %v936, %v931
    %v997 = vpack.c.b16 %v942, %v937
    %v998 = vpack.c.b16 %v943, %v938
    %v999 = vpack.c.b16 %v944, %v939
    %v1000 = vpack.c.b16 %v945, %v940
    %v1001 = vpack.c.b16 %v946, %v941
    %v1002 = vpack.c.b16 %v952, %v947
    %v1003 = vpack.c.b16 %v953, %v948
    %v1004 = vpack.c.b16 %v954, %v949
    %v1005 = vpack.c.b16 %v955, %v950
    %v1006 = vpack.c.b16 %v956, %v951
    %v1007 = vpack.c.b16 %v962, %v957
    %v1008 = vpack.c.b16 %v963, %v958
    %v1009 = vpack.c.b16 %v964, %v959
    %v1010 = vpack.c.b16 %v965, %v960
    %v1011 = vpack.c.b16 %v966, %v961
    %v1012 = vpack.c.b16 %v972, %v967
    %v1013 = vpack.c.b16 %v973, %v968
    %v1014 = vpack.c.b16 %v974, %v969
    %v1015 = vpack.c.b16 %v975, %v970
    %v1016 = vpack.c.b16 %v976, %v971
    %1057 = vmatprep.subr.bf16.mxu0 %v978
    %1058 = vmatpush1.bf16.msra.mxu0 %v977
    %1059 = vmatprep.subr.bf16.mxu0 %v983
    %1060 = vmatpush1.bf16.msra.mxu0 %v982
    %1061 = vmatprep.subr.bf16.mxu0 %v988
    %1062 = vmatpush1.bf16.msra.mxu0 %v987
    %1063 = vmatprep.subr.bf16.mxu0 %v993
    %1064 = vmatpush1.bf16.msra.mxu0 %v992
    %1065 = vmatprep.subr.bf16.mxu0 %v998
    %1066 = vmatpush1.bf16.msra.mxu0 %v997
    %1067 = vmatprep.subr.bf16.mxu0 %v1003
    %1068 = vmatpush1.bf16.msra.mxu0 %v1002
    %1069 = vmatprep.subr.bf16.mxu0 %v1008
    %1070 = vmatpush1.bf16.msra.mxu0 %v1007
    %1071 = vmatprep.subr.bf16.mxu0 %v1013
    %1072 = vmatpush1.bf16.msra.mxu0 %v1012
    %1073 = vmatprep.subr.bf16.mxu0 0
    %1074 = vmatpush1.bf16.msra.mxu0 0
    %1075 = vmatprep.subr.bf16.mxu0 0
    %1076 = vmatpush1.bf16.msra.mxu0 0
    %1077 = vmatprep.subr.bf16.mxu0 0
    %1078 = vmatpush1.bf16.msra.mxu0 0
    %1079 = vmatprep.subr.bf16.mxu0 0
    %1080 = vmatpush1.bf16.msra.mxu0 0
    %1081 = vmatprep.subr.bf16.mxu0 0
    %1082 = vmatpush1.bf16.msra.mxu0 0
    %1083 = vmatprep.subr.bf16.mxu0 0
    %1084 = vmatpush1.bf16.msra.mxu0 0
    %1085 = vmatprep.subr.bf16.mxu0 0
    %1086 = vmatpush1.bf16.msra.mxu0 0
    %1087 = vmatprep.subr.bf16.mxu0 0
    %1088 = vmatpush1.bf16.msra.mxu0 0
    %1089 = vmatprep.mubr.bf16.mxu0 0
    %1090 = vmatmul.mubr.bf16.gmra.mrb[0].mxu0 %v841
    %v1091 = vpop.f32.mrb[0].mxu0
    %v1092 = vadd.f32 0.0, %v1091
    %v1093 = vpop.f32.mrb[0].mxu0
    %v1094 = vadd.f32 0.0, %v1093
    %v1095 = vpop.f32.mrb[0].mxu0
    %v1096 = vadd.f32 0.0, %v1095
    %v1097 = vpop.f32.mrb[0].mxu0
    %v1098 = vadd.f32 0.0, %v1097
    %1099 = vmatprep.mubr.bf16.mxu0 0
    %1100 = vmatmul.mubr.bf16.gmra.mrb[0].mxu0 %v842
    %v1101 = vpop.f32.mrb[0].mxu0
    %v1102 = vadd.f32 0.0, %v1101
    %v1103 = vpop.f32.mrb[0].mxu0
    %v1104 = vadd.f32 0.0, %v1103
    %v1105 = vpop.f32.mrb[0].mxu0
    %v1106 = vadd.f32 0.0, %v1105
    %v1107 = vpop.f32.mrb[0].mxu0
    %v1108 = vadd.f32 0.0, %v1107
    %1109 = vmatprep.mubr.bf16.mxu0 0
    %1110 = vmatmul.mubr.bf16.gmra.mrb[0].mxu0 %v843
    %v1111 = vpop.f32.mrb[0].mxu0
    %v1112 = vadd.f32 0.0, %v1111
    %v1113 = vpop.f32.mrb[0].mxu0
    %v1114 = vadd.f32 0.0, %v1113
    %v1115 = vpop.f32.mrb[0].mxu0
    %v1116 = vadd.f32 0.0, %v1115
    %v1117 = vpop.f32.mrb[0].mxu0
    %v1118 = vadd.f32 0.0, %v1117
    %1119 = vmatprep.mubr.bf16.mxu0 0
    %1120 = vmatmul.mubr.bf16.gmra.mrb[0].mxu0 %v844
    %v1121 = vpop.f32.mrb[0].mxu0
    %v1122 = vadd.f32 0.0, %v1121
    %v1123 = vpop.f32.mrb[0].mxu0
    %v1124 = vadd.f32 0.0, %v1123
    %v1125 = vpop.f32.mrb[0].mxu0
    %v1126 = vadd.f32 0.0, %v1125
    %v1127 = vpop.f32.mrb[0].mxu0
    %v1128 = vadd.f32 0.0, %v1127
    %1129 = vdwg.mxu0
    %1130 = vmatprep.subr.bf16.mxu0 %v980
    %1131 = vmatpush1.bf16.msra.mxu0 %v979
    %1132 = vmatprep.subr.bf16.mxu0 %v985
    %1133 = vmatpush1.bf16.msra.mxu0 %v984
    %1134 = vmatprep.subr.bf16.mxu0 %v990
    %1135 = vmatpush1.bf16.msra.mxu0 %v989
    %1136 = vmatprep.subr.bf16.mxu0 %v995
    %1137 = vmatpush1.bf16.msra.mxu0 %v994
    %1138 = vmatprep.subr.bf16.mxu0 %v1000
    %1139 = vmatpush1.bf16.msra.mxu0 %v999
    %1140 = vmatprep.subr.bf16.mxu0 %v1005
    %1141 = vmatpush1.bf16.msra.mxu0 %v1004
    %1142 = vmatprep.subr.bf16.mxu0 %v1010
    %1143 = vmatpush1.bf16.msra.mxu0 %v1009
    %1144 = vmatprep.subr.bf16.mxu0 %v1015
    %1145 = vmatpush1.bf16.msra.mxu0 %v1014
    %1146 = vmatprep.subr.bf16.mxu0 0
    %1147 = vmatpush1.bf16.msra.mxu0 0
    %1148 = vmatprep.subr.bf16.mxu0 0
    %1149 = vmatpush1.bf16.msra.mxu0 0
    %1150 = vmatprep.subr.bf16.mxu0 0
    %1151 = vmatpush1.bf16.msra.mxu0 0
    %1152 = vmatprep.subr.bf16.mxu0 0
    %1153 = vmatpush1.bf16.msra.mxu0 0
    %1154 = vmatprep.subr.bf16.mxu0 0
    %1155 = vmatpush1.bf16.msra.mxu0 0
    %1156 = vmatprep.subr.bf16.mxu0 0
    %1157 = vmatpush1.bf16.msra.mxu0 0
    %1158 = vmatprep.subr.bf16.mxu0 0
    %1159 = vmatpush1.bf16.msra.mxu0 0
    %1160 = vmatprep.subr.bf16.mxu0 0
    %1161 = vmatpush1.bf16.msra.mxu0 0
    %1162 = vmatprep.mubr.bf16.mxu0 0
    %1163 = vmatmul.mubr.bf16.gmra.mrb[0].mxu0 %v841
    %v1164 = vpop.f32.mrb[0].mxu0
    %v1165 = vadd.f32 0.0, %v1164
    %v1166 = vpop.f32.mrb[0].mxu0
    %v1167 = vadd.f32 0.0, %v1166
    %v1168 = vpop.f32.mrb[0].mxu0
    %v1169 = vadd.f32 0.0, %v1168
    %v1170 = vpop.f32.mrb[0].mxu0
    %v1171 = vadd.f32 0.0, %v1170
    %1172 = vmatprep.mubr.bf16.mxu0 0
    %1173 = vmatmul.mubr.bf16.gmra.mrb[0].mxu0 %v842
    %v1174 = vpop.f32.mrb[0].mxu0
    %v1175 = vadd.f32 0.0, %v1174
    %v1176 = vpop.f32.mrb[0].mxu0
    %v1177 = vadd.f32 0.0, %v1176
    %v1178 = vpop.f32.mrb[0].mxu0
    %v1179 = vadd.f32 0.0, %v1178
    %v1180 = vpop.f32.mrb[0].mxu0
    %v1181 = vadd.f32 0.0, %v1180
    %1182 = vmatprep.mubr.bf16.mxu0 0
    %1183 = vmatmul.mubr.bf16.gmra.mrb[0].mxu0 %v843
    %v1184 = vpop.f32.mrb[0].mxu0
    %v1185 = vadd.f32 0.0, %v1184
    %v1186 = vpop.f32.mrb[0].mxu0
    %v1187 = vadd.f32 0.0, %v1186
    %v1188 = vpop.f32.mrb[0].mxu0
    %v1189 = vadd.f32 0.0, %v1188
    %v1190 = vpop.f32.mrb[0].mxu0
    %v1191 = vadd.f32 0.0, %v1190
    %1192 = vmatprep.mubr.bf16.mxu0 0
    %1193 = vmatmul.mubr.bf16.gmra.mrb[0].mxu0 %v844
    %v1194 = vpop.f32.mrb[0].mxu0
    %v1195 = vadd.f32 0.0, %v1194
    %v1196 = vpop.f32.mrb[0].mxu0
    %v1197 = vadd.f32 0.0, %v1196
    %v1198 = vpop.f32.mrb[0].mxu0
    %v1199 = vadd.f32 0.0, %v1198
    %v1200 = vpop.f32.mrb[0].mxu0
    %v1201 = vadd.f32 0.0, %v1200
    %1202 = vdwg.mxu0
    %1203 = vmatprep.subr.bf16.mxu0 0
    %1204 = vmatpush1.bf16.msra.mxu0 %v981
    %1205 = vmatprep.subr.bf16.mxu0 0
    %1206 = vmatpush1.bf16.msra.mxu0 %v986
    %1207 = vmatprep.subr.bf16.mxu0 0
    %1208 = vmatpush1.bf16.msra.mxu0 %v991
    %1209 = vmatprep.subr.bf16.mxu0 0
    %1210 = vmatpush1.bf16.msra.mxu0 %v996
    %1211 = vmatprep.subr.bf16.mxu0 0
    %1212 = vmatpush1.bf16.msra.mxu0 %v1001
    %1213 = vmatprep.subr.bf16.mxu0 0
    %1214 = vmatpush1.bf16.msra.mxu0 %v1006
    %1215 = vmatprep.subr.bf16.mxu0 0
    %1216 = vmatpush1.bf16.msra.mxu0 %v1011
    %1217 = vmatprep.subr.bf16.mxu0 0
    %1218 = vmatpush1.bf16.msra.mxu0 %v1016
    %1219 = vmatprep.subr.bf16.mxu0 0
    %1220 = vmatpush1.bf16.msra.mxu0 0
    %1221 = vmatprep.subr.bf16.mxu0 0
    %1222 = vmatpush1.bf16.msra.mxu0 0
    %1223 = vmatprep.subr.bf16.mxu0 0
    %1224 = vmatpush1.bf16.msra.mxu0 0
    %1225 = vmatprep.subr.bf16.mxu0 0
    %1226 = vmatpush1.bf16.msra.mxu0 0
    %1227 = vmatprep.subr.bf16.mxu0 0
    %1228 = vmatpush1.bf16.msra.mxu0 0
    %1229 = vmatprep.subr.bf16.mxu0 0
    %1230 = vmatpush1.bf16.msra.mxu0 0
    %1231 = vmatprep.subr.bf16.mxu0 0
    %1232 = vmatpush1.bf16.msra.mxu0 0
    %1233 = vmatprep.subr.bf16.mxu0 0
    %1234 = vmatpush1.bf16.msra.mxu0 0
    %1235 = vmatprep.mubr.bf16.mxu0 0
    %1236 = vmatmul.mubr.bf16.gmra.mrb[0].mxu0 %v841
    %v1237 = vpop.f32.mrb[0].mxu0
    %v1238 = vadd.f32 0.0, %v1237
    %v1239 = vpop.f32.mrb[0].mxu0
    %v1240 = vpop.f32.mrb[0].mxu0
    %v1241 = vadd.f32 0.0, %v1240
    %v1242 = vpop.f32.mrb[0].mxu0
    %1243 = vmatprep.mubr.bf16.mxu0 0
    %1244 = vmatmul.mubr.bf16.gmra.mrb[0].mxu0 %v842
    %v1245 = vpop.f32.mrb[0].mxu0
    %v1246 = vadd.f32 0.0, %v1245
    %v1247 = vpop.f32.mrb[0].mxu0
    %v1248 = vpop.f32.mrb[0].mxu0
    %v1249 = vadd.f32 0.0, %v1248
    %v1250 = vpop.f32.mrb[0].mxu0
    %1251 = vmatprep.mubr.bf16.mxu0 0
    %1252 = vmatmul.mubr.bf16.gmra.mrb[0].mxu0 %v843
    %v1253 = vpop.f32.mrb[0].mxu0
    %v1254 = vadd.f32 0.0, %v1253
    %v1255 = vpop.f32.mrb[0].mxu0
    %v1256 = vpop.f32.mrb[0].mxu0
    %v1257 = vadd.f32 0.0, %v1256
    %v1258 = vpop.f32.mrb[0].mxu0
    %1259 = vmatprep.mubr.bf16.mxu0 0
    %1260 = vmatmul.mubr.bf16.gmra.mrb[0].mxu0 %v844
    %v1261 = vpop.f32.mrb[0].mxu0
    %v1262 = vadd.f32 0.0, %v1261
    %v1263 = vpop.f32.mrb[0].mxu0
    %v1264 = vpop.f32.mrb[0].mxu0
    %v1265 = vadd.f32 0.0, %v1264
    %v1266 = vpop.f32.mrb[0].mxu0
    %1267 = vdwg.mxu0
    %v1268 = vadd.f32 %v614, %v1092
    %v1269 = vadd.f32 %v615, %v1094
    %v1270 = vadd.f32 %v616, %v1165
    %v1271 = vadd.f32 %v617, %v1167
    %v1272 = vadd.f32 %v618, %v1238
    %v1273 = vadd.f32 %v619, %v1096
    %v1274 = vadd.f32 %v620, %v1098
    %v1275 = vadd.f32 %v621, %v1169
    %v1276 = vadd.f32 %v622, %v1171
    %v1277 = vadd.f32 %v623, %v1241
    %v1278 = vadd.f32 %v624, %v1102
    %v1279 = vadd.f32 %v625, %v1104
    %v1280 = vadd.f32 %v626, %v1175
    %v1281 = vadd.f32 %v627, %v1177
    %v1282 = vadd.f32 %v628, %v1246
    %v1283 = vadd.f32 %v629, %v1106
    %v1284 = vadd.f32 %v630, %v1108
    %v1285 = vadd.f32 %v631, %v1179
    %v1286 = vadd.f32 %v632, %v1181
    %v1287 = vadd.f32 %v633, %v1249
    %v1288 = vadd.f32 %v634, %v1112
    %v1289 = vadd.f32 %v635, %v1114
    %v1290 = vadd.f32 %v636, %v1185
    %v1291 = vadd.f32 %v637, %v1187
    %v1292 = vadd.f32 %v638, %v1254
    %v1293 = vadd.f32 %v639, %v1116
    %v1294 = vadd.f32 %v640, %v1118
    %v1295 = vadd.f32 %v641, %v1189
    %v1296 = vadd.f32 %v642, %v1191
    %v1297 = vadd.f32 %v643, %v1257
    %v1298 = vadd.f32 %v644, %v1122
    %v1299 = vadd.f32 %v645, %v1124
    %v1300 = vadd.f32 %v646, %v1195
    %v1301 = vadd.f32 %v647, %v1197
    %v1302 = vadd.f32 %v648, %v1262
    %v1303 = vadd.f32 %v649, %v1126
    %v1304 = vadd.f32 %v650, %v1128
    %v1305 = vadd.f32 %v651, %v1199
    %v1306 = vadd.f32 %v652, %v1201
    %v1307 = vadd.f32 %v653, %v1265
    %1308 = vst [vmem:[#allocation2] sm:$0xff] %v1268
    %1309 = vst [vmem:[#allocation2 + $0x8] sm:$0xff] %v1269
    %1310 = vst [vmem:[#allocation2 + $0x10] sm:$0xff] %v1270
    %1311 = vst [vmem:[#allocation2 + $0x18] sm:$0xff] %v1271
    %1312 = vst [vmem:[#allocation2 + $0x20] sm:$0xff] %v1272
    %1313 = vst [vmem:[#allocation2 + $0x28] sm:$0xff] %v1273
    %1314 = vst [vmem:[#allocation2 + $0x30] sm:$0xff] %v1274
    %1315 = vst [vmem:[#allocation2 + $0x38] sm:$0xff] %v1275
    %1316 = vst [vmem:[#allocation2 + $0x40] sm:$0xff] %v1276
    %1317 = vst [vmem:[#allocation2 + $0x48] sm:$0xff] %v1277
    %1318 = vst [vmem:[#allocation2 + $0x50] sm:$0xff] %v1278
    %1319 = vst [vmem:[#allocation2 + $0x58] sm:$0xff] %v1279
    %1320 = vst [vmem:[#allocation2 + $0x60] sm:$0xff] %v1280
    %1321 = vst [vmem:[#allocation2 + $0x68] sm:$0xff] %v1281
    %1322 = vst [vmem:[#allocation2 + $0x70] sm:$0xff] %v1282
    %1323 = vst [vmem:[#allocation2 + $0x78] sm:$0xff] %v1283
    %1324 = vst [vmem:[#allocation2 + $0x80] sm:$0xff] %v1284
    %1325 = vst [vmem:[#allocation2 + $0x88] sm:$0xff] %v1285
    %1326 = vst [vmem:[#allocation2 + $0x90] sm:$0xff] %v1286
    %1327 = vst [vmem:[#allocation2 + $0x98] sm:$0xff] %v1287
    %1328 = vst [vmem:[#allocation2 + $0xa0] sm:$0xff] %v1288
    %1329 = vst [vmem:[#allocation2 + $0xa8] sm:$0xff] %v1289
    %1330 = vst [vmem:[#allocation2 + $0xb0] sm:$0xff] %v1290
    %1331 = vst [vmem:[#allocation2 + $0xb8] sm:$0xff] %v1291
    %1332 = vst [vmem:[#allocation2 + $0xc0] sm:$0xff] %v1292
    %1333 = vst [vmem:[#allocation2 + $0xc8] sm:$0xff] %v1293
    %1334 = vst [vmem:[#allocation2 + $0xd0] sm:$0xff] %v1294
    %1335 = vst [vmem:[#allocation2 + $0xd8] sm:$0xff] %v1295
    %1336 = vst [vmem:[#allocation2 + $0xe0] sm:$0xff] %v1296
    %1337 = vst [vmem:[#allocation2 + $0xe8] sm:$0xff] %v1297
    %1338 = vst [vmem:[#allocation2 + $0xf0] sm:$0xff] %v1298
    %1339 = vst [vmem:[#allocation2 + $0xf8] sm:$0xff] %v1299
    %1340 = vst [vmem:[#allocation2 + $0x100] sm:$0xff] %v1300
    %1341 = vst [vmem:[#allocation2 + $0x108] sm:$0xff] %v1301
    %1342 = vst [vmem:[#allocation2 + $0x110] sm:$0xff] %v1302
    %1343 = vst [vmem:[#allocation2 + $0x118] sm:$0xff] %v1303
    %1344 = vst [vmem:[#allocation2 + $0x120] sm:$0xff] %v1304
    %1345 = vst [vmem:[#allocation2 + $0x128] sm:$0xff] %v1305
    %1346 = vst [vmem:[#allocation2 + $0x130] sm:$0xff] %v1306
    %1347 = vst [vmem:[#allocation2 + $0x138] sm:$0xff] %v1307
    %v1348 = vld [vmem:[#allocation2] sm:$0xff]
    %v1349 = vld [vmem:[#allocation2 + $0x8] sm:$0xff]
    %v1350 = vld [vmem:[#allocation2 + $0x10] sm:$0xff]
    %v1351 = vld [vmem:[#allocation2 + $0x18] sm:$0xff]
    %v1352 = vld [vmem:[#allocation2 + $0x20] sm:$0xff]
    %v1353 = vld [vmem:[#allocation2 + $0x28] sm:$0xff]
    %v1354 = vld [vmem:[#allocation2 + $0x30] sm:$0xff]
    %v1355 = vld [vmem:[#allocation2 + $0x38] sm:$0xff]
    %v1356 = vld [vmem:[#allocation2 + $0x40] sm:$0xff]
    %v1357 = vld [vmem:[#allocation2 + $0x48] sm:$0xff]
    %v1358 = vld [vmem:[#allocation2 + $0x50] sm:$0xff]
    %v1359 = vld [vmem:[#allocation2 + $0x58] sm:$0xff]
    %v1360 = vld [vmem:[#allocation2 + $0x60] sm:$0xff]
    %v1361 = vld [vmem:[#allocation2 + $0x68] sm:$0xff]
    %v1362 = vld [vmem:[#allocation2 + $0x70] sm:$0xff]
    %v1363 = vld [vmem:[#allocation2 + $0x78] sm:$0xff]
    %v1364 = vld [vmem:[#allocation2 + $0x80] sm:$0xff]
    %v1365 = vld [vmem:[#allocation2 + $0x88] sm:$0xff]
    %v1366 = vld [vmem:[#allocation2 + $0x90] sm:$0xff]
    %v1367 = vld [vmem:[#allocation2 + $0x98] sm:$0xff]
    %v1368 = vld [vmem:[#allocation2 + $0xa0] sm:$0xff]
    %v1369 = vld [vmem:[#allocation2 + $0xa8] sm:$0xff]
    %v1370 = vld [vmem:[#allocation2 + $0xb0] sm:$0xff]
    %v1371 = vld [vmem:[#allocation2 + $0xb8] sm:$0xff]
    %v1372 = vld [vmem:[#allocation2 + $0xc0] sm:$0xff]
    %v1373 = vld [vmem:[#allocation2 + $0xc8] sm:$0xff]
    %v1374 = vld [vmem:[#allocation2 + $0xd0] sm:$0xff]
    %v1375 = vld [vmem:[#allocation2 + $0xd8] sm:$0xff]
    %v1376 = vld [vmem:[#allocation2 + $0xe0] sm:$0xff]
    %v1377 = vld [vmem:[#allocation2 + $0xe8] sm:$0xff]
    %v1378 = vld [vmem:[#allocation2 + $0xf0] sm:$0xff]
    %v1379 = vld [vmem:[#allocation2 + $0xf8] sm:$0xff]
    %v1380 = vld [vmem:[#allocation2 + $0x100] sm:$0xff]
    %v1381 = vld [vmem:[#allocation2 + $0x108] sm:$0xff]
    %v1382 = vld [vmem:[#allocation2 + $0x110] sm:$0xff]
    %v1383 = vld [vmem:[#allocation2 + $0x118] sm:$0xff]
    %v1384 = vld [vmem:[#allocation2 + $0x120] sm:$0xff]
    %v1385 = vld [vmem:[#allocation2 + $0x128] sm:$0xff]
    %v1386 = vld [vmem:[#allocation2 + $0x130] sm:$0xff]
    %v1387 = vld [vmem:[#allocation2 + $0x138] sm:$0xff]
    %v1388 = vld [vmem:[#allocation3] sm:$0xe]
    %v1389 = vld [vmem:[#allocation3 + $0x4] sm:$0x1]
    %v1390 = vld [vmem:[#allocation3 + $0x8] sm:$0xe]
    %v1391 = vld [vmem:[#allocation3 + $0xc] sm:$0x1]
    %v1392 = vld [vmem:[#allocation3 + $0x10] sm:$0xe]
    %v1393 = vld [vmem:[#allocation3 + $0x14] sm:$0x1]
    %v1394 = vld [vmem:[#allocation3 + $0x18] sm:$0xe]
    %v1395 = vld [vmem:[#allocation3 + $0x1c] sm:$0x1]
    %v1396 = vld [vmem:[#allocation3 + $0x20] sm:$0xe]
    %v1397 = vld [vmem:[#allocation3 + $0x24] sm:$0x1]
    %v1398 = vld [vmem:[#allocation3 + $0x28] sm:$0xe]
    %v1399 = vld [vmem:[#allocation3 + $0x2c] sm:$0x1]
    %v1400 = vld [vmem:[#allocation3 + $0x30] sm:$0xe]
    %v1401 = vld [vmem:[#allocation3 + $0x34] sm:$0x1]
    %v1402 = vld [vmem:[#allocation3 + $0x38] sm:$0xe]
    %v1403 = vld [vmem:[#allocation3 + $0x3c] sm:$0x1]
    %vm1420 = vcmask 1042432
    %vm1421 = vcmask 1046532
    %vm1422 = vmor %vm1420, %vm1421
    %v1423 = vrot.slane %v1388, 5
    %v1424 = vrot.slane %v1423, 4
    %v1425 = vrot.slane %v1389, 5
    %v1426 = vsel %vm1422, %v1424, %v1425
    %v1427 = vrot.slane %v1390, 5
    %v1428 = vrot.slane %v1427, 4
    %v1429 = vrot.slane %v1391, 5
    %v1430 = vsel %vm1422, %v1428, %v1429
    %v1431 = vrot.slane %v1392, 5
    %v1432 = vrot.slane %v1431, 4
    %v1433 = vrot.slane %v1393, 5
    %v1434 = vsel %vm1422, %v1432, %v1433
    %v1435 = vrot.slane %v1394, 5
    %v1436 = vrot.slane %v1435, 4
    %v1437 = vrot.slane %v1395, 5
    %v1438 = vsel %vm1422, %v1436, %v1437
    %v1439 = vrot.slane %v1396, 5
    %v1440 = vrot.slane %v1439, 4
    %v1441 = vrot.slane %v1397, 5
    %v1442 = vsel %vm1422, %v1440, %v1441
    %v1443 = vrot.slane %v1398, 5
    %v1444 = vrot.slane %v1443, 4
    %v1445 = vrot.slane %v1399, 5
    %v1446 = vsel %vm1422, %v1444, %v1445
    %v1447 = vrot.slane %v1400, 5
    %v1448 = vrot.slane %v1447, 4
    %v1449 = vrot.slane %v1401, 5
    %v1450 = vsel %vm1422, %v1448, %v1449
    %v1451 = vrot.slane %v1402, 5
    %v1452 = vrot.slane %v1451, 4
    %v1453 = vrot.slane %v1403, 5
    %v1454 = vsel %vm1422, %v1452, %v1453
    %v1455 = vld [vmem:[#allocation6 + $0x280] sm:$0xff]
    %v1456 = vld [vmem:[#allocation6 + $0x288] sm:$0xff]
    %v1457 = vld [vmem:[#allocation6 + $0x290] sm:$0xf]
    %v1458 = vld [vmem:[#allocation6 + $0x294] sm:$0xff]
    %v1459 = vld [vmem:[#allocation6 + $0x29c] sm:$0xff]
    %v1460 = vld [vmem:[#allocation6 + $0x2a4] sm:$0xf]
    %v1461 = vld [vmem:[#allocation6 + $0x2a8] sm:$0xff]
    %v1462 = vld [vmem:[#allocation6 + $0x2b0] sm:$0xff]
    %v1463 = vld [vmem:[#allocation6 + $0x2b8] sm:$0xf]
    %v1464 = vld [vmem:[#allocation6 + $0x2bc] sm:$0xff]
    %v1465 = vld [vmem:[#allocation6 + $0x2c4] sm:$0xff]
    %v1466 = vld [vmem:[#allocation6 + $0x2cc] sm:$0xf]
    %v1467 = vld [vmem:[#allocation6 + $0x2d0] sm:$0xff]
    %v1468 = vld [vmem:[#allocation6 + $0x2d8] sm:$0xff]
    %v1469 = vld [vmem:[#allocation6 + $0x2e0] sm:$0xf]
    %v1470 = vld [vmem:[#allocation6 + $0x2e4] sm:$0xff]
    %v1471 = vld [vmem:[#allocation6 + $0x2ec] sm:$0xff]
    %v1472 = vld [vmem:[#allocation6 + $0x2f4] sm:$0xf]
    %v1473 = vld [vmem:[#allocation6 + $0x2f8] sm:$0xff]
    %v1474 = vld [vmem:[#allocation6 + $0x300] sm:$0xff]
    %v1475 = vld [vmem:[#allocation6 + $0x308] sm:$0xf]
    %v1476 = vld [vmem:[#allocation6 + $0x30c] sm:$0xff]
    %v1477 = vld [vmem:[#allocation6 + $0x314] sm:$0xff]
    %v1478 = vld [vmem:[#allocation6 + $0x31c] sm:$0xf]
    %v1479 = vld [vmem:[#allocation6 + $0x320] sm:$0xff]
    %v1480 = vld [vmem:[#allocation6 + $0x328] sm:$0xff]
    %v1481 = vld [vmem:[#allocation6 + $0x330] sm:$0xf]
    %v1482 = vld [vmem:[#allocation6 + $0x334] sm:$0xff]
    %v1483 = vld [vmem:[#allocation6 + $0x33c] sm:$0xff]
    %v1484 = vld [vmem:[#allocation6 + $0x344] sm:$0xf]
    %v1485 = vld [vmem:[#allocation6 + $0x348] sm:$0xff]
    %v1486 = vld [vmem:[#allocation6 + $0x350] sm:$0xff]
    %v1487 = vld [vmem:[#allocation6 + $0x358] sm:$0xf]
    %v1488 = vld [vmem:[#allocation6 + $0x35c] sm:$0xff]
    %v1489 = vld [vmem:[#allocation6 + $0x364] sm:$0xff]
    %v1490 = vld [vmem:[#allocation6 + $0x36c] sm:$0xf]
    %v1491 = vld [vmem:[#allocation6 + $0x370] sm:$0xff]
    %v1492 = vld [vmem:[#allocation6 + $0x378] sm:$0xff]
    %v1493 = vld [vmem:[#allocation6 + $0x380] sm:$0xf]
    %v1494 = vld [vmem:[#allocation6 + $0x384] sm:$0xff]
    %v1495 = vld [vmem:[#allocation6 + $0x38c] sm:$0xff]
    %v1496 = vld [vmem:[#allocation6 + $0x394] sm:$0xf]
    %v1497 = vld [vmem:[#allocation6 + $0x398] sm:$0xff]
    %v1498 = vld [vmem:[#allocation6 + $0x3a0] sm:$0xff]
    %v1499 = vld [vmem:[#allocation6 + $0x3a8] sm:$0xf]
    %v1500 = vld [vmem:[#allocation6 + $0x3ac] sm:$0xff]
    %v1501 = vld [vmem:[#allocation6 + $0x3b4] sm:$0xff]
    %v1502 = vld [vmem:[#allocation6 + $0x3bc] sm:$0xf]
    %v1503 = vunpack.c.l.b16 %v1426
    %v1504 = vunpack.c.l.b16 %v1430
    %v1505 = vunpack.c.l.b16 %v1434
    %v1506 = vunpack.c.l.b16 %v1438
    %v1507 = vunpack.c.l.b16 %v1442
    %v1508 = vunpack.c.l.b16 %v1446
    %v1509 = vunpack.c.l.b16 %v1450
    %v1510 = vunpack.c.l.b16 %v1454
    %v1511 = vpack.c.b16 %v1504, %v1503
    %v1512 = vpack.c.b16 %v1506, %v1505
    %v1513 = vpack.c.b16 %v1508, %v1507
    %v1514 = vpack.c.b16 %v1510, %v1509
    %v1567 = vunpack.c.l.b16 %v1455
    %v1568 = vunpack.c.h.b16 %v1455
    %v1569 = vunpack.c.l.b16 %v1456
    %v1570 = vunpack.c.h.b16 %v1456
    %v1571 = vunpack.c.l.b16 %v1457
    %v1572 = vunpack.c.l.b16 %v1458
    %v1573 = vunpack.c.h.b16 %v1458
    %v1574 = vunpack.c.l.b16 %v1459
    %v1575 = vunpack.c.h.b16 %v1459
    %v1576 = vunpack.c.l.b16 %v1460
    %v1577 = vunpack.c.l.b16 %v1461
    %v1578 = vunpack.c.h.b16 %v1461
    %v1579 = vunpack.c.l.b16 %v1462
    %v1580 = vunpack.c.h.b16 %v1462
    %v1581 = vunpack.c.l.b16 %v1463
    %v1582 = vunpack.c.l.b16 %v1464
    %v1583 = vunpack.c.h.b16 %v1464
    %v1584 = vunpack.c.l.b16 %v1465
    %v1585 = vunpack.c.h.b16 %v1465
    %v1586 = vunpack.c.l.b16 %v1466
    %v1587 = vunpack.c.l.b16 %v1467
    %v1588 = vunpack.c.h.b16 %v1467
    %v1589 = vunpack.c.l.b16 %v1468
    %v1590 = vunpack.c.h.b16 %v1468
    %v1591 = vunpack.c.l.b16 %v1469
    %v1592 = vunpack.c.l.b16 %v1470
    %v1593 = vunpack.c.h.b16 %v1470
    %v1594 = vunpack.c.l.b16 %v1471
    %v1595 = vunpack.c.h.b16 %v1471
    %v1596 = vunpack.c.l.b16 %v1472
    %v1597 = vunpack.c.l.b16 %v1473
    %v1598 = vunpack.c.h.b16 %v1473
    %v1599 = vunpack.c.l.b16 %v1474
    %v1600 = vunpack.c.h.b16 %v1474
    %v1601 = vunpack.c.l.b16 %v1475
    %v1602 = vunpack.c.l.b16 %v1476
    %v1603 = vunpack.c.h.b16 %v1476
    %v1604 = vunpack.c.l.b16 %v1477
    %v1605 = vunpack.c.h.b16 %v1477
    %v1606 = vunpack.c.l.b16 %v1478
    %v1607 = vunpack.c.l.b16 %v1479
    %v1608 = vunpack.c.h.b16 %v1479
    %v1609 = vunpack.c.l.b16 %v1480
    %v1610 = vunpack.c.h.b16 %v1480
    %v1611 = vunpack.c.l.b16 %v1481
    %v1612 = vunpack.c.l.b16 %v1482
    %v1613 = vunpack.c.h.b16 %v1482
    %v1614 = vunpack.c.l.b16 %v1483
    %v1615 = vunpack.c.h.b16 %v1483
    %v1616 = vunpack.c.l.b16 %v1484
    %v1617 = vunpack.c.l.b16 %v1485
    %v1618 = vunpack.c.h.b16 %v1485
    %v1619 = vunpack.c.l.b16 %v1486
    %v1620 = vunpack.c.h.b16 %v1486
    %v1621 = vunpack.c.l.b16 %v1487
    %v1622 = vunpack.c.l.b16 %v1488
    %v1623 = vunpack.c.h.b16 %v1488
    %v1624 = vunpack.c.l.b16 %v1489
    %v1625 = vunpack.c.h.b16 %v1489
    %v1626 = vunpack.c.l.b16 %v1490
    %v1627 = vunpack.c.l.b16 %v1491
    %v1628 = vunpack.c.h.b16 %v1491
    %v1629 = vunpack.c.l.b16 %v1492
    %v1630 = vunpack.c.h.b16 %v1492
    %v1631 = vunpack.c.l.b16 %v1493
    %v1632 = vunpack.c.l.b16 %v1494
    %v1633 = vunpack.c.h.b16 %v1494
    %v1634 = vunpack.c.l.b16 %v1495
    %v1635 = vunpack.c.h.b16 %v1495
    %v1636 = vunpack.c.l.b16 %v1496
    %v1637 = vunpack.c.l.b16 %v1497
    %v1638 = vunpack.c.h.b16 %v1497
    %v1639 = vunpack.c.l.b16 %v1498
    %v1640 = vunpack.c.h.b16 %v1498
    %v1641 = vunpack.c.l.b16 %v1499
    %v1642 = vunpack.c.l.b16 %v1500
    %v1643 = vunpack.c.h.b16 %v1500
    %v1644 = vunpack.c.l.b16 %v1501
    %v1645 = vunpack.c.h.b16 %v1501
    %v1646 = vunpack.c.l.b16 %v1502
    %v1647 = vpack.c.b16 %v1572, %v1567
    %v1648 = vpack.c.b16 %v1573, %v1568
    %v1649 = vpack.c.b16 %v1574, %v1569
    %v1650 = vpack.c.b16 %v1575, %v1570
    %v1651 = vpack.c.b16 %v1576, %v1571
    %v1652 = vpack.c.b16 %v1582, %v1577
    %v1653 = vpack.c.b16 %v1583, %v1578
    %v1654 = vpack.c.b16 %v1584, %v1579
    %v1655 = vpack.c.b16 %v1585, %v1580
    %v1656 = vpack.c.b16 %v1586, %v1581
    %v1657 = vpack.c.b16 %v1592, %v1587
    %v1658 = vpack.c.b16 %v1593, %v1588
    %v1659 = vpack.c.b16 %v1594, %v1589
    %v1660 = vpack.c.b16 %v1595, %v1590
    %v1661 = vpack.c.b16 %v1596, %v1591
    %v1662 = vpack.c.b16 %v1602, %v1597
    %v1663 = vpack.c.b16 %v1603, %v1598
    %v1664 = vpack.c.b16 %v1604, %v1599
    %v1665 = vpack.c.b16 %v1605, %v1600
    %v1666 = vpack.c.b16 %v1606, %v1601
    %v1667 = vpack.c.b16 %v1612, %v1607
    %v1668 = vpack.c.b16 %v1613, %v1608
    %v1669 = vpack.c.b16 %v1614, %v1609
    %v1670 = vpack.c.b16 %v1615, %v1610
    %v1671 = vpack.c.b16 %v1616, %v1611
    %v1672 = vpack.c.b16 %v1622, %v1617
    %v1673 = vpack.c.b16 %v1623, %v1618
    %v1674 = vpack.c.b16 %v1624, %v1619
    %v1675 = vpack.c.b16 %v1625, %v1620
    %v1676 = vpack.c.b16 %v1626, %v1621
    %v1677 = vpack.c.b16 %v1632, %v1627
    %v1678 = vpack.c.b16 %v1633, %v1628
    %v1679 = vpack.c.b16 %v1634, %v1629
    %v1680 = vpack.c.b16 %v1635, %v1630
    %v1681 = vpack.c.b16 %v1636, %v1631
    %v1682 = vpack.c.b16 %v1642, %v1637
    %v1683 = vpack.c.b16 %v1643, %v1638
    %v1684 = vpack.c.b16 %v1644, %v1639
    %v1685 = vpack.c.b16 %v1645, %v1640
    %v1686 = vpack.c.b16 %v1646, %v1641
    %1727 = vmatprep.subr.bf16.mxu0 %v1648
    %1728 = vmatpush1.bf16.msra.mxu0 %v1647
    %1729 = vmatprep.subr.bf16.mxu0 %v1653
    %1730 = vmatpush1.bf16.msra.mxu0 %v1652
    %1731 = vmatprep.subr.bf16.mxu0 %v1658
    %1732 = vmatpush1.bf16.msra.mxu0 %v1657
    %1733 = vmatprep.subr.bf16.mxu0 %v1663
    %1734 = vmatpush1.bf16.msra.mxu0 %v1662
    %1735 = vmatprep.subr.bf16.mxu0 %v1668
    %1736 = vmatpush1.bf16.msra.mxu0 %v1667
    %1737 = vmatprep.subr.bf16.mxu0 %v1673
    %1738 = vmatpush1.bf16.msra.mxu0 %v1672
    %1739 = vmatprep.subr.bf16.mxu0 %v1678
    %1740 = vmatpush1.bf16.msra.mxu0 %v1677
    %1741 = vmatprep.subr.bf16.mxu0 %v1683
    %1742 = vmatpush1.bf16.msra.mxu0 %v1682
    %1743 = vmatprep.subr.bf16.mxu0 0
    %1744 = vmatpush1.bf16.msra.mxu0 0
    %1745 = vmatprep.subr.bf16.mxu0 0
    %1746 = vmatpush1.bf16.msra.mxu0 0
    %1747 = vmatprep.subr.bf16.mxu0 0
    %1748 = vmatpush1.bf16.msra.mxu0 0
    %1749 = vmatprep.subr.bf16.mxu0 0
    %1750 = vmatpush1.bf16.msra.mxu0 0
    %1751 = vmatprep.subr.bf16.mxu0 0
    %1752 = vmatpush1.bf16.msra.mxu0 0
    %1753 = vmatprep.subr.bf16.mxu0 0
    %1754 = vmatpush1.bf16.msra.mxu0 0
    %1755 = vmatprep.subr.bf16.mxu0 0
    %1756 = vmatpush1.bf16.msra.mxu0 0
    %1757 = vmatprep.subr.bf16.mxu0 0
    %1758 = vmatpush1.bf16.msra.mxu0 0
    %1759 = vmatprep.mubr.bf16.mxu0 0
    %1760 = vmatmul.mubr.bf16.gmra.mrb[0].mxu0 %v1511
    %v1761 = vpop.f32.mrb[0].mxu0
    %v1762 = vadd.f32 0.0, %v1761
    %v1763 = vpop.f32.mrb[0].mxu0
    %v1764 = vadd.f32 0.0, %v1763
    %v1765 = vpop.f32.mrb[0].mxu0
    %v1766 = vadd.f32 0.0, %v1765
    %v1767 = vpop.f32.mrb[0].mxu0
    %v1768 = vadd.f32 0.0, %v1767
    %1769 = vmatprep.mubr.bf16.mxu0 0
    %1770 = vmatmul.mubr.bf16.gmra.mrb[0].mxu0 %v1512
    %v1771 = vpop.f32.mrb[0].mxu0
    %v1772 = vadd.f32 0.0, %v1771
    %v1773 = vpop.f32.mrb[0].mxu0
    %v1774 = vadd.f32 0.0, %v1773
    %v1775 = vpop.f32.mrb[0].mxu0
    %v1776 = vadd.f32 0.0, %v1775
    %v1777 = vpop.f32.mrb[0].mxu0
    %v1778 = vadd.f32 0.0, %v1777
    %1779 = vmatprep.mubr.bf16.mxu0 0
    %1780 = vmatmul.mubr.bf16.gmra.mrb[0].mxu0 %v1513
    %v1781 = vpop.f32.mrb[0].mxu0
    %v1782 = vadd.f32 0.0, %v1781
    %v1783 = vpop.f32.mrb[0].mxu0
    %v1784 = vadd.f32 0.0, %v1783
    %v1785 = vpop.f32.mrb[0].mxu0
    %v1786 = vadd.f32 0.0, %v1785
    %v1787 = vpop.f32.mrb[0].mxu0
    %v1788 = vadd.f32 0.0, %v1787
    %1789 = vmatprep.mubr.bf16.mxu0 0
    %1790 = vmatmul.mubr.bf16.gmra.mrb[0].mxu0 %v1514
    %v1791 = vpop.f32.mrb[0].mxu0
    %v1792 = vadd.f32 0.0, %v1791
    %v1793 = vpop.f32.mrb[0].mxu0
    %v1794 = vadd.f32 0.0, %v1793
    %v1795 = vpop.f32.mrb[0].mxu0
    %v1796 = vadd.f32 0.0, %v1795
    %v1797 = vpop.f32.mrb[0].mxu0
    %v1798 = vadd.f32 0.0, %v1797
    %1799 = vdwg.mxu0
    %1800 = vmatprep.subr.bf16.mxu0 %v1650
    %1801 = vmatpush1.bf16.msra.mxu0 %v1649
    %1802 = vmatprep.subr.bf16.mxu0 %v1655
    %1803 = vmatpush1.bf16.msra.mxu0 %v1654
    %1804 = vmatprep.subr.bf16.mxu0 %v1660
    %1805 = vmatpush1.bf16.msra.mxu0 %v1659
    %1806 = vmatprep.subr.bf16.mxu0 %v1665
    %1807 = vmatpush1.bf16.msra.mxu0 %v1664
    %1808 = vmatprep.subr.bf16.mxu0 %v1670
    %1809 = vmatpush1.bf16.msra.mxu0 %v1669
    %1810 = vmatprep.subr.bf16.mxu0 %v1675
    %1811 = vmatpush1.bf16.msra.mxu0 %v1674
    %1812 = vmatprep.subr.bf16.mxu0 %v1680
    %1813 = vmatpush1.bf16.msra.mxu0 %v1679
    %1814 = vmatprep.subr.bf16.mxu0 %v1685
    %1815 = vmatpush1.bf16.msra.mxu0 %v1684
    %1816 = vmatprep.subr.bf16.mxu0 0
    %1817 = vmatpush1.bf16.msra.mxu0 0
    %1818 = vmatprep.subr.bf16.mxu0 0
    %1819 = vmatpush1.bf16.msra.mxu0 0
    %1820 = vmatprep.subr.bf16.mxu0 0
    %1821 = vmatpush1.bf16.msra.mxu0 0
    %1822 = vmatprep.subr.bf16.mxu0 0
    %1823 = vmatpush1.bf16.msra.mxu0 0
    %1824 = vmatprep.subr.bf16.mxu0 0
    %1825 = vmatpush1.bf16.msra.mxu0 0
    %1826 = vmatprep.subr.bf16.mxu0 0
    %1827 = vmatpush1.bf16.msra.mxu0 0
    %1828 = vmatprep.subr.bf16.mxu0 0
    %1829 = vmatpush1.bf16.msra.mxu0 0
    %1830 = vmatprep.subr.bf16.mxu0 0
    %1831 = vmatpush1.bf16.msra.mxu0 0
    %1832 = vmatprep.mubr.bf16.mxu0 0
    %1833 = vmatmul.mubr.bf16.gmra.mrb[0].mxu0 %v1511
    %v1834 = vpop.f32.mrb[0].mxu0
    %v1835 = vadd.f32 0.0, %v1834
    %v1836 = vpop.f32.mrb[0].mxu0
    %v1837 = vadd.f32 0.0, %v1836
    %v1838 = vpop.f32.mrb[0].mxu0
    %v1839 = vadd.f32 0.0, %v1838
    %v1840 = vpop.f32.mrb[0].mxu0
    %v1841 = vadd.f32 0.0, %v1840
    %1842 = vmatprep.mubr.bf16.mxu0 0
    %1843 = vmatmul.mubr.bf16.gmra.mrb[0].mxu0 %v1512
    %v1844 = vpop.f32.mrb[0].mxu0
    %v1845 = vadd.f32 0.0, %v1844
    %v1846 = vpop.f32.mrb[0].mxu0
    %v1847 = vadd.f32 0.0, %v1846
    %v1848 = vpop.f32.mrb[0].mxu0
    %v1849 = vadd.f32 0.0, %v1848
    %v1850 = vpop.f32.mrb[0].mxu0
    %v1851 = vadd.f32 0.0, %v1850
    %1852 = vmatprep.mubr.bf16.mxu0 0
    %1853 = vmatmul.mubr.bf16.gmra.mrb[0].mxu0 %v1513
    %v1854 = vpop.f32.mrb[0].mxu0
    %v1855 = vadd.f32 0.0, %v1854
    %v1856 = vpop.f32.mrb[0].mxu0
    %v1857 = vadd.f32 0.0, %v1856
    %v1858 = vpop.f32.mrb[0].mxu0
    %v1859 = vadd.f32 0.0, %v1858
    %v1860 = vpop.f32.mrb[0].mxu0
    %v1861 = vadd.f32 0.0, %v1860
    %1862 = vmatprep.mubr.bf16.mxu0 0
    %1863 = vmatmul.mubr.bf16.gmra.mrb[0].mxu0 %v1514
    %v1864 = vpop.f32.mrb[0].mxu0
    %v1865 = vadd.f32 0.0, %v1864
    %v1866 = vpop.f32.mrb[0].mxu0
    %v1867 = vadd.f32 0.0, %v1866
    %v1868 = vpop.f32.mrb[0].mxu0
    %v1869 = vadd.f32 0.0, %v1868
    %v1870 = vpop.f32.mrb[0].mxu0
    %v1871 = vadd.f32 0.0, %v1870
    %1872 = vdwg.mxu0
    %1873 = vmatprep.subr.bf16.mxu0 0
    %1874 = vmatpush1.bf16.msra.mxu0 %v1651
    %1875 = vmatprep.subr.bf16.mxu0 0
    %1876 = vmatpush1.bf16.msra.mxu0 %v1656
    %1877 = vmatprep.subr.bf16.mxu0 0
    %1878 = vmatpush1.bf16.msra.mxu0 %v1661
    %1879 = vmatprep.subr.bf16.mxu0 0
    %1880 = vmatpush1.bf16.msra.mxu0 %v1666
    %1881 = vmatprep.subr.bf16.mxu0 0
    %1882 = vmatpush1.bf16.msra.mxu0 %v1671
    %1883 = vmatprep.subr.bf16.mxu0 0
    %1884 = vmatpush1.bf16.msra.mxu0 %v1676
    %1885 = vmatprep.subr.bf16.mxu0 0
    %1886 = vmatpush1.bf16.msra.mxu0 %v1681
    %1887 = vmatprep.subr.bf16.mxu0 0
    %1888 = vmatpush1.bf16.msra.mxu0 %v1686
    %1889 = vmatprep.subr.bf16.mxu0 0
    %1890 = vmatpush1.bf16.msra.mxu0 0
    %1891 = vmatprep.subr.bf16.mxu0 0
    %1892 = vmatpush1.bf16.msra.mxu0 0
    %1893 = vmatprep.subr.bf16.mxu0 0
    %1894 = vmatpush1.bf16.msra.mxu0 0
    %1895 = vmatprep.subr.bf16.mxu0 0
    %1896 = vmatpush1.bf16.msra.mxu0 0
    %1897 = vmatprep.subr.bf16.mxu0 0
    %1898 = vmatpush1.bf16.msra.mxu0 0
    %1899 = vmatprep.subr.bf16.mxu0 0
    %1900 = vmatpush1.bf16.msra.mxu0 0
    %1901 = vmatprep.subr.bf16.mxu0 0
    %1902 = vmatpush1.bf16.msra.mxu0 0
    %1903 = vmatprep.subr.bf16.mxu0 0
    %1904 = vmatpush1.bf16.msra.mxu0 0
    %1905 = vmatprep.mubr.bf16.mxu0 0
    %1906 = vmatmul.mubr.bf16.gmra.mrb[0].mxu0 %v1511
    %v1907 = vpop.f32.mrb[0].mxu0
    %v1908 = vadd.f32 0.0, %v1907
    %v1909 = vpop.f32.mrb[0].mxu0
    %v1910 = vpop.f32.mrb[0].mxu0
    %v1911 = vadd.f32 0.0, %v1910
    %v1912 = vpop.f32.mrb[0].mxu0
    %1913 = vmatprep.mubr.bf16.mxu0 0
    %1914 = vmatmul.mubr.bf16.gmra.mrb[0].mxu0 %v1512
    %v1915 = vpop.f32.mrb[0].mxu0
    %v1916 = vadd.f32 0.0, %v1915
    %v1917 = vpop.f32.mrb[0].mxu0
    %v1918 = vpop.f32.mrb[0].mxu0
    %v1919 = vadd.f32 0.0, %v1918
    %v1920 = vpop.f32.mrb[0].mxu0
    %1921 = vmatprep.mubr.bf16.mxu0 0
    %1922 = vmatmul.mubr.bf16.gmra.mrb[0].mxu0 %v1513
    %v1923 = vpop.f32.mrb[0].mxu0
    %v1924 = vadd.f32 0.0, %v1923
    %v1925 = vpop.f32.mrb[0].mxu0
    %v1926 = vpop.f32.mrb[0].mxu0
    %v1927 = vadd.f32 0.0, %v1926
    %v1928 = vpop.f32.mrb[0].mxu0
    %1929 = vmatprep.mubr.bf16.mxu0 0
    %1930 = vmatmul.mubr.bf16.gmra.mrb[0].mxu0 %v1514
    %v1931 = vpop.f32.mrb[0].mxu0
    %v1932 = vadd.f32 0.0, %v1931
    %v1933 = vpop.f32.mrb[0].mxu0
    %v1934 = vpop.f32.mrb[0].mxu0
    %v1935 = vadd.f32 0.0, %v1934
    %v1936 = vpop.f32.mrb[0].mxu0
    %1937 = vdwg.mxu0
    %v1938 = vadd.f32 %v1348, %v1762
    %v1939 = vadd.f32 %v1349, %v1764
    %v1940 = vadd.f32 %v1350, %v1835
    %v1941 = vadd.f32 %v1351, %v1837
    %v1942 = vadd.f32 %v1352, %v1908
    %v1943 = vadd.f32 %v1353, %v1766
    %v1944 = vadd.f32 %v1354, %v1768
    %v1945 = vadd.f32 %v1355, %v1839
    %v1946 = vadd.f32 %v1356, %v1841
    %v1947 = vadd.f32 %v1357, %v1911
    %v1948 = vadd.f32 %v1358, %v1772
    %v1949 = vadd.f32 %v1359, %v1774
    %v1950 = vadd.f32 %v1360, %v1845
    %v1951 = vadd.f32 %v1361, %v1847
    %v1952 = vadd.f32 %v1362, %v1916
    %v1953 = vadd.f32 %v1363, %v1776
    %v1954 = vadd.f32 %v1364, %v1778
    %v1955 = vadd.f32 %v1365, %v1849
    %v1956 = vadd.f32 %v1366, %v1851
    %v1957 = vadd.f32 %v1367, %v1919
    %v1958 = vadd.f32 %v1368, %v1782
    %v1959 = vadd.f32 %v1369, %v1784
    %v1960 = vadd.f32 %v1370, %v1855
    %v1961 = vadd.f32 %v1371, %v1857
    %v1962 = vadd.f32 %v1372, %v1924
    %v1963 = vadd.f32 %v1373, %v1786
    %v1964 = vadd.f32 %v1374, %v1788
    %v1965 = vadd.f32 %v1375, %v1859
    %v1966 = vadd.f32 %v1376, %v1861
    %v1967 = vadd.f32 %v1377, %v1927
    %v1968 = vadd.f32 %v1378, %v1792
    %v1969 = vadd.f32 %v1379, %v1794
    %v1970 = vadd.f32 %v1380, %v1865
    %v1971 = vadd.f32 %v1381, %v1867
    %v1972 = vadd.f32 %v1382, %v1932
    %v1973 = vadd.f32 %v1383, %v1796
    %v1974 = vadd.f32 %v1384, %v1798
    %v1975 = vadd.f32 %v1385, %v1869
    %v1976 = vadd.f32 %v1386, %v1871
    %v1977 = vadd.f32 %v1387, %v1935
    %1978 = vst [vmem:[#allocation2] sm:$0xff] %v1938
    %1979 = vst [vmem:[#allocation2 + $0x8] sm:$0xff] %v1939
    %1980 = vst [vmem:[#allocation2 + $0x10] sm:$0xff] %v1940
    %1981 = vst [vmem:[#allocation2 + $0x18] sm:$0xff] %v1941
    %1982 = vst [vmem:[#allocation2 + $0x20] sm:$0xff] %v1942
    %1983 = vst [vmem:[#allocation2 + $0x28] sm:$0xff] %v1943
    %1984 = vst [vmem:[#allocation2 + $0x30] sm:$0xff] %v1944
    %1985 = vst [vmem:[#allocation2 + $0x38] sm:$0xff] %v1945
    %1986 = vst [vmem:[#allocation2 + $0x40] sm:$0xff] %v1946
    %1987 = vst [vmem:[#allocation2 + $0x48] sm:$0xff] %v1947
    %1988 = vst [vmem:[#allocation2 + $0x50] sm:$0xff] %v1948
    %1989 = vst [vmem:[#allocation2 + $0x58] sm:$0xff] %v1949
    %1990 = vst [vmem:[#allocation2 + $0x60] sm:$0xff] %v1950
    %1991 = vst [vmem:[#allocation2 + $0x68] sm:$0xff] %v1951
    %1992 = vst [vmem:[#allocation2 + $0x70] sm:$0xff] %v1952
    %1993 = vst [vmem:[#allocation2 + $0x78] sm:$0xff] %v1953
    %1994 = vst [vmem:[#allocation2 + $0x80] sm:$0xff] %v1954
    %1995 = vst [vmem:[#allocation2 + $0x88] sm:$0xff] %v1955
    %1996 = vst [vmem:[#allocation2 + $0x90] sm:$0xff] %v1956
    %1997 = vst [vmem:[#allocation2 + $0x98] sm:$0xff] %v1957
    %1998 = vst [vmem:[#allocation2 + $0xa0] sm:$0xff] %v1958
    %1999 = vst [vmem:[#allocation2 + $0xa8] sm:$0xff] %v1959
    %2000 = vst [vmem:[#allocation2 + $0xb0] sm:$0xff] %v1960
    %2001 = vst [vmem:[#allocation2 + $0xb8] sm:$0xff] %v1961
    %2002 = vst [vmem:[#allocation2 + $0xc0] sm:$0xff] %v1962
    %2003 = vst [vmem:[#allocation2 + $0xc8] sm:$0xff] %v1963
    %2004 = vst [vmem:[#allocation2 + $0xd0] sm:$0xff] %v1964
    %2005 = vst [vmem:[#allocation2 + $0xd8] sm:$0xff] %v1965
    %2006 = vst [vmem:[#allocation2 + $0xe0] sm:$0xff] %v1966
    %2007 = vst [vmem:[#allocation2 + $0xe8] sm:$0xff] %v1967
    %2008 = vst [vmem:[#allocation2 + $0xf0] sm:$0xff] %v1968
    %2009 = vst [vmem:[#allocation2 + $0xf8] sm:$0xff] %v1969
    %2010 = vst [vmem:[#allocation2 + $0x100] sm:$0xff] %v1970
    %2011 = vst [vmem:[#allocation2 + $0x108] sm:$0xff] %v1971
    %2012 = vst [vmem:[#allocation2 + $0x110] sm:$0xff] %v1972
    %2013 = vst [vmem:[#allocation2 + $0x118] sm:$0xff] %v1973
    %2014 = vst [vmem:[#allocation2 + $0x120] sm:$0xff] %v1974
    %2015 = vst [vmem:[#allocation2 + $0x128] sm:$0xff] %v1975
    %2016 = vst [vmem:[#allocation2 + $0x130] sm:$0xff] %v1976
    %2017 = vst [vmem:[#allocation2 + $0x138] sm:$0xff] %v1977
    %v2018 = vld [vmem:[#allocation2] sm:$0xff]
    %v2019 = vld [vmem:[#allocation2 + $0x8] sm:$0xff]
    %v2020 = vld [vmem:[#allocation2 + $0x10] sm:$0xff]
    %v2021 = vld [vmem:[#allocation2 + $0x18] sm:$0xff]
    %v2022 = vld [vmem:[#allocation2 + $0x20] sm:$0xff]
    %v2023 = vld [vmem:[#allocation2 + $0x28] sm:$0xff]
    %v2024 = vld [vmem:[#allocation2 + $0x30] sm:$0xff]
    %v2025 = vld [vmem:[#allocation2 + $0x38] sm:$0xff]
    %v2026 = vld [vmem:[#allocation2 + $0x40] sm:$0xff]
    %v2027 = vld [vmem:[#allocation2 + $0x48] sm:$0xff]
    %v2028 = vld [vmem:[#allocation2 + $0x50] sm:$0xff]
    %v2029 = vld [vmem:[#allocation2 + $0x58] sm:$0xff]
    %v2030 = vld [vmem:[#allocation2 + $0x60] sm:$0xff]
    %v2031 = vld [vmem:[#allocation2 + $0x68] sm:$0xff]
    %v2032 = vld [vmem:[#allocation2 + $0x70] sm:$0xff]
    %v2033 = vld [vmem:[#allocation2 + $0x78] sm:$0xff]
    %v2034 = vld [vmem:[#allocation2 + $0x80] sm:$0xff]
    %v2035 = vld [vmem:[#allocation2 + $0x88] sm:$0xff]
    %v2036 = vld [vmem:[#allocation2 + $0x90] sm:$0xff]
    %v2037 = vld [vmem:[#allocation2 + $0x98] sm:$0xff]
    %v2038 = vld [vmem:[#allocation2 + $0xa0] sm:$0xff]
    %v2039 = vld [vmem:[#allocation2 + $0xa8] sm:$0xff]
    %v2040 = vld [vmem:[#allocation2 + $0xb0] sm:$0xff]
    %v2041 = vld [vmem:[#allocation2 + $0xb8] sm:$0xff]
    %v2042 = vld [vmem:[#allocation2 + $0xc0] sm:$0xff]
    %v2043 = vld [vmem:[#allocation2 + $0xc8] sm:$0xff]
    %v2044 = vld [vmem:[#allocation2 + $0xd0] sm:$0xff]
    %v2045 = vld [vmem:[#allocation2 + $0xd8] sm:$0xff]
    %v2046 = vld [vmem:[#allocation2 + $0xe0] sm:$0xff]
    %v2047 = vld [vmem:[#allocation2 + $0xe8] sm:$0xff]
    %v2048 = vld [vmem:[#allocation2 + $0xf0] sm:$0xff]
    %v2049 = vld [vmem:[#allocation2 + $0xf8] sm:$0xff]
    %v2050 = vld [vmem:[#allocation2 + $0x100] sm:$0xff]
    %v2051 = vld [vmem:[#allocation2 + $0x108] sm:$0xff]
    %v2052 = vld [vmem:[#allocation2 + $0x110] sm:$0xff]
    %v2053 = vld [vmem:[#allocation2 + $0x118] sm:$0xff]
    %v2054 = vld [vmem:[#allocation2 + $0x120] sm:$0xff]
    %v2055 = vld [vmem:[#allocation2 + $0x128] sm:$0xff]
    %v2056 = vld [vmem:[#allocation2 + $0x130] sm:$0xff]
    %v2057 = vld [vmem:[#allocation2 + $0x138] sm:$0xff]
    %v2058 = vld [vmem:[#allocation3] sm:$0xe]
    %v2059 = vld [vmem:[#allocation3 + $0x4] sm:$0x3]
    %v2060 = vld [vmem:[#allocation3 + $0x8] sm:$0xe]
    %v2061 = vld [vmem:[#allocation3 + $0xc] sm:$0x3]
    %v2062 = vld [vmem:[#allocation3 + $0x10] sm:$0xe]
    %v2063 = vld [vmem:[#allocation3 + $0x14] sm:$0x3]
    %v2064 = vld [vmem:[#allocation3 + $0x18] sm:$0xe]
    %v2065 = vld [vmem:[#allocation3 + $0x1c] sm:$0x3]
    %v2066 = vld [vmem:[#allocation3 + $0x20] sm:$0xe]
    %v2067 = vld [vmem:[#allocation3 + $0x24] sm:$0x3]
    %v2068 = vld [vmem:[#allocation3 + $0x28] sm:$0xe]
    %v2069 = vld [vmem:[#allocation3 + $0x2c] sm:$0x3]
    %v2070 = vld [vmem:[#allocation3 + $0x30] sm:$0xe]
    %v2071 = vld [vmem:[#allocation3 + $0x34] sm:$0x3]
    %v2072 = vld [vmem:[#allocation3 + $0x38] sm:$0xe]
    %v2073 = vld [vmem:[#allocation3 + $0x3c] sm:$0x3]
    %vm2074 = vsmask.f32 2304
    %vm2075 = vsmask.f32 6416
    %vm2076 = vmor %vm2074, %vm2075
    %v2078 = vshrl.u32 %v2058, 16
    %v2080 = vrot.slane %v2078, 5
    %v2081 = vshll.u32 %v2058, 16
    %v2083 = vrot.slane %v2081, 6
    %v2084 = vor.u32 %v2080, %v2083
    %v2085 = vrot.slane %v2084, 4
    %v2087 = vshrl.u32 %v2059, 16
    %v2089 = vrot.slane %v2087, 5
    %v2090 = vshll.u32 %v2059, 16
    %v2092 = vrot.slane %v2090, 6
    %v2093 = vor.u32 %v2089, %v2092
    %v2094 = vsel %vm2076, %v2085, %v2093
    %v2096 = vshrl.u32 %v2060, 16
    %v2098 = vrot.slane %v2096, 5
    %v2099 = vshll.u32 %v2060, 16
    %v2101 = vrot.slane %v2099, 6
    %v2102 = vor.u32 %v2098, %v2101
    %v2103 = vrot.slane %v2102, 4
    %v2105 = vshrl.u32 %v2061, 16
    %v2107 = vrot.slane %v2105, 5
    %v2108 = vshll.u32 %v2061, 16
    %v2110 = vrot.slane %v2108, 6
    %v2111 = vor.u32 %v2107, %v2110
    %v2112 = vsel %vm2076, %v2103, %v2111
    %v2114 = vshrl.u32 %v2062, 16
    %v2116 = vrot.slane %v2114, 5
    %v2117 = vshll.u32 %v2062, 16
    %v2119 = vrot.slane %v2117, 6
    %v2120 = vor.u32 %v2116, %v2119
    %v2121 = vrot.slane %v2120, 4
    %v2123 = vshrl.u32 %v2063, 16
    %v2125 = vrot.slane %v2123, 5
    %v2126 = vshll.u32 %v2063, 16
    %v2128 = vrot.slane %v2126, 6
    %v2129 = vor.u32 %v2125, %v2128
    %v2130 = vsel %vm2076, %v2121, %v2129
    %v2132 = vshrl.u32 %v2064, 16
    %v2134 = vrot.slane %v2132, 5
    %v2135 = vshll.u32 %v2064, 16
    %v2137 = vrot.slane %v2135, 6
    %v2138 = vor.u32 %v2134, %v2137
    %v2139 = vrot.slane %v2138, 4
    %v2141 = vshrl.u32 %v2065, 16
    %v2143 = vrot.slane %v2141, 5
    %v2144 = vshll.u32 %v2065, 16
    %v2146 = vrot.slane %v2144, 6
    %v2147 = vor.u32 %v2143, %v2146
    %v2148 = vsel %vm2076, %v2139, %v2147
    %v2150 = vshrl.u32 %v2066, 16
    %v2152 = vrot.slane %v2150, 5
    %v2153 = vshll.u32 %v2066, 16
    %v2155 = vrot.slane %v2153, 6
    %v2156 = vor.u32 %v2152, %v2155
    %v2157 = vrot.slane %v2156, 4
    %v2159 = vshrl.u32 %v2067, 16
    %v2161 = vrot.slane %v2159, 5
    %v2162 = vshll.u32 %v2067, 16
    %v2164 = vrot.slane %v2162, 6
    %v2165 = vor.u32 %v2161, %v2164
    %v2166 = vsel %vm2076, %v2157, %v2165
    %v2168 = vshrl.u32 %v2068, 16
    %v2170 = vrot.slane %v2168, 5
    %v2171 = vshll.u32 %v2068, 16
    %v2173 = vrot.slane %v2171, 6
    %v2174 = vor.u32 %v2170, %v2173
    %v2175 = vrot.slane %v2174, 4
    %v2177 = vshrl.u32 %v2069, 16
    %v2179 = vrot.slane %v2177, 5
    %v2180 = vshll.u32 %v2069, 16
    %v2182 = vrot.slane %v2180, 6
    %v2183 = vor.u32 %v2179, %v2182
    %v2184 = vsel %vm2076, %v2175, %v2183
    %v2186 = vshrl.u32 %v2070, 16
    %v2188 = vrot.slane %v2186, 5
    %v2189 = vshll.u32 %v2070, 16
    %v2191 = vrot.slane %v2189, 6
    %v2192 = vor.u32 %v2188, %v2191
    %v2193 = vrot.slane %v2192, 4
    %v2195 = vshrl.u32 %v2071, 16
    %v2197 = vrot.slane %v2195, 5
    %v2198 = vshll.u32 %v2071, 16
    %v2200 = vrot.slane %v2198, 6
    %v2201 = vor.u32 %v2197, %v2200
    %v2202 = vsel %vm2076, %v2193, %v2201
    %v2204 = vshrl.u32 %v2072, 16
    %v2206 = vrot.slane %v2204, 5
    %v2207 = vshll.u32 %v2072, 16
    %v2209 = vrot.slane %v2207, 6
    %v2210 = vor.u32 %v2206, %v2209
    %v2211 = vrot.slane %v2210, 4
    %v2213 = vshrl.u32 %v2073, 16
    %v2215 = vrot.slane %v2213, 5
    %v2216 = vshll.u32 %v2073, 16
    %v2218 = vrot.slane %v2216, 6
    %v2219 = vor.u32 %v2215, %v2218
    %v2220 = vsel %vm2076, %v2211, %v2219
    %v2221 = vld [vmem:[#allocation6 + $0x3c0] sm:$0xff]
    %v2222 = vld [vmem:[#allocation6 + $0x3c8] sm:$0xff]
    %v2223 = vld [vmem:[#allocation6 + $0x3d0] sm:$0xf]
    %v2224 = vld [vmem:[#allocation6 + $0x3d4] sm:$0xff]
    %v2225 = vld [vmem:[#allocation6 + $0x3dc] sm:$0xff]
    %v2226 = vld [vmem:[#allocation6 + $0x3e4] sm:$0xf]
    %v2227 = vld [vmem:[#allocation6 + $0x3e8] sm:$0xff]
    %v2228 = vld [vmem:[#allocation6 + $0x3f0] sm:$0xff]
    %v2229 = vld [vmem:[#allocation6 + $0x3f8] sm:$0xf]
    %v2230 = vld [vmem:[#allocation6 + $0x3fc] sm:$0xff]
    %v2231 = vld [vmem:[#allocation6 + $0x404] sm:$0xff]
    %v2232 = vld [vmem:[#allocation6 + $0x40c] sm:$0xf]
    %v2233 = vld [vmem:[#allocation6 + $0x410] sm:$0xff]
    %v2234 = vld [vmem:[#allocation6 + $0x418] sm:$0xff]
    %v2235 = vld [vmem:[#allocation6 + $0x420] sm:$0xf]
    %v2236 = vld [vmem:[#allocation6 + $0x424] sm:$0xff]
    %v2237 = vld [vmem:[#allocation6 + $0x42c] sm:$0xff]
    %v2238 = vld [vmem:[#allocation6 + $0x434] sm:$0xf]
    %v2239 = vld [vmem:[#allocation6 + $0x438] sm:$0xff]
    %v2240 = vld [vmem:[#allocation6 + $0x440] sm:$0xff]
    %v2241 = vld [vmem:[#allocation6 + $0x448] sm:$0xf]
    %v2242 = vld [vmem:[#allocation6 + $0x44c] sm:$0xff]
    %v2243 = vld [vmem:[#allocation6 + $0x454] sm:$0xff]
    %v2244 = vld [vmem:[#allocation6 + $0x45c] sm:$0xf]
    %v2245 = vld [vmem:[#allocation6 + $0x460] sm:$0xff]
    %v2246 = vld [vmem:[#allocation6 + $0x468] sm:$0xff]
    %v2247 = vld [vmem:[#allocation6 + $0x470] sm:$0xf]
    %v2248 = vld [vmem:[#allocation6 + $0x474] sm:$0xff]
    %v2249 = vld [vmem:[#allocation6 + $0x47c] sm:$0xff]
    %v2250 = vld [vmem:[#allocation6 + $0x484] sm:$0xf]
    %v2251 = vld [vmem:[#allocation6 + $0x488] sm:$0xff]
    %v2252 = vld [vmem:[#allocation6 + $0x490] sm:$0xff]
    %v2253 = vld [vmem:[#allocation6 + $0x498] sm:$0xf]
    %v2254 = vld [vmem:[#allocation6 + $0x49c] sm:$0xff]
    %v2255 = vld [vmem:[#allocation6 + $0x4a4] sm:$0xff]
    %v2256 = vld [vmem:[#allocation6 + $0x4ac] sm:$0xf]
    %v2257 = vld [vmem:[#allocation6 + $0x4b0] sm:$0xff]
    %v2258 = vld [vmem:[#allocation6 + $0x4b8] sm:$0xff]
    %v2259 = vld [vmem:[#allocation6 + $0x4c0] sm:$0xf]
    %v2260 = vld [vmem:[#allocation6 + $0x4c4] sm:$0xff]
    %v2261 = vld [vmem:[#allocation6 + $0x4cc] sm:$0xff]
    %v2262 = vld [vmem:[#allocation6 + $0x4d4] sm:$0xf]
    %v2263 = vld [vmem:[#allocation6 + $0x4d8] sm:$0xff]
    %v2264 = vld [vmem:[#allocation6 + $0x4e0] sm:$0xff]
    %v2265 = vld [vmem:[#allocation6 + $0x4e8] sm:$0xf]
    %v2266 = vld [vmem:[#allocation6 + $0x4ec] sm:$0xff]
    %v2267 = vld [vmem:[#allocation6 + $0x4f4] sm:$0xff]
    %v2268 = vld [vmem:[#allocation6 + $0x4fc] sm:$0xf]
    %v2269 = vunpack.c.l.b16 %v2094
    %v2270 = vunpack.c.l.b16 %v2112
    %v2271 = vunpack.c.l.b16 %v2130
    %v2272 = vunpack.c.l.b16 %v2148
    %v2273 = vunpack.c.l.b16 %v2166
    %v2274 = vunpack.c.l.b16 %v2184
    %v2275 = vunpack.c.l.b16 %v2202
    %v2276 = vunpack.c.l.b16 %v2220
    %v2277 = vpack.c.b16 %v2270, %v2269
    %v2278 = vpack.c.b16 %v2272, %v2271
    %v2279 = vpack.c.b16 %v2274, %v2273
    %v2280 = vpack.c.b16 %v2276, %v2275
    %v2333 = vunpack.c.l.b16 %v2221
    %v2334 = vunpack.c.h.b16 %v2221
    %v2335 = vunpack.c.l.b16 %v2222
    %v2336 = vunpack.c.h.b16 %v2222
    %v2337 = vunpack.c.l.b16 %v2223
    %v2338 = vunpack.c.l.b16 %v2224
    %v2339 = vunpack.c.h.b16 %v2224
    %v2340 = vunpack.c.l.b16 %v2225
    %v2341 = vunpack.c.h.b16 %v2225
    %v2342 = vunpack.c.l.b16 %v2226
    %v2343 = vunpack.c.l.b16 %v2227
    %v2344 = vunpack.c.h.b16 %v2227
    %v2345 = vunpack.c.l.b16 %v2228
    %v2346 = vunpack.c.h.b16 %v2228
    %v2347 = vunpack.c.l.b16 %v2229
    %v2348 = vunpack.c.l.b16 %v2230
    %v2349 = vunpack.c.h.b16 %v2230
    %v2350 = vunpack.c.l.b16 %v2231
    %v2351 = vunpack.c.h.b16 %v2231
    %v2352 = vunpack.c.l.b16 %v2232
    %v2353 = vunpack.c.l.b16 %v2233
    %v2354 = vunpack.c.h.b16 %v2233
    %v2355 = vunpack.c.l.b16 %v2234
    %v2356 = vunpack.c.h.b16 %v2234
    %v2357 = vunpack.c.l.b16 %v2235
    %v2358 = vunpack.c.l.b16 %v2236
    %v2359 = vunpack.c.h.b16 %v2236
    %v2360 = vunpack.c.l.b16 %v2237
    %v2361 = vunpack.c.h.b16 %v2237
    %v2362 = vunpack.c.l.b16 %v2238
    %v2363 = vunpack.c.l.b16 %v2239
    %v2364 = vunpack.c.h.b16 %v2239
    %v2365 = vunpack.c.l.b16 %v2240
    %v2366 = vunpack.c.h.b16 %v2240
    %v2367 = vunpack.c.l.b16 %v2241
    %v2368 = vunpack.c.l.b16 %v2242
    %v2369 = vunpack.c.h.b16 %v2242
    %v2370 = vunpack.c.l.b16 %v2243
    %v2371 = vunpack.c.h.b16 %v2243
    %v2372 = vunpack.c.l.b16 %v2244
    %v2373 = vunpack.c.l.b16 %v2245
    %v2374 = vunpack.c.h.b16 %v2245
    %v2375 = vunpack.c.l.b16 %v2246
    %v2376 = vunpack.c.h.b16 %v2246
    %v2377 = vunpack.c.l.b16 %v2247
    %v2378 = vunpack.c.l.b16 %v2248
    %v2379 = vunpack.c.h.b16 %v2248
    %v2380 = vunpack.c.l.b16 %v2249
    %v2381 = vunpack.c.h.b16 %v2249
    %v2382 = vunpack.c.l.b16 %v2250
    %v2383 = vunpack.c.l.b16 %v2251
    %v2384 = vunpack.c.h.b16 %v2251
    %v2385 = vunpack.c.l.b16 %v2252
    %v2386 = vunpack.c.h.b16 %v2252
    %v2387 = vunpack.c.l.b16 %v2253
    %v2388 = vunpack.c.l.b16 %v2254
    %v2389 = vunpack.c.h.b16 %v2254
    %v2390 = vunpack.c.l.b16 %v2255
    %v2391 = vunpack.c.h.b16 %v2255
    %v2392 = vunpack.c.l.b16 %v2256
    %v2393 = vunpack.c.l.b16 %v2257
    %v2394 = vunpack.c.h.b16 %v2257
    %v2395 = vunpack.c.l.b16 %v2258
    %v2396 = vunpack.c.h.b16 %v2258
    %v2397 = vunpack.c.l.b16 %v2259
    %v2398 = vunpack.c.l.b16 %v2260
    %v2399 = vunpack.c.h.b16 %v2260
    %v2400 = vunpack.c.l.b16 %v2261
    %v2401 = vunpack.c.h.b16 %v2261
    %v2402 = vunpack.c.l.b16 %v2262
    %v2403 = vunpack.c.l.b16 %v2263
    %v2404 = vunpack.c.h.b16 %v2263
    %v2405 = vunpack.c.l.b16 %v2264
    %v2406 = vunpack.c.h.b16 %v2264
    %v2407 = vunpack.c.l.b16 %v2265
    %v2408 = vunpack.c.l.b16 %v2266
    %v2409 = vunpack.c.h.b16 %v2266
    %v2410 = vunpack.c.l.b16 %v2267
    %v2411 = vunpack.c.h.b16 %v2267
    %v2412 = vunpack.c.l.b16 %v2268
    %v2413 = vpack.c.b16 %v2338, %v2333
    %v2414 = vpack.c.b16 %v2339, %v2334
    %v2415 = vpack.c.b16 %v2340, %v2335
    %v2416 = vpack.c.b16 %v2341, %v2336
    %v2417 = vpack.c.b16 %v2342, %v2337
    %v2418 = vpack.c.b16 %v2348, %v2343
    %v2419 = vpack.c.b16 %v2349, %v2344
    %v2420 = vpack.c.b16 %v2350, %v2345
    %v2421 = vpack.c.b16 %v2351, %v2346
    %v2422 = vpack.c.b16 %v2352, %v2347
    %v2423 = vpack.c.b16 %v2358, %v2353
    %v2424 = vpack.c.b16 %v2359, %v2354
    %v2425 = vpack.c.b16 %v2360, %v2355
    %v2426 = vpack.c.b16 %v2361, %v2356
    %v2427 = vpack.c.b16 %v2362, %v2357
    %v2428 = vpack.c.b16 %v2368, %v2363
    %v2429 = vpack.c.b16 %v2369, %v2364
    %v2430 = vpack.c.b16 %v2370, %v2365
    %v2431 = vpack.c.b16 %v2371, %v2366
    %v2432 = vpack.c.b16 %v2372, %v2367
    %v2433 = vpack.c.b16 %v2378, %v2373
    %v2434 = vpack.c.b16 %v2379, %v2374
    %v2435 = vpack.c.b16 %v2380, %v2375
    %v2436 = vpack.c.b16 %v2381, %v2376
    %v2437 = vpack.c.b16 %v2382, %v2377
    %v2438 = vpack.c.b16 %v2388, %v2383
    %v2439 = vpack.c.b16 %v2389, %v2384
    %v2440 = vpack.c.b16 %v2390, %v2385
    %v2441 = vpack.c.b16 %v2391, %v2386
    %v2442 = vpack.c.b16 %v2392, %v2387
    %v2443 = vpack.c.b16 %v2398, %v2393
    %v2444 = vpack.c.b16 %v2399, %v2394
    %v2445 = vpack.c.b16 %v2400, %v2395
    %v2446 = vpack.c.b16 %v2401, %v2396
    %v2447 = vpack.c.b16 %v2402, %v2397
    %v2448 = vpack.c.b16 %v2408, %v2403
    %v2449 = vpack.c.b16 %v2409, %v2404
    %v2450 = vpack.c.b16 %v2410, %v2405
    %v2451 = vpack.c.b16 %v2411, %v2406
    %v2452 = vpack.c.b16 %v2412, %v2407
    %2493 = vmatprep.subr.bf16.mxu0 %v2414
    %2494 = vmatpush1.bf16.msra.mxu0 %v2413
    %2495 = vmatprep.subr.bf16.mxu0 %v2419
    %2496 = vmatpush1.bf16.msra.mxu0 %v2418
    %2497 = vmatprep.subr.bf16.mxu0 %v2424
    %2498 = vmatpush1.bf16.msra.mxu0 %v2423
    %2499 = vmatprep.subr.bf16.mxu0 %v2429
    %2500 = vmatpush1.bf16.msra.mxu0 %v2428
    %2501 = vmatprep.subr.bf16.mxu0 %v2434
    %2502 = vmatpush1.bf16.msra.mxu0 %v2433
    %2503 = vmatprep.subr.bf16.mxu0 %v2439
    %2504 = vmatpush1.bf16.msra.mxu0 %v2438
    %2505 = vmatprep.subr.bf16.mxu0 %v2444
    %2506 = vmatpush1.bf16.msra.mxu0 %v2443
    %2507 = vmatprep.subr.bf16.mxu0 %v2449
    %2508 = vmatpush1.bf16.msra.mxu0 %v2448
    %2509 = vmatprep.subr.bf16.mxu0 0
    %2510 = vmatpush1.bf16.msra.mxu0 0
    %2511 = vmatprep.subr.bf16.mxu0 0
    %2512 = vmatpush1.bf16.msra.mxu0 0
    %2513 = vmatprep.subr.bf16.mxu0 0
    %2514 = vmatpush1.bf16.msra.mxu0 0
    %2515 = vmatprep.subr.bf16.mxu0 0
    %2516 = vmatpush1.bf16.msra.mxu0 0
    %2517 = vmatprep.subr.bf16.mxu0 0
    %2518 = vmatpush1.bf16.msra.mxu0 0
    %2519 = vmatprep.subr.bf16.mxu0 0
    %2520 = vmatpush1.bf16.msra.mxu0 0
    %2521 = vmatprep.subr.bf16.mxu0 0
    %2522 = vmatpush1.bf16.msra.mxu0 0
    %2523 = vmatprep.subr.bf16.mxu0 0
    %2524 = vmatpush1.bf16.msra.mxu0 0
    %2525 = vmatprep.mubr.bf16.mxu0 0
    %2526 = vmatmul.mubr.bf16.gmra.mrb[0].mxu0 %v2277
    %v2527 = vpop.f32.mrb[0].mxu0
    %v2528 = vadd.f32 0.0, %v2527
    %v2529 = vpop.f32.mrb[0].mxu0
    %v2530 = vadd.f32 0.0, %v2529
    %v2531 = vpop.f32.mrb[0].mxu0
    %v2532 = vadd.f32 0.0, %v2531
    %v2533 = vpop.f32.mrb[0].mxu0
    %v2534 = vadd.f32 0.0, %v2533
    %2535 = vmatprep.mubr.bf16.mxu0 0
    %2536 = vmatmul.mubr.bf16.gmra.mrb[0].mxu0 %v2278
    %v2537 = vpop.f32.mrb[0].mxu0
    %v2538 = vadd.f32 0.0, %v2537
    %v2539 = vpop.f32.mrb[0].mxu0
    %v2540 = vadd.f32 0.0, %v2539
    %v2541 = vpop.f32.mrb[0].mxu0
    %v2542 = vadd.f32 0.0, %v2541
    %v2543 = vpop.f32.mrb[0].mxu0
    %v2544 = vadd.f32 0.0, %v2543
    %2545 = vmatprep.mubr.bf16.mxu0 0
    %2546 = vmatmul.mubr.bf16.gmra.mrb[0].mxu0 %v2279
    %v2547 = vpop.f32.mrb[0].mxu0
    %v2548 = vadd.f32 0.0, %v2547
    %v2549 = vpop.f32.mrb[0].mxu0
    %v2550 = vadd.f32 0.0, %v2549
    %v2551 = vpop.f32.mrb[0].mxu0
    %v2552 = vadd.f32 0.0, %v2551
    %v2553 = vpop.f32.mrb[0].mxu0
    %v2554 = vadd.f32 0.0, %v2553
    %2555 = vmatprep.mubr.bf16.mxu0 0
    %2556 = vmatmul.mubr.bf16.gmra.mrb[0].mxu0 %v2280
    %v2557 = vpop.f32.mrb[0].mxu0
    %v2558 = vadd.f32 0.0, %v2557
    %v2559 = vpop.f32.mrb[0].mxu0
    %v2560 = vadd.f32 0.0, %v2559
    %v2561 = vpop.f32.mrb[0].mxu0
    %v2562 = vadd.f32 0.0, %v2561
    %v2563 = vpop.f32.mrb[0].mxu0
    %v2564 = vadd.f32 0.0, %v2563
    %2565 = vdwg.mxu0
    %2566 = vmatprep.subr.bf16.mxu0 %v2416
    %2567 = vmatpush1.bf16.msra.mxu0 %v2415
    %2568 = vmatprep.subr.bf16.mxu0 %v2421
    %2569 = vmatpush1.bf16.msra.mxu0 %v2420
    %2570 = vmatprep.subr.bf16.mxu0 %v2426
    %2571 = vmatpush1.bf16.msra.mxu0 %v2425
    %2572 = vmatprep.subr.bf16.mxu0 %v2431
    %2573 = vmatpush1.bf16.msra.mxu0 %v2430
    %2574 = vmatprep.subr.bf16.mxu0 %v2436
    %2575 = vmatpush1.bf16.msra.mxu0 %v2435
    %2576 = vmatprep.subr.bf16.mxu0 %v2441
    %2577 = vmatpush1.bf16.msra.mxu0 %v2440
    %2578 = vmatprep.subr.bf16.mxu0 %v2446
    %2579 = vmatpush1.bf16.msra.mxu0 %v2445
    %2580 = vmatprep.subr.bf16.mxu0 %v2451
    %2581 = vmatpush1.bf16.msra.mxu0 %v2450
    %2582 = vmatprep.subr.bf16.mxu0 0
    %2583 = vmatpush1.bf16.msra.mxu0 0
    %2584 = vmatprep.subr.bf16.mxu0 0
    %2585 = vmatpush1.bf16.msra.mxu0 0
    %2586 = vmatprep.subr.bf16.mxu0 0
    %2587 = vmatpush1.bf16.msra.mxu0 0
    %2588 = vmatprep.subr.bf16.mxu0 0
    %2589 = vmatpush1.bf16.msra.mxu0 0
    %2590 = vmatprep.subr.bf16.mxu0 0
    %2591 = vmatpush1.bf16.msra.mxu0 0
    %2592 = vmatprep.subr.bf16.mxu0 0
    %2593 = vmatpush1.bf16.msra.mxu0 0
    %2594 = vmatprep.subr.bf16.mxu0 0
    %2595 = vmatpush1.bf16.msra.mxu0 0
    %2596 = vmatprep.subr.bf16.mxu0 0
    %2597 = vmatpush1.bf16.msra.mxu0 0
    %2598 = vmatprep.mubr.bf16.mxu0 0
    %2599 = vmatmul.mubr.bf16.gmra.mrb[0].mxu0 %v2277
    %v2600 = vpop.f32.mrb[0].mxu0
    %v2601 = vadd.f32 0.0, %v2600
    %v2602 = vpop.f32.mrb[0].mxu0
    %v2603 = vadd.f32 0.0, %v2602
    %v2604 = vpop.f32.mrb[0].mxu0
    %v2605 = vadd.f32 0.0, %v2604
    %v2606 = vpop.f32.mrb[0].mxu0
    %v2607 = vadd.f32 0.0, %v2606
    %2608 = vmatprep.mubr.bf16.mxu0 0
    %2609 = vmatmul.mubr.bf16.gmra.mrb[0].mxu0 %v2278
    %v2610 = vpop.f32.mrb[0].mxu0
    %v2611 = vadd.f32 0.0, %v2610
    %v2612 = vpop.f32.mrb[0].mxu0
    %v2613 = vadd.f32 0.0, %v2612
    %v2614 = vpop.f32.mrb[0].mxu0
    %v2615 = vadd.f32 0.0, %v2614
    %v2616 = vpop.f32.mrb[0].mxu0
    %v2617 = vadd.f32 0.0, %v2616
    %2618 = vmatprep.mubr.bf16.mxu0 0
    %2619 = vmatmul.mubr.bf16.gmra.mrb[0].mxu0 %v2279
    %v2620 = vpop.f32.mrb[0].mxu0
    %v2621 = vadd.f32 0.0, %v2620
    %v2622 = vpop.f32.mrb[0].mxu0
    %v2623 = vadd.f32 0.0, %v2622
    %v2624 = vpop.f32.mrb[0].mxu0
    %v2625 = vadd.f32 0.0, %v2624
    %v2626 = vpop.f32.mrb[0].mxu0
    %v2627 = vadd.f32 0.0, %v2626
    %2628 = vmatprep.mubr.bf16.mxu0 0
    %2629 = vmatmul.mubr.bf16.gmra.mrb[0].mxu0 %v2280
    %v2630 = vpop.f32.mrb[0].mxu0
    %v2631 = vadd.f32 0.0, %v2630
    %v2632 = vpop.f32.mrb[0].mxu0
    %v2633 = vadd.f32 0.0, %v2632
    %v2634 = vpop.f32.mrb[0].mxu0
    %v2635 = vadd.f32 0.0, %v2634
    %v2636 = vpop.f32.mrb[0].mxu0
    %v2637 = vadd.f32 0.0, %v2636
    %2638 = vdwg.mxu0
    %2639 = vmatprep.subr.bf16.mxu0 0
    %2640 = vmatpush1.bf16.msra.mxu0 %v2417
    %2641 = vmatprep.subr.bf16.mxu0 0
    %2642 = vmatpush1.bf16.msra.mxu0 %v2422
    %2643 = vmatprep.subr.bf16.mxu0 0
    %2644 = vmatpush1.bf16.msra.mxu0 %v2427
    %2645 = vmatprep.subr.bf16.mxu0 0
    %2646 = vmatpush1.bf16.msra.mxu0 %v2432
    %2647 = vmatprep.subr.bf16.mxu0 0
    %2648 = vmatpush1.bf16.msra.mxu0 %v2437
    %2649 = vmatprep.subr.bf16.mxu0 0
    %2650 = vmatpush1.bf16.msra.mxu0 %v2442
    %2651 = vmatprep.subr.bf16.mxu0 0
    %2652 = vmatpush1.bf16.msra.mxu0 %v2447
    %2653 = vmatprep.subr.bf16.mxu0 0
    %2654 = vmatpush1.bf16.msra.mxu0 %v2452
    %2655 = vmatprep.subr.bf16.mxu0 0
    %2656 = vmatpush1.bf16.msra.mxu0 0
    %2657 = vmatprep.subr.bf16.mxu0 0
    %2658 = vmatpush1.bf16.msra.mxu0 0
    %2659 = vmatprep.subr.bf16.mxu0 0
    %2660 = vmatpush1.bf16.msra.mxu0 0
    %2661 = vmatprep.subr.bf16.mxu0 0
    %2662 = vmatpush1.bf16.msra.mxu0 0
    %2663 = vmatprep.subr.bf16.mxu0 0
    %2664 = vmatpush1.bf16.msra.mxu0 0
    %2665 = vmatprep.subr.bf16.mxu0 0
    %2666 = vmatpush1.bf16.msra.mxu0 0
    %2667 = vmatprep.subr.bf16.mxu0 0
    %2668 = vmatpush1.bf16.msra.mxu0 0
    %2669 = vmatprep.subr.bf16.mxu0 0
    %2670 = vmatpush1.bf16.msra.mxu0 0
    %2671 = vmatprep.mubr.bf16.mxu0 0
    %2672 = vmatmul.mubr.bf16.gmra.mrb[0].mxu0 %v2277
    %v2673 = vpop.f32.mrb[0].mxu0
    %v2674 = vadd.f32 0.0, %v2673
    %v2675 = vpop.f32.mrb[0].mxu0
    %v2676 = vpop.f32.mrb[0].mxu0
    %v2677 = vadd.f32 0.0, %v2676
    %v2678 = vpop.f32.mrb[0].mxu0
    %2679 = vmatprep.mubr.bf16.mxu0 0
    %2680 = vmatmul.mubr.bf16.gmra.mrb[0].mxu0 %v2278
    %v2681 = vpop.f32.mrb[0].mxu0
    %v2682 = vadd.f32 0.0, %v2681
    %v2683 = vpop.f32.mrb[0].mxu0
    %v2684 = vpop.f32.mrb[0].mxu0
    %v2685 = vadd.f32 0.0, %v2684
    %v2686 = vpop.f32.mrb[0].mxu0
    %2687 = vmatprep.mubr.bf16.mxu0 0
    %2688 = vmatmul.mubr.bf16.gmra.mrb[0].mxu0 %v2279
    %v2689 = vpop.f32.mrb[0].mxu0
    %v2690 = vadd.f32 0.0, %v2689
    %v2691 = vpop.f32.mrb[0].mxu0
    %v2692 = vpop.f32.mrb[0].mxu0
    %v2693 = vadd.f32 0.0, %v2692
    %v2694 = vpop.f32.mrb[0].mxu0
    %2695 = vmatprep.mubr.bf16.mxu0 0
    %2696 = vmatmul.mubr.bf16.gmra.mrb[0].mxu0 %v2280
    %v2697 = vpop.f32.mrb[0].mxu0
    %v2698 = vadd.f32 0.0, %v2697
    %v2699 = vpop.f32.mrb[0].mxu0
    %v2700 = vpop.f32.mrb[0].mxu0
    %v2701 = vadd.f32 0.0, %v2700
    %v2702 = vpop.f32.mrb[0].mxu0
    %2703 = vdwg.mxu0
    %v2704 = vadd.f32 %v2018, %v2528
    %v2705 = vadd.f32 %v2019, %v2530
    %v2706 = vadd.f32 %v2020, %v2601
    %v2707 = vadd.f32 %v2021, %v2603
    %v2708 = vadd.f32 %v2022, %v2674
    %v2709 = vadd.f32 %v2023, %v2532
    %v2710 = vadd.f32 %v2024, %v2534
    %v2711 = vadd.f32 %v2025, %v2605
    %v2712 = vadd.f32 %v2026, %v2607
    %v2713 = vadd.f32 %v2027, %v2677
    %v2714 = vadd.f32 %v2028, %v2538
    %v2715 = vadd.f32 %v2029, %v2540
    %v2716 = vadd.f32 %v2030, %v2611
    %v2717 = vadd.f32 %v2031, %v2613
    %v2718 = vadd.f32 %v2032, %v2682
    %v2719 = vadd.f32 %v2033, %v2542
    %v2720 = vadd.f32 %v2034, %v2544
    %v2721 = vadd.f32 %v2035, %v2615
    %v2722 = vadd.f32 %v2036, %v2617
    %v2723 = vadd.f32 %v2037, %v2685
    %v2724 = vadd.f32 %v2038, %v2548
    %v2725 = vadd.f32 %v2039, %v2550
    %v2726 = vadd.f32 %v2040, %v2621
    %v2727 = vadd.f32 %v2041, %v2623
    %v2728 = vadd.f32 %v2042, %v2690
    %v2729 = vadd.f32 %v2043, %v2552
    %v2730 = vadd.f32 %v2044, %v2554
    %v2731 = vadd.f32 %v2045, %v2625
    %v2732 = vadd.f32 %v2046, %v2627
    %v2733 = vadd.f32 %v2047, %v2693
    %v2734 = vadd.f32 %v2048, %v2558
    %v2735 = vadd.f32 %v2049, %v2560
    %v2736 = vadd.f32 %v2050, %v2631
    %v2737 = vadd.f32 %v2051, %v2633
    %v2738 = vadd.f32 %v2052, %v2698
    %v2739 = vadd.f32 %v2053, %v2562
    %v2740 = vadd.f32 %v2054, %v2564
    %v2741 = vadd.f32 %v2055, %v2635
    %v2742 = vadd.f32 %v2056, %v2637
    %v2743 = vadd.f32 %v2057, %v2701
    %2744 = vst [vmem:[#allocation2] sm:$0xff] %v2704
    %2745 = vst [vmem:[#allocation2 + $0x8] sm:$0xff] %v2705
    %2746 = vst [vmem:[#allocation2 + $0x10] sm:$0xff] %v2706
    %2747 = vst [vmem:[#allocation2 + $0x18] sm:$0xff] %v2707
    %2748 = vst [vmem:[#allocation2 + $0x20] sm:$0xff] %v2708
    %2749 = vst [vmem:[#allocation2 + $0x28] sm:$0xff] %v2709
    %2750 = vst [vmem:[#allocation2 + $0x30] sm:$0xff] %v2710
    %2751 = vst [vmem:[#allocation2 + $0x38] sm:$0xff] %v2711
    %2752 = vst [vmem:[#allocation2 + $0x40] sm:$0xff] %v2712
    %2753 = vst [vmem:[#allocation2 + $0x48] sm:$0xff] %v2713
    %2754 = vst [vmem:[#allocation2 + $0x50] sm:$0xff] %v2714
    %2755 = vst [vmem:[#allocation2 + $0x58] sm:$0xff] %v2715
    %2756 = vst [vmem:[#allocation2 + $0x60] sm:$0xff] %v2716
    %2757 = vst [vmem:[#allocation2 + $0x68] sm:$0xff] %v2717
    %2758 = vst [vmem:[#allocation2 + $0x70] sm:$0xff] %v2718
    %2759 = vst [vmem:[#allocation2 + $0x78] sm:$0xff] %v2719
    %2760 = vst [vmem:[#allocation2 + $0x80] sm:$0xff] %v2720
    %2761 = vst [vmem:[#allocation2 + $0x88] sm:$0xff] %v2721
    %2762 = vst [vmem:[#allocation2 + $0x90] sm:$0xff] %v2722
    %2763 = vst [vmem:[#allocation2 + $0x98] sm:$0xff] %v2723
    %2764 = vst [vmem:[#allocation2 + $0xa0] sm:$0xff] %v2724
    %2765 = vst [vmem:[#allocation2 + $0xa8] sm:$0xff] %v2725
    %2766 = vst [vmem:[#allocation2 + $0xb0] sm:$0xff] %v2726
    %2767 = vst [vmem:[#allocation2 + $0xb8] sm:$0xff] %v2727
    %2768 = vst [vmem:[#allocation2 + $0xc0] sm:$0xff] %v2728
    %2769 = vst [vmem:[#allocation2 + $0xc8] sm:$0xff] %v2729
    %2770 = vst [vmem:[#allocation2 + $0xd0] sm:$0xff] %v2730
    %2771 = vst [vmem:[#allocation2 + $0xd8] sm:$0xff] %v2731
    %2772 = vst [vmem:[#allocation2 + $0xe0] sm:$0xff] %v2732
    %2773 = vst [vmem:[#allocation2 + $0xe8] sm:$0xff] %v2733
    %2774 = vst [vmem:[#allocation2 + $0xf0] sm:$0xff] %v2734
    %2775 = vst [vmem:[#allocation2 + $0xf8] sm:$0xff] %v2735
    %2776 = vst [vmem:[#allocation2 + $0x100] sm:$0xff] %v2736
    %2777 = vst [vmem:[#allocation2 + $0x108] sm:$0xff] %v2737
    %2778 = vst [vmem:[#allocation2 + $0x110] sm:$0xff] %v2738
    %2779 = vst [vmem:[#allocation2 + $0x118] sm:$0xff] %v2739
    %2780 = vst [vmem:[#allocation2 + $0x120] sm:$0xff] %v2740
    %2781 = vst [vmem:[#allocation2 + $0x128] sm:$0xff] %v2741
    %2782 = vst [vmem:[#allocation2 + $0x130] sm:$0xff] %v2742
    %2783 = vst [vmem:[#allocation2 + $0x138] sm:$0xff] %v2743
    %v2784 = vld [vmem:[#allocation2] sm:$0xff]
    %v2785 = vld [vmem:[#allocation2 + $0x8] sm:$0xff]
    %v2786 = vld [vmem:[#allocation2 + $0x10] sm:$0xff]
    %v2787 = vld [vmem:[#allocation2 + $0x18] sm:$0xff]
    %v2788 = vld [vmem:[#allocation2 + $0x20] sm:$0xff]
    %v2789 = vld [vmem:[#allocation2 + $0x28] sm:$0xff]
    %v2790 = vld [vmem:[#allocation2 + $0x30] sm:$0xff]
    %v2791 = vld [vmem:[#allocation2 + $0x38] sm:$0xff]
    %v2792 = vld [vmem:[#allocation2 + $0x40] sm:$0xff]
    %v2793 = vld [vmem:[#allocation2 + $0x48] sm:$0xff]
    %v2794 = vld [vmem:[#allocation2 + $0x50] sm:$0xff]
    %v2795 = vld [vmem:[#allocation2 + $0x58] sm:$0xff]
    %v2796 = vld [vmem:[#allocation2 + $0x60] sm:$0xff]
    %v2797 = vld [vmem:[#allocation2 + $0x68] sm:$0xff]
    %v2798 = vld [vmem:[#allocation2 + $0x70] sm:$0xff]
    %v2799 = vld [vmem:[#allocation2 + $0x78] sm:$0xff]
    %v2800 = vld [vmem:[#allocation2 + $0x80] sm:$0xff]
    %v2801 = vld [vmem:[#allocation2 + $0x88] sm:$0xff]
    %v2802 = vld [vmem:[#allocation2 + $0x90] sm:$0xff]
    %v2803 = vld [vmem:[#allocation2 + $0x98] sm:$0xff]
    %v2804 = vld [vmem:[#allocation2 + $0xa0] sm:$0xff]
    %v2805 = vld [vmem:[#allocation2 + $0xa8] sm:$0xff]
    %v2806 = vld [vmem:[#allocation2 + $0xb0] sm:$0xff]
    %v2807 = vld [vmem:[#allocation2 + $0xb8] sm:$0xff]
    %v2808 = vld [vmem:[#allocation2 + $0xc0] sm:$0xff]
    %v2809 = vld [vmem:[#allocation2 + $0xc8] sm:$0xff]
    %v2810 = vld [vmem:[#allocation2 + $0xd0] sm:$0xff]
    %v2811 = vld [vmem:[#allocation2 + $0xd8] sm:$0xff]
    %v2812 = vld [vmem:[#allocation2 + $0xe0] sm:$0xff]
    %v2813 = vld [vmem:[#allocation2 + $0xe8] sm:$0xff]
    %v2814 = vld [vmem:[#allocation2 + $0xf0] sm:$0xff]
    %v2815 = vld [vmem:[#allocation2 + $0xf8] sm:$0xff]
    %v2816 = vld [vmem:[#allocation2 + $0x100] sm:$0xff]
    %v2817 = vld [vmem:[#allocation2 + $0x108] sm:$0xff]
    %v2818 = vld [vmem:[#allocation2 + $0x110] sm:$0xff]
    %v2819 = vld [vmem:[#allocation2 + $0x118] sm:$0xff]
    %v2820 = vld [vmem:[#allocation2 + $0x120] sm:$0xff]
    %v2821 = vld [vmem:[#allocation2 + $0x128] sm:$0xff]
    %v2822 = vld [vmem:[#allocation2 + $0x130] sm:$0xff]
    %v2823 = vld [vmem:[#allocation2 + $0x138] sm:$0xff]
    %v2824 = vld [vmem:[#allocation3] sm:$0xc]
    %v2825 = vld [vmem:[#allocation3 + $0x4] sm:$0x3]
    %v2826 = vld [vmem:[#allocation3 + $0x8] sm:$0xc]
    %v2827 = vld [vmem:[#allocation3 + $0xc] sm:$0x3]
    %v2828 = vld [vmem:[#allocation3 + $0x10] sm:$0xc]
    %v2829 = vld [vmem:[#allocation3 + $0x14] sm:$0x3]
    %v2830 = vld [vmem:[#allocation3 + $0x18] sm:$0xc]
    %v2831 = vld [vmem:[#allocation3 + $0x1c] sm:$0x3]
    %v2832 = vld [vmem:[#allocation3 + $0x20] sm:$0xc]
    %v2833 = vld [vmem:[#allocation3 + $0x24] sm:$0x3]
    %v2834 = vld [vmem:[#allocation3 + $0x28] sm:$0xc]
    %v2835 = vld [vmem:[#allocation3 + $0x2c] sm:$0x3]
    %v2836 = vld [vmem:[#allocation3 + $0x30] sm:$0xc]
    %v2837 = vld [vmem:[#allocation3 + $0x34] sm:$0x3]
    %v2838 = vld [vmem:[#allocation3 + $0x38] sm:$0xc]
    %v2839 = vld [vmem:[#allocation3 + $0x3c] sm:$0x3]
    %vm2856 = vcmask 1041408
    %vm2857 = vcmask 1045508
    %vm2858 = vmor %vm2856, %vm2857
    %v2859 = vrot.slane %v2824, 6
    %v2860 = vrot.slane %v2859, 4
    %v2861 = vrot.slane %v2825, 6
    %v2862 = vsel %vm2858, %v2860, %v2861
    %v2863 = vrot.slane %v2826, 6
    %v2864 = vrot.slane %v2863, 4
    %v2865 = vrot.slane %v2827, 6
    %v2866 = vsel %vm2858, %v2864, %v2865
    %v2867 = vrot.slane %v2828, 6
    %v2868 = vrot.slane %v2867, 4
    %v2869 = vrot.slane %v2829, 6
    %v2870 = vsel %vm2858, %v2868, %v2869
    %v2871 = vrot.slane %v2830, 6
    %v2872 = vrot.slane %v2871, 4
    %v2873 = vrot.slane %v2831, 6
    %v2874 = vsel %vm2858, %v2872, %v2873
    %v2875 = vrot.slane %v2832, 6
    %v2876 = vrot.slane %v2875, 4
    %v2877 = vrot.slane %v2833, 6
    %v2878 = vsel %vm2858, %v2876, %v2877
    %v2879 = vrot.slane %v2834, 6
    %v2880 = vrot.slane %v2879, 4
    %v2881 = vrot.slane %v2835, 6
    %v2882 = vsel %vm2858, %v2880, %v2881
    %v2883 = vrot.slane %v2836, 6
    %v2884 = vrot.slane %v2883, 4
    %v2885 = vrot.slane %v2837, 6
    %v2886 = vsel %vm2858, %v2884, %v2885
    %v2887 = vrot.slane %v2838, 6
    %v2888 = vrot.slane %v2887, 4
    %v2889 = vrot.slane %v2839, 6
    %v2890 = vsel %vm2858, %v2888, %v2889
    %v2891 = vld [vmem:[#allocation6 + $0x500] sm:$0xff]
    %v2892 = vld [vmem:[#allocation6 + $0x508] sm:$0xff]
    %v2893 = vld [vmem:[#allocation6 + $0x510] sm:$0xf]
    %v2894 = vld [vmem:[#allocation6 + $0x514] sm:$0xff]
    %v2895 = vld [vmem:[#allocation6 + $0x51c] sm:$0xff]
    %v2896 = vld [vmem:[#allocation6 + $0x524] sm:$0xf]
    %v2897 = vld [vmem:[#allocation6 + $0x528] sm:$0xff]
    %v2898 = vld [vmem:[#allocation6 + $0x530] sm:$0xff]
    %v2899 = vld [vmem:[#allocation6 + $0x538] sm:$0xf]
    %v2900 = vld [vmem:[#allocation6 + $0x53c] sm:$0xff]
    %v2901 = vld [vmem:[#allocation6 + $0x544] sm:$0xff]
    %v2902 = vld [vmem:[#allocation6 + $0x54c] sm:$0xf]
    %v2903 = vld [vmem:[#allocation6 + $0x550] sm:$0xff]
    %v2904 = vld [vmem:[#allocation6 + $0x558] sm:$0xff]
    %v2905 = vld [vmem:[#allocation6 + $0x560] sm:$0xf]
    %v2906 = vld [vmem:[#allocation6 + $0x564] sm:$0xff]
    %v2907 = vld [vmem:[#allocation6 + $0x56c] sm:$0xff]
    %v2908 = vld [vmem:[#allocation6 + $0x574] sm:$0xf]
    %v2909 = vld [vmem:[#allocation6 + $0x578] sm:$0xff]
    %v2910 = vld [vmem:[#allocation6 + $0x580] sm:$0xff]
    %v2911 = vld [vmem:[#allocation6 + $0x588] sm:$0xf]
    %v2912 = vld [vmem:[#allocation6 + $0x58c] sm:$0xff]
    %v2913 = vld [vmem:[#allocation6 + $0x594] sm:$0xff]
    %v2914 = vld [vmem:[#allocation6 + $0x59c] sm:$0xf]
    %v2915 = vld [vmem:[#allocation6 + $0x5a0] sm:$0xff]
    %v2916 = vld [vmem:[#allocation6 + $0x5a8] sm:$0xff]
    %v2917 = vld [vmem:[#allocation6 + $0x5b0] sm:$0xf]
    %v2918 = vld [vmem:[#allocation6 + $0x5b4] sm:$0xff]
    %v2919 = vld [vmem:[#allocation6 + $0x5bc] sm:$0xff]
    %v2920 = vld [vmem:[#allocation6 + $0x5c4] sm:$0xf]
    %v2921 = vld [vmem:[#allocation6 + $0x5c8] sm:$0xff]
    %v2922 = vld [vmem:[#allocation6 + $0x5d0] sm:$0xff]
    %v2923 = vld [vmem:[#allocation6 + $0x5d8] sm:$0xf]
    %v2924 = vld [vmem:[#allocation6 + $0x5dc] sm:$0xff]
    %v2925 = vld [vmem:[#allocation6 + $0x5e4] sm:$0xff]
    %v2926 = vld [vmem:[#allocation6 + $0x5ec] sm:$0xf]
    %v2927 = vld [vmem:[#allocation6 + $0x5f0] sm:$0xff]
    %v2928 = vld [vmem:[#allocation6 + $0x5f8] sm:$0xff]
    %v2929 = vld [vmem:[#allocation6 + $0x600] sm:$0xf]
    %v2930 = vld [vmem:[#allocation6 + $0x604] sm:$0xff]
    %v2931 = vld [vmem:[#allocation6 + $0x60c] sm:$0xff]
    %v2932 = vld [vmem:[#allocation6 + $0x614] sm:$0xf]
    %v2933 = vld [vmem:[#allocation6 + $0x618] sm:$0xff]
    %v2934 = vld [vmem:[#allocation6 + $0x620] sm:$0xff]
    %v2935 = vld [vmem:[#allocation6 + $0x628] sm:$0xf]
    %v2936 = vld [vmem:[#allocation6 + $0x62c] sm:$0xff]
    %v2937 = vld [vmem:[#allocation6 + $0x634] sm:$0xff]
    %v2938 = vld [vmem:[#allocation6 + $0x63c] sm:$0xf]
    %v2939 = vunpack.c.l.b16 %v2862
    %v2940 = vunpack.c.l.b16 %v2866
    %v2941 = vunpack.c.l.b16 %v2870
    %v2942 = vunpack.c.l.b16 %v2874
    %v2943 = vunpack.c.l.b16 %v2878
    %v2944 = vunpack.c.l.b16 %v2882
    %v2945 = vunpack.c.l.b16 %v2886
    %v2946 = vunpack.c.l.b16 %v2890
    %v2947 = vpack.c.b16 %v2940, %v2939
    %v2948 = vpack.c.b16 %v2942, %v2941
    %v2949 = vpack.c.b16 %v2944, %v2943
    %v2950 = vpack.c.b16 %v2946, %v2945
    %v3003 = vunpack.c.l.b16 %v2891
    %v3004 = vunpack.c.h.b16 %v2891
    %v3005 = vunpack.c.l.b16 %v2892
    %v3006 = vunpack.c.h.b16 %v2892
    %v3007 = vunpack.c.l.b16 %v2893
    %v3008 = vunpack.c.l.b16 %v2894
    %v3009 = vunpack.c.h.b16 %v2894
    %v3010 = vunpack.c.l.b16 %v2895
    %v3011 = vunpack.c.h.b16 %v2895
    %v3012 = vunpack.c.l.b16 %v2896
    %v3013 = vunpack.c.l.b16 %v2897
    %v3014 = vunpack.c.h.b16 %v2897
    %v3015 = vunpack.c.l.b16 %v2898
    %v3016 = vunpack.c.h.b16 %v2898
    %v3017 = vunpack.c.l.b16 %v2899
    %v3018 = vunpack.c.l.b16 %v2900
    %v3019 = vunpack.c.h.b16 %v2900
    %v3020 = vunpack.c.l.b16 %v2901
    %v3021 = vunpack.c.h.b16 %v2901
    %v3022 = vunpack.c.l.b16 %v2902
    %v3023 = vunpack.c.l.b16 %v2903
    %v3024 = vunpack.c.h.b16 %v2903
    %v3025 = vunpack.c.l.b16 %v2904
    %v3026 = vunpack.c.h.b16 %v2904
    %v3027 = vunpack.c.l.b16 %v2905
    %v3028 = vunpack.c.l.b16 %v2906
    %v3029 = vunpack.c.h.b16 %v2906
    %v3030 = vunpack.c.l.b16 %v2907
    %v3031 = vunpack.c.h.b16 %v2907
    %v3032 = vunpack.c.l.b16 %v2908
    %v3033 = vunpack.c.l.b16 %v2909
    %v3034 = vunpack.c.h.b16 %v2909
    %v3035 = vunpack.c.l.b16 %v2910
    %v3036 = vunpack.c.h.b16 %v2910
    %v3037 = vunpack.c.l.b16 %v2911
    %v3038 = vunpack.c.l.b16 %v2912
    %v3039 = vunpack.c.h.b16 %v2912
    %v3040 = vunpack.c.l.b16 %v2913
    %v3041 = vunpack.c.h.b16 %v2913
    %v3042 = vunpack.c.l.b16 %v2914
    %v3043 = vunpack.c.l.b16 %v2915
    %v3044 = vunpack.c.h.b16 %v2915
    %v3045 = vunpack.c.l.b16 %v2916
    %v3046 = vunpack.c.h.b16 %v2916
    %v3047 = vunpack.c.l.b16 %v2917
    %v3048 = vunpack.c.l.b16 %v2918
    %v3049 = vunpack.c.h.b16 %v2918
    %v3050 = vunpack.c.l.b16 %v2919
    %v3051 = vunpack.c.h.b16 %v2919
    %v3052 = vunpack.c.l.b16 %v2920
    %v3053 = vunpack.c.l.b16 %v2921
    %v3054 = vunpack.c.h.b16 %v2921
    %v3055 = vunpack.c.l.b16 %v2922
    %v3056 = vunpack.c.h.b16 %v2922
    %v3057 = vunpack.c.l.b16 %v2923
    %v3058 = vunpack.c.l.b16 %v2924
    %v3059 = vunpack.c.h.b16 %v2924
    %v3060 = vunpack.c.l.b16 %v2925
    %v3061 = vunpack.c.h.b16 %v2925
    %v3062 = vunpack.c.l.b16 %v2926
    %v3063 = vunpack.c.l.b16 %v2927
    %v3064 = vunpack.c.h.b16 %v2927
    %v3065 = vunpack.c.l.b16 %v2928
    %v3066 = vunpack.c.h.b16 %v2928
    %v3067 = vunpack.c.l.b16 %v2929
    %v3068 = vunpack.c.l.b16 %v2930
    %v3069 = vunpack.c.h.b16 %v2930
    %v3070 = vunpack.c.l.b16 %v2931
    %v3071 = vunpack.c.h.b16 %v2931
    %v3072 = vunpack.c.l.b16 %v2932
    %v3073 = vunpack.c.l.b16 %v2933
    %v3074 = vunpack.c.h.b16 %v2933
    %v3075 = vunpack.c.l.b16 %v2934
    %v3076 = vunpack.c.h.b16 %v2934
    %v3077 = vunpack.c.l.b16 %v2935
    %v3078 = vunpack.c.l.b16 %v2936
    %v3079 = vunpack.c.h.b16 %v2936
    %v3080 = vunpack.c.l.b16 %v2937
    %v3081 = vunpack.c.h.b16 %v2937
    %v3082 = vunpack.c.l.b16 %v2938
    %v3083 = vpack.c.b16 %v3008, %v3003
    %v3084 = vpack.c.b16 %v3009, %v3004
    %v3085 = vpack.c.b16 %v3010, %v3005
    %v3086 = vpack.c.b16 %v3011, %v3006
    %v3087 = vpack.c.b16 %v3012, %v3007
    %v3088 = vpack.c.b16 %v3018, %v3013
    %v3089 = vpack.c.b16 %v3019, %v3014
    %v3090 = vpack.c.b16 %v3020, %v3015
    %v3091 = vpack.c.b16 %v3021, %v3016
    %v3092 = vpack.c.b16 %v3022, %v3017
    %v3093 = vpack.c.b16 %v3028, %v3023
    %v3094 = vpack.c.b16 %v3029, %v3024
    %v3095 = vpack.c.b16 %v3030, %v3025
    %v3096 = vpack.c.b16 %v3031, %v3026
    %v3097 = vpack.c.b16 %v3032, %v3027
    %v3098 = vpack.c.b16 %v3038, %v3033
    %v3099 = vpack.c.b16 %v3039, %v3034
    %v3100 = vpack.c.b16 %v3040, %v3035
    %v3101 = vpack.c.b16 %v3041, %v3036
    %v3102 = vpack.c.b16 %v3042, %v3037
    %v3103 = vpack.c.b16 %v3048, %v3043
    %v3104 = vpack.c.b16 %v3049, %v3044
    %v3105 = vpack.c.b16 %v3050, %v3045
    %v3106 = vpack.c.b16 %v3051, %v3046
    %v3107 = vpack.c.b16 %v3052, %v3047
    %v3108 = vpack.c.b16 %v3058, %v3053
    %v3109 = vpack.c.b16 %v3059, %v3054
    %v3110 = vpack.c.b16 %v3060, %v3055
    %v3111 = vpack.c.b16 %v3061, %v3056
    %v3112 = vpack.c.b16 %v3062, %v3057
    %v3113 = vpack.c.b16 %v3068, %v3063
    %v3114 = vpack.c.b16 %v3069, %v3064
    %v3115 = vpack.c.b16 %v3070, %v3065
    %v3116 = vpack.c.b16 %v3071, %v3066
    %v3117 = vpack.c.b16 %v3072, %v3067
    %v3118 = vpack.c.b16 %v3078, %v3073
    %v3119 = vpack.c.b16 %v3079, %v3074
    %v3120 = vpack.c.b16 %v3080, %v3075
    %v3121 = vpack.c.b16 %v3081, %v3076
    %v3122 = vpack.c.b16 %v3082, %v3077
    %3163 = vmatprep.subr.bf16.mxu0 %v3084
    %3164 = vmatpush1.bf16.msra.mxu0 %v3083
    %3165 = vmatprep.subr.bf16.mxu0 %v3089
    %3166 = vmatpush1.bf16.msra.mxu0 %v3088
    %3167 = vmatprep.subr.bf16.mxu0 %v3094
    %3168 = vmatpush1.bf16.msra.mxu0 %v3093
    %3169 = vmatprep.subr.bf16.mxu0 %v3099
    %3170 = vmatpush1.bf16.msra.mxu0 %v3098
    %3171 = vmatprep.subr.bf16.mxu0 %v3104
    %3172 = vmatpush1.bf16.msra.mxu0 %v3103
    %3173 = vmatprep.subr.bf16.mxu0 %v3109
    %3174 = vmatpush1.bf16.msra.mxu0 %v3108
    %3175 = vmatprep.subr.bf16.mxu0 %v3114
    %3176 = vmatpush1.bf16.msra.mxu0 %v3113
    %3177 = vmatprep.subr.bf16.mxu0 %v3119
    %3178 = vmatpush1.bf16.msra.mxu0 %v3118
    %3179 = vmatprep.subr.bf16.mxu0 0
    %3180 = vmatpush1.bf16.msra.mxu0 0
    %3181 = vmatprep.subr.bf16.mxu0 0
    %3182 = vmatpush1.bf16.msra.mxu0 0
    %3183 = vmatprep.subr.bf16.mxu0 0
    %3184 = vmatpush1.bf16.msra.mxu0 0
    %3185 = vmatprep.subr.bf16.mxu0 0
    %3186 = vmatpush1.bf16.msra.mxu0 0
    %3187 = vmatprep.subr.bf16.mxu0 0
    %3188 = vmatpush1.bf16.msra.mxu0 0
    %3189 = vmatprep.subr.bf16.mxu0 0
    %3190 = vmatpush1.bf16.msra.mxu0 0
    %3191 = vmatprep.subr.bf16.mxu0 0
    %3192 = vmatpush1.bf16.msra.mxu0 0
    %3193 = vmatprep.subr.bf16.mxu0 0
    %3194 = vmatpush1.bf16.msra.mxu0 0
    %3195 = vmatprep.mubr.bf16.mxu0 0
    %3196 = vmatmul.mubr.bf16.gmra.mrb[0].mxu0 %v2947
    %v3197 = vpop.f32.mrb[0].mxu0
    %v3198 = vadd.f32 0.0, %v3197
    %v3199 = vpop.f32.mrb[0].mxu0
    %v3200 = vadd.f32 0.0, %v3199
    %v3201 = vpop.f32.mrb[0].mxu0
    %v3202 = vadd.f32 0.0, %v3201
    %v3203 = vpop.f32.mrb[0].mxu0
    %v3204 = vadd.f32 0.0, %v3203
    %3205 = vmatprep.mubr.bf16.mxu0 0
    %3206 = vmatmul.mubr.bf16.gmra.mrb[0].mxu0 %v2948
    %v3207 = vpop.f32.mrb[0].mxu0
    %v3208 = vadd.f32 0.0, %v3207
    %v3209 = vpop.f32.mrb[0].mxu0
    %v3210 = vadd.f32 0.0, %v3209
    %v3211 = vpop.f32.mrb[0].mxu0
    %v3212 = vadd.f32 0.0, %v3211
    %v3213 = vpop.f32.mrb[0].mxu0
    %v3214 = vadd.f32 0.0, %v3213
    %3215 = vmatprep.mubr.bf16.mxu0 0
    %3216 = vmatmul.mubr.bf16.gmra.mrb[0].mxu0 %v2949
    %v3217 = vpop.f32.mrb[0].mxu0
    %v3218 = vadd.f32 0.0, %v3217
    %v3219 = vpop.f32.mrb[0].mxu0
    %v3220 = vadd.f32 0.0, %v3219
    %v3221 = vpop.f32.mrb[0].mxu0
    %v3222 = vadd.f32 0.0, %v3221
    %v3223 = vpop.f32.mrb[0].mxu0
    %v3224 = vadd.f32 0.0, %v3223
    %3225 = vmatprep.mubr.bf16.mxu0 0
    %3226 = vmatmul.mubr.bf16.gmra.mrb[0].mxu0 %v2950
    %v3227 = vpop.f32.mrb[0].mxu0
    %v3228 = vadd.f32 0.0, %v3227
    %v3229 = vpop.f32.mrb[0].mxu0
    %v3230 = vadd.f32 0.0, %v3229
    %v3231 = vpop.f32.mrb[0].mxu0
    %v3232 = vadd.f32 0.0, %v3231
    %v3233 = vpop.f32.mrb[0].mxu0
    %v3234 = vadd.f32 0.0, %v3233
    %3235 = vdwg.mxu0
    %3236 = vmatprep.subr.bf16.mxu0 %v3086
    %3237 = vmatpush1.bf16.msra.mxu0 %v3085
    %3238 = vmatprep.subr.bf16.mxu0 %v3091
    %3239 = vmatpush1.bf16.msra.mxu0 %v3090
    %3240 = vmatprep.subr.bf16.mxu0 %v3096
    %3241 = vmatpush1.bf16.msra.mxu0 %v3095
    %3242 = vmatprep.subr.bf16.mxu0 %v3101
    %3243 = vmatpush1.bf16.msra.mxu0 %v3100
    %3244 = vmatprep.subr.bf16.mxu0 %v3106
    %3245 = vmatpush1.bf16.msra.mxu0 %v3105
    %3246 = vmatprep.subr.bf16.mxu0 %v3111
    %3247 = vmatpush1.bf16.msra.mxu0 %v3110
    %3248 = vmatprep.subr.bf16.mxu0 %v3116
    %3249 = vmatpush1.bf16.msra.mxu0 %v3115
    %3250 = vmatprep.subr.bf16.mxu0 %v3121
    %3251 = vmatpush1.bf16.msra.mxu0 %v3120
    %3252 = vmatprep.subr.bf16.mxu0 0
    %3253 = vmatpush1.bf16.msra.mxu0 0
    %3254 = vmatprep.subr.bf16.mxu0 0
    %3255 = vmatpush1.bf16.msra.mxu0 0
    %3256 = vmatprep.subr.bf16.mxu0 0
    %3257 = vmatpush1.bf16.msra.mxu0 0
    %3258 = vmatprep.subr.bf16.mxu0 0
    %3259 = vmatpush1.bf16.msra.mxu0 0
    %3260 = vmatprep.subr.bf16.mxu0 0
    %3261 = vmatpush1.bf16.msra.mxu0 0
    %3262 = vmatprep.subr.bf16.mxu0 0
    %3263 = vmatpush1.bf16.msra.mxu0 0
    %3264 = vmatprep.subr.bf16.mxu0 0
    %3265 = vmatpush1.bf16.msra.mxu0 0
    %3266 = vmatprep.subr.bf16.mxu0 0
    %3267 = vmatpush1.bf16.msra.mxu0 0
    %3268 = vmatprep.mubr.bf16.mxu0 0
    %3269 = vmatmul.mubr.bf16.gmra.mrb[0].mxu0 %v2947
    %v3270 = vpop.f32.mrb[0].mxu0
    %v3271 = vadd.f32 0.0, %v3270
    %v3272 = vpop.f32.mrb[0].mxu0
    %v3273 = vadd.f32 0.0, %v3272
    %v3274 = vpop.f32.mrb[0].mxu0
    %v3275 = vadd.f32 0.0, %v3274
    %v3276 = vpop.f32.mrb[0].mxu0
    %v3277 = vadd.f32 0.0, %v3276
    %3278 = vmatprep.mubr.bf16.mxu0 0
    %3279 = vmatmul.mubr.bf16.gmra.mrb[0].mxu0 %v2948
    %v3280 = vpop.f32.mrb[0].mxu0
    %v3281 = vadd.f32 0.0, %v3280
    %v3282 = vpop.f32.mrb[0].mxu0
    %v3283 = vadd.f32 0.0, %v3282
    %v3284 = vpop.f32.mrb[0].mxu0
    %v3285 = vadd.f32 0.0, %v3284
    %v3286 = vpop.f32.mrb[0].mxu0
    %v3287 = vadd.f32 0.0, %v3286
    %3288 = vmatprep.mubr.bf16.mxu0 0
    %3289 = vmatmul.mubr.bf16.gmra.mrb[0].mxu0 %v2949
    %v3290 = vpop.f32.mrb[0].mxu0
    %v3291 = vadd.f32 0.0, %v3290
    %v3292 = vpop.f32.mrb[0].mxu0
    %v3293 = vadd.f32 0.0, %v3292
    %v3294 = vpop.f32.mrb[0].mxu0
    %v3295 = vadd.f32 0.0, %v3294
    %v3296 = vpop.f32.mrb[0].mxu0
    %v3297 = vadd.f32 0.0, %v3296
    %3298 = vmatprep.mubr.bf16.mxu0 0
    %3299 = vmatmul.mubr.bf16.gmra.mrb[0].mxu0 %v2950
    %v3300 = vpop.f32.mrb[0].mxu0
    %v3301 = vadd.f32 0.0, %v3300
    %v3302 = vpop.f32.mrb[0].mxu0
    %v3303 = vadd.f32 0.0, %v3302
    %v3304 = vpop.f32.mrb[0].mxu0
    %v3305 = vadd.f32 0.0, %v3304
    %v3306 = vpop.f32.mrb[0].mxu0
    %v3307 = vadd.f32 0.0, %v3306
    %3308 = vdwg.mxu0
    %3309 = vmatprep.subr.bf16.mxu0 0
    %3310 = vmatpush1.bf16.msra.mxu0 %v3087
    %3311 = vmatprep.subr.bf16.mxu0 0
    %3312 = vmatpush1.bf16.msra.mxu0 %v3092
    %3313 = vmatprep.subr.bf16.mxu0 0
    %3314 = vmatpush1.bf16.msra.mxu0 %v3097
    %3315 = vmatprep.subr.bf16.mxu0 0
    %3316 = vmatpush1.bf16.msra.mxu0 %v3102
    %3317 = vmatprep.subr.bf16.mxu0 0
    %3318 = vmatpush1.bf16.msra.mxu0 %v3107
    %3319 = vmatprep.subr.bf16.mxu0 0
    %3320 = vmatpush1.bf16.msra.mxu0 %v3112
    %3321 = vmatprep.subr.bf16.mxu0 0
    %3322 = vmatpush1.bf16.msra.mxu0 %v3117
    %3323 = vmatprep.subr.bf16.mxu0 0
    %3324 = vmatpush1.bf16.msra.mxu0 %v3122
    %3325 = vmatprep.subr.bf16.mxu0 0
    %3326 = vmatpush1.bf16.msra.mxu0 0
    %3327 = vmatprep.subr.bf16.mxu0 0
    %3328 = vmatpush1.bf16.msra.mxu0 0
    %3329 = vmatprep.subr.bf16.mxu0 0
    %3330 = vmatpush1.bf16.msra.mxu0 0
    %3331 = vmatprep.subr.bf16.mxu0 0
    %3332 = vmatpush1.bf16.msra.mxu0 0
    %3333 = vmatprep.subr.bf16.mxu0 0
    %3334 = vmatpush1.bf16.msra.mxu0 0
    %3335 = vmatprep.subr.bf16.mxu0 0
    %3336 = vmatpush1.bf16.msra.mxu0 0
    %3337 = vmatprep.subr.bf16.mxu0 0
    %3338 = vmatpush1.bf16.msra.mxu0 0
    %3339 = vmatprep.subr.bf16.mxu0 0
    %3340 = vmatpush1.bf16.msra.mxu0 0
    %3341 = vmatprep.mubr.bf16.mxu0 0
    %3342 = vmatmul.mubr.bf16.gmra.mrb[0].mxu0 %v2947
    %v3343 = vpop.f32.mrb[0].mxu0
    %v3344 = vadd.f32 0.0, %v3343
    %v3345 = vpop.f32.mrb[0].mxu0
    %v3346 = vpop.f32.mrb[0].mxu0
    %v3347 = vadd.f32 0.0, %v3346
    %v3348 = vpop.f32.mrb[0].mxu0
    %3349 = vmatprep.mubr.bf16.mxu0 0
    %3350 = vmatmul.mubr.bf16.gmra.mrb[0].mxu0 %v2948
    %v3351 = vpop.f32.mrb[0].mxu0
    %v3352 = vadd.f32 0.0, %v3351
    %v3353 = vpop.f32.mrb[0].mxu0
    %v3354 = vpop.f32.mrb[0].mxu0
    %v3355 = vadd.f32 0.0, %v3354
    %v3356 = vpop.f32.mrb[0].mxu0
    %3357 = vmatprep.mubr.bf16.mxu0 0
    %3358 = vmatmul.mubr.bf16.gmra.mrb[0].mxu0 %v2949
    %v3359 = vpop.f32.mrb[0].mxu0
    %v3360 = vadd.f32 0.0, %v3359
    %v3361 = vpop.f32.mrb[0].mxu0
    %v3362 = vpop.f32.mrb[0].mxu0
    %v3363 = vadd.f32 0.0, %v3362
    %v3364 = vpop.f32.mrb[0].mxu0
    %3365 = vmatprep.mubr.bf16.mxu0 0
    %3366 = vmatmul.mubr.bf16.gmra.mrb[0].mxu0 %v2950
    %v3367 = vpop.f32.mrb[0].mxu0
    %v3368 = vadd.f32 0.0, %v3367
    %v3369 = vpop.f32.mrb[0].mxu0
    %v3370 = vpop.f32.mrb[0].mxu0
    %v3371 = vadd.f32 0.0, %v3370
    %v3372 = vpop.f32.mrb[0].mxu0
    %3373 = vdwg.mxu0
    %v3374 = vadd.f32 %v2784, %v3198
    %v3375 = vadd.f32 %v2785, %v3200
    %v3376 = vadd.f32 %v2786, %v3271
    %v3377 = vadd.f32 %v2787, %v3273
    %v3378 = vadd.f32 %v2788, %v3344
    %v3379 = vadd.f32 %v2789, %v3202
    %v3380 = vadd.f32 %v2790, %v3204
    %v3381 = vadd.f32 %v2791, %v3275
    %v3382 = vadd.f32 %v2792, %v3277
    %v3383 = vadd.f32 %v2793, %v3347
    %v3384 = vadd.f32 %v2794, %v3208
    %v3385 = vadd.f32 %v2795, %v3210
    %v3386 = vadd.f32 %v2796, %v3281
    %v3387 = vadd.f32 %v2797, %v3283
    %v3388 = vadd.f32 %v2798, %v3352
    %v3389 = vadd.f32 %v2799, %v3212
    %v3390 = vadd.f32 %v2800, %v3214
    %v3391 = vadd.f32 %v2801, %v3285
    %v3392 = vadd.f32 %v2802, %v3287
    %v3393 = vadd.f32 %v2803, %v3355
    %v3394 = vadd.f32 %v2804, %v3218
    %v3395 = vadd.f32 %v2805, %v3220
    %v3396 = vadd.f32 %v2806, %v3291
    %v3397 = vadd.f32 %v2807, %v3293
    %v3398 = vadd.f32 %v2808, %v3360
    %v3399 = vadd.f32 %v2809, %v3222
    %v3400 = vadd.f32 %v2810, %v3224
    %v3401 = vadd.f32 %v2811, %v3295
    %v3402 = vadd.f32 %v2812, %v3297
    %v3403 = vadd.f32 %v2813, %v3363
    %v3404 = vadd.f32 %v2814, %v3228
    %v3405 = vadd.f32 %v2815, %v3230
    %v3406 = vadd.f32 %v2816, %v3301
    %v3407 = vadd.f32 %v2817, %v3303
    %v3408 = vadd.f32 %v2818, %v3368
    %v3409 = vadd.f32 %v2819, %v3232
    %v3410 = vadd.f32 %v2820, %v3234
    %v3411 = vadd.f32 %v2821, %v3305
    %v3412 = vadd.f32 %v2822, %v3307
    %v3413 = vadd.f32 %v2823, %v3371
    %3414 = vst [vmem:[#allocation2] sm:$0xff] %v3374
    %3415 = vst [vmem:[#allocation2 + $0x8] sm:$0xff] %v3375
    %3416 = vst [vmem:[#allocation2 + $0x10] sm:$0xff] %v3376
    %3417 = vst [vmem:[#allocation2 + $0x18] sm:$0xff] %v3377
    %3418 = vst [vmem:[#allocation2 + $0x20] sm:$0xff] %v3378
    %3419 = vst [vmem:[#allocation2 + $0x28] sm:$0xff] %v3379
    %3420 = vst [vmem:[#allocation2 + $0x30] sm:$0xff] %v3380
    %3421 = vst [vmem:[#allocation2 + $0x38] sm:$0xff] %v3381
    %3422 = vst [vmem:[#allocation2 + $0x40] sm:$0xff] %v3382
    %3423 = vst [vmem:[#allocation2 + $0x48] sm:$0xff] %v3383
    %3424 = vst [vmem:[#allocation2 + $0x50] sm:$0xff] %v3384
    %3425 = vst [vmem:[#allocation2 + $0x58] sm:$0xff] %v3385
    %3426 = vst [vmem:[#allocation2 + $0x60] sm:$0xff] %v3386
    %3427 = vst [vmem:[#allocation2 + $0x68] sm:$0xff] %v3387
    %3428 = vst [vmem:[#allocation2 + $0x70] sm:$0xff] %v3388
    %3429 = vst [vmem:[#allocation2 + $0x78] sm:$0xff] %v3389
    %3430 = vst [vmem:[#allocation2 + $0x80] sm:$0xff] %v3390
    %3431 = vst [vmem:[#allocation2 + $0x88] sm:$0xff] %v3391
    %3432 = vst [vmem:[#allocation2 + $0x90] sm:$0xff] %v3392
    %3433 = vst [vmem:[#allocation2 + $0x98] sm:$0xff] %v3393
    %3434 = vst [vmem:[#allocation2 + $0xa0] sm:$0xff] %v3394
    %3435 = vst [vmem:[#allocation2 + $0xa8] sm:$0xff] %v3395
    %3436 = vst [vmem:[#allocation2 + $0xb0] sm:$0xff] %v3396
    %3437 = vst [vmem:[#allocation2 + $0xb8] sm:$0xff] %v3397
    %3438 = vst [vmem:[#allocation2 + $0xc0] sm:$0xff] %v3398
    %3439 = vst [vmem:[#allocation2 + $0xc8] sm:$0xff] %v3399
    %3440 = vst [vmem:[#allocation2 + $0xd0] sm:$0xff] %v3400
    %3441 = vst [vmem:[#allocation2 + $0xd8] sm:$0xff] %v3401
    %3442 = vst [vmem:[#allocation2 + $0xe0] sm:$0xff] %v3402
    %3443 = vst [vmem:[#allocation2 + $0xe8] sm:$0xff] %v3403
    %3444 = vst [vmem:[#allocation2 + $0xf0] sm:$0xff] %v3404
    %3445 = vst [vmem:[#allocation2 + $0xf8] sm:$0xff] %v3405
    %3446 = vst [vmem:[#allocation2 + $0x100] sm:$0xff] %v3406
    %3447 = vst [vmem:[#allocation2 + $0x108] sm:$0xff] %v3407
    %3448 = vst [vmem:[#allocation2 + $0x110] sm:$0xff] %v3408
    %3449 = vst [vmem:[#allocation2 + $0x118] sm:$0xff] %v3409
    %3450 = vst [vmem:[#allocation2 + $0x120] sm:$0xff] %v3410
    %3451 = vst [vmem:[#allocation2 + $0x128] sm:$0xff] %v3411
    %3452 = vst [vmem:[#allocation2 + $0x130] sm:$0xff] %v3412
    %3453 = vst [vmem:[#allocation2 + $0x138] sm:$0xff] %v3413
    %v3454 = vld [vmem:[#allocation2] sm:$0xff]
    %v3455 = vld [vmem:[#allocation2 + $0x8] sm:$0xff]
    %v3456 = vld [vmem:[#allocation2 + $0x10] sm:$0xff]
    %v3457 = vld [vmem:[#allocation2 + $0x18] sm:$0xff]
    %v3458 = vld [vmem:[#allocation2 + $0x20] sm:$0xff]
    %v3459 = vld [vmem:[#allocation2 + $0x28] sm:$0xff]
    %v3460 = vld [vmem:[#allocation2 + $0x30] sm:$0xff]
    %v3461 = vld [vmem:[#allocation2 + $0x38] sm:$0xff]
    %v3462 = vld [vmem:[#allocation2 + $0x40] sm:$0xff]
    %v3463 = vld [vmem:[#allocation2 + $0x48] sm:$0xff]
    %v3464 = vld [vmem:[#allocation2 + $0x50] sm:$0xff]
    %v3465 = vld [vmem:[#allocation2 + $0x58] sm:$0xff]
    %v3466 = vld [vmem:[#allocation2 + $0x60] sm:$0xff]
    %v3467 = vld [vmem:[#allocation2 + $0x68] sm:$0xff]
    %v3468 = vld [vmem:[#allocation2 + $0x70] sm:$0xff]
    %v3469 = vld [vmem:[#allocation2 + $0x78] sm:$0xff]
    %v3470 = vld [vmem:[#allocation2 + $0x80] sm:$0xff]
    %v3471 = vld [vmem:[#allocation2 + $0x88] sm:$0xff]
    %v3472 = vld [vmem:[#allocation2 + $0x90] sm:$0xff]
    %v3473 = vld [vmem:[#allocation2 + $0x98] sm:$0xff]
    %v3474 = vld [vmem:[#allocation2 + $0xa0] sm:$0xff]
    %v3475 = vld [vmem:[#allocation2 + $0xa8] sm:$0xff]
    %v3476 = vld [vmem:[#allocation2 + $0xb0] sm:$0xff]
    %v3477 = vld [vmem:[#allocation2 + $0xb8] sm:$0xff]
    %v3478 = vld [vmem:[#allocation2 + $0xc0] sm:$0xff]
    %v3479 = vld [vmem:[#allocation2 + $0xc8] sm:$0xff]
    %v3480 = vld [vmem:[#allocation2 + $0xd0] sm:$0xff]
    %v3481 = vld [vmem:[#allocation2 + $0xd8] sm:$0xff]
    %v3482 = vld [vmem:[#allocation2 + $0xe0] sm:$0xff]
    %v3483 = vld [vmem:[#allocation2 + $0xe8] sm:$0xff]
    %v3484 = vld [vmem:[#allocation2 + $0xf0] sm:$0xff]
    %v3485 = vld [vmem:[#allocation2 + $0xf8] sm:$0xff]
    %v3486 = vld [vmem:[#allocation2 + $0x100] sm:$0xff]
    %v3487 = vld [vmem:[#allocation2 + $0x108] sm:$0xff]
    %v3488 = vld [vmem:[#allocation2 + $0x110] sm:$0xff]
    %v3489 = vld [vmem:[#allocation2 + $0x118] sm:$0xff]
    %v3490 = vld [vmem:[#allocation2 + $0x120] sm:$0xff]
    %v3491 = vld [vmem:[#allocation2 + $0x128] sm:$0xff]
    %v3492 = vld [vmem:[#allocation2 + $0x130] sm:$0xff]
    %v3493 = vld [vmem:[#allocation2 + $0x138] sm:$0xff]
    %v3494 = vld [vmem:[#allocation8] sm:$0xff]
    %v3495 = vld [vmem:[#allocation8 + $0x8] sm:$0xff]
    %v3496 = vld [vmem:[#allocation8 + $0x10] sm:$0xff]
    %v3497 = vld [vmem:[#allocation8 + $0x18] sm:$0xff]
    %v3498 = vld [vmem:[#allocation8 + $0x20] sm:$0xff]
    %v3499 = vadd.f32 %v3454, %v3494
    %v3500 = vadd.f32 %v3455, %v3495
    %v3501 = vadd.f32 %v3456, %v3496
    %v3502 = vadd.f32 %v3457, %v3497
    %v3503 = vadd.f32 %v3458, %v3498
    %v3504 = vadd.f32 %v3459, %v3494
    %v3505 = vadd.f32 %v3460, %v3495
    %v3506 = vadd.f32 %v3461, %v3496
    %v3507 = vadd.f32 %v3462, %v3497
    %v3508 = vadd.f32 %v3463, %v3498
    %v3509 = vadd.f32 %v3464, %v3494
    %v3510 = vadd.f32 %v3465, %v3495
    %v3511 = vadd.f32 %v3466, %v3496
    %v3512 = vadd.f32 %v3467, %v3497
    %v3513 = vadd.f32 %v3468, %v3498
    %v3514 = vadd.f32 %v3469, %v3494
    %v3515 = vadd.f32 %v3470, %v3495
    %v3516 = vadd.f32 %v3471, %v3496
    %v3517 = vadd.f32 %v3472, %v3497
    %v3518 = vadd.f32 %v3473, %v3498
    %v3519 = vadd.f32 %v3474, %v3494
    %v3520 = vadd.f32 %v3475, %v3495
    %v3521 = vadd.f32 %v3476, %v3496
    %v3522 = vadd.f32 %v3477, %v3497
    %v3523 = vadd.f32 %v3478, %v3498
    %v3524 = vadd.f32 %v3479, %v3494
    %v3525 = vadd.f32 %v3480, %v3495
    %v3526 = vadd.f32 %v3481, %v3496
    %v3527 = vadd.f32 %v3482, %v3497
    %v3528 = vadd.f32 %v3483, %v3498
    %v3529 = vadd.f32 %v3484, %v3494
    %v3530 = vadd.f32 %v3485, %v3495
    %v3531 = vadd.f32 %v3486, %v3496
    %v3532 = vadd.f32 %v3487, %v3497
    %v3533 = vadd.f32 %v3488, %v3498
    %v3534 = vadd.f32 %v3489, %v3494
    %v3535 = vadd.f32 %v3490, %v3495
    %v3536 = vadd.f32 %v3491, %v3496
    %v3537 = vadd.f32 %v3492, %v3497
    %v3538 = vadd.f32 %v3493, %v3498
    %v3539 = vmax.f32 %v3499, 0.0
    %v3540 = vmax.f32 %v3500, 0.0
    %v3541 = vmax.f32 %v3501, 0.0
    %v3542 = vmax.f32 %v3502, 0.0
    %v3543 = vmax.f32 %v3503, 0.0
    %v3544 = vmax.f32 %v3504, 0.0
    %v3545 = vmax.f32 %v3505, 0.0
    %v3546 = vmax.f32 %v3506, 0.0
    %v3547 = vmax.f32 %v3507, 0.0
    %v3548 = vmax.f32 %v3508, 0.0
    %v3549 = vmax.f32 %v3509, 0.0
    %v3550 = vmax.f32 %v3510, 0.0
    %v3551 = vmax.f32 %v3511, 0.0
    %v3552 = vmax.f32 %v3512, 0.0
    %v3553 = vmax.f32 %v3513, 0.0
    %v3554 = vmax.f32 %v3514, 0.0
    %v3555 = vmax.f32 %v3515, 0.0
    %v3556 = vmax.f32 %v3516, 0.0
    %v3557 = vmax.f32 %v3517, 0.0
    %v3558 = vmax.f32 %v3518, 0.0
    %v3559 = vmax.f32 %v3519, 0.0
    %v3560 = vmax.f32 %v3520, 0.0
    %v3561 = vmax.f32 %v3521, 0.0
    %v3562 = vmax.f32 %v3522, 0.0
    %v3563 = vmax.f32 %v3523, 0.0
    %v3564 = vmax.f32 %v3524, 0.0
    %v3565 = vmax.f32 %v3525, 0.0
    %v3566 = vmax.f32 %v3526, 0.0
    %v3567 = vmax.f32 %v3527, 0.0
    %v3568 = vmax.f32 %v3528, 0.0
    %v3569 = vmax.f32 %v3529, 0.0
    %v3570 = vmax.f32 %v3530, 0.0
    %v3571 = vmax.f32 %v3531, 0.0
    %v3572 = vmax.f32 %v3532, 0.0
    %v3573 = vmax.f32 %v3533, 0.0
    %v3574 = vmax.f32 %v3534, 0.0
    %v3575 = vmax.f32 %v3535, 0.0
    %v3576 = vmax.f32 %v3536, 0.0
    %v3577 = vmax.f32 %v3537, 0.0
    %v3578 = vmax.f32 %v3538, 0.0
    %v3579 = vrot.slane %v3539, 4
    %v3580 = vmax.f32 %v3539, %v3579
    %v3581 = vrot.slane %v3580, 2
    %v3582 = vmax.f32 %v3580, %v3581
    %v3583 = vrot.slane %v3582, 1
    %v3584 = vmax.f32 %v3582, %v3583
    %v3585 = vrot.slane %v3540, 4
    %v3586 = vmax.f32 %v3540, %v3585
    %v3587 = vrot.slane %v3586, 2
    %v3588 = vmax.f32 %v3586, %v3587
    %v3589 = vrot.slane %v3588, 1
    %v3590 = vmax.f32 %v3588, %v3589
    %v3591 = vrot.slane %v3541, 4
    %v3592 = vmax.f32 %v3541, %v3591
    %v3593 = vrot.slane %v3592, 2
    %v3594 = vmax.f32 %v3592, %v3593
    %v3595 = vrot.slane %v3594, 1
    %v3596 = vmax.f32 %v3594, %v3595
    %v3597 = vrot.slane %v3542, 4
    %v3598 = vmax.f32 %v3542, %v3597
    %v3599 = vrot.slane %v3598, 2
    %v3600 = vmax.f32 %v3598, %v3599
    %v3601 = vrot.slane %v3600, 1
    %v3602 = vmax.f32 %v3600, %v3601
    %v3603 = vrot.slane %v3543, 4
    %v3604 = vmax.f32 %v3543, %v3603
    %v3605 = vrot.slane %v3604, 2
    %v3606 = vmax.f32 %v3604, %v3605
    %v3607 = vrot.slane %v3606, 1
    %v3608 = vmax.f32 %v3606, %v3607
    %v3609 = vrot.slane %v3544, 4
    %v3610 = vmax.f32 %v3544, %v3609
    %v3611 = vrot.slane %v3610, 2
    %v3612 = vmax.f32 %v3610, %v3611
    %v3613 = vrot.slane %v3612, 1
    %v3614 = vmax.f32 %v3612, %v3613
    %v3615 = vrot.slane %v3545, 4
    %v3616 = vmax.f32 %v3545, %v3615
    %v3617 = vrot.slane %v3616, 2
    %v3618 = vmax.f32 %v3616, %v3617
    %v3619 = vrot.slane %v3618, 1
    %v3620 = vmax.f32 %v3618, %v3619
    %v3621 = vrot.slane %v3546, 4
    %v3622 = vmax.f32 %v3546, %v3621
    %v3623 = vrot.slane %v3622, 2
    %v3624 = vmax.f32 %v3622, %v3623
    %v3625 = vrot.slane %v3624, 1
    %v3626 = vmax.f32 %v3624, %v3625
    %v3627 = vrot.slane %v3547, 4
    %v3628 = vmax.f32 %v3547, %v3627
    %v3629 = vrot.slane %v3628, 2
    %v3630 = vmax.f32 %v3628, %v3629
    %v3631 = vrot.slane %v3630, 1
    %v3632 = vmax.f32 %v3630, %v3631
    %v3633 = vrot.slane %v3548, 4
    %v3634 = vmax.f32 %v3548, %v3633
    %v3635 = vrot.slane %v3634, 2
    %v3636 = vmax.f32 %v3634, %v3635
    %v3637 = vrot.slane %v3636, 1
    %v3638 = vmax.f32 %v3636, %v3637
    %v3639 = vrot.slane %v3549, 4
    %v3640 = vmax.f32 %v3549, %v3639
    %v3641 = vrot.slane %v3640, 2
    %v3642 = vmax.f32 %v3640, %v3641
    %v3643 = vrot.slane %v3642, 1
    %v3644 = vmax.f32 %v3642, %v3643
    %v3645 = vrot.slane %v3550, 4
    %v3646 = vmax.f32 %v3550, %v3645
    %v3647 = vrot.slane %v3646, 2
    %v3648 = vmax.f32 %v3646, %v3647
    %v3649 = vrot.slane %v3648, 1
    %v3650 = vmax.f32 %v3648, %v3649
    %v3651 = vrot.slane %v3551, 4
    %v3652 = vmax.f32 %v3551, %v3651
    %v3653 = vrot.slane %v3652, 2
    %v3654 = vmax.f32 %v3652, %v3653
    %v3655 = vrot.slane %v3654, 1
    %v3656 = vmax.f32 %v3654, %v3655
    %v3657 = vrot.slane %v3552, 4
    %v3658 = vmax.f32 %v3552, %v3657
    %v3659 = vrot.slane %v3658, 2
    %v3660 = vmax.f32 %v3658, %v3659
    %v3661 = vrot.slane %v3660, 1
    %v3662 = vmax.f32 %v3660, %v3661
    %v3663 = vrot.slane %v3553, 4
    %v3664 = vmax.f32 %v3553, %v3663
    %v3665 = vrot.slane %v3664, 2
    %v3666 = vmax.f32 %v3664, %v3665
    %v3667 = vrot.slane %v3666, 1
    %v3668 = vmax.f32 %v3666, %v3667
    %v3669 = vrot.slane %v3554, 4
    %v3670 = vmax.f32 %v3554, %v3669
    %v3671 = vrot.slane %v3670, 2
    %v3672 = vmax.f32 %v3670, %v3671
    %v3673 = vrot.slane %v3672, 1
    %v3674 = vmax.f32 %v3672, %v3673
    %v3675 = vrot.slane %v3555, 4
    %v3676 = vmax.f32 %v3555, %v3675
    %v3677 = vrot.slane %v3676, 2
    %v3678 = vmax.f32 %v3676, %v3677
    %v3679 = vrot.slane %v3678, 1
    %v3680 = vmax.f32 %v3678, %v3679
    %v3681 = vrot.slane %v3556, 4
    %v3682 = vmax.f32 %v3556, %v3681
    %v3683 = vrot.slane %v3682, 2
    %v3684 = vmax.f32 %v3682, %v3683
    %v3685 = vrot.slane %v3684, 1
    %v3686 = vmax.f32 %v3684, %v3685
    %v3687 = vrot.slane %v3557, 4
    %v3688 = vmax.f32 %v3557, %v3687
    %v3689 = vrot.slane %v3688, 2
    %v3690 = vmax.f32 %v3688, %v3689
    %v3691 = vrot.slane %v3690, 1
    %v3692 = vmax.f32 %v3690, %v3691
    %v3693 = vrot.slane %v3558, 4
    %v3694 = vmax.f32 %v3558, %v3693
    %v3695 = vrot.slane %v3694, 2
    %v3696 = vmax.f32 %v3694, %v3695
    %v3697 = vrot.slane %v3696, 1
    %v3698 = vmax.f32 %v3696, %v3697
    %v3699 = vrot.slane %v3559, 4
    %v3700 = vmax.f32 %v3559, %v3699
    %v3701 = vrot.slane %v3700, 2
    %v3702 = vmax.f32 %v3700, %v3701
    %v3703 = vrot.slane %v3702, 1
    %v3704 = vmax.f32 %v3702, %v3703
    %v3705 = vrot.slane %v3560, 4
    %v3706 = vmax.f32 %v3560, %v3705
    %v3707 = vrot.slane %v3706, 2
    %v3708 = vmax.f32 %v3706, %v3707
    %v3709 = vrot.slane %v3708, 1
    %v3710 = vmax.f32 %v3708, %v3709
    %v3711 = vrot.slane %v3561, 4
    %v3712 = vmax.f32 %v3561, %v3711
    %v3713 = vrot.slane %v3712, 2
    %v3714 = vmax.f32 %v3712, %v3713
    %v3715 = vrot.slane %v3714, 1
    %v3716 = vmax.f32 %v3714, %v3715
    %v3717 = vrot.slane %v3562, 4
    %v3718 = vmax.f32 %v3562, %v3717
    %v3719 = vrot.slane %v3718, 2
    %v3720 = vmax.f32 %v3718, %v3719
    %v3721 = vrot.slane %v3720, 1
    %v3722 = vmax.f32 %v3720, %v3721
    %v3723 = vrot.slane %v3563, 4
    %v3724 = vmax.f32 %v3563, %v3723
    %v3725 = vrot.slane %v3724, 2
    %v3726 = vmax.f32 %v3724, %v3725
    %v3727 = vrot.slane %v3726, 1
    %v3728 = vmax.f32 %v3726, %v3727
    %v3729 = vrot.slane %v3564, 4
    %v3730 = vmax.f32 %v3564, %v3729
    %v3731 = vrot.slane %v3730, 2
    %v3732 = vmax.f32 %v3730, %v3731
    %v3733 = vrot.slane %v3732, 1
    %v3734 = vmax.f32 %v3732, %v3733
    %v3735 = vrot.slane %v3565, 4
    %v3736 = vmax.f32 %v3565, %v3735
    %v3737 = vrot.slane %v3736, 2
    %v3738 = vmax.f32 %v3736, %v3737
    %v3739 = vrot.slane %v3738, 1
    %v3740 = vmax.f32 %v3738, %v3739
    %v3741 = vrot.slane %v3566, 4
    %v3742 = vmax.f32 %v3566, %v3741
    %v3743 = vrot.slane %v3742, 2
    %v3744 = vmax.f32 %v3742, %v3743
    %v3745 = vrot.slane %v3744, 1
    %v3746 = vmax.f32 %v3744, %v3745
    %v3747 = vrot.slane %v3567, 4
    %v3748 = vmax.f32 %v3567, %v3747
    %v3749 = vrot.slane %v3748, 2
    %v3750 = vmax.f32 %v3748, %v3749
    %v3751 = vrot.slane %v3750, 1
    %v3752 = vmax.f32 %v3750, %v3751
    %v3753 = vrot.slane %v3568, 4
    %v3754 = vmax.f32 %v3568, %v3753
    %v3755 = vrot.slane %v3754, 2
    %v3756 = vmax.f32 %v3754, %v3755
    %v3757 = vrot.slane %v3756, 1
    %v3758 = vmax.f32 %v3756, %v3757
    %v3759 = vrot.slane %v3569, 4
    %v3760 = vmax.f32 %v3569, %v3759
    %v3761 = vrot.slane %v3760, 2
    %v3762 = vmax.f32 %v3760, %v3761
    %v3763 = vrot.slane %v3762, 1
    %v3764 = vmax.f32 %v3762, %v3763
    %v3765 = vrot.slane %v3570, 4
    %v3766 = vmax.f32 %v3570, %v3765
    %v3767 = vrot.slane %v3766, 2
    %v3768 = vmax.f32 %v3766, %v3767
    %v3769 = vrot.slane %v3768, 1
    %v3770 = vmax.f32 %v3768, %v3769
    %v3771 = vrot.slane %v3571, 4
    %v3772 = vmax.f32 %v3571, %v3771
    %v3773 = vrot.slane %v3772, 2
    %v3774 = vmax.f32 %v3772, %v3773
    %v3775 = vrot.slane %v3774, 1
    %v3776 = vmax.f32 %v3774, %v3775
    %v3777 = vrot.slane %v3572, 4
    %v3778 = vmax.f32 %v3572, %v3777
    %v3779 = vrot.slane %v3778, 2
    %v3780 = vmax.f32 %v3778, %v3779
    %v3781 = vrot.slane %v3780, 1
    %v3782 = vmax.f32 %v3780, %v3781
    %v3783 = vrot.slane %v3573, 4
    %v3784 = vmax.f32 %v3573, %v3783
    %v3785 = vrot.slane %v3784, 2
    %v3786 = vmax.f32 %v3784, %v3785
    %v3787 = vrot.slane %v3786, 1
    %v3788 = vmax.f32 %v3786, %v3787
    %v3789 = vrot.slane %v3574, 4
    %v3790 = vmax.f32 %v3574, %v3789
    %v3791 = vrot.slane %v3790, 2
    %v3792 = vmax.f32 %v3790, %v3791
    %v3793 = vrot.slane %v3792, 1
    %v3794 = vmax.f32 %v3792, %v3793
    %v3795 = vrot.slane %v3575, 4
    %v3796 = vmax.f32 %v3575, %v3795
    %v3797 = vrot.slane %v3796, 2
    %v3798 = vmax.f32 %v3796, %v3797
    %v3799 = vrot.slane %v3798, 1
    %v3800 = vmax.f32 %v3798, %v3799
    %v3801 = vrot.slane %v3576, 4
    %v3802 = vmax.f32 %v3576, %v3801
    %v3803 = vrot.slane %v3802, 2
    %v3804 = vmax.f32 %v3802, %v3803
    %v3805 = vrot.slane %v3804, 1
    %v3806 = vmax.f32 %v3804, %v3805
    %v3807 = vrot.slane %v3577, 4
    %v3808 = vmax.f32 %v3577, %v3807
    %v3809 = vrot.slane %v3808, 2
    %v3810 = vmax.f32 %v3808, %v3809
    %v3811 = vrot.slane %v3810, 1
    %v3812 = vmax.f32 %v3810, %v3811
    %v3813 = vrot.slane %v3578, 4
    %v3814 = vmax.f32 %v3578, %v3813
    %v3815 = vrot.slane %v3814, 2
    %v3816 = vmax.f32 %v3814, %v3815
    %v3817 = vrot.slane %v3816, 1
    %v3818 = vmax.f32 %v3816, %v3817
    %v3819 = vld [vmem:[#allocation9] sm:$0xff]
    %v3820 = vld [vmem:[#allocation9 + $0x8] sm:$0xff]
    %v3821 = vld [vmem:[#allocation9 + $0x10] sm:$0xff]
    %v3822 = vld [vmem:[#allocation9 + $0x18] sm:$0xff]
    %v3823 = vld [vmem:[#allocation9 + $0x20] sm:$0xff]
    %v3824 = vld [vmem:[#allocation9 + $0x28] sm:$0xff]
    %v3825 = vld [vmem:[#allocation9 + $0x30] sm:$0xff]
    %v3826 = vld [vmem:[#allocation9 + $0x38] sm:$0xff]
    %v3827 = vld [vmem:[#allocation9 + $0x40] sm:$0xff]
    %v3828 = vld [vmem:[#allocation9 + $0x48] sm:$0xff]
    %v3829 = vld [vmem:[#allocation9 + $0x50] sm:$0xff]
    %v3830 = vld [vmem:[#allocation9 + $0x58] sm:$0xff]
    %v3831 = vld [vmem:[#allocation9 + $0x60] sm:$0xff]
    %v3832 = vld [vmem:[#allocation9 + $0x68] sm:$0xff]
    %v3833 = vld [vmem:[#allocation9 + $0x70] sm:$0xff]
    %v3834 = vld [vmem:[#allocation9 + $0x78] sm:$0xff]
    %v3835 = vld [vmem:[#allocation9 + $0x80] sm:$0xff]
    %v3836 = vld [vmem:[#allocation9 + $0x88] sm:$0xff]
    %v3837 = vld [vmem:[#allocation9 + $0x90] sm:$0xff]
    %v3838 = vld [vmem:[#allocation9 + $0x98] sm:$0xff]
    %v3839 = vld [vmem:[#allocation9 + $0xa0] sm:$0xff]
    %v3840 = vld [vmem:[#allocation9 + $0xa8] sm:$0xff]
    %v3841 = vld [vmem:[#allocation9 + $0xb0] sm:$0xff]
    %v3842 = vld [vmem:[#allocation9 + $0xb8] sm:$0xff]
    %v3843 = vld [vmem:[#allocation9 + $0xc0] sm:$0xff]
    %v3844 = vld [vmem:[#allocation9 + $0xc8] sm:$0xff]
    %v3845 = vld [vmem:[#allocation9 + $0xd0] sm:$0xff]
    %v3846 = vld [vmem:[#allocation9 + $0xd8] sm:$0xff]
    %v3847 = vld [vmem:[#allocation9 + $0xe0] sm:$0xff]
    %v3848 = vld [vmem:[#allocation9 + $0xe8] sm:$0xff]
    %v3849 = vld [vmem:[#allocation9 + $0xf0] sm:$0xff]
    %v3850 = vld [vmem:[#allocation9 + $0xf8] sm:$0xff]
    %v3851 = vld [vmem:[#allocation9 + $0x100] sm:$0xff]
    %v3852 = vld [vmem:[#allocation9 + $0x108] sm:$0xff]
    %v3853 = vld [vmem:[#allocation9 + $0x110] sm:$0xff]
    %v3854 = vld [vmem:[#allocation9 + $0x118] sm:$0xff]
    %v3855 = vld [vmem:[#allocation9 + $0x120] sm:$0xff]
    %v3856 = vld [vmem:[#allocation9 + $0x128] sm:$0xff]
    %v3857 = vld [vmem:[#allocation9 + $0x130] sm:$0xff]
    %v3858 = vld [vmem:[#allocation9 + $0x138] sm:$0xff]
    %v3859 = vld [vmem:[#allocation9 + $0x140] sm:$0xff]
    %v3860 = vld [vmem:[#allocation9 + $0x148] sm:$0xff]
    %v3861 = vld [vmem:[#allocation9 + $0x150] sm:$0xff]
    %v3862 = vld [vmem:[#allocation9 + $0x158] sm:$0xff]
    %v3863 = vld [vmem:[#allocation9 + $0x160] sm:$0xff]
    %v3864 = vld [vmem:[#allocation9 + $0x168] sm:$0xff]
    %v3865 = vld [vmem:[#allocation9 + $0x170] sm:$0xff]
    %v3866 = vld [vmem:[#allocation9 + $0x178] sm:$0xff]
    %v3867 = vld [vmem:[#allocation9 + $0x180] sm:$0xff]
    %v3868 = vld [vmem:[#allocation9 + $0x188] sm:$0xff]
    %v3869 = vld [vmem:[#allocation9 + $0x190] sm:$0xff]
    %v3870 = vld [vmem:[#allocation9 + $0x198] sm:$0xff]
    %v3871 = vld [vmem:[#allocation9 + $0x1a0] sm:$0xff]
    %v3872 = vld [vmem:[#allocation9 + $0x1a8] sm:$0xff]
    %v3873 = vld [vmem:[#allocation9 + $0x1b0] sm:$0xff]
    %v3874 = vld [vmem:[#allocation9 + $0x1b8] sm:$0xff]
    %v3875 = vld [vmem:[#allocation9 + $0x1c0] sm:$0xff]
    %v3876 = vld [vmem:[#allocation9 + $0x1c8] sm:$0xff]
    %v3877 = vld [vmem:[#allocation9 + $0x1d0] sm:$0xff]
    %v3878 = vld [vmem:[#allocation9 + $0x1d8] sm:$0xff]
    %v3879 = vld [vmem:[#allocation9 + $0x1e0] sm:$0xff]
    %v3880 = vld [vmem:[#allocation9 + $0x1e8] sm:$0xff]
    %v3881 = vld [vmem:[#allocation9 + $0x1f0] sm:$0xff]
    %v3882 = vld [vmem:[#allocation9 + $0x1f8] sm:$0xff]
    %v3883 = vld [vmem:[#allocation9 + $0x200] sm:$0xff]
    %v3884 = vld [vmem:[#allocation9 + $0x208] sm:$0xff]
    %v3885 = vld [vmem:[#allocation9 + $0x210] sm:$0xff]
    %v3886 = vld [vmem:[#allocation9 + $0x218] sm:$0xff]
    %v3887 = vld [vmem:[#allocation9 + $0x220] sm:$0xff]
    %v3888 = vld [vmem:[#allocation9 + $0x228] sm:$0xff]
    %v3889 = vld [vmem:[#allocation9 + $0x230] sm:$0xff]
    %v3890 = vld [vmem:[#allocation9 + $0x238] sm:$0xff]
    %v3891 = vld [vmem:[#allocation9 + $0x240] sm:$0xff]
    %v3892 = vld [vmem:[#allocation9 + $0x248] sm:$0xff]
    %v3893 = vld [vmem:[#allocation9 + $0x250] sm:$0xff]
    %v3894 = vld [vmem:[#allocation9 + $0x258] sm:$0xff]
    %v3895 = vld [vmem:[#allocation9 + $0x260] sm:$0xff]
    %v3896 = vld [vmem:[#allocation9 + $0x268] sm:$0xff]
    %v3897 = vld [vmem:[#allocation9 + $0x270] sm:$0xff]
    %v3898 = vld [vmem:[#allocation9 + $0x278] sm:$0xff]
    %v3899 = vld [vmem:[%s4] sm:$0x1]
    %v3901 = vlaneseq
    %v3902 = vshrl.u32 %v3901, 7
    %v3903 = vsub.s32 0, %v3902
    %v3904 = vrot.slane %v3899, %v3903
    %vm3946 = vcmask 1041409
    %v3947 = vsel %vm3946, %v3614, %v3584
    %vm3948 = vcmask 1042434
    %v3949 = vsel %vm3948, %v3644, %v3947
    %vm3950 = vcmask 1043459
    %v3951 = vsel %vm3950, %v3674, %v3949
    %vm3952 = vcmask 1044484
    %v3953 = vsel %vm3952, %v3704, %v3951
    %vm3954 = vcmask 1045509
    %v3955 = vsel %vm3954, %v3734, %v3953
    %vm3956 = vcmask 1046534
    %v3957 = vsel %vm3956, %v3764, %v3955
    %vm3958 = vcmask 1047559
    %v3959 = vsel %vm3958, %v3794, %v3957
    %v3960 = vsel %vm3946, %v3620, %v3590
    %v3961 = vsel %vm3948, %v3650, %v3960
    %v3962 = vsel %vm3950, %v3680, %v3961
    %v3963 = vsel %vm3952, %v3710, %v3962
    %v3964 = vsel %vm3954, %v3740, %v3963
    %v3965 = vsel %vm3956, %v3770, %v3964
    %v3966 = vsel %vm3958, %v3800, %v3965
    %v3967 = vsel %vm3946, %v3626, %v3596
    %v3968 = vsel %vm3948, %v3656, %v3967
    %v3969 = vsel %vm3950, %v3686, %v3968
    %v3970 = vsel %vm3952, %v3716, %v3969
    %v3971 = vsel %vm3954, %v3746, %v3970
    %v3972 = vsel %vm3956, %v3776, %v3971
    %v3973 = vsel %vm3958, %v3806, %v3972
    %v3974 = vsel %vm3946, %v3632, %v3602
    %v3975 = vsel %vm3948, %v3662, %v3974
    %v3976 = vsel %vm3950, %v3692, %v3975
    %v3977 = vsel %vm3952, %v3722, %v3976
    %v3978 = vsel %vm3954, %v3752, %v3977
    %v3979 = vsel %vm3956, %v3782, %v3978
    %v3980 = vsel %vm3958, %v3812, %v3979
    %v3981 = vsel %vm3946, %v3638, %v3608
    %v3982 = vsel %vm3948, %v3668, %v3981
    %v3983 = vsel %vm3950, %v3698, %v3982
    %v3984 = vsel %vm3952, %v3728, %v3983
    %v3985 = vsel %vm3954, %v3758, %v3984
    %v3986 = vsel %vm3956, %v3788, %v3985
    %v3987 = vsel %vm3958, %v3818, %v3986
    %3993 = vmatprep.subr.mxu0 0.0
    %3994 = vmatpush1.msra.mxu0 %v3819
    %3995 = vmatprep.subr.mxu0 0.0
    %3996 = vmatpush1.msra.mxu0 %v3820
    %3997 = vmatprep.subr.mxu0 0.0
    %3998 = vmatpush1.msra.mxu0 %v3821
    %3999 = vmatprep.subr.mxu0 0.0
    %4000 = vmatpush1.msra.mxu0 %v3822
    %4001 = vmatprep.subr.mxu0 0.0
    %4002 = vmatpush1.msra.mxu0 %v3823
    %4003 = vmatprep.subr.mxu0 0.0
    %4004 = vmatpush1.msra.mxu0 %v3824
    %4005 = vmatprep.subr.mxu0 0.0
    %4006 = vmatpush1.msra.mxu0 %v3825
    %4007 = vmatprep.subr.mxu0 0.0
    %4008 = vmatpush1.msra.mxu0 %v3826
    %4009 = vmatprep.subr.mxu0 0.0
    %4010 = vmatpush1.msra.mxu0 %v3827
    %4011 = vmatprep.subr.mxu0 0.0
    %4012 = vmatpush1.msra.mxu0 %v3828
    %4013 = vmatprep.subr.mxu0 0.0
    %4014 = vmatpush1.msra.mxu0 %v3829
    %4015 = vmatprep.subr.mxu0 0.0
    %4016 = vmatpush1.msra.mxu0 %v3830
    %4017 = vmatprep.subr.mxu0 0.0
    %4018 = vmatpush1.msra.mxu0 %v3831
    %4019 = vmatprep.subr.mxu0 0.0
    %4020 = vmatpush1.msra.mxu0 %v3832
    %4021 = vmatprep.subr.mxu0 0.0
    %4022 = vmatpush1.msra.mxu0 %v3833
    %4023 = vmatprep.subr.mxu0 0.0
    %4024 = vmatpush1.msra.mxu0 %v3834
    %4025 = vmatprep.subr.mxu0 0.0
    %4026 = vmatpush1.msra.mxu0 %v3835
    %4027 = vmatprep.subr.mxu0 0.0
    %4028 = vmatpush1.msra.mxu0 %v3836
    %4029 = vmatprep.subr.mxu0 0.0
    %4030 = vmatpush1.msra.mxu0 %v3837
    %4031 = vmatprep.subr.mxu0 0.0
    %4032 = vmatpush1.msra.mxu0 %v3838
    %4033 = vmatprep.subr.mxu0 0.0
    %4034 = vmatpush1.msra.mxu0 %v3839
    %4035 = vmatprep.subr.mxu0 0.0
    %4036 = vmatpush1.msra.mxu0 %v3840
    %4037 = vmatprep.subr.mxu0 0.0
    %4038 = vmatpush1.msra.mxu0 %v3841
    %4039 = vmatprep.subr.mxu0 0.0
    %4040 = vmatpush1.msra.mxu0 %v3842
    %4041 = vmatprep.subr.mxu0 0.0
    %4042 = vmatpush1.msra.mxu0 %v3843
    %4043 = vmatprep.subr.mxu0 0.0
    %4044 = vmatpush1.msra.mxu0 %v3844
    %4045 = vmatprep.subr.mxu0 0.0
    %4046 = vmatpush1.msra.mxu0 %v3845
    %4047 = vmatprep.subr.mxu0 0.0
    %4048 = vmatpush1.msra.mxu0 %v3846
    %4049 = vmatprep.subr.mxu0 0.0
    %4050 = vmatpush1.msra.mxu0 %v3847
    %4051 = vmatprep.subr.mxu0 0.0
    %4052 = vmatpush1.msra.mxu0 %v3848
    %4053 = vmatprep.subr.mxu0 0.0
    %4054 = vmatpush1.msra.mxu0 %v3849
    %4055 = vmatprep.subr.mxu0 0.0
    %4056 = vmatpush1.msra.mxu0 %v3850
    %4057 = vmatprep.mubr.f32.mxu0 %v3966
    %4058 = vmatmul.mubr.f32.gmra.mrb[0].mxu0 %v3959
    %v4059 = vpop.f32.mrb[0].mxu0
    %v4060 = vadd.f32 %v3904, %v4059
    %v4061 = vpop.f32.mrb[0].mxu0
    %4062 = vdwg.mxu0
    %4063 = vmatprep.subr.mxu0 0.0
    %4064 = vmatpush1.msra.mxu0 %v3851
    %4065 = vmatprep.subr.mxu0 0.0
    %4066 = vmatpush1.msra.mxu0 %v3852
    %4067 = vmatprep.subr.mxu0 0.0
    %4068 = vmatpush1.msra.mxu0 %v3853
    %4069 = vmatprep.subr.mxu0 0.0
    %4070 = vmatpush1.msra.mxu0 %v3854
    %4071 = vmatprep.subr.mxu0 0.0
    %4072 = vmatpush1.msra.mxu0 %v3855
    %4073 = vmatprep.subr.mxu0 0.0
    %4074 = vmatpush1.msra.mxu0 %v3856
    %4075 = vmatprep.subr.mxu0 0.0
    %4076 = vmatpush1.msra.mxu0 %v3857
    %4077 = vmatprep.subr.mxu0 0.0
    %4078 = vmatpush1.msra.mxu0 %v3858
    %4079 = vmatprep.subr.mxu0 0.0
    %4080 = vmatpush1.msra.mxu0 %v3859
    %4081 = vmatprep.subr.mxu0 0.0
    %4082 = vmatpush1.msra.mxu0 %v3860
    %4083 = vmatprep.subr.mxu0 0.0
    %4084 = vmatpush1.msra.mxu0 %v3861
    %4085 = vmatprep.subr.mxu0 0.0
    %4086 = vmatpush1.msra.mxu0 %v3862
    %4087 = vmatprep.subr.mxu0 0.0
    %4088 = vmatpush1.msra.mxu0 %v3863
    %4089 = vmatprep.subr.mxu0 0.0
    %4090 = vmatpush1.msra.mxu0 %v3864
    %4091 = vmatprep.subr.mxu0 0.0
    %4092 = vmatpush1.msra.mxu0 %v3865
    %4093 = vmatprep.subr.mxu0 0.0
    %4094 = vmatpush1.msra.mxu0 %v3866
    %4095 = vmatprep.subr.mxu0 0.0
    %4096 = vmatpush1.msra.mxu0 %v3867
    %4097 = vmatprep.subr.mxu0 0.0
    %4098 = vmatpush1.msra.mxu0 %v3868
    %4099 = vmatprep.subr.mxu0 0.0
    %4100 = vmatpush1.msra.mxu0 %v3869
    %4101 = vmatprep.subr.mxu0 0.0
    %4102 = vmatpush1.msra.mxu0 %v3870
    %4103 = vmatprep.subr.mxu0 0.0
    %4104 = vmatpush1.msra.mxu0 %v3871
    %4105 = vmatprep.subr.mxu0 0.0
    %4106 = vmatpush1.msra.mxu0 %v3872
    %4107 = vmatprep.subr.mxu0 0.0
    %4108 = vmatpush1.msra.mxu0 %v3873
    %4109 = vmatprep.subr.mxu0 0.0
    %4110 = vmatpush1.msra.mxu0 %v3874
    %4111 = vmatprep.subr.mxu0 0.0
    %4112 = vmatpush1.msra.mxu0 %v3875
    %4113 = vmatprep.subr.mxu0 0.0
    %4114 = vmatpush1.msra.mxu0 %v3876
    %4115 = vmatprep.subr.mxu0 0.0
    %4116 = vmatpush1.msra.mxu0 %v3877
    %4117 = vmatprep.subr.mxu0 0.0
    %4118 = vmatpush1.msra.mxu0 %v3878
    %4119 = vmatprep.subr.mxu0 0.0
    %4120 = vmatpush1.msra.mxu0 %v3879
    %4121 = vmatprep.subr.mxu0 0.0
    %4122 = vmatpush1.msra.mxu0 %v3880
    %4123 = vmatprep.subr.mxu0 0.0
    %4124 = vmatpush1.msra.mxu0 %v3881
    %4125 = vmatprep.subr.mxu0 0.0
    %4126 = vmatpush1.msra.mxu0 %v3882
    %4127 = vmatprep.mubr.f32.mxu0 %v3980
    %4128 = vmatmul.mubr.f32.gmra.mrb[0].mxu0 %v3973
    %v4129 = vpop.f32.mrb[0].mxu0
    %v4130 = vadd.f32 %v4060, %v4129
    %v4131 = vpop.f32.mrb[0].mxu0
    %4132 = vdwg.mxu0
    %4133 = vmatprep.subr.mxu0 0.0
    %4134 = vmatpush1.msra.mxu0 %v3883
    %4135 = vmatprep.subr.mxu0 0.0
    %4136 = vmatpush1.msra.mxu0 %v3884
    %4137 = vmatprep.subr.mxu0 0.0
    %4138 = vmatpush1.msra.mxu0 %v3885
    %4139 = vmatprep.subr.mxu0 0.0
    %4140 = vmatpush1.msra.mxu0 %v3886
    %4141 = vmatprep.subr.mxu0 0.0
    %4142 = vmatpush1.msra.mxu0 %v3887
    %4143 = vmatprep.subr.mxu0 0.0
    %4144 = vmatpush1.msra.mxu0 %v3888
    %4145 = vmatprep.subr.mxu0 0.0
    %4146 = vmatpush1.msra.mxu0 %v3889
    %4147 = vmatprep.subr.mxu0 0.0
    %4148 = vmatpush1.msra.mxu0 %v3890
    %4149 = vmatprep.subr.mxu0 0.0
    %4150 = vmatpush1.msra.mxu0 %v3891
    %4151 = vmatprep.subr.mxu0 0.0
    %4152 = vmatpush1.msra.mxu0 %v3892
    %4153 = vmatprep.subr.mxu0 0.0
    %4154 = vmatpush1.msra.mxu0 %v3893
    %4155 = vmatprep.subr.mxu0 0.0
    %4156 = vmatpush1.msra.mxu0 %v3894
    %4157 = vmatprep.subr.mxu0 0.0
    %4158 = vmatpush1.msra.mxu0 %v3895
    %4159 = vmatprep.subr.mxu0 0.0
    %4160 = vmatpush1.msra.mxu0 %v3896
    %4161 = vmatprep.subr.mxu0 0.0
    %4162 = vmatpush1.msra.mxu0 %v3897
    %4163 = vmatprep.subr.mxu0 0.0
    %4164 = vmatpush1.msra.mxu0 %v3898
    %4165 = vmatprep.subr.mxu0 0.0
    %4166 = vmatpush1.msra.mxu0 0.0
    %4167 = vmatprep.subr.mxu0 0.0
    %4168 = vmatpush1.msra.mxu0 0.0
    %4169 = vmatprep.subr.mxu0 0.0
    %4170 = vmatpush1.msra.mxu0 0.0
    %4171 = vmatprep.subr.mxu0 0.0
    %4172 = vmatpush1.msra.mxu0 0.0
    %4173 = vmatprep.subr.mxu0 0.0
    %4174 = vmatpush1.msra.mxu0 0.0
    %4175 = vmatprep.subr.mxu0 0.0
    %4176 = vmatpush1.msra.mxu0 0.0
    %4177 = vmatprep.subr.mxu0 0.0
    %4178 = vmatpush1.msra.mxu0 0.0
    %4179 = vmatprep.subr.mxu0 0.0
    %4180 = vmatpush1.msra.mxu0 0.0
    %4181 = vmatprep.subr.mxu0 0.0
    %4182 = vmatpush1.msra.mxu0 0.0
    %4183 = vmatprep.subr.mxu0 0.0
    %4184 = vmatpush1.msra.mxu0 0.0
    %4185 = vmatprep.subr.mxu0 0.0
    %4186 = vmatpush1.msra.mxu0 0.0
    %4187 = vmatprep.subr.mxu0 0.0
    %4188 = vmatpush1.msra.mxu0 0.0
    %4189 = vmatprep.subr.mxu0 0.0
    %4190 = vmatpush1.msra.mxu0 0.0
    %4191 = vmatprep.subr.mxu0 0.0
    %4192 = vmatpush1.msra.mxu0 0.0
    %4193 = vmatprep.subr.mxu0 0.0
    %4194 = vmatpush1.msra.mxu0 0.0
    %4195 = vmatprep.subr.mxu0 0.0
    %4196 = vmatpush1.msra.mxu0 0.0
    %4197 = vmatprep.mubr.f32.mxu0 0.0
    %4198 = vmatmul.mubr.f32.gmra.mrb[0].mxu0 %v3987
    %v4199 = vpop.f32.mrb[0].mxu0
    %v4200 = vadd.f32 %v4130, %v4199
    %v4201 = vpop.f32.mrb[0].mxu0
    %4202 = vdwg.mxu0
    %4203 = vst [vmem:[#allocation11] sm:$0xff] %v4200
    // Predicated region
    $region38: #{tpu_custom_call.1} parent=1 // pred_check
      _
    $region39: #{tpu_custom_call.1} parent=1 // pred_check_branch
      %4205 = sbr.rel (0) target = $region41
    $region40: #{tpu_custom_call.1} parent=1 // pred_region
      %s4207 = ssub.s32 128, 128
      %4208 = vsyncadd [#allocation5], %s4207
      %s4210 = sshll.u32 [#allocation11], 4
      %s4211 = int_to_ptr.vmem [resolvable:$true] %s4210
      %4213 = dma.vmem_to_hbm [thread:$0]  %s4211, 128, %s5, [#allocation5]
    $region41: #{tpu_custom_call.1} parent=1 // pred_fallthru
      _
    // Predicated region
    $region42: #{tpu_custom_call.1} parent=1 // pred_check
      _
    $region43: #{tpu_custom_call.1} parent=1 // pred_check_branch
      %4215 = sbr.rel (0) target = $region45
    $region44: #{tpu_custom_call.1} parent=1 // pred_region
      %4216 = dma.done [#allocation5], 128
    $region45: #{tpu_custom_call.1} parent=1 // pred_fallthru
      _
    %4217 = vsyncpa [#allocation4], 1
    %4218 = vsyncpa [#allocation7], 1
    %4219 = vsyncpa [#allocation10], 1
    %4220 = vsyncpa [#allocation5], 1

</llo_original>
